<compile_context>
chip_gen: v6e
topology: v6e:2x2x1
jax: 0.10.0
libtpu: 0.0.40
codegen_flags: <defaults>
</compile_context>

<pallas_src>
import functools
import math

import jax
import jax.numpy as jnp
from jax import lax
from jax.experimental import pallas as pl
from jax.experimental.pallas import tpu as pltpu

VMEM = pltpu.MemorySpace.VMEM

# Row tile for the (B*W)-row GEMMs.  Multiple of 8; sized for the 128 MiB VMEM
# parts -- halve (or re-derive) for v7x's 64 MiB VMEM if blocks grow.
ROW_TILE = 256
VMEM_LIMIT = 48 * 1024 * 1024   # explicit scoped-VMEM budget (raises v5e's 16 MiB default)


def _cparams(*sem):
    return pltpu.CompilerParams(
        dimension_semantics=sem if sem else None,
        vmem_limit_bytes=VMEM_LIMIT)


def _pick_row_tile(n, target=ROW_TILE):
    """Largest multiple-of-8 divisor of n that is <= target (else whole n)."""
    if n <= target:
        return n
    t = (target // 8) * 8
    while t >= 8:
        if n % t == 0:
            return t
        t -= 8
    return n


def _mxdot(a, b):
    """MXU matmul with bf16 inputs and float32 accumulation."""
    return jnp.dot(a.astype(jnp.bfloat16), b.astype(jnp.bfloat16),
                   preferred_element_type=jnp.float32)


def _l2n(x):
    """Row L2 normalisation (torch x/(||x||+1e-30)) via EUP rsqrt."""
    return x * lax.rsqrt(jnp.sum(x * x, axis=-1, keepdims=True) + 1e-30)


# ---------------------------------------------------------------------------
# Kernels
# ---------------------------------------------------------------------------
def _attention_kernel(hid_ref, enc_ref, mask_ref, wh_ref, we_ref, b_ref,
                      v_ref, bv_ref, w_ref, ctx_ref):
    """Fused additive-attention scorer + softmax + weighted context."""
    h = hid_ref[0]                                           # (1, H)
    enc = enc_ref[0, 0]                                      # (L, H)
    e = jnp.tanh(_mxdot(enc, we_ref[...]) + _mxdot(h, wh_ref[...]) + b_ref[...])
    # H->1 projection on the VPU (multiply + lane reduce), not a 1-wide MXU matmul.
    s = jnp.sum(e * v_ref[...], axis=-1, keepdims=True) + bv_ref[...]   # (L, 1)
    masked = mask_ref[0, 0] > 0.5
    s = jnp.where(masked, -jnp.inf, s)
    smax = jnp.max(s, axis=0, keepdims=True)
    p = jnp.exp(s - smax)
    w = p * pl.reciprocal(jnp.sum(p, axis=0, keepdims=True), approx=True)
    w_ref[0, 0] = w.astype(w_ref.dtype)
    ctx_ref[0, 0] = jnp.sum(w * enc, axis=0, keepdims=True).astype(ctx_ref.dtype)


def _prep_adj_kernel(ww_ref, wem_ref, dep_ref, opt_ref, gw_ref,
                     aww_ref, adep_ref, aop_ref, agw_ref):
    """Row-normalise all graph adjacencies once; store bf16 for MXU reuse."""
    def norm(a):
        cnt = jnp.sum((a != 0.0).astype(jnp.float32), axis=-1, keepdims=True)
        return (a * pl.reciprocal(cnt + 1e-30, approx=True)).astype(jnp.bfloat16)

    aww_ref[0] = norm(ww_ref[0] * wem_ref[0])
    adep_ref[0] = norm(dep_ref[0])
    aop_ref[0] = norm(opt_ref[0])
    agw_ref[0] = norm(gw_ref[0])


def _bottom2up_kernel(aw_ref, nh_ref, gcol_ref, op_ref,
                      adjww_ref, adjdep_ref, adjop_ref,
                      wgw_ref, bgw_ref, wwk_ref, bwk_ref, wws_ref, bws_ref,
                      wf_ref, bf_ref, wu_ref, bu_ref,
                      wwo_ref, bwo_ref, wf2_ref, bf2_ref, wlo_ref, blo_ref,
                      word_out_ref, op_out_ref, *, H, ft):
    aw = aw_ref[0]                                           # (W, H)
    nh = nh_ref[0]                                           # (1, H)
    gcol = gcol_ref[0]                                       # (W, 1)
    op = op_ref[0]                                           # (O, H)

    # goal-conditioned word feature
    gt = _mxdot(nh, wgw_ref[...]) + bgw_ref[...]             # (1, H)
    word_g = _l2n(gt * gcol)                                 # (W, H)

    # knowledge / syntax neighbours (precomputed row-normalised adjacencies)
    wkt = _mxdot(aw, wwk_ref[...]) + bwk_ref[...]
    word_k = _l2n(_mxdot(adjww_ref[0], wkt))
    wst = _mxdot(aw, wws_ref[...]) + bws_ref[...]
    word_s = _l2n(_mxdot(adjdep_ref[0], wst))

    # fused forget/update gates: partial dots against row-slices of the
    # concatenated weights (no HBM-materialised concat).
    f = jax.nn.sigmoid(
        _mxdot(aw, wf_ref[0:H]) + _mxdot(word_g, wf_ref[H:2 * H])
        + _mxdot(word_k, wf_ref[2 * H:3 * H]) + _mxdot(word_s, wf_ref[3 * H:4 * H])
        + bf_ref[...])
    u = jnp.maximum(
        _mxdot(word_g, wu_ref[0:H]) + _mxdot(word_k, wu_ref[H:2 * H])
        + _mxdot(word_s, wu_ref[2 * H:3 * H]) + bu_ref[...], 0.0)
    word_updated = jnp.maximum(f, ft) * aw + (1.0 - f) * u
    word_out_ref[0] = word_updated.astype(word_out_ref.dtype)

    # word -> operator aggregation + operator gate
    wo_lin = _mxdot(word_updated, wwo_ref[...]) + bwo_ref[...]
    word_op = _mxdot(adjop_ref[0], wo_lin)                   # (O, H)
    f2 = jax.nn.sigmoid(_mxdot(op, wf2_ref[0:H]) + _mxdot(word_op, wf2_ref[H:2 * H])
                        + bf2_ref[...])
    u2 = jnp.maximum(_mxdot(word_op, wlo_ref[...]) + blo_ref[...], 0.0)
    op_out_ref[0] = (jnp.maximum(f2, ft) * op + (1.0 - f2) * u2).astype(op_out_ref.dtype)


def _update_graph_kernel(aw_ref, op_ref, old_ref,
                         wfw_ref, wfo_ref, bfg_ref,
                         wrw_ref, wro_ref, brl_ref,
                         wuo_ref, wur_ref, bup_ref,
                         out_ref, *, O, ft):
    awn = _l2n(aw_ref[0])                                    # (tw, H)
    opn = _l2n(op_ref[0])                                    # (O, H)
    old = old_ref[0]                                         # (tw, O)

    # contribution of the flattened operator embedding (same for every word
    # row) computed in-kernel -- replaces the (B, W, O*H) broadcast + concat.
    cf = bfg_ref[...]
    cr = brl_ref[...]
    for o in range(O):
        row = opn[o:o + 1, :]                                # (1, H)
        cf = cf + _mxdot(row, wfo_ref[o])
        cr = cr + _mxdot(row, wro_ref[o])

    f = jax.nn.sigmoid(_mxdot(awn, wfw_ref[...]) + cf)       # (tw, O)
    rel = _mxdot(awn, wrw_ref[...]) + cr
    u = jnp.maximum(_mxdot(old, wuo_ref[...]) + _mxdot(rel, wur_ref[...])
                    + bup_ref[...], 0.0)
    u = u - jnp.max(u, axis=-1, keepdims=True)
    e = jnp.exp(u)
    u = e * pl.reciprocal(jnp.sum(e, axis=-1, keepdims=True), approx=True)
    fc = jnp.maximum(f, ft)                                  # clipped forget used in BOTH terms
    out_ref[0] = (fc * old + (1.0 - fc) * u).astype(out_ref.dtype)


def _up2bottom_kernel(aw_ref, nh_ref, op_ref, wop_ref,
                      adjww_ref, adjdep_ref, gadj_ref,
                      wow_ref, bow_ref, wwk_ref, bwk_ref, wws_ref, bws_ref,
                      wu_ref, bu_ref, wwg_ref, bwg_ref, wf_ref, bf_ref,
                      out_ref, *, H, ft):
    aw = aw_ref[0]                                           # (W, H)
    nh = nh_ref[0]                                           # (1, H)
    op = op_ref[0]                                           # (O, H)
    wop = wop_ref[0]                                         # (W, O)

    word_o = _l2n(_mxdot(wop, _mxdot(op, wow_ref[...]) + bow_ref[...]))
    wkt = _mxdot(aw, wwk_ref[...]) + bwk_ref[...]
    word_k = _l2n(_mxdot(adjww_ref[0], wkt))
    wst = _mxdot(aw, wws_ref[...]) + bws_ref[...]
    word_s = _l2n(_mxdot(adjdep_ref[0], wst))

    word_upd = jnp.maximum(
        _mxdot(word_o, wu_ref[0:H]) + _mxdot(word_k, wu_ref[H:2 * H])
        + _mxdot(word_s, wu_ref[2 * H:3 * H]) + bu_ref[...], 0.0)       # (W, H)

    goal_w = _mxdot(gadj_ref[0], word_upd)                              # (1, H)
    goal_upd = jnp.maximum(_mxdot(goal_w, wwg_ref[...]) + bwg_ref[...], 0.0)
    f = jax.nn.sigmoid(_mxdot(goal_w, wf_ref[0:H]) + _mxdot(nh, wf_ref[H:2 * H])
                       + bf_ref[...])
    out_ref[0] = (jnp.maximum(f, ft) * nh + (1.0 - f) * goal_upd).astype(out_ref.dtype)


def _score_kernel(hid_ref, ctx_ref, tok_ref, wh_ref, wc_ref, wt_ref,
                  b1_ref, v_ref, b2_ref, out_ref):
    """ScoreModel: leaky_relu([hid|ctx|tok] @ W1 + b1) projected to a scalar."""
    base = _mxdot(hid_ref[0], wh_ref[...]) + _mxdot(ctx_ref[0], wc_ref[...]) + b1_ref[...]
    h = _mxdot(tok_ref[0], wt_ref[...]) + base               # (C, H)
    h = jnp.where(h >= 0.0, h, 0.01 * h)                     # F.leaky_relu default slope
    s = jnp.sum(h * v_ref[...], axis=-1, keepdims=True) + b2_ref[...]   # (C, 1)
    out_ref[0] = s.astype(out_ref.dtype)


def _gen_prob_kernel(hid_ref, ctx_ref, wh_ref, wc_ref, b_ref, out_ref):
    s = (jnp.sum(hid_ref[...] * wh_ref[...], axis=-1, keepdims=True)
         + jnp.sum(ctx_ref[...] * wc_ref[...], axis=-1, keepdims=True)
         + b_ref[...])
    out_ref[...] = jax.nn.sigmoid(s).astype(out_ref.dtype)


# ---------------------------------------------------------------------------
# pallas_call wrappers
# ---------------------------------------------------------------------------
def hierarchical_scores(pa, pv, hid3, enc, maskf):
    """Attention weights + weighted context for every (batch, group)."""
    B, S, L, H = enc.shape
    w, ctx = pl.pallas_call(
        _attention_kernel,
        grid=(B, S),
        in_specs=[
            pl.BlockSpec((1, 1, H), lambda b, s: (b, 0, 0)),
            pl.BlockSpec((1, 1, L, H), lambda b, s: (b, s, 0, 0)),
            pl.BlockSpec((1, 1, L, 1), lambda b, s: (b, s, 0, 0)),
            pl.BlockSpec((H, H), lambda b, s: (0, 0)),
            pl.BlockSpec((H, H), lambda b, s: (0, 0)),
            pl.BlockSpec((1, H), lambda b, s: (0, 0)),
            pl.BlockSpec((1, H), lambda b, s: (0, 0)),
            pl.BlockSpec((1, 1), lambda b, s: (0, 0)),
        ],
        out_specs=[
            pl.BlockSpec((1, 1, L, 1), lambda b, s: (b, s, 0, 0)),
            pl.BlockSpec((1, 1, 1, H), lambda b, s: (b, s, 0, 0)),
        ],
        out_shape=[jax.ShapeDtypeStruct((B, S, L, 1), jnp.float32),
                   jax.ShapeDtypeStruct((B, S, 1, H), jnp.float32)],
        compiler_params=_cparams("parallel", "parallel"),
    )(hid3, enc, maskf, pa["Wh"], pa["We"], pa["b"], pv["v"], pv["b"])
    return w[..., 0], ctx[:, :, 0, :]


def hierarchical_attention(q, node_hidden3, span_output, word_outputs,
                           span_mask, word_masks):
    # TODO(synk): HierarchicalAttention source was not provided with the module;
    # implemented as standard additive span-over-word attention with the
    # expected (context, goal_word) output shapes.
    B, S, H = span_output.shape
    lengths = [wo.shape[1] for wo in word_outputs]
    Lmax = max(lengths)
    word_stack = jnp.stack(
        [jnp.pad(wo, ((0, 0), (0, Lmax - L), (0, 0)))
         for wo, L in zip(word_outputs, lengths)], axis=1)                # (B,S,Lmax,H)
    word_maskf = jnp.stack(
        [jnp.pad(m.astype(jnp.float32), ((0, 0), (0, Lmax - L)),
                 constant_values=1.0)
         for m, L in zip(word_masks, lengths)], axis=1)[..., None]        # (B,S,Lmax,1)

    word_w, word_ctx = hierarchical_scores(
        q["attn_word"], q["attn_word_v"], node_hidden3, word_stack, word_maskf)
    span_w, _ = hierarchical_scores(
        q["attn_span"], q["attn_span_v"], node_hidden3,
        span_output[:, None], span_mask.astype(jnp.float32)[:, None, :, None])
    span_w = span_w[:, 0, :]                                              # (B, S)
    context = jnp.einsum("bs,bsh->bh", span_w, word_ctx)                  # (B, H)
    goal_word = jnp.concatenate(
        [span_w[:, i:i + 1] * word_w[:, i, :L] for i, L in enumerate(lengths)],
        axis=1)                                                           # (B, W)
    return context[:, None, :], goal_word


def prep_adjacency(word_word, word_exist_matrix, dep_bd, op_t, gw_raw):
    B, W, _ = word_word.shape
    O = op_t.shape[1]
    bspec = lambda *rest: pl.BlockSpec((1,) + rest, lambda b: (b,) + (0,) * len(rest))
    return pl.pallas_call(
        _prep_adj_kernel,
        grid=(B,),
        in_specs=[bspec(W, W), bspec(W, W), bspec(W, W), bspec(O, W), bspec(1, W)],
        out_specs=[bspec(W, W), bspec(W, W), bspec(O, W), bspec(1, W)],
        out_shape=[jax.ShapeDtypeStruct((B, W, W), jnp.bfloat16),
                   jax.ShapeDtypeStruct((B, W, W), jnp.bfloat16),
                   jax.ShapeDtypeStruct((B, O, W), jnp.bfloat16),
                   jax.ShapeDtypeStruct((B, 1, W), jnp.bfloat16)],
        compiler_params=_cparams("parallel"),
    )(word_word, word_exist_matrix, dep_bd, op_t, gw_raw)


def bottom2up(q, all_word, nh3, goal_col, op_emb, adj_ww, adj_dep, adj_op, ft):
    B, W, H = all_word.shape
    O = op_emb.shape[1]
    b2u = q["b2u"]
    bspec = lambda *rest: pl.BlockSpec((1,) + rest, lambda b: (b,) + (0,) * len(rest))
    cspec = lambda *shape: pl.BlockSpec(shape, lambda b: (0,) * len(shape))
    in_specs = [
        bspec(W, H), bspec(1, H), bspec(W, 1), bspec(O, H),
        bspec(W, W), bspec(W, W), bspec(O, W),
        cspec(H, H), cspec(1, H),              # g_w
        cspec(H, H), cspec(1, H),              # w_w_k
        cspec(H, H), cspec(1, H),              # w_w_s
        cspec(4 * H, H), cspec(1, H),          # forget_gate
        cspec(3 * H, H), cspec(1, H),          # w_update
        cspec(H, H), cspec(1, H),              # w_o
        cspec(2 * H, H), cspec(1, H),          # forget_gate2
        cspec(H, H), cspec(1, H),              # linear_output
    ]
    return pl.pallas_call(
        functools.partial(_bottom2up_kernel, H=H, ft=ft),
        grid=(B,),
        in_specs=in_specs,
        out_specs=[bspec(W, H), bspec(O, H)],
        out_shape=[jax.ShapeDtypeStruct((B, W, H), jnp.float32),
                   jax.ShapeDtypeStruct((B, O, H), jnp.float32)],
        compiler_params=_cparams("parallel"),
    )(all_word, nh3, goal_col, op_emb, adj_ww, adj_dep, adj_op,
      b2u["w_gw"], b2u["b_gw"],
      q["w_w_k"]["W"], q["w_w_k"]["b"],
      q["w_w_s"]["W"], q["w_w_s"]["b"],
      b2u["w_f"], b2u["b_f"],
      q["w_update"]["W"], q["w_update"]["b"],
      b2u["w_wo"], b2u["b_wo"],
      b2u["w_f2"], b2u["b_f2"],
      b2u["w_lo"], b2u["b_lo"])


def update_graph(ug, word_updated, op_new, word_operator_old, ft):
    B, W, H = word_updated.shape
    O = op_new.shape[1]
    tw = _pick_row_tile(W)
    grid = (B, W // tw)
    row = lambda *rest: pl.BlockSpec((1, tw) + rest, lambda b, t: (b, t) + (0,) * len(rest))
    per_b = lambda *rest: pl.BlockSpec((1,) + rest, lambda b, t: (b,) + (0,) * len(rest))
    cst = lambda *shape: pl.BlockSpec(shape, lambda b, t: (0,) * len(shape))
    return pl.pallas_call(
        functools.partial(_update_graph_kernel, O=O, ft=ft),
        grid=grid,
        in_specs=[row(H), per_b(O, H), row(O),
                  cst(H, O), cst(O, H, O), cst(1, O),
                  cst(H, O), cst(O, H, O), cst(1, O),
                  cst(O, O), cst(O, O), cst(1, O)],
        out_specs=row(O),
        out_shape=jax.ShapeDtypeStruct((B, W, O), jnp.float32),
        compiler_params=_cparams("parallel", "parallel"),
    )(word_updated, op_new, word_operator_old,
      ug["wf_w"], ug["wf_o"], ug["b_f"],
      ug["wr_w"], ug["wr_o"], ug["b_r"],
      ug["wu_old"], ug["wu_rel"], ug["b_u"])


def up2bottom(q, word_updated, nh3, op_new, word_operator_new,
              adj_ww, adj_dep, adj_goal, ft):
    B, W, H = word_updated.shape
    O = op_new.shape[1]
    u2b = q["u2b"]
    bspec = lambda *rest: pl.BlockSpec((1,) + rest, lambda b: (b,) + (0,) * len(rest))
    cspec = lambda *shape: pl.BlockSpec(shape, lambda b: (0,) * len(shape))
    out = pl.pallas_call(
        functools.partial(_up2bottom_kernel, H=H, ft=ft),
        grid=(B,),
        in_specs=[bspec(W, H), bspec(1, H), bspec(O, H), bspec(W, O),
                  bspec(W, W), bspec(W, W), bspec(1, W),
                  cspec(H, H), cspec(1, H),          # o_w
                  cspec(H, H), cspec(1, H),          # w_w_k
                  cspec(H, H), cspec(1, H),          # w_w_s
                  cspec(3 * H, H), cspec(1, H),      # w_update
                  cspec(H, H), cspec(1, H),          # w_g
                  cspec(2 * H, H), cspec(1, H)],     # forget_gate
        out_specs=bspec(1, H),
        out_shape=jax.ShapeDtypeStruct((B, 1, H), jnp.float32),
        compiler_params=_cparams("parallel"),
    )(word_updated, nh3, op_new, word_operator_new, adj_ww, adj_dep, adj_goal,
      u2b["w_ow"], u2b["b_ow"],
      q["w_w_k"]["W"], q["w_w_k"]["b"],
      q["w_w_s"]["W"], q["w_w_s"]["b"],
      q["w_update"]["W"], q["w_update"]["b"],
      u2b["w_wg"], u2b["b_wg"],
      u2b["w_f"], u2b["b_f"])
    return out[:, 0, :]


def score_model(ps, hid3, ctx3, tok):
    # TODO(synk): tile over the class axis C if it ever grows past a few hundred
    # rows; at the shapes this model produces a single per-batch block suffices.
    B, C, H = tok.shape
    out = pl.pallas_call(
        _score_kernel,
        grid=(B,),
        in_specs=[
            pl.BlockSpec((1, 1, H), lambda b: (b, 0, 0)),
            pl.BlockSpec((1, 1, H), lambda b: (b, 0, 0)),
            pl.BlockSpec((1, C, H), lambda b: (b, 0, 0)),
            pl.BlockSpec((H, H), lambda b: (0, 0)),
            pl.BlockSpec((H, H), lambda b: (0, 0)),
            pl.BlockSpec((H, H), lambda b: (0, 0)),
            pl.BlockSpec((1, H), lambda b: (0, 0)),
            pl.BlockSpec((1, H), lambda b: (0, 0)),
            pl.BlockSpec((1, 1), lambda b: (0, 0)),
        ],
        out_specs=pl.BlockSpec((1, C, 1), lambda b: (b, 0, 0)),
        out_shape=jax.ShapeDtypeStruct((B, C, 1), jnp.float32),
        compiler_params=_cparams("parallel"),
    )(hid3, ctx3, tok, ps["Wh"], ps["Wc"], ps["Wt"], ps["b1"], ps["v"], ps["b2"])
    return out[..., 0]


def gen_prob(pg, hidden, context):
    B = hidden.shape[0]
    return pl.pallas_call(
        _gen_prob_kernel,
        out_shape=jax.ShapeDtypeStruct((B, 1), jnp.float32),
        in_specs=[pl.BlockSpec(memory_space=VMEM)] * 5,
        out_specs=pl.BlockSpec(memory_space=VMEM),
        compiler_params=_cparams(),
    )(hidden, context, pg["wh"], pg["wc"], pg["b"])


def get_pointer_embedding(pointer_num_pos, encoder_outputs):
    L = encoder_outputs.shape[1]
    idx = jnp.clip(pointer_num_pos, 0, L - 1)
    emb = jnp.take_along_axis(encoder_outputs, idx[..., None], axis=1)
    return emb * (pointer_num_pos != -1)[..., None].astype(encoder_outputs.dtype)


def _block_diag(mats, W):
    """Batched block-diagonal (B, W, W) from per-span (B, L_i, L_i) matrices."""
    pieces, off = [], 0
    for m in mats:
        L = m.shape[1]
        pieces.append(jnp.pad(m, ((0, 0), (0, 0), (off, W - off - L))))
        off += L
    return jnp.concatenate(pieces, axis=1)


# ---------------------------------------------------------------------------
# Parameters (deterministic, PyTorch-Linear-style uniform init)
# ---------------------------------------------------------------------------
def _linear_init(key, fan_in, fan_out):
    kw, kb = jax.random.split(key)
    bound = 1.0 / math.sqrt(fan_in)
    return {"W": jax.random.uniform(kw, (fan_in, fan_out), jnp.float32, -bound, bound),
            "b": jax.random.uniform(kb, (fan_out,), jnp.float32, -bound, bound)}


def init_params(key, hidden_size, op_num):
    H = hidden_size
    ks = iter(jax.random.split(key, 32))
    p = {}
    p["attn_span"] = _linear_init(next(ks), 2 * H, H)
    p["attn_span_v"] = _linear_init(next(ks), H, 1)
    p["attn_word"] = _linear_init(next(ks), 2 * H, H)
    p["attn_word_v"] = _linear_init(next(ks), H, 1)
    p["sp_w"] = _linear_init(next(ks), 3 * H, H)
    p["sp_s"] = _linear_init(next(ks), H, 1)
    p["sg_w"] = _linear_init(next(ks), 3 * H, H)
    p["sg_s"] = _linear_init(next(ks), H, 1)
    p["gen_prob"] = _linear_init(next(ks), 2 * H, 1)
    p["w_w_s"] = _linear_init(next(ks), H, H)
    p["w_w_k"] = _linear_init(next(ks), H, H)
    p["w_update"] = _linear_init(next(ks), 3 * H, H)
    p["b2u_g_w"] = _linear_init(next(ks), H, H)
    p["b2u_w_o"] = _linear_init(next(ks), H, H)
    p["b2u_forget"] = _linear_init(next(ks), 3 * H + H, H)
    p["b2u_forget2"] = _linear_init(next(ks), 2 * H, H)
    p["b2u_linout"] = _linear_init(next(ks), H, H)
    p["u2b_o_w"] = _linear_init(next(ks), H, H)
    p["u2b_w_g"] = _linear_init(next(ks), H, H)
    p["u2b_forget"] = _linear_init(next(ks), 2 * H, H)
    p["w_o_forget"] = _linear_init(next(ks), H + op_num * H, op_num)
    p["w_o_rel"] = _linear_init(next(ks), H + op_num * H, op_num)
    p["w_o_update"] = _linear_init(next(ks), 2 * op_num, op_num)
    return p


def prepare_params(p, hidden_size, op_num):
    """Split concatenated weights into per-piece slices, cast matmul weights to
    bf16 (float32 accumulation happens in-kernel) and reshape biases to rows."""
    H, O = hidden_size, op_num
    bf = lambda w: w.astype(jnp.bfloat16)
    brow = lambda b: b.reshape(1, -1).astype(jnp.float32)
    q = {}

    for name in ("attn_span", "attn_word"):
        W = p[name]["W"]
        q[name] = {"Wh": bf(W[:H]), "We": bf(W[H:]), "b": brow(p[name]["b"])}
        v = p[name + "_v"]
        q[name + "_v"] = {"v": v["W"].reshape(1, H).astype(jnp.float32),
                          "b": v["b"].reshape(1, 1).astype(jnp.float32)}

    for wname, sname, out in (("sp_w", "sp_s", "score_pointer"),
                              ("sg_w", "sg_s", "score_generator")):
        W = p[wname]["W"]
        q[out] = {"Wh": bf(W[:H]), "Wc": bf(W[H:2 * H]), "Wt": bf(W[2 * H:]),
                  "b1": brow(p[wname]["b"]),
                  "v": p[sname]["W"].reshape(1, H).astype(jnp.float32),
                  "b2": p[sname]["b"].reshape(1, 1).astype(jnp.float32)}

    Wg = p["gen_prob"]["W"]
    q["gen_prob"] = {"wh": Wg[:H].reshape(1, H).astype(jnp.float32),
                     "wc": Wg[H:].reshape(1, H).astype(jnp.float32),
                     "b": p["gen_prob"]["b"].reshape(1, 1).astype(jnp.float32)}

    for name in ("w_w_s", "w_w_k", "w_update"):
        q[name] = {"W": bf(p[name]["W"]), "b": brow(p[name]["b"])}

    q["b2u"] = {"w_gw": bf(p["b2u_g_w"]["W"]), "b_gw": brow(p["b2u_g_w"]["b"]),
                "w_f": bf(p["b2u_forget"]["W"]), "b_f": brow(p["b2u_forget"]["b"]),
                "w_wo": bf(p["b2u_w_o"]["W"]), "b_wo": brow(p["b2u_w_o"]["b"]),
                "w_f2": bf(p["b2u_forget2"]["W"]), "b_f2": brow(p["b2u_forget2"]["b"]),
                "w_lo": bf(p["b2u_linout"]["W"]), "b_lo": brow(p["b2u_linout"]["b"])}

    q["u2b"] = {"w_ow": bf(p["u2b_o_w"]["W"]), "b_ow": brow(p["u2b_o_w"]["b"]),
                "w_wg": bf(p["u2b_w_g"]["W"]), "b_wg": brow(p["u2b_w_g"]["b"]),
                "w_f": bf(p["u2b_forget"]["W"]), "b_f": brow(p["u2b_forget"]["b"])}

    Wf, Wr = p["w_o_forget"]["W"], p["w_o_rel"]["W"]
    Wu = p["w_o_update"]["W"]
    q["ug"] = {"wf_w": bf(Wf[:H]), "wf_o": bf(Wf[H:].reshape(O, H, O)),
               "b_f": brow(p["w_o_forget"]["b"]),
               "wr_w": bf(Wr[:H]), "wr_o": bf(Wr[H:].reshape(O, H, O)),
               "b_r": brow(p["w_o_rel"]["b"]),
               "wu_old": bf(Wu[:O]), "wu_rel": bf(Wu[O:]),
               "b_u": brow(p["w_o_update"]["b"])}
    return q


# ---------------------------------------------------------------------------
# Forward pass
# ---------------------------------------------------------------------------
@functools.partial(jax.jit, static_argnames=("ft", "class_size"))
def predict_model_forward(q, node_hidden, encoder_outputs, graph_adjs, masks,
                          meta_value, *, ft, class_size):
    span_output, word_outputs = encoder_outputs
    span_mask, word_masks, word_exist_sequence, word_exist_matrix = masks
    word_operator, word_word, depend_relation = graph_adjs
    (pointer_mask, word_pointer_num_poses,
     non_op_generator_embedding, op_embedding) = meta_value

    B, H = node_hidden.shape
    lengths = [wo.shape[1] for wo in word_outputs]
    W = sum(lengths)
    nh3 = node_hidden.reshape(B, 1, H)          # dropout == identity (eval mode)

    # ---- hierarchical attention ----
    output_attn, goal_word = hierarchical_attention(
        q, nh3, span_output, word_outputs, span_mask, word_masks)
    context = output_attn[:, 0, :]

    # ---- normalised adjacencies: computed once, reused by both HGCN passes ----
    dep_bd = _block_diag(depend_relation, W)
    op_t = jnp.swapaxes(word_exist_sequence[:, :, None] * word_operator, 1, 2)
    gw_raw = (goal_word * word_exist_sequence)[:, None, :]
    adj_ww, adj_dep, adj_op, adj_goal = prep_adjacency(
        word_word, word_exist_matrix, dep_bd, op_t, gw_raw)

    # ---- HGCN ----
    all_word = jnp.concatenate(word_outputs, axis=1)
    word_updated, op_new = bottom2up(
        q, all_word, nh3, goal_word.reshape(B, W, 1), op_embedding,
        adj_ww, adj_dep, adj_op, ft)
    word_operator_new = update_graph(q["ug"], word_updated, op_new,
                                     word_operator, ft)
    goal_next = up2bottom(q, word_updated, nh3, op_new, word_operator_new,
                          adj_ww, adj_dep, adj_goal, ft)

    # ---- pointer / generator scoring ----
    word_outputs2, off = [], 0
    for L in lengths:
        word_outputs2.append(word_updated[:, off:off + L, :])
        off += L
    pointer_embedding = sum(
        get_pointer_embedding(pos, wo)
        for wo, pos in zip(word_outputs2, word_pointer_num_poses))
    generator_embedding = jnp.concatenate(
        [op_new, non_op_generator_embedding], axis=1)
    all_embedding = jnp.concatenate(
        [generator_embedding, pointer_embedding], axis=1)

    ctx3 = context.reshape(B, 1, H)
    pointer_score = score_model(q["score_pointer"], nh3, ctx3, pointer_embedding)
    pointer_score = jnp.where(pointer_mask, -jnp.inf, pointer_score)
    pointer_prob = jax.nn.softmax(pointer_score, axis=-1)
    generator_score = score_model(q["score_generator"], nh3, ctx3,
                                  generator_embedding)
    generator_prob = jax.nn.softmax(generator_score, axis=-1)
    gen_p = gen_prob(q["gen_prob"], node_hidden, context)

    prob = jnp.concatenate(
        [gen_p * generator_prob, (1.0 - gen_p) * pointer_prob], axis=-1)
    pad = jnp.zeros((B, class_size - prob.shape[-1]), prob.dtype)
    prob = jnp.concatenate([prob, pad], axis=-1)
    output = jnp.log(prob + 1e-30)
    embedding_masks = (pointer_mask, pointer_embedding,
                       generator_embedding, all_embedding)
    return output, context, embedding_masks, goal_next


# ---------------------------------------------------------------------------
if __name__ == "__main__":
    B, H, S = 2, 32, 2
    span_lengths = [4, 4]
    W = sum(span_lengths)
    op_num, n_pointer, n_non_op = 3, 4, 2
    class_size = 12
    ft = 0.1

    key = jax.random.PRNGKey(0)
    pkey, dkey = jax.random.split(key)
    params = init_params(pkey, H, op_num)
    kparams = prepare_params(params, H, op_num)

    keys = iter(jax.random.split(dkey, 24))
    node_hidden = jax.random.normal(next(keys), (B, H), jnp.float32)
    span_output = jax.random.normal(next(keys), (B, S, H), jnp.float32)
    word_outputs = [jax.random.normal(next(keys), (B, L, H), jnp.float32)
                    for L in span_lengths]
    span_mask = jnp.zeros((B, S), dtype=bool)
    word_masks = [jnp.zeros((B, L), dtype=bool) for L in span_lengths]
    word_exist_sequence = (jax.random.uniform(next(keys), (B, W)) > 0.2
                           ).astype(jnp.float32)
    word_exist_matrix = (jax.random.uniform(next(keys), (B, W, W)) > 0.3
                         ).astype(jnp.float32)
    word_operator = (jax.random.uniform(next(keys), (B, W, op_num)) > 0.5
                     ).astype(jnp.float32)
    word_word = (jax.random.uniform(next(keys), (B, W, W)) > 0.5
                 ).astype(jnp.float32)
    depend_relation = [(jax.random.uniform(next(keys), (B, L, L)) > 0.5
                        ).astype(jnp.float32) for L in span_lengths]
    pointer_mask = jnp.zeros((B, n_pointer), dtype=bool).at[:, -1].set(True)
    word_pointer_num_poses = [
        jax.random.randint(next(keys), (B, n_pointer), -1, L)
        for L in span_lengths]
    non_op_generator_embedding = jax.random.normal(
        next(keys), (B, n_non_op, H), jnp.float32)
    op_embedding = jax.random.normal(next(keys), (B, op_num, H), jnp.float32)

    encoder_outputs = (span_output, word_outputs)
    graph_adjs = (word_operator, word_word, depend_relation)
    masks = (span_mask, word_masks, word_exist_sequence, word_exist_matrix)
    meta_value = (pointer_mask, word_pointer_num_poses,
                  non_op_generator_embedding, op_embedding)

    output, context, embedding_masks, goal_next = predict_model_forward(
        kparams, node_hidden, encoder_outputs, graph_adjs, masks, meta_value,
        ft=ft, class_size=class_size)

    jax.block_until_ready((output, context, goal_next))
    assert output.shape == (B, class_size)
    assert context.shape == (B, H)
    assert goal_next.shape == (B, H)
    assert bool(jnp.all(jnp.isfinite(output)))
    print("KERNEL_OK")
</pallas_src>

<mosaic_0001>
module attributes {stable_mosaic.version = 11 : i64} {
  func.func @_attention_kernel(%arg0: i32, %arg1: i32, %arg2: memref<1x1x32xf32, #tpu.memory_space<vmem>>, %arg3: memref<1x1x4x32xf32, #tpu.memory_space<vmem>>, %arg4: memref<1x1x4x1xf32, #tpu.memory_space<vmem>>, %arg5: memref<32x32xbf16, #tpu.memory_space<vmem>>, %arg6: memref<32x32xbf16, #tpu.memory_space<vmem>>, %arg7: memref<1x32xf32, #tpu.memory_space<vmem>>, %arg8: memref<1x32xf32, #tpu.memory_space<vmem>>, %arg9: memref<1x1xf32, #tpu.memory_space<vmem>>, %arg10: memref<1x1x4x1xf32, #tpu.memory_space<vmem>>, %arg11: memref<1x1x1x32xf32, #tpu.memory_space<vmem>>) attributes {dimension_semantics = [#tpu.dimension_semantics<parallel>, #tpu.dimension_semantics<parallel>], iteration_bounds = array<i64: 2, 2>, scalar_prefetch = 0 : i64, scratch_operands = 0 : i64, tpu.core_type = #tpu.core_type<tc>, window_params = [{transform_indices = @transform_0, window_bounds = array<i64: 1, 1, 32>}, {transform_indices = @transform_1, window_bounds = array<i64: 1, 1, 4, 32>}, {transform_indices = @transform_2, window_bounds = array<i64: 1, 1, 4, 1>}, {pipeline_mode = #tpu.pipeline_mode<synchronous>, transform_indices = @transform_3, window_bounds = array<i64: 32, 32>}, {pipeline_mode = #tpu.pipeline_mode<synchronous>, transform_indices = @transform_4, window_bounds = array<i64: 32, 32>}, {pipeline_mode = #tpu.pipeline_mode<synchronous>, transform_indices = @transform_5, window_bounds = array<i64: 1, 32>}, {pipeline_mode = #tpu.pipeline_mode<synchronous>, transform_indices = @transform_6, window_bounds = array<i64: 1, 32>}, {pipeline_mode = #tpu.pipeline_mode<synchronous>, transform_indices = @transform_7, window_bounds = array<i64: 1, 1>}, {transform_indices = @transform_8, window_bounds = array<i64: 1, 1, 4, 1>}, {transform_indices = @transform_9, window_bounds = array<i64: 1, 1, 1, 32>}]} {
    %c0 = arith.constant 0 : index
    %c0_0 = arith.constant 0 : index
    %c0_1 = arith.constant 0 : index
    %0 = vector.load %arg2[%c0, %c0_0, %c0_1] : memref<1x1x32xf32, #tpu.memory_space<vmem>>, vector<1x1x32xf32>
    %1 = vector.shape_cast %0 : vector<1x1x32xf32> to vector<1x32xf32>
    %c0_2 = arith.constant 0 : index
    %c0_3 = arith.constant 0 : index
    %c0_4 = arith.constant 0 : index
    %c0_5 = arith.constant 0 : index
    %2 = vector.load %arg3[%c0_2, %c0_3, %c0_4, %c0_5] : memref<1x1x4x32xf32, #tpu.memory_space<vmem>>, vector<1x1x4x32xf32>
    %3 = vector.shape_cast %2 : vector<1x1x4x32xf32> to vector<4x32xf32>
    %c0_6 = arith.constant 0 : index
    %c0_7 = arith.constant 0 : index
    %4 = vector.load %arg6[%c0_6, %c0_7] : memref<32x32xbf16, #tpu.memory_space<vmem>>, vector<32x32xbf16>
    %5 = arith.truncf %3 : vector<4x32xf32> to vector<4x32xbf16>
    %cst = arith.constant dense<0.000000e+00> : vector<4x32xf32>
    %6 = tpu.matmul %5, %4, %cst {dimension_numbers = #tpu.dot_dimension_numbers<[1], [0], [0], [1], [0, 0, 1, 1], [], []>} : vector<4x32xbf16>, vector<32x32xbf16>, vector<4x32xf32> -> vector<4x32xf32>
    %c0_8 = arith.constant 0 : index
    %c0_9 = arith.constant 0 : index
    %7 = vector.load %arg5[%c0_8, %c0_9] : memref<32x32xbf16, #tpu.memory_space<vmem>>, vector<32x32xbf16>
    %8 = arith.truncf %1 : vector<1x32xf32> to vector<1x32xbf16>
    %cst_10 = arith.constant dense<0.000000e+00> : vector<1x32xf32>
    %9 = tpu.matmul %8, %7, %cst_10 {dimension_numbers = #tpu.dot_dimension_numbers<[1], [0], [0], [1], [0, 0, 1, 1], [], []>} : vector<1x32xbf16>, vector<32x32xbf16>, vector<1x32xf32> -> vector<1x32xf32>
    %10 = vector.broadcast %9 : vector<1x32xf32> to vector<4x32xf32>
    %11 = arith.addf %6, %10 : vector<4x32xf32>
    %c0_11 = arith.constant 0 : index
    %c0_12 = arith.constant 0 : index
    %12 = vector.load %arg7[%c0_11, %c0_12] : memref<1x32xf32, #tpu.memory_space<vmem>>, vector<1x32xf32>
    %13 = vector.broadcast %12 : vector<1x32xf32> to vector<4x32xf32>
    %14 = arith.addf %11, %13 : vector<4x32xf32>
    %15 = math.tanh %14 : vector<4x32xf32>
    %c0_13 = arith.constant 0 : index
    %c0_14 = arith.constant 0 : index
    %16 = vector.load %arg8[%c0_13, %c0_14] : memref<1x32xf32, #tpu.memory_space<vmem>>, vector<1x32xf32>
    %17 = vector.broadcast %16 : vector<1x32xf32> to vector<4x32xf32>
    %18 = arith.mulf %15, %17 : vector<4x32xf32>
    %cst_15 = arith.constant dense<0.000000e+00> : vector<4xf32>
    %19 = vector.multi_reduction <add>, %18, %cst_15 [1] : vector<4x32xf32> to vector<4xf32>
    %20 = vector.shape_cast %19 : vector<4xf32> to vector<4x1xf32>
    %c0_16 = arith.constant 0 : index
    %c0_17 = arith.constant 0 : index
    %21 = vector.load %arg9[%c0_16, %c0_17] : memref<1x1xf32, #tpu.memory_space<vmem>>, vector<1x1xf32>
    %22 = vector.broadcast %21 : vector<1x1xf32> to vector<4x1xf32>
    %23 = arith.addf %20, %22 : vector<4x1xf32>
    %c0_18 = arith.constant 0 : index
    %c0_19 = arith.constant 0 : index
    %c0_20 = arith.constant 0 : index
    %c0_21 = arith.constant 0 : index
    %24 = vector.load %arg4[%c0_18, %c0_19, %c0_20, %c0_21] : memref<1x1x4x1xf32, #tpu.memory_space<vmem>>, vector<1x1x4x1xf32>
    %25 = vector.shape_cast %24 : vector<1x1x4x1xf32> to vector<4x1xf32>
    %cst_22 = arith.constant 5.000000e-01 : f32
    %26 = vector.broadcast %cst_22 : f32 to vector<4x1xf32>
    %27 = arith.cmpf ogt, %25, %26 : vector<4x1xf32>
    %cst_23 = arith.constant 0xFF800000 : f32
    %28 = vector.broadcast %cst_23 : f32 to vector<4x1xf32>
    %29 = arith.select %27, %28, %23 : vector<4x1xi1>, vector<4x1xf32>
    %cst_24 = arith.constant dense<0xFF800000> : vector<1xf32>
    %30 = vector.multi_reduction <maximumf>, %29, %cst_24 [0] : vector<4x1xf32> to vector<1xf32>
    %31 = vector.shape_cast %30 : vector<1xf32> to vector<1x1xf32>
    %32 = vector.broadcast %31 : vector<1x1xf32> to vector<4x1xf32>
    %33 = arith.subf %29, %32 : vector<4x1xf32>
    %34 = math.exp %33 : vector<4x1xf32>
    %cst_25 = arith.constant dense<0.000000e+00> : vector<1xf32>
    %35 = vector.multi_reduction <add>, %34, %cst_25 [0] : vector<4x1xf32> to vector<1xf32>
    %36 = vector.shape_cast %35 : vector<1xf32> to vector<1x1xf32>
    %37 = tpu.reciprocal %36 {approx = true} : vector<1x1xf32> -> vector<1x1xf32>
    %38 = vector.broadcast %37 : vector<1x1xf32> to vector<4x1xf32>
    %39 = arith.mulf %34, %38 : vector<4x1xf32>
    %c0_26 = arith.constant 0 : index
    %c0_27 = arith.constant 0 : index
    %c0_28 = arith.constant 0 : index
    %c0_29 = arith.constant 0 : index
    %40 = vector.load %arg10[%c0_26, %c0_27, %c0_28, %c0_29] : memref<1x1x4x1xf32, #tpu.memory_space<vmem>>, vector<1x1x4x1xf32>
    %41 = vector.shape_cast %40 : vector<1x1x4x1xf32> to vector<4x1xf32>
    %42 = vector.shape_cast %39 : vector<4x1xf32> to vector<1x1x4x1xf32>
    tpu.vector_store %arg10[%c0_26, %c0_27, %c0_28, %c0_29], %42 {strides = array<i32>} : memref<1x1x4x1xf32, #tpu.memory_space<vmem>>, vector<1x1x4x1xf32>,
    %43 = vector.broadcast %39 : vector<4x1xf32> to vector<4x32xf32>
    %44 = arith.mulf %43, %3 : vector<4x32xf32>
    %cst_30 = arith.constant dense<0.000000e+00> : vector<32xf32>
    %45 = vector.multi_reduction <add>, %44, %cst_30 [0] : vector<4x32xf32> to vector<32xf32>
    %46 = vector.shape_cast %45 : vector<32xf32> to vector<1x32xf32>
    %c0_31 = arith.constant 0 : index
    %c0_32 = arith.constant 0 : index
    %c0_33 = arith.constant 0 : index
    %c0_34 = arith.constant 0 : index
    %47 = vector.load %arg11[%c0_31, %c0_32, %c0_33, %c0_34] : memref<1x1x1x32xf32, #tpu.memory_space<vmem>>, vector<1x1x1x32xf32>
    %48 = vector.shape_cast %47 : vector<1x1x1x32xf32> to vector<1x32xf32>
    %49 = vector.shape_cast %46 : vector<1x32xf32> to vector<1x1x1x32xf32>
    tpu.vector_store %arg11[%c0_31, %c0_32, %c0_33, %c0_34], %49 {strides = array<i32>} : memref<1x1x1x32xf32, #tpu.memory_space<vmem>>, vector<1x1x1x32xf32>,
    return
  }
  func.func @transform_0(%arg0: i32, %arg1: i32) -> (i32, i32, i32) {
    %c0_i32 = arith.constant 0 : i32
    %c0_i32_0 = arith.constant 0 : i32
    %c0_i32_1 = arith.constant 0 : i32
    return %arg0, %c0_i32, %c0_i32_0 : i32, i32, i32
  }
  func.func @transform_1(%arg0: i32, %arg1: i32) -> (i32, i32, i32, i32) {
    %c0_i32 = arith.constant 0 : i32
    %c0_i32_0 = arith.constant 0 : i32
    %c0_i32_1 = arith.constant 0 : i32
    return %arg0, %arg1, %c0_i32, %c0_i32_0 : i32, i32, i32, i32
  }
  func.func @transform_2(%arg0: i32, %arg1: i32) -> (i32, i32, i32, i32) {
    %c0_i32 = arith.constant 0 : i32
    %c0_i32_0 = arith.constant 0 : i32
    %c0_i32_1 = arith.constant 0 : i32
    return %arg0, %arg1, %c0_i32, %c0_i32_0 : i32, i32, i32, i32
  }
  func.func @transform_3(%arg0: i32, %arg1: i32) -> (i32, i32) {
    %c0_i32 = arith.constant 0 : i32
    %c0_i32_0 = arith.constant 0 : i32
    %c0_i32_1 = arith.constant 0 : i32
    return %c0_i32, %c0_i32_0 : i32, i32
  }
  func.func @transform_4(%arg0: i32, %arg1: i32) -> (i32, i32) {
    %c0_i32 = arith.constant 0 : i32
    %c0_i32_0 = arith.constant 0 : i32
    %c0_i32_1 = arith.constant 0 : i32
    return %c0_i32, %c0_i32_0 : i32, i32
  }
  func.func @transform_5(%arg0: i32, %arg1: i32) -> (i32, i32) {
    %c0_i32 = arith.constant 0 : i32
    %c0_i32_0 = arith.constant 0 : i32
    %c0_i32_1 = arith.constant 0 : i32
    return %c0_i32, %c0_i32_0 : i32, i32
  }
  func.func @transform_6(%arg0: i32, %arg1: i32) -> (i32, i32) {
    %c0_i32 = arith.constant 0 : i32
    %c0_i32_0 = arith.constant 0 : i32
    %c0_i32_1 = arith.constant 0 : i32
    return %c0_i32, %c0_i32_0 : i32, i32
  }
  func.func @transform_7(%arg0: i32, %arg1: i32) -> (i32, i32) {
    %c0_i32 = arith.constant 0 : i32
    %c0_i32_0 = arith.constant 0 : i32
    %c0_i32_1 = arith.constant 0 : i32
    return %c0_i32, %c0_i32_0 : i32, i32
  }
  func.func @transform_8(%arg0: i32, %arg1: i32) -> (i32, i32, i32, i32) {
    %c0_i32 = arith.constant 0 : i32
    %c0_i32_0 = arith.constant 0 : i32
    %c0_i32_1 = arith.constant 0 : i32
    return %arg0, %arg1, %c0_i32, %c0_i32_0 : i32, i32, i32, i32
  }
  func.func @transform_9(%arg0: i32, %arg1: i32) -> (i32, i32, i32, i32) {
    %c0_i32 = arith.constant 0 : i32
    %c0_i32_0 = arith.constant 0 : i32
    %c0_i32_1 = arith.constant 0 : i32
    return %arg0, %arg1, %c0_i32, %c0_i32_0 : i32, i32, i32, i32
  }
}

module attributes {stable_mosaic.version = 11 : i64} {
  func.func @_attention_kernel(%arg0: i32, %arg1: i32, %arg2: memref<1x1x32xf32, #tpu.memory_space<vmem>>, %arg3: memref<1x1x2x32xf32, #tpu.memory_space<vmem>>, %arg4: memref<1x1x2x1xf32, #tpu.memory_space<vmem>>, %arg5: memref<32x32xbf16, #tpu.memory_space<vmem>>, %arg6: memref<32x32xbf16, #tpu.memory_space<vmem>>, %arg7: memref<1x32xf32, #tpu.memory_space<vmem>>, %arg8: memref<1x32xf32, #tpu.memory_space<vmem>>, %arg9: memref<1x1xf32, #tpu.memory_space<vmem>>, %arg10: memref<1x1x2x1xf32, #tpu.memory_space<vmem>>, %arg11: memref<1x1x1x32xf32, #tpu.memory_space<vmem>>) attributes {dimension_semantics = [#tpu.dimension_semantics<parallel>, #tpu.dimension_semantics<parallel>], iteration_bounds = array<i64: 2, 1>, scalar_prefetch = 0 : i64, scratch_operands = 0 : i64, tpu.core_type = #tpu.core_type<tc>, window_params = [{transform_indices = @transform_0, window_bounds = array<i64: 1, 1, 32>}, {transform_indices = @transform_1, window_bounds = array<i64: 1, 1, 2, 32>}, {transform_indices = @transform_2, window_bounds = array<i64: 1, 1, 2, 1>}, {pipeline_mode = #tpu.pipeline_mode<synchronous>, transform_indices = @transform_3, window_bounds = array<i64: 32, 32>}, {pipeline_mode = #tpu.pipeline_mode<synchronous>, transform_indices = @transform_4, window_bounds = array<i64: 32, 32>}, {pipeline_mode = #tpu.pipeline_mode<synchronous>, transform_indices = @transform_5, window_bounds = array<i64: 1, 32>}, {pipeline_mode = #tpu.pipeline_mode<synchronous>, transform_indices = @transform_6, window_bounds = array<i64: 1, 32>}, {pipeline_mode = #tpu.pipeline_mode<synchronous>, transform_indices = @transform_7, window_bounds = array<i64: 1, 1>}, {transform_indices = @transform_8, window_bounds = array<i64: 1, 1, 2, 1>}, {transform_indices = @transform_9, window_bounds = array<i64: 1, 1, 1, 32>}]} {
    %c0 = arith.constant 0 : index
    %c0_0 = arith.constant 0 : index
    %c0_1 = arith.constant 0 : index
    %0 = vector.load %arg2[%c0, %c0_0, %c0_1] : memref<1x1x32xf32, #tpu.memory_space<vmem>>, vector<1x1x32xf32>
    %1 = vector.shape_cast %0 : vector<1x1x32xf32> to vector<1x32xf32>
    %c0_2 = arith.constant 0 : index
    %c0_3 = arith.constant 0 : index
    %c0_4 = arith.constant 0 : index
    %c0_5 = arith.constant 0 : index
    %2 = vector.load %arg3[%c0_2, %c0_3, %c0_4, %c0_5] : memref<1x1x2x32xf32, #tpu.memory_space<vmem>>, vector<1x1x2x32xf32>
    %3 = vector.shape_cast %2 : vector<1x1x2x32xf32> to vector<2x32xf32>
    %c0_6 = arith.constant 0 : index
    %c0_7 = arith.constant 0 : index
    %4 = vector.load %arg6[%c0_6, %c0_7] : memref<32x32xbf16, #tpu.memory_space<vmem>>, vector<32x32xbf16>
    %5 = arith.truncf %3 : vector<2x32xf32> to vector<2x32xbf16>
    %cst = arith.constant dense<0.000000e+00> : vector<2x32xf32>
    %6 = tpu.matmul %5, %4, %cst {dimension_numbers = #tpu.dot_dimension_numbers<[1], [0], [0], [1], [0, 0, 1, 1], [], []>} : vector<2x32xbf16>, vector<32x32xbf16>, vector<2x32xf32> -> vector<2x32xf32>
    %c0_8 = arith.constant 0 : index
    %c0_9 = arith.constant 0 : index
    %7 = vector.load %arg5[%c0_8, %c0_9] : memref<32x32xbf16, #tpu.memory_space<vmem>>, vector<32x32xbf16>
    %8 = arith.truncf %1 : vector<1x32xf32> to vector<1x32xbf16>
    %cst_10 = arith.constant dense<0.000000e+00> : vector<1x32xf32>
    %9 = tpu.matmul %8, %7, %cst_10 {dimension_numbers = #tpu.dot_dimension_numbers<[1], [0], [0], [1], [0, 0, 1, 1], [], []>} : vector<1x32xbf16>, vector<32x32xbf16>, vector<1x32xf32> -> vector<1x32xf32>
    %10 = vector.broadcast %9 : vector<1x32xf32> to vector<2x32xf32>
    %11 = arith.addf %6, %10 : vector<2x32xf32>
    %c0_11 = arith.constant 0 : index
    %c0_12 = arith.constant 0 : index
    %12 = vector.load %arg7[%c0_11, %c0_12] : memref<1x32xf32, #tpu.memory_space<vmem>>, vector<1x32xf32>
    %13 = vector.broadcast %12 : vector<1x32xf32> to vector<2x32xf32>
    %14 = arith.addf %11, %13 : vector<2x32xf32>
    %15 = math.tanh %14 : vector<2x32xf32>
    %c0_13 = arith.constant 0 : index
    %c0_14 = arith.constant 0 : index
    %16 = vector.load %arg8[%c0_13, %c0_14] : memref<1x32xf32, #tpu.memory_space<vmem>>, vector<1x32xf32>
    %17 = vector.broadcast %16 : vector<1x32xf32> to vector<2x32xf32>
    %18 = arith.mulf %15, %17 : vector<2x32xf32>
    %cst_15 = arith.constant dense<0.000000e+00> : vector<2xf32>
    %19 = vector.multi_reduction <add>, %18, %cst_15 [1] : vector<2x32xf32> to vector<2xf32>
    %20 = vector.shape_cast %19 : vector<2xf32> to vector<2x1xf32>
    %c0_16 = arith.constant 0 : index
    %c0_17 = arith.constant 0 : index
    %21 = vector.load %arg9[%c0_16, %c0_17] : memref<1x1xf32, #tpu.memory_space<vmem>>, vector<1x1xf32>
    %22 = vector.broadcast %21 : vector<1x1xf32> to vector<2x1xf32>
    %23 = arith.addf %20, %22 : vector<2x1xf32>
    %c0_18 = arith.constant 0 : index
    %c0_19 = arith.constant 0 : index
    %c0_20 = arith.constant 0 : index
    %c0_21 = arith.constant 0 : index
    %24 = vector.load %arg4[%c0_18, %c0_19, %c0_20, %c0_21] : memref<1x1x2x1xf32, #tpu.memory_space<vmem>>, vector<1x1x2x1xf32>
    %25 = vector.shape_cast %24 : vector<1x1x2x1xf32> to vector<2x1xf32>
    %cst_22 = arith.constant 5.000000e-01 : f32
    %26 = vector.broadcast %cst_22 : f32 to vector<2x1xf32>
    %27 = arith.cmpf ogt, %25, %26 : vector<2x1xf32>
    %cst_23 = arith.constant 0xFF800000 : f32
    %28 = vector.broadcast %cst_23 : f32 to vector<2x1xf32>
    %29 = arith.select %27, %28, %23 : vector<2x1xi1>, vector<2x1xf32>
    %cst_24 = arith.constant dense<0xFF800000> : vector<1xf32>
    %30 = vector.multi_reduction <maximumf>, %29, %cst_24 [0] : vector<2x1xf32> to vector<1xf32>
    %31 = vector.shape_cast %30 : vector<1xf32> to vector<1x1xf32>
    %32 = vector.broadcast %31 : vector<1x1xf32> to vector<2x1xf32>
    %33 = arith.subf %29, %32 : vector<2x1xf32>
    %34 = math.exp %33 : vector<2x1xf32>
    %cst_25 = arith.constant dense<0.000000e+00> : vector<1xf32>
    %35 = vector.multi_reduction <add>, %34, %cst_25 [0] : vector<2x1xf32> to vector<1xf32>
    %36 = vector.shape_cast %35 : vector<1xf32> to vector<1x1xf32>
    %37 = tpu.reciprocal %36 {approx = true} : vector<1x1xf32> -> vector<1x1xf32>
    %38 = vector.broadcast %37 : vector<1x1xf32> to vector<2x1xf32>
    %39 = arith.mulf %34, %38 : vector<2x1xf32>
    %c0_26 = arith.constant 0 : index
    %c0_27 = arith.constant 0 : index
    %c0_28 = arith.constant 0 : index
    %c0_29 = arith.constant 0 : index
    %40 = vector.load %arg10[%c0_26, %c0_27, %c0_28, %c0_29] : memref<1x1x2x1xf32, #tpu.memory_space<vmem>>, vector<1x1x2x1xf32>
    %41 = vector.shape_cast %40 : vector<1x1x2x1xf32> to vector<2x1xf32>
    %42 = vector.shape_cast %39 : vector<2x1xf32> to vector<1x1x2x1xf32>
    tpu.vector_store %arg10[%c0_26, %c0_27, %c0_28, %c0_29], %42 {strides = array<i32>} : memref<1x1x2x1xf32, #tpu.memory_space<vmem>>, vector<1x1x2x1xf32>,
    %43 = vector.broadcast %39 : vector<2x1xf32> to vector<2x32xf32>
    %44 = arith.mulf %43, %3 : vector<2x32xf32>
    %cst_30 = arith.constant dense<0.000000e+00> : vector<32xf32>
    %45 = vector.multi_reduction <add>, %44, %cst_30 [0] : vector<2x32xf32> to vector<32xf32>
    %46 = vector.shape_cast %45 : vector<32xf32> to vector<1x32xf32>
    %c0_31 = arith.constant 0 : index
    %c0_32 = arith.constant 0 : index
    %c0_33 = arith.constant 0 : index
    %c0_34 = arith.constant 0 : index
    %47 = vector.load %arg11[%c0_31, %c0_32, %c0_33, %c0_34] : memref<1x1x1x32xf32, #tpu.memory_space<vmem>>, vector<1x1x1x32xf32>
    %48 = vector.shape_cast %47 : vector<1x1x1x32xf32> to vector<1x32xf32>
    %49 = vector.shape_cast %46 : vector<1x32xf32> to vector<1x1x1x32xf32>
    tpu.vector_store %arg11[%c0_31, %c0_32, %c0_33, %c0_34], %49 {strides = array<i32>} : memref<1x1x1x32xf32, #tpu.memory_space<vmem>>, vector<1x1x1x32xf32>,
    return
  }
  func.func @transform_0(%arg0: i32, %arg1: i32) -> (i32, i32, i32) {
    %c0_i32 = arith.constant 0 : i32
    %c0_i32_0 = arith.constant 0 : i32
    %c0_i32_1 = arith.constant 0 : i32
    return %arg0, %c0_i32, %c0_i32_0 : i32, i32, i32
  }
  func.func @transform_1(%arg0: i32, %arg1: i32) -> (i32, i32, i32, i32) {
    %c0_i32 = arith.constant 0 : i32
    %c0_i32_0 = arith.constant 0 : i32
    %c0_i32_1 = arith.constant 0 : i32
    return %arg0, %arg1, %c0_i32, %c0_i32_0 : i32, i32, i32, i32
  }
  func.func @transform_2(%arg0: i32, %arg1: i32) -> (i32, i32, i32, i32) {
    %c0_i32 = arith.constant 0 : i32
    %c0_i32_0 = arith.constant 0 : i32
    %c0_i32_1 = arith.constant 0 : i32
    return %arg0, %arg1, %c0_i32, %c0_i32_0 : i32, i32, i32, i32
  }
  func.func @transform_3(%arg0: i32, %arg1: i32) -> (i32, i32) {
    %c0_i32 = arith.constant 0 : i32
    %c0_i32_0 = arith.constant 0 : i32
    %c0_i32_1 = arith.constant 0 : i32
    return %c0_i32, %c0_i32_0 : i32, i32
  }
  func.func @transform_4(%arg0: i32, %arg1: i32) -> (i32, i32) {
    %c0_i32 = arith.constant 0 : i32
    %c0_i32_0 = arith.constant 0 : i32
    %c0_i32_1 = arith.constant 0 : i32
    return %c0_i32, %c0_i32_0 : i32, i32
  }
  func.func @transform_5(%arg0: i32, %arg1: i32) -> (i32, i32) {
    %c0_i32 = arith.constant 0 : i32
    %c0_i32_0 = arith.constant 0 : i32
    %c0_i32_1 = arith.constant 0 : i32
    return %c0_i32, %c0_i32_0 : i32, i32
  }
  func.func @transform_6(%arg0: i32, %arg1: i32) -> (i32, i32) {
    %c0_i32 = arith.constant 0 : i32
    %c0_i32_0 = arith.constant 0 : i32
    %c0_i32_1 = arith.constant 0 : i32
    return %c0_i32, %c0_i32_0 : i32, i32
  }
  func.func @transform_7(%arg0: i32, %arg1: i32) -> (i32, i32) {
    %c0_i32 = arith.constant 0 : i32
    %c0_i32_0 = arith.constant 0 : i32
    %c0_i32_1 = arith.constant 0 : i32
    return %c0_i32, %c0_i32_0 : i32, i32
  }
  func.func @transform_8(%arg0: i32, %arg1: i32) -> (i32, i32, i32, i32) {
    %c0_i32 = arith.constant 0 : i32
    %c0_i32_0 = arith.constant 0 : i32
    %c0_i32_1 = arith.constant 0 : i32
    return %arg0, %arg1, %c0_i32, %c0_i32_0 : i32, i32, i32, i32
  }
  func.func @transform_9(%arg0: i32, %arg1: i32) -> (i32, i32, i32, i32) {
    %c0_i32 = arith.constant 0 : i32
    %c0_i32_0 = arith.constant 0 : i32
    %c0_i32_1 = arith.constant 0 : i32
    return %arg0, %arg1, %c0_i32, %c0_i32_0 : i32, i32, i32, i32
  }
}

module attributes {stable_mosaic.version = 11 : i64} {
  func.func @_prep_adj_kernel(%arg0: i32, %arg1: memref<1x8x8xf32, #tpu.memory_space<vmem>>, %arg2: memref<1x8x8xf32, #tpu.memory_space<vmem>>, %arg3: memref<1x8x8xf32, #tpu.memory_space<vmem>>, %arg4: memref<1x3x8xf32, #tpu.memory_space<vmem>>, %arg5: memref<1x1x8xf32, #tpu.memory_space<vmem>>, %arg6: memref<1x8x8xbf16, #tpu.memory_space<vmem>>, %arg7: memref<1x8x8xbf16, #tpu.memory_space<vmem>>, %arg8: memref<1x3x8xbf16, #tpu.memory_space<vmem>>, %arg9: memref<1x1x8xbf16, #tpu.memory_space<vmem>>) attributes {dimension_semantics = [#tpu.dimension_semantics<parallel>], iteration_bounds = array<i64: 2>, scalar_prefetch = 0 : i64, scratch_operands = 0 : i64, tpu.core_type = #tpu.core_type<tc>, window_params = [{transform_indices = @transform_0, window_bounds = array<i64: 1, 8, 8>}, {transform_indices = @transform_1, window_bounds = array<i64: 1, 8, 8>}, {transform_indices = @transform_2, window_bounds = array<i64: 1, 8, 8>}, {transform_indices = @transform_3, window_bounds = array<i64: 1, 3, 8>}, {transform_indices = @transform_4, window_bounds = array<i64: 1, 1, 8>}, {transform_indices = @transform_5, window_bounds = array<i64: 1, 8, 8>}, {transform_indices = @transform_6, window_bounds = array<i64: 1, 8, 8>}, {transform_indices = @transform_7, window_bounds = array<i64: 1, 3, 8>}, {transform_indices = @transform_8, window_bounds = array<i64: 1, 1, 8>}]} {
    %c0 = arith.constant 0 : index
    %c0_0 = arith.constant 0 : index
    %c0_1 = arith.constant 0 : index
    %0 = vector.load %arg1[%c0, %c0_0, %c0_1] : memref<1x8x8xf32, #tpu.memory_space<vmem>>, vector<1x8x8xf32>
    %1 = vector.shape_cast %0 : vector<1x8x8xf32> to vector<8x8xf32>
    %c0_2 = arith.constant 0 : index
    %c0_3 = arith.constant 0 : index
    %c0_4 = arith.constant 0 : index
    %2 = vector.load %arg2[%c0_2, %c0_3, %c0_4] : memref<1x8x8xf32, #tpu.memory_space<vmem>>, vector<1x8x8xf32>
    %3 = vector.shape_cast %2 : vector<1x8x8xf32> to vector<8x8xf32>
    %4 = arith.mulf %1, %3 : vector<8x8xf32>
    %cst = arith.constant 0.000000e+00 : f32
    %5 = vector.broadcast %cst : f32 to vector<8x8xf32>
    %6 = arith.cmpf one, %4, %5 : vector<8x8xf32>
    %7 = arith.extui %6 : vector<8x8xi1> to vector<8x8xi32>
    %8 = arith.sitofp %7 : vector<8x8xi32> to vector<8x8xf32>
    %cst_5 = arith.constant dense<0.000000e+00> : vector<8xf32>
    %9 = vector.multi_reduction <add>, %8, %cst_5 [1] : vector<8x8xf32> to vector<8xf32>
    %10 = vector.shape_cast %9 : vector<8xf32> to vector<8x1xf32>
    %cst_6 = arith.constant 1.000000e-30 : f32
    %11 = vector.broadcast %cst_6 : f32 to vector<8x1xf32>
    %12 = arith.addf %10, %11 : vector<8x1xf32>
    %13 = tpu.reciprocal %12 {approx = true} : vector<8x1xf32> -> vector<8x1xf32>
    %14 = vector.broadcast %13 : vector<8x1xf32> to vector<8x8xf32>
    %15 = arith.mulf %4, %14 : vector<8x8xf32>
    %16 = arith.truncf %15 : vector<8x8xf32> to vector<8x8xbf16>
    %c0_7 = arith.constant 0 : index
    %c0_8 = arith.constant 0 : index
    %c0_9 = arith.constant 0 : index
    %17 = vector.load %arg6[%c0_7, %c0_8, %c0_9] : memref<1x8x8xbf16, #tpu.memory_space<vmem>>, vector<1x8x8xbf16>
    %18 = vector.shape_cast %17 : vector<1x8x8xbf16> to vector<8x8xbf16>
    %19 = vector.shape_cast %16 : vector<8x8xbf16> to vector<1x8x8xbf16>
    tpu.vector_store %arg6[%c0_7, %c0_8, %c0_9], %19 {strides = array<i32>} : memref<1x8x8xbf16, #tpu.memory_space<vmem>>, vector<1x8x8xbf16>,
    %c0_10 = arith.constant 0 : index
    %c0_11 = arith.constant 0 : index
    %c0_12 = arith.constant 0 : index
    %20 = vector.load %arg3[%c0_10, %c0_11, %c0_12] : memref<1x8x8xf32, #tpu.memory_space<vmem>>, vector<1x8x8xf32>
    %21 = vector.shape_cast %20 : vector<1x8x8xf32> to vector<8x8xf32>
    %cst_13 = arith.constant 0.000000e+00 : f32
    %22 = vector.broadcast %cst_13 : f32 to vector<8x8xf32>
    %23 = arith.cmpf one, %21, %22 : vector<8x8xf32>
    %24 = arith.extui %23 : vector<8x8xi1> to vector<8x8xi32>
    %25 = arith.sitofp %24 : vector<8x8xi32> to vector<8x8xf32>
    %cst_14 = arith.constant dense<0.000000e+00> : vector<8xf32>
    %26 = vector.multi_reduction <add>, %25, %cst_14 [1] : vector<8x8xf32> to vector<8xf32>
    %27 = vector.shape_cast %26 : vector<8xf32> to vector<8x1xf32>
    %cst_15 = arith.constant 1.000000e-30 : f32
    %28 = vector.broadcast %cst_15 : f32 to vector<8x1xf32>
    %29 = arith.addf %27, %28 : vector<8x1xf32>
    %30 = tpu.reciprocal %29 {approx = true} : vector<8x1xf32> -> vector<8x1xf32>
    %31 = vector.broadcast %30 : vector<8x1xf32> to vector<8x8xf32>
    %32 = arith.mulf %21, %31 : vector<8x8xf32>
    %33 = arith.truncf %32 : vector<8x8xf32> to vector<8x8xbf16>
    %c0_16 = arith.constant 0 : index
    %c0_17 = arith.constant 0 : index
    %c0_18 = arith.constant 0 : index
    %34 = vector.load %arg7[%c0_16, %c0_17, %c0_18] : memref<1x8x8xbf16, #tpu.memory_space<vmem>>, vector<1x8x8xbf16>
    %35 = vector.shape_cast %34 : vector<1x8x8xbf16> to vector<8x8xbf16>
    %36 = vector.shape_cast %33 : vector<8x8xbf16> to vector<1x8x8xbf16>
    tpu.vector_store %arg7[%c0_16, %c0_17, %c0_18], %36 {strides = array<i32>} : memref<1x8x8xbf16, #tpu.memory_space<vmem>>, vector<1x8x8xbf16>,
    %c0_19 = arith.constant 0 : index
    %c0_20 = arith.constant 0 : index
    %c0_21 = arith.constant 0 : index
    %37 = vector.load %arg4[%c0_19, %c0_20, %c0_21] : memref<1x3x8xf32, #tpu.memory_space<vmem>>, vector<1x3x8xf32>
    %38 = vector.shape_cast %37 : vector<1x3x8xf32> to vector<3x8xf32>
    %cst_22 = arith.constant 0.000000e+00 : f32
    %39 = vector.broadcast %cst_22 : f32 to vector<3x8xf32>
    %40 = arith.cmpf one, %38, %39 : vector<3x8xf32>
    %41 = arith.extui %40 : vector<3x8xi1> to vector<3x8xi32>
    %42 = arith.sitofp %41 : vector<3x8xi32> to vector<3x8xf32>
    %cst_23 = arith.constant dense<0.000000e+00> : vector<3xf32>
    %43 = vector.multi_reduction <add>, %42, %cst_23 [1] : vector<3x8xf32> to vector<3xf32>
    %44 = vector.shape_cast %43 : vector<3xf32> to vector<3x1xf32>
    %cst_24 = arith.constant 1.000000e-30 : f32
    %45 = vector.broadcast %cst_24 : f32 to vector<3x1xf32>
    %46 = arith.addf %44, %45 : vector<3x1xf32>
    %47 = tpu.reciprocal %46 {approx = true} : vector<3x1xf32> -> vector<3x1xf32>
    %48 = vector.broadcast %47 : vector<3x1xf32> to vector<3x8xf32>
    %49 = arith.mulf %38, %48 : vector<3x8xf32>
    %50 = arith.truncf %49 : vector<3x8xf32> to vector<3x8xbf16>
    %c0_25 = arith.constant 0 : index
    %c0_26 = arith.constant 0 : index
    %c0_27 = arith.constant 0 : index
    %51 = vector.load %arg8[%c0_25, %c0_26, %c0_27] : memref<1x3x8xbf16, #tpu.memory_space<vmem>>, vector<1x3x8xbf16>
    %52 = vector.shape_cast %51 : vector<1x3x8xbf16> to vector<3x8xbf16>
    %53 = vector.shape_cast %50 : vector<3x8xbf16> to vector<1x3x8xbf16>
    tpu.vector_store %arg8[%c0_25, %c0_26, %c0_27], %53 {strides = array<i32>} : memref<1x3x8xbf16, #tpu.memory_space<vmem>>, vector<1x3x8xbf16>,
    %c0_28 = arith.constant 0 : index
    %c0_29 = arith.constant 0 : index
    %c0_30 = arith.constant 0 : index
    %54 = vector.load %arg5[%c0_28, %c0_29, %c0_30] : memref<1x1x8xf32, #tpu.memory_space<vmem>>, vector<1x1x8xf32>
    %55 = vector.shape_cast %54 : vector<1x1x8xf32> to vector<1x8xf32>
    %cst_31 = arith.constant 0.000000e+00 : f32
    %56 = vector.broadcast %cst_31 : f32 to vector<1x8xf32>
    %57 = arith.cmpf one, %55, %56 : vector<1x8xf32>
    %58 = arith.extui %57 : vector<1x8xi1> to vector<1x8xi32>
    %59 = arith.sitofp %58 : vector<1x8xi32> to vector<1x8xf32>
    %cst_32 = arith.constant dense<0.000000e+00> : vector<1xf32>
    %60 = vector.multi_reduction <add>, %59, %cst_32 [1] : vector<1x8xf32> to vector<1xf32>
    %61 = vector.shape_cast %60 : vector<1xf32> to vector<1x1xf32>
    %cst_33 = arith.constant 1.000000e-30 : f32
    %62 = vector.broadcast %cst_33 : f32 to vector<1x1xf32>
    %63 = arith.addf %61, %62 : vector<1x1xf32>
    %64 = tpu.reciprocal %63 {approx = true} : vector<1x1xf32> -> vector<1x1xf32>
    %65 = vector.broadcast %64 : vector<1x1xf32> to vector<1x8xf32>
    %66 = arith.mulf %55, %65 : vector<1x8xf32>
    %67 = arith.truncf %66 : vector<1x8xf32> to vector<1x8xbf16>
    %c0_34 = arith.constant 0 : index
    %c0_35 = arith.constant 0 : index
    %c0_36 = arith.constant 0 : index
    %68 = vector.load %arg9[%c0_34, %c0_35, %c0_36] : memref<1x1x8xbf16, #tpu.memory_space<vmem>>, vector<1x1x8xbf16>
    %69 = vector.shape_cast %68 : vector<1x1x8xbf16> to vector<1x8xbf16>
    %70 = vector.shape_cast %67 : vector<1x8xbf16> to vector<1x1x8xbf16>
    tpu.vector_store %arg9[%c0_34, %c0_35, %c0_36], %70 {strides = array<i32>} : memref<1x1x8xbf16, #tpu.memory_space<vmem>>, vector<1x1x8xbf16>,
    return
  }
  func.func @transform_0(%arg0: i32) -> (i32, i32, i32) {
    %c0_i32 = arith.constant 0 : i32
    %c0_i32_0 = arith.constant 0 : i32
    %c0_i32_1 = arith.constant 0 : i32
    return %arg0, %c0_i32, %c0_i32_0 : i32, i32, i32
  }
  func.func @transform_1(%arg0: i32) -> (i32, i32, i32) {
    %c0_i32 = arith.constant 0 : i32
    %c0_i32_0 = arith.constant 0 : i32
    %c0_i32_1 = arith.constant 0 : i32
    return %arg0, %c0_i32, %c0_i32_0 : i32, i32, i32
  }
  func.func @transform_2(%arg0: i32) -> (i32, i32, i32) {
    %c0_i32 = arith.constant 0 : i32
    %c0_i32_0 = arith.constant 0 : i32
    %c0_i32_1 = arith.constant 0 : i32
    return %arg0, %c0_i32, %c0_i32_0 : i32, i32, i32
  }
  func.func @transform_3(%arg0: i32) -> (i32, i32, i32) {
    %c0_i32 = arith.constant 0 : i32
    %c0_i32_0 = arith.constant 0 : i32
    %c0_i32_1 = arith.constant 0 : i32
    return %arg0, %c0_i32, %c0_i32_0 : i32, i32, i32
  }
  func.func @transform_4(%arg0: i32) -> (i32, i32, i32) {
    %c0_i32 = arith.constant 0 : i32
    %c0_i32_0 = arith.constant 0 : i32
    %c0_i32_1 = arith.constant 0 : i32
    return %arg0, %c0_i32, %c0_i32_0 : i32, i32, i32
  }
  func.func @transform_5(%arg0: i32) -> (i32, i32, i32) {
    %c0_i32 = arith.constant 0 : i32
    %c0_i32_0 = arith.constant 0 : i32
    %c0_i32_1 = arith.constant 0 : i32
    return %arg0, %c0_i32, %c0_i32_0 : i32, i32, i32
  }
  func.func @transform_6(%arg0: i32) -> (i32, i32, i32) {
    %c0_i32 = arith.constant 0 : i32
    %c0_i32_0 = arith.constant 0 : i32
    %c0_i32_1 = arith.constant 0 : i32
    return %arg0, %c0_i32, %c0_i32_0 : i32, i32, i32
  }
  func.func @transform_7(%arg0: i32) -> (i32, i32, i32) {
    %c0_i32 = arith.constant 0 : i32
    %c0_i32_0 = arith.constant 0 : i32
    %c0_i32_1 = arith.constant 0 : i32
    return %arg0, %c0_i32, %c0_i32_0 : i32, i32, i32
  }
  func.func @transform_8(%arg0: i32) -> (i32, i32, i32) {
    %c0_i32 = arith.constant 0 : i32
    %c0_i32_0 = arith.constant 0 : i32
    %c0_i32_1 = arith.constant 0 : i32
    return %arg0, %c0_i32, %c0_i32_0 : i32, i32, i32
  }
}

module attributes {stable_mosaic.version = 11 : i64} {
  func.func @_bottom2up_kernel(%arg0: i32, %arg1: memref<1x8x32xf32, #tpu.memory_space<vmem>>, %arg2: memref<1x1x32xf32, #tpu.memory_space<vmem>>, %arg3: memref<1x8x1xf32, #tpu.memory_space<vmem>>, %arg4: memref<1x3x32xf32, #tpu.memory_space<vmem>>, %arg5: memref<1x8x8xbf16, #tpu.memory_space<vmem>>, %arg6: memref<1x8x8xbf16, #tpu.memory_space<vmem>>, %arg7: memref<1x3x8xbf16, #tpu.memory_space<vmem>>, %arg8: memref<32x32xbf16, #tpu.memory_space<vmem>>, %arg9: memref<1x32xf32, #tpu.memory_space<vmem>>, %arg10: memref<32x32xbf16, #tpu.memory_space<vmem>>, %arg11: memref<1x32xf32, #tpu.memory_space<vmem>>, %arg12: memref<32x32xbf16, #tpu.memory_space<vmem>>, %arg13: memref<1x32xf32, #tpu.memory_space<vmem>>, %arg14: memref<128x32xbf16, #tpu.memory_space<vmem>>, %arg15: memref<1x32xf32, #tpu.memory_space<vmem>>, %arg16: memref<96x32xbf16, #tpu.memory_space<vmem>>, %arg17: memref<1x32xf32, #tpu.memory_space<vmem>>, %arg18: memref<32x32xbf16, #tpu.memory_space<vmem>>, %arg19: memref<1x32xf32, #tpu.memory_space<vmem>>, %arg20: memref<64x32xbf16, #tpu.memory_space<vmem>>, %arg21: memref<1x32xf32, #tpu.memory_space<vmem>>, %arg22: memref<32x32xbf16, #tpu.memory_space<vmem>>, %arg23: memref<1x32xf32, #tpu.memory_space<vmem>>, %arg24: memref<1x8x32xf32, #tpu.memory_space<vmem>>, %arg25: memref<1x3x32xf32, #tpu.memory_space<vmem>>) attributes {dimension_semantics = [#tpu.dimension_semantics<parallel>], iteration_bounds = array<i64: 2>, scalar_prefetch = 0 : i64, scratch_operands = 0 : i64, tpu.core_type = #tpu.core_type<tc>, window_params = [{transform_indices = @transform_0, window_bounds = array<i64: 1, 8, 32>}, {transform_indices = @transform_1, window_bounds = array<i64: 1, 1, 32>}, {transform_indices = @transform_2, window_bounds = array<i64: 1, 8, 1>}, {transform_indices = @transform_3, window_bounds = array<i64: 1, 3, 32>}, {transform_indices = @transform_4, window_bounds = array<i64: 1, 8, 8>}, {transform_indices = @transform_5, window_bounds = array<i64: 1, 8, 8>}, {transform_indices = @transform_6, window_bounds = array<i64: 1, 3, 8>}, {pipeline_mode = #tpu.pipeline_mode<synchronous>, transform_indices = @transform_7, window_bounds = array<i64: 32, 32>}, {pipeline_mode = #tpu.pipeline_mode<synchronous>, transform_indices = @transform_8, window_bounds = array<i64: 1, 32>}, {pipeline_mode = #tpu.pipeline_mode<synchronous>, transform_indices = @transform_9, window_bounds = array<i64: 32, 32>}, {pipeline_mode = #tpu.pipeline_mode<synchronous>, transform_indices = @transform_10, window_bounds = array<i64: 1, 32>}, {pipeline_mode = #tpu.pipeline_mode<synchronous>, transform_indices = @transform_11, window_bounds = array<i64: 32, 32>}, {pipeline_mode = #tpu.pipeline_mode<synchronous>, transform_indices = @transform_12, window_bounds = array<i64: 1, 32>}, {pipeline_mode = #tpu.pipeline_mode<synchronous>, transform_indices = @transform_13, window_bounds = array<i64: 128, 32>}, {pipeline_mode = #tpu.pipeline_mode<synchronous>, transform_indices = @transform_14, window_bounds = array<i64: 1, 32>}, {pipeline_mode = #tpu.pipeline_mode<synchronous>, transform_indices = @transform_15, window_bounds = array<i64: 96, 32>}, {pipeline_mode = #tpu.pipeline_mode<synchronous>, transform_indices = @transform_16, window_bounds = array<i64: 1, 32>}, {pipeline_mode = #tpu.pipeline_mode<synchronous>, transform_indices = @transform_17, window_bounds = array<i64: 32, 32>}, {pipeline_mode = #tpu.pipeline_mode<synchronous>, transform_indices = @transform_18, window_bounds = array<i64: 1, 32>}, {pipeline_mode = #tpu.pipeline_mode<synchronous>, transform_indices = @transform_19, window_bounds = array<i64: 64, 32>}, {pipeline_mode = #tpu.pipeline_mode<synchronous>, transform_indices = @transform_20, window_bounds = array<i64: 1, 32>}, {pipeline_mode = #tpu.pipeline_mode<synchronous>, transform_indices = @transform_21, window_bounds = array<i64: 32, 32>}, {pipeline_mode = #tpu.pipeline_mode<synchronous>, transform_indices = @transform_22, window_bounds = array<i64: 1, 32>}, {transform_indices = @transform_23, window_bounds = array<i64: 1, 8, 32>}, {transform_indices = @transform_24, window_bounds = array<i64: 1, 3, 32>}]} {
    %c0 = arith.constant 0 : index
    %c0_0 = arith.constant 0 : index
    %c0_1 = arith.constant 0 : index
    %0 = vector.load %arg1[%c0, %c0_0, %c0_1] : memref<1x8x32xf32, #tpu.memory_space<vmem>>, vector<1x8x32xf32>
    %1 = vector.shape_cast %0 : vector<1x8x32xf32> to vector<8x32xf32>
    %c0_2 = arith.constant 0 : index
    %c0_3 = arith.constant 0 : index
    %c0_4 = arith.constant 0 : index
    %2 = vector.load %arg2[%c0_2, %c0_3, %c0_4] : memref<1x1x32xf32, #tpu.memory_space<vmem>>, vector<1x1x32xf32>
    %3 = vector.shape_cast %2 : vector<1x1x32xf32> to vector<1x32xf32>
    %c0_5 = arith.constant 0 : index
    %c0_6 = arith.constant 0 : index
    %c0_7 = arith.constant 0 : index
    %4 = vector.load %arg3[%c0_5, %c0_6, %c0_7] : memref<1x8x1xf32, #tpu.memory_space<vmem>>, vector<1x8x1xf32>
    %5 = vector.shape_cast %4 : vector<1x8x1xf32> to vector<8x1xf32>
    %c0_8 = arith.constant 0 : index
    %c0_9 = arith.constant 0 : index
    %c0_10 = arith.constant 0 : index
    %6 = vector.load %arg4[%c0_8, %c0_9, %c0_10] : memref<1x3x32xf32, #tpu.memory_space<vmem>>, vector<1x3x32xf32>
    %7 = vector.shape_cast %6 : vector<1x3x32xf32> to vector<3x32xf32>
    %c0_11 = arith.constant 0 : index
    %c0_12 = arith.constant 0 : index
    %8 = vector.load %arg8[%c0_11, %c0_12] : memref<32x32xbf16, #tpu.memory_space<vmem>>, vector<32x32xbf16>
    %9 = arith.truncf %3 : vector<1x32xf32> to vector<1x32xbf16>
    %cst = arith.constant dense<0.000000e+00> : vector<1x32xf32>
    %10 = tpu.matmul %9, %8, %cst {dimension_numbers = #tpu.dot_dimension_numbers<[1], [0], [0], [1], [0, 0, 1, 1], [], []>} : vector<1x32xbf16>, vector<32x32xbf16>, vector<1x32xf32> -> vector<1x32xf32>
    %c0_13 = arith.constant 0 : index
    %c0_14 = arith.constant 0 : index
    %11 = vector.load %arg9[%c0_13, %c0_14] : memref<1x32xf32, #tpu.memory_space<vmem>>, vector<1x32xf32>
    %12 = arith.addf %10, %11 : vector<1x32xf32>
    %13 = vector.broadcast %12 : vector<1x32xf32> to vector<8x32xf32>
    %14 = vector.broadcast %5 : vector<8x1xf32> to vector<8x32xf32>
    %15 = arith.mulf %13, %14 : vector<8x32xf32>
    %16 = arith.mulf %15, %15 : vector<8x32xf32>
    %cst_15 = arith.constant dense<0.000000e+00> : vector<8xf32>
    %17 = vector.multi_reduction <add>, %16, %cst_15 [1] : vector<8x32xf32> to vector<8xf32>
    %18 = vector.shape_cast %17 : vector<8xf32> to vector<8x1xf32>
    %cst_16 = arith.constant 1.000000e-30 : f32
    %19 = vector.broadcast %cst_16 : f32 to vector<8x1xf32>
    %20 = arith.addf %18, %19 : vector<8x1xf32>
    %21 = math.rsqrt %20 : vector<8x1xf32>
    %22 = vector.broadcast %21 : vector<8x1xf32> to vector<8x32xf32>
    %23 = arith.mulf %15, %22 : vector<8x32xf32>
    %c0_17 = arith.constant 0 : index
    %c0_18 = arith.constant 0 : index
    %24 = vector.load %arg10[%c0_17, %c0_18] : memref<32x32xbf16, #tpu.memory_space<vmem>>, vector<32x32xbf16>
    %25 = arith.truncf %1 : vector<8x32xf32> to vector<8x32xbf16>
    %cst_19 = arith.constant dense<0.000000e+00> : vector<8x32xf32>
    %26 = tpu.matmul %25, %24, %cst_19 {dimension_numbers = #tpu.dot_dimension_numbers<[1], [0], [0], [1], [0, 0, 1, 1], [], []>} : vector<8x32xbf16>, vector<32x32xbf16>, vector<8x32xf32> -> vector<8x32xf32>
    %c0_20 = arith.constant 0 : index
    %c0_21 = arith.constant 0 : index
    %27 = vector.load %arg11[%c0_20, %c0_21] : memref<1x32xf32, #tpu.memory_space<vmem>>, vector<1x32xf32>
    %28 = vector.broadcast %27 : vector<1x32xf32> to vector<8x32xf32>
    %29 = arith.addf %26, %28 : vector<8x32xf32>
    %c0_22 = arith.constant 0 : index
    %c0_23 = arith.constant 0 : index
    %c0_24 = arith.constant 0 : index
    %30 = vector.load %arg5[%c0_22, %c0_23, %c0_24] : memref<1x8x8xbf16, #tpu.memory_space<vmem>>, vector<1x8x8xbf16>
    %31 = vector.shape_cast %30 : vector<1x8x8xbf16> to vector<8x8xbf16>
    %32 = arith.truncf %29 : vector<8x32xf32> to vector<8x32xbf16>
    %cst_25 = arith.constant dense<0.000000e+00> : vector<8x32xf32>
    %33 = tpu.matmul %31, %32, %cst_25 {dimension_numbers = #tpu.dot_dimension_numbers<[1], [0], [0], [1], [0, 0, 1, 1], [], []>} : vector<8x8xbf16>, vector<8x32xbf16>, vector<8x32xf32> -> vector<8x32xf32>
    %34 = arith.mulf %33, %33 : vector<8x32xf32>
    %cst_26 = arith.constant dense<0.000000e+00> : vector<8xf32>
    %35 = vector.multi_reduction <add>, %34, %cst_26 [1] : vector<8x32xf32> to vector<8xf32>
    %36 = vector.shape_cast %35 : vector<8xf32> to vector<8x1xf32>
    %cst_27 = arith.constant 1.000000e-30 : f32
    %37 = vector.broadcast %cst_27 : f32 to vector<8x1xf32>
    %38 = arith.addf %36, %37 : vector<8x1xf32>
    %39 = math.rsqrt %38 : vector<8x1xf32>
    %40 = vector.broadcast %39 : vector<8x1xf32> to vector<8x32xf32>
    %41 = arith.mulf %33, %40 : vector<8x32xf32>
    %c0_28 = arith.constant 0 : index
    %c0_29 = arith.constant 0 : index
    %42 = vector.load %arg12[%c0_28, %c0_29] : memref<32x32xbf16, #tpu.memory_space<vmem>>, vector<32x32xbf16>
    %43 = arith.truncf %1 : vector<8x32xf32> to vector<8x32xbf16>
    %cst_30 = arith.constant dense<0.000000e+00> : vector<8x32xf32>
    %44 = tpu.matmul %43, %42, %cst_30 {dimension_numbers = #tpu.dot_dimension_numbers<[1], [0], [0], [1], [0, 0, 1, 1], [], []>} : vector<8x32xbf16>, vector<32x32xbf16>, vector<8x32xf32> -> vector<8x32xf32>
    %c0_31 = arith.constant 0 : index
    %c0_32 = arith.constant 0 : index
    %45 = vector.load %arg13[%c0_31, %c0_32] : memref<1x32xf32, #tpu.memory_space<vmem>>, vector<1x32xf32>
    %46 = vector.broadcast %45 : vector<1x32xf32> to vector<8x32xf32>
    %47 = arith.addf %44, %46 : vector<8x32xf32>
    %c0_33 = arith.constant 0 : index
    %c0_34 = arith.constant 0 : index
    %c0_35 = arith.constant 0 : index
    %48 = vector.load %arg6[%c0_33, %c0_34, %c0_35] : memref<1x8x8xbf16, #tpu.memory_space<vmem>>, vector<1x8x8xbf16>
    %49 = vector.shape_cast %48 : vector<1x8x8xbf16> to vector<8x8xbf16>
    %50 = arith.truncf %47 : vector<8x32xf32> to vector<8x32xbf16>
    %cst_36 = arith.constant dense<0.000000e+00> : vector<8x32xf32>
    %51 = tpu.matmul %49, %50, %cst_36 {dimension_numbers = #tpu.dot_dimension_numbers<[1], [0], [0], [1], [0, 0, 1, 1], [], []>} : vector<8x8xbf16>, vector<8x32xbf16>, vector<8x32xf32> -> vector<8x32xf32>
    %52 = arith.mulf %51, %51 : vector<8x32xf32>
    %cst_37 = arith.constant dense<0.000000e+00> : vector<8xf32>
    %53 = vector.multi_reduction <add>, %52, %cst_37 [1] : vector<8x32xf32> to vector<8xf32>
    %54 = vector.shape_cast %53 : vector<8xf32> to vector<8x1xf32>
    %cst_38 = arith.constant 1.000000e-30 : f32
    %55 = vector.broadcast %cst_38 : f32 to vector<8x1xf32>
    %56 = arith.addf %54, %55 : vector<8x1xf32>
    %57 = math.rsqrt %56 : vector<8x1xf32>
    %58 = vector.broadcast %57 : vector<8x1xf32> to vector<8x32xf32>
    %59 = arith.mulf %51, %58 : vector<8x32xf32>
    %c0_39 = arith.constant 0 : index
    %c0_40 = arith.constant 0 : index
    %60 = vector.load %arg14[%c0_39, %c0_40] : memref<128x32xbf16, #tpu.memory_space<vmem>>, vector<32x32xbf16>
    %61 = arith.truncf %1 : vector<8x32xf32> to vector<8x32xbf16>
    %cst_41 = arith.constant dense<0.000000e+00> : vector<8x32xf32>
    %62 = tpu.matmul %61, %60, %cst_41 {dimension_numbers = #tpu.dot_dimension_numbers<[1], [0], [0], [1], [0, 0, 1, 1], [], []>} : vector<8x32xbf16>, vector<32x32xbf16>, vector<8x32xf32> -> vector<8x32xf32>
    %c32 = arith.constant 32 : index
    %c0_42 = arith.constant 0 : index
    %63 = vector.load %arg14[%c32, %c0_42] : memref<128x32xbf16, #tpu.memory_space<vmem>>, vector<32x32xbf16>
    %64 = arith.truncf %23 : vector<8x32xf32> to vector<8x32xbf16>
    %cst_43 = arith.constant dense<0.000000e+00> : vector<8x32xf32>
    %65 = tpu.matmul %64, %63, %cst_43 {dimension_numbers = #tpu.dot_dimension_numbers<[1], [0], [0], [1], [0, 0, 1, 1], [], []>} : vector<8x32xbf16>, vector<32x32xbf16>, vector<8x32xf32> -> vector<8x32xf32>
    %66 = arith.addf %62, %65 : vector<8x32xf32>
    %c64 = arith.constant 64 : index
    %c0_44 = arith.constant 0 : index
    %67 = vector.load %arg14[%c64, %c0_44] : memref<128x32xbf16, #tpu.memory_space<vmem>>, vector<32x32xbf16>
    %68 = arith.truncf %41 : vector<8x32xf32> to vector<8x32xbf16>
    %cst_45 = arith.constant dense<0.000000e+00> : vector<8x32xf32>
    %69 = tpu.matmul %68, %67, %cst_45 {dimension_numbers = #tpu.dot_dimension_numbers<[1], [0], [0], [1], [0, 0, 1, 1], [], []>} : vector<8x32xbf16>, vector<32x32xbf16>, vector<8x32xf32> -> vector<8x32xf32>
    %70 = arith.addf %66, %69 : vector<8x32xf32>
    %c96 = arith.constant 96 : index
    %c0_46 = arith.constant 0 : index
    %71 = vector.load %arg14[%c96, %c0_46] : memref<128x32xbf16, #tpu.memory_space<vmem>>, vector<32x32xbf16>
    %72 = arith.truncf %59 : vector<8x32xf32> to vector<8x32xbf16>
    %cst_47 = arith.constant dense<0.000000e+00> : vector<8x32xf32>
    %73 = tpu.matmul %72, %71, %cst_47 {dimension_numbers = #tpu.dot_dimension_numbers<[1], [0], [0], [1], [0, 0, 1, 1], [], []>} : vector<8x32xbf16>, vector<32x32xbf16>, vector<8x32xf32> -> vector<8x32xf32>
    %74 = arith.addf %70, %73 : vector<8x32xf32>
    %c0_48 = arith.constant 0 : index
    %c0_49 = arith.constant 0 : index
    %75 = vector.load %arg15[%c0_48, %c0_49] : memref<1x32xf32, #tpu.memory_space<vmem>>, vector<1x32xf32>
    %76 = vector.broadcast %75 : vector<1x32xf32> to vector<8x32xf32>
    %77 = arith.addf %74, %76 : vector<8x32xf32>
    %78 = arith.negf %77 : vector<8x32xf32>
    %79 = math.exp %78 : vector<8x32xf32>
    %cst_50 = arith.constant 1.000000e+00 : f32
    %80 = vector.broadcast %cst_50 : f32 to vector<8x32xf32>
    %81 = arith.addf %80, %79 : vector<8x32xf32>
    %82 = arith.divf %80, %81 : vector<8x32xf32>
    %c0_51 = arith.constant 0 : index
    %c0_52 = arith.constant 0 : index
    %83 = vector.load %arg16[%c0_51, %c0_52] : memref<96x32xbf16, #tpu.memory_space<vmem>>, vector<32x32xbf16>
    %84 = arith.truncf %23 : vector<8x32xf32> to vector<8x32xbf16>
    %cst_53 = arith.constant dense<0.000000e+00> : vector<8x32xf32>
    %85 = tpu.matmul %84, %83, %cst_53 {dimension_numbers = #tpu.dot_dimension_numbers<[1], [0], [0], [1], [0, 0, 1, 1], [], []>} : vector<8x32xbf16>, vector<32x32xbf16>, vector<8x32xf32> -> vector<8x32xf32>
    %c32_54 = arith.constant 32 : index
    %c0_55 = arith.constant 0 : index
    %86 = vector.load %arg16[%c32_54, %c0_55] : memref<96x32xbf16, #tpu.memory_space<vmem>>, vector<32x32xbf16>
    %87 = arith.truncf %41 : vector<8x32xf32> to vector<8x32xbf16>
    %cst_56 = arith.constant dense<0.000000e+00> : vector<8x32xf32>
    %88 = tpu.matmul %87, %86, %cst_56 {dimension_numbers = #tpu.dot_dimension_numbers<[1], [0], [0], [1], [0, 0, 1, 1], [], []>} : vector<8x32xbf16>, vector<32x32xbf16>, vector<8x32xf32> -> vector<8x32xf32>
    %89 = arith.addf %85, %88 : vector<8x32xf32>
    %c64_57 = arith.constant 64 : index
    %c0_58 = arith.constant 0 : index
    %90 = vector.load %arg16[%c64_57, %c0_58] : memref<96x32xbf16, #tpu.memory_space<vmem>>, vector<32x32xbf16>
    %91 = arith.truncf %59 : vector<8x32xf32> to vector<8x32xbf16>
    %cst_59 = arith.constant dense<0.000000e+00> : vector<8x32xf32>
    %92 = tpu.matmul %91, %90, %cst_59 {dimension_numbers = #tpu.dot_dimension_numbers<[1], [0], [0], [1], [0, 0, 1, 1], [], []>} : vector<8x32xbf16>, vector<32x32xbf16>, vector<8x32xf32> -> vector<8x32xf32>
    %93 = arith.addf %89, %92 : vector<8x32xf32>
    %c0_60 = arith.constant 0 : index
    %c0_61 = arith.constant 0 : index
    %94 = vector.load %arg17[%c0_60, %c0_61] : memref<1x32xf32, #tpu.memory_space<vmem>>, vector<1x32xf32>
    %95 = vector.broadcast %94 : vector<1x32xf32> to vector<8x32xf32>
    %96 = arith.addf %93, %95 : vector<8x32xf32>
    %cst_62 = arith.constant 0.000000e+00 : f32
    %97 = vector.broadcast %cst_62 : f32 to vector<8x32xf32>
    %98 = arith.maximumf %96, %97 : vector<8x32xf32>
    %cst_63 = arith.constant 1.000000e-01 : f32
    %99 = vector.broadcast %cst_63 : f32 to vector<8x32xf32>
    %100 = arith.maximumf %82, %99 : vector<8x32xf32>
    %101 = arith.mulf %100, %1 : vector<8x32xf32>
    %cst_64 = arith.constant 1.000000e+00 : f32
    %102 = vector.broadcast %cst_64 : f32 to vector<8x32xf32>
    %103 = arith.subf %102, %82 : vector<8x32xf32>
    %104 = arith.mulf %103, %98 : vector<8x32xf32>
    %105 = arith.addf %101, %104 : vector<8x32xf32>
    %c0_65 = arith.constant 0 : index
    %c0_66 = arith.constant 0 : index
    %c0_67 = arith.constant 0 : index
    %106 = vector.load %arg24[%c0_65, %c0_66, %c0_67] : memref<1x8x32xf32, #tpu.memory_space<vmem>>, vector<1x8x32xf32>
    %107 = vector.shape_cast %106 : vector<1x8x32xf32> to vector<8x32xf32>
    %108 = vector.shape_cast %105 : vector<8x32xf32> to vector<1x8x32xf32>
    tpu.vector_store %arg24[%c0_65, %c0_66, %c0_67], %108 {strides = array<i32>} : memref<1x8x32xf32, #tpu.memory_space<vmem>>, vector<1x8x32xf32>,
    %c0_68 = arith.constant 0 : index
    %c0_69 = arith.constant 0 : index
    %109 = vector.load %arg18[%c0_68, %c0_69] : memref<32x32xbf16, #tpu.memory_space<vmem>>, vector<32x32xbf16>
    %110 = arith.truncf %105 : vector<8x32xf32> to vector<8x32xbf16>
    %cst_70 = arith.constant dense<0.000000e+00> : vector<8x32xf32>
    %111 = tpu.matmul %110, %109, %cst_70 {dimension_numbers = #tpu.dot_dimension_numbers<[1], [0], [0], [1], [0, 0, 1, 1], [], []>} : vector<8x32xbf16>, vector<32x32xbf16>, vector<8x32xf32> -> vector<8x32xf32>
    %c0_71 = arith.constant 0 : index
    %c0_72 = arith.constant 0 : index
    %112 = vector.load %arg19[%c0_71, %c0_72] : memref<1x32xf32, #tpu.memory_space<vmem>>, vector<1x32xf32>
    %113 = vector.broadcast %112 : vector<1x32xf32> to vector<8x32xf32>
    %114 = arith.addf %111, %113 : vector<8x32xf32>
    %c0_73 = arith.constant 0 : index
    %c0_74 = arith.constant 0 : index
    %c0_75 = arith.constant 0 : index
    %115 = vector.load %arg7[%c0_73, %c0_74, %c0_75] : memref<1x3x8xbf16, #tpu.memory_space<vmem>>, vector<1x3x8xbf16>
    %116 = vector.shape_cast %115 : vector<1x3x8xbf16> to vector<3x8xbf16>
    %117 = arith.truncf %114 : vector<8x32xf32> to vector<8x32xbf16>
    %cst_76 = arith.constant dense<0.000000e+00> : vector<3x32xf32>
    %118 = tpu.matmul %116, %117, %cst_76 {dimension_numbers = #tpu.dot_dimension_numbers<[1], [0], [0], [1], [0, 0, 1, 1], [], []>} : vector<3x8xbf16>, vector<8x32xbf16>, vector<3x32xf32> -> vector<3x32xf32>
    %c0_77 = arith.constant 0 : index
    %c0_78 = arith.constant 0 : index
    %119 = vector.load %arg20[%c0_77, %c0_78] : memref<64x32xbf16, #tpu.memory_space<vmem>>, vector<32x32xbf16>
    %120 = arith.truncf %7 : vector<3x32xf32> to vector<3x32xbf16>
    %cst_79 = arith.constant dense<0.000000e+00> : vector<3x32xf32>
    %121 = tpu.matmul %120, %119, %cst_79 {dimension_numbers = #tpu.dot_dimension_numbers<[1], [0], [0], [1], [0, 0, 1, 1], [], []>} : vector<3x32xbf16>, vector<32x32xbf16>, vector<3x32xf32> -> vector<3x32xf32>
    %c32_80 = arith.constant 32 : index
    %c0_81 = arith.constant 0 : index
    %122 = vector.load %arg20[%c32_80, %c0_81] : memref<64x32xbf16, #tpu.memory_space<vmem>>, vector<32x32xbf16>
    %123 = arith.truncf %118 : vector<3x32xf32> to vector<3x32xbf16>
    %cst_82 = arith.constant dense<0.000000e+00> : vector<3x32xf32>
    %124 = tpu.matmul %123, %122, %cst_82 {dimension_numbers = #tpu.dot_dimension_numbers<[1], [0], [0], [1], [0, 0, 1, 1], [], []>} : vector<3x32xbf16>, vector<32x32xbf16>, vector<3x32xf32> -> vector<3x32xf32>
    %125 = arith.addf %121, %124 : vector<3x32xf32>
    %c0_83 = arith.constant 0 : index
    %c0_84 = arith.constant 0 : index
    %126 = vector.load %arg21[%c0_83, %c0_84] : memref<1x32xf32, #tpu.memory_space<vmem>>, vector<1x32xf32>
    %127 = vector.broadcast %126 : vector<1x32xf32> to vector<3x32xf32>
    %128 = arith.addf %125, %127 : vector<3x32xf32>
    %129 = arith.negf %128 : vector<3x32xf32>
    %130 = math.exp %129 : vector<3x32xf32>
    %cst_85 = arith.constant 1.000000e+00 : f32
    %131 = vector.broadcast %cst_85 : f32 to vector<3x32xf32>
    %132 = arith.addf %131, %130 : vector<3x32xf32>
    %133 = arith.divf %131, %132 : vector<3x32xf32>
    %c0_86 = arith.constant 0 : index
    %c0_87 = arith.constant 0 : index
    %134 = vector.load %arg22[%c0_86, %c0_87] : memref<32x32xbf16, #tpu.memory_space<vmem>>, vector<32x32xbf16>
    %135 = arith.truncf %118 : vector<3x32xf32> to vector<3x32xbf16>
    %cst_88 = arith.constant dense<0.000000e+00> : vector<3x32xf32>
    %136 = tpu.matmul %135, %134, %cst_88 {dimension_numbers = #tpu.dot_dimension_numbers<[1], [0], [0], [1], [0, 0, 1, 1], [], []>} : vector<3x32xbf16>, vector<32x32xbf16>, vector<3x32xf32> -> vector<3x32xf32>
    %c0_89 = arith.constant 0 : index
    %c0_90 = arith.constant 0 : index
    %137 = vector.load %arg23[%c0_89, %c0_90] : memref<1x32xf32, #tpu.memory_space<vmem>>, vector<1x32xf32>
    %138 = vector.broadcast %137 : vector<1x32xf32> to vector<3x32xf32>
    %139 = arith.addf %136, %138 : vector<3x32xf32>
    %cst_91 = arith.constant 0.000000e+00 : f32
    %140 = vector.broadcast %cst_91 : f32 to vector<3x32xf32>
    %141 = arith.maximumf %139, %140 : vector<3x32xf32>
    %cst_92 = arith.constant 1.000000e-01 : f32
    %142 = vector.broadcast %cst_92 : f32 to vector<3x32xf32>
    %143 = arith.maximumf %133, %142 : vector<3x32xf32>
    %144 = arith.mulf %143, %7 : vector<3x32xf32>
    %cst_93 = arith.constant 1.000000e+00 : f32
    %145 = vector.broadcast %cst_93 : f32 to vector<3x32xf32>
    %146 = arith.subf %145, %133 : vector<3x32xf32>
    %147 = arith.mulf %146, %141 : vector<3x32xf32>
    %148 = arith.addf %144, %147 : vector<3x32xf32>
    %c0_94 = arith.constant 0 : index
    %c0_95 = arith.constant 0 : index
    %c0_96 = arith.constant 0 : index
    %149 = vector.load %arg25[%c0_94, %c0_95, %c0_96] : memref<1x3x32xf32, #tpu.memory_space<vmem>>, vector<1x3x32xf32>
    %150 = vector.shape_cast %149 : vector<1x3x32xf32> to vector<3x32xf32>
    %151 = vector.shape_cast %148 : vector<3x32xf32> to vector<1x3x32xf32>
    tpu.vector_store %arg25[%c0_94, %c0_95, %c0_96], %151 {strides = array<i32>} : memref<1x3x32xf32, #tpu.memory_space<vmem>>, vector<1x3x32xf32>,
    return
  }
  func.func @transform_0(%arg0: i32) -> (i32, i32, i32) {
    %c0_i32 = arith.constant 0 : i32
    %c0_i32_0 = arith.constant 0 : i32
    %c0_i32_1 = arith.constant 0 : i32
    return %arg0, %c0_i32, %c0_i32_0 : i32, i32, i32
  }
  func.func @transform_1(%arg0: i32) -> (i32, i32, i32) {
    %c0_i32 = arith.constant 0 : i32
    %c0_i32_0 = arith.constant 0 : i32
    %c0_i32_1 = arith.constant 0 : i32
    return %arg0, %c0_i32, %c0_i32_0 : i32, i32, i32
  }
  func.func @transform_2(%arg0: i32) -> (i32, i32, i32) {
    %c0_i32 = arith.constant 0 : i32
    %c0_i32_0 = arith.constant 0 : i32
    %c0_i32_1 = arith.constant 0 : i32
    return %arg0, %c0_i32, %c0_i32_0 : i32, i32, i32
  }
  func.func @transform_3(%arg0: i32) -> (i32, i32, i32) {
    %c0_i32 = arith.constant 0 : i32
    %c0_i32_0 = arith.constant 0 : i32
    %c0_i32_1 = arith.constant 0 : i32
    return %arg0, %c0_i32, %c0_i32_0 : i32, i32, i32
  }
  func.func @transform_4(%arg0: i32) -> (i32, i32, i32) {
    %c0_i32 = arith.constant 0 : i32
    %c0_i32_0 = arith.constant 0 : i32
    %c0_i32_1 = arith.constant 0 : i32
    return %arg0, %c0_i32, %c0_i32_0 : i32, i32, i32
  }
  func.func @transform_5(%arg0: i32) -> (i32, i32, i32) {
    %c0_i32 = arith.constant 0 : i32
    %c0_i32_0 = arith.constant 0 : i32
    %c0_i32_1 = arith.constant 0 : i32
    return %arg0, %c0_i32, %c0_i32_0 : i32, i32, i32
  }
  func.func @transform_6(%arg0: i32) -> (i32, i32, i32) {
    %c0_i32 = arith.constant 0 : i32
    %c0_i32_0 = arith.constant 0 : i32
    %c0_i32_1 = arith.constant 0 : i32
    return %arg0, %c0_i32, %c0_i32_0 : i32, i32, i32
  }
  func.func @transform_7(%arg0: i32) -> (i32, i32) {
    %c0_i32 = arith.constant 0 : i32
    %c0_i32_0 = arith.constant 0 : i32
    %c0_i32_1 = arith.constant 0 : i32
    return %c0_i32, %c0_i32_0 : i32, i32
  }
  func.func @transform_8(%arg0: i32) -> (i32, i32) {
    %c0_i32 = arith.constant 0 : i32
    %c0_i32_0 = arith.constant 0 : i32
    %c0_i32_1 = arith.constant 0 : i32
    return %c0_i32, %c0_i32_0 : i32, i32
  }
  func.func @transform_9(%arg0: i32) -> (i32, i32) {
    %c0_i32 = arith.constant 0 : i32
    %c0_i32_0 = arith.constant 0 : i32
    %c0_i32_1 = arith.constant 0 : i32
    return %c0_i32, %c0_i32_0 : i32, i32
  }
  func.func @transform_10(%arg0: i32) -> (i32, i32) {
    %c0_i32 = arith.constant 0 : i32
    %c0_i32_0 = arith.constant 0 : i32
    %c0_i32_1 = arith.constant 0 : i32
    return %c0_i32, %c0_i32_0 : i32, i32
  }
  func.func @transform_11(%arg0: i32) -> (i32, i32) {
    %c0_i32 = arith.constant 0 : i32
    %c0_i32_0 = arith.constant 0 : i32
    %c0_i32_1 = arith.constant 0 : i32
    return %c0_i32, %c0_i32_0 : i32, i32
  }
  func.func @transform_12(%arg0: i32) -> (i32, i32) {
    %c0_i32 = arith.constant 0 : i32
    %c0_i32_0 = arith.constant 0 : i32
    %c0_i32_1 = arith.constant 0 : i32
    return %c0_i32, %c0_i32_0 : i32, i32
  }
  func.func @transform_13(%arg0: i32) -> (i32, i32) {
    %c0_i32 = arith.constant 0 : i32
    %c0_i32_0 = arith.constant 0 : i32
    %c0_i32_1 = arith.constant 0 : i32
    return %c0_i32, %c0_i32_0 : i32, i32
  }
  func.func @transform_14(%arg0: i32) -> (i32, i32) {
    %c0_i32 = arith.constant 0 : i32
    %c0_i32_0 = arith.constant 0 : i32
    %c0_i32_1 = arith.constant 0 : i32
    return %c0_i32, %c0_i32_0 : i32, i32
  }
  func.func @transform_15(%arg0: i32) -> (i32, i32) {
    %c0_i32 = arith.constant 0 : i32
    %c0_i32_0 = arith.constant 0 : i32
    %c0_i32_1 = arith.constant 0 : i32
    return %c0_i32, %c0_i32_0 : i32, i32
  }
  func.func @transform_16(%arg0: i32) -> (i32, i32) {
    %c0_i32 = arith.constant 0 : i32
    %c0_i32_0 = arith.constant 0 : i32
    %c0_i32_1 = arith.constant 0 : i32
    return %c0_i32, %c0_i32_0 : i32, i32
  }
  func.func @transform_17(%arg0: i32) -> (i32, i32) {
    %c0_i32 = arith.constant 0 : i32
    %c0_i32_0 = arith.constant 0 : i32
    %c0_i32_1 = arith.constant 0 : i32
    return %c0_i32, %c0_i32_0 : i32, i32
  }
  func.func @transform_18(%arg0: i32) -> (i32, i32) {
    %c0_i32 = arith.constant 0 : i32
    %c0_i32_0 = arith.constant 0 : i32
    %c0_i32_1 = arith.constant 0 : i32
    return %c0_i32, %c0_i32_0 : i32, i32
  }
  func.func @transform_19(%arg0: i32) -> (i32, i32) {
    %c0_i32 = arith.constant 0 : i32
    %c0_i32_0 = arith.constant 0 : i32
    %c0_i32_1 = arith.constant 0 : i32
    return %c0_i32, %c0_i32_0 : i32, i32
  }
  func.func @transform_20(%arg0: i32) -> (i32, i32) {
    %c0_i32 = arith.constant 0 : i32
    %c0_i32_0 = arith.constant 0 : i32
    %c0_i32_1 = arith.constant 0 : i32
    return %c0_i32, %c0_i32_0 : i32, i32
  }
  func.func @transform_21(%arg0: i32) -> (i32, i32) {
    %c0_i32 = arith.constant 0 : i32
    %c0_i32_0 = arith.constant 0 : i32
    %c0_i32_1 = arith.constant 0 : i32
    return %c0_i32, %c0_i32_0 : i32, i32
  }
  func.func @transform_22(%arg0: i32) -> (i32, i32) {
    %c0_i32 = arith.constant 0 : i32
    %c0_i32_0 = arith.constant 0 : i32
    %c0_i32_1 = arith.constant 0 : i32
    return %c0_i32, %c0_i32_0 : i32, i32
  }
  func.func @transform_23(%arg0: i32) -> (i32, i32, i32) {
    %c0_i32 = arith.constant 0 : i32
    %c0_i32_0 = arith.constant 0 : i32
    %c0_i32_1 = arith.constant 0 : i32
    return %arg0, %c0_i32, %c0_i32_0 : i32, i32, i32
  }
  func.func @transform_24(%arg0: i32) -> (i32, i32, i32) {
    %c0_i32 = arith.constant 0 : i32
    %c0_i32_0 = arith.constant 0 : i32
    %c0_i32_1 = arith.constant 0 : i32
    return %arg0, %c0_i32, %c0_i32_0 : i32, i32, i32
  }
}

module attributes {stable_mosaic.version = 11 : i64} {
  func.func @_update_graph_kernel(%arg0: i32, %arg1: i32, %arg2: memref<1x8x32xf32, #tpu.memory_space<vmem>>, %arg3: memref<1x3x32xf32, #tpu.memory_space<vmem>>, %arg4: memref<1x8x3xf32, #tpu.memory_space<vmem>>, %arg5: memref<32x3xbf16, #tpu.memory_space<vmem>>, %arg6: memref<3x32x3xbf16, #tpu.memory_space<vmem>>, %arg7: memref<1x3xf32, #tpu.memory_space<vmem>>, %arg8: memref<32x3xbf16, #tpu.memory_space<vmem>>, %arg9: memref<3x32x3xbf16, #tpu.memory_space<vmem>>, %arg10: memref<1x3xf32, #tpu.memory_space<vmem>>, %arg11: memref<3x3xbf16, #tpu.memory_space<vmem>>, %arg12: memref<3x3xbf16, #tpu.memory_space<vmem>>, %arg13: memref<1x3xf32, #tpu.memory_space<vmem>>, %arg14: memref<1x8x3xf32, #tpu.memory_space<vmem>>) attributes {dimension_semantics = [#tpu.dimension_semantics<parallel>, #tpu.dimension_semantics<parallel>], iteration_bounds = array<i64: 2, 1>, scalar_prefetch = 0 : i64, scratch_operands = 0 : i64, tpu.core_type = #tpu.core_type<tc>, window_params = [{transform_indices = @transform_0, window_bounds = array<i64: 1, 8, 32>}, {transform_indices = @transform_1, window_bounds = array<i64: 1, 3, 32>}, {transform_indices = @transform_2, window_bounds = array<i64: 1, 8, 3>}, {pipeline_mode = #tpu.pipeline_mode<synchronous>, transform_indices = @transform_3, window_bounds = array<i64: 32, 3>}, {pipeline_mode = #tpu.pipeline_mode<synchronous>, transform_indices = @transform_4, window_bounds = array<i64: 3, 32, 3>}, {pipeline_mode = #tpu.pipeline_mode<synchronous>, transform_indices = @transform_5, window_bounds = array<i64: 1, 3>}, {pipeline_mode = #tpu.pipeline_mode<synchronous>, transform_indices = @transform_6, window_bounds = array<i64: 32, 3>}, {pipeline_mode = #tpu.pipeline_mode<synchronous>, transform_indices = @transform_7, window_bounds = array<i64: 3, 32, 3>}, {pipeline_mode = #tpu.pipeline_mode<synchronous>, transform_indices = @transform_8, window_bounds = array<i64: 1, 3>}, {pipeline_mode = #tpu.pipeline_mode<synchronous>, transform_indices = @transform_9, window_bounds = array<i64: 3, 3>}, {pipeline_mode = #tpu.pipeline_mode<synchronous>, transform_indices = @transform_10, window_bounds = array<i64: 3, 3>}, {pipeline_mode = #tpu.pipeline_mode<synchronous>, transform_indices = @transform_11, window_bounds = array<i64: 1, 3>}, {transform_indices = @transform_12, window_bounds = array<i64: 1, 8, 3>}]} {
    %c0 = arith.constant 0 : index
    %c0_0 = arith.constant 0 : index
    %c0_1 = arith.constant 0 : index
    %0 = vector.load %arg2[%c0, %c0_0, %c0_1] : memref<1x8x32xf32, #tpu.memory_space<vmem>>, vector<1x8x32xf32>
    %1 = vector.shape_cast %0 : vector<1x8x32xf32> to vector<8x32xf32>
    %2 = arith.mulf %1, %1 : vector<8x32xf32>
    %cst = arith.constant dense<0.000000e+00> : vector<8xf32>
    %3 = vector.multi_reduction <add>, %2, %cst [1] : vector<8x32xf32> to vector<8xf32>
    %4 = vector.shape_cast %3 : vector<8xf32> to vector<8x1xf32>
    %cst_2 = arith.constant 1.000000e-30 : f32
    %5 = vector.broadcast %cst_2 : f32 to vector<8x1xf32>
    %6 = arith.addf %4, %5 : vector<8x1xf32>
    %7 = math.rsqrt %6 : vector<8x1xf32>
    %8 = vector.broadcast %7 : vector<8x1xf32> to vector<8x32xf32>
    %9 = arith.mulf %1, %8 : vector<8x32xf32>
    %c0_3 = arith.constant 0 : index
    %c0_4 = arith.constant 0 : index
    %c0_5 = arith.constant 0 : index
    %10 = vector.load %arg3[%c0_3, %c0_4, %c0_5] : memref<1x3x32xf32, #tpu.memory_space<vmem>>, vector<1x3x32xf32>
    %11 = vector.shape_cast %10 : vector<1x3x32xf32> to vector<3x32xf32>
    %12 = arith.mulf %11, %11 : vector<3x32xf32>
    %cst_6 = arith.constant dense<0.000000e+00> : vector<3xf32>
    %13 = vector.multi_reduction <add>, %12, %cst_6 [1] : vector<3x32xf32> to vector<3xf32>
    %14 = vector.shape_cast %13 : vector<3xf32> to vector<3x1xf32>
    %cst_7 = arith.constant 1.000000e-30 : f32
    %15 = vector.broadcast %cst_7 : f32 to vector<3x1xf32>
    %16 = arith.addf %14, %15 : vector<3x1xf32>
    %17 = math.rsqrt %16 : vector<3x1xf32>
    %18 = vector.broadcast %17 : vector<3x1xf32> to vector<3x32xf32>
    %19 = arith.mulf %11, %18 : vector<3x32xf32>
    %c0_8 = arith.constant 0 : index
    %c0_9 = arith.constant 0 : index
    %c0_10 = arith.constant 0 : index
    %20 = vector.load %arg4[%c0_8, %c0_9, %c0_10] : memref<1x8x3xf32, #tpu.memory_space<vmem>>, vector<1x8x3xf32>
    %21 = vector.shape_cast %20 : vector<1x8x3xf32> to vector<8x3xf32>
    %c0_11 = arith.constant 0 : index
    %c0_12 = arith.constant 0 : index
    %22 = vector.load %arg7[%c0_11, %c0_12] : memref<1x3xf32, #tpu.memory_space<vmem>>, vector<1x3xf32>
    %c0_13 = arith.constant 0 : index
    %c0_14 = arith.constant 0 : index
    %23 = vector.load %arg10[%c0_13, %c0_14] : memref<1x3xf32, #tpu.memory_space<vmem>>, vector<1x3xf32>
    %24 = vector.extract_strided_slice %19 {offsets = [0, 0], sizes = [1, 32], strides = [1, 1]} : vector<3x32xf32> to vector<1x32xf32>
    %c0_15 = arith.constant 0 : index
    %c0_16 = arith.constant 0 : index
    %c0_17 = arith.constant 0 : index
    %25 = vector.load %arg6[%c0_15, %c0_16, %c0_17] : memref<3x32x3xbf16, #tpu.memory_space<vmem>>, vector<1x32x3xbf16>
    %26 = vector.shape_cast %25 : vector<1x32x3xbf16> to vector<32x3xbf16>
    %27 = arith.truncf %24 : vector<1x32xf32> to vector<1x32xbf16>
    %cst_18 = arith.constant dense<0.000000e+00> : vector<1x3xf32>
    %28 = tpu.matmul %27, %26, %cst_18 {dimension_numbers = #tpu.dot_dimension_numbers<[1], [0], [0], [1], [0, 0, 1, 1], [], []>} : vector<1x32xbf16>, vector<32x3xbf16>, vector<1x3xf32> -> vector<1x3xf32>
    %29 = arith.addf %22, %28 : vector<1x3xf32>
    %c0_19 = arith.constant 0 : index
    %c0_20 = arith.constant 0 : index
    %c0_21 = arith.constant 0 : index
    %30 = vector.load %arg9[%c0_19, %c0_20, %c0_21] : memref<3x32x3xbf16, #tpu.memory_space<vmem>>, vector<1x32x3xbf16>
    %31 = vector.shape_cast %30 : vector<1x32x3xbf16> to vector<32x3xbf16>
    %32 = arith.truncf %24 : vector<1x32xf32> to vector<1x32xbf16>
    %cst_22 = arith.constant dense<0.000000e+00> : vector<1x3xf32>
    %33 = tpu.matmul %32, %31, %cst_22 {dimension_numbers = #tpu.dot_dimension_numbers<[1], [0], [0], [1], [0, 0, 1, 1], [], []>} : vector<1x32xbf16>, vector<32x3xbf16>, vector<1x3xf32> -> vector<1x3xf32>
    %34 = arith.addf %23, %33 : vector<1x3xf32>
    %35 = vector.extract_strided_slice %19 {offsets = [1, 0], sizes = [1, 32], strides = [1, 1]} : vector<3x32xf32> to vector<1x32xf32>
    %c1 = arith.constant 1 : index
    %c0_23 = arith.constant 0 : index
    %c0_24 = arith.constant 0 : index
    %36 = vector.load %arg6[%c1, %c0_23, %c0_24] : memref<3x32x3xbf16, #tpu.memory_space<vmem>>, vector<1x32x3xbf16>
    %37 = vector.shape_cast %36 : vector<1x32x3xbf16> to vector<32x3xbf16>
    %38 = arith.truncf %35 : vector<1x32xf32> to vector<1x32xbf16>
    %cst_25 = arith.constant dense<0.000000e+00> : vector<1x3xf32>
    %39 = tpu.matmul %38, %37, %cst_25 {dimension_numbers = #tpu.dot_dimension_numbers<[1], [0], [0], [1], [0, 0, 1, 1], [], []>} : vector<1x32xbf16>, vector<32x3xbf16>, vector<1x3xf32> -> vector<1x3xf32>
    %40 = arith.addf %29, %39 : vector<1x3xf32>
    %c1_26 = arith.constant 1 : index
    %c0_27 = arith.constant 0 : index
    %c0_28 = arith.constant 0 : index
    %41 = vector.load %arg9[%c1_26, %c0_27, %c0_28] : memref<3x32x3xbf16, #tpu.memory_space<vmem>>, vector<1x32x3xbf16>
    %42 = vector.shape_cast %41 : vector<1x32x3xbf16> to vector<32x3xbf16>
    %43 = arith.truncf %35 : vector<1x32xf32> to vector<1x32xbf16>
    %cst_29 = arith.constant dense<0.000000e+00> : vector<1x3xf32>
    %44 = tpu.matmul %43, %42, %cst_29 {dimension_numbers = #tpu.dot_dimension_numbers<[1], [0], [0], [1], [0, 0, 1, 1], [], []>} : vector<1x32xbf16>, vector<32x3xbf16>, vector<1x3xf32> -> vector<1x3xf32>
    %45 = arith.addf %34, %44 : vector<1x3xf32>
    %46 = vector.extract_strided_slice %19 {offsets = [2, 0], sizes = [1, 32], strides = [1, 1]} : vector<3x32xf32> to vector<1x32xf32>
    %c2 = arith.constant 2 : index
    %c0_30 = arith.constant 0 : index
    %c0_31 = arith.constant 0 : index
    %47 = vector.load %arg6[%c2, %c0_30, %c0_31] : memref<3x32x3xbf16, #tpu.memory_space<vmem>>, vector<1x32x3xbf16>
    %48 = vector.shape_cast %47 : vector<1x32x3xbf16> to vector<32x3xbf16>
    %49 = arith.truncf %46 : vector<1x32xf32> to vector<1x32xbf16>
    %cst_32 = arith.constant dense<0.000000e+00> : vector<1x3xf32>
    %50 = tpu.matmul %49, %48, %cst_32 {dimension_numbers = #tpu.dot_dimension_numbers<[1], [0], [0], [1], [0, 0, 1, 1], [], []>} : vector<1x32xbf16>, vector<32x3xbf16>, vector<1x3xf32> -> vector<1x3xf32>
    %51 = arith.addf %40, %50 : vector<1x3xf32>
    %c2_33 = arith.constant 2 : index
    %c0_34 = arith.constant 0 : index
    %c0_35 = arith.constant 0 : index
    %52 = vector.load %arg9[%c2_33, %c0_34, %c0_35] : memref<3x32x3xbf16, #tpu.memory_space<vmem>>, vector<1x32x3xbf16>
    %53 = vector.shape_cast %52 : vector<1x32x3xbf16> to vector<32x3xbf16>
    %54 = arith.truncf %46 : vector<1x32xf32> to vector<1x32xbf16>
    %cst_36 = arith.constant dense<0.000000e+00> : vector<1x3xf32>
    %55 = tpu.matmul %54, %53, %cst_36 {dimension_numbers = #tpu.dot_dimension_numbers<[1], [0], [0], [1], [0, 0, 1, 1], [], []>} : vector<1x32xbf16>, vector<32x3xbf16>, vector<1x3xf32> -> vector<1x3xf32>
    %56 = arith.addf %45, %55 : vector<1x3xf32>
    %c0_37 = arith.constant 0 : index
    %c0_38 = arith.constant 0 : index
    %57 = vector.load %arg5[%c0_37, %c0_38] : memref<32x3xbf16, #tpu.memory_space<vmem>>, vector<32x3xbf16>
    %58 = arith.truncf %9 : vector<8x32xf32> to vector<8x32xbf16>
    %cst_39 = arith.constant dense<0.000000e+00> : vector<8x3xf32>
    %59 = tpu.matmul %58, %57, %cst_39 {dimension_numbers = #tpu.dot_dimension_numbers<[1], [0], [0], [1], [0, 0, 1, 1], [], []>} : vector<8x32xbf16>, vector<32x3xbf16>, vector<8x3xf32> -> vector<8x3xf32>
    %60 = vector.broadcast %51 : vector<1x3xf32> to vector<8x3xf32>
    %61 = arith.addf %59, %60 : vector<8x3xf32>
    %62 = arith.negf %61 : vector<8x3xf32>
    %63 = math.exp %62 : vector<8x3xf32>
    %cst_40 = arith.constant 1.000000e+00 : f32
    %64 = vector.broadcast %cst_40 : f32 to vector<8x3xf32>
    %65 = arith.addf %64, %63 : vector<8x3xf32>
    %66 = arith.divf %64, %65 : vector<8x3xf32>
    %c0_41 = arith.constant 0 : index
    %c0_42 = arith.constant 0 : index
    %67 = vector.load %arg8[%c0_41, %c0_42] : memref<32x3xbf16, #tpu.memory_space<vmem>>, vector<32x3xbf16>
    %68 = arith.truncf %9 : vector<8x32xf32> to vector<8x32xbf16>
    %cst_43 = arith.constant dense<0.000000e+00> : vector<8x3xf32>
    %69 = tpu.matmul %68, %67, %cst_43 {dimension_numbers = #tpu.dot_dimension_numbers<[1], [0], [0], [1], [0, 0, 1, 1], [], []>} : vector<8x32xbf16>, vector<32x3xbf16>, vector<8x3xf32> -> vector<8x3xf32>
    %70 = vector.broadcast %56 : vector<1x3xf32> to vector<8x3xf32>
    %71 = arith.addf %69, %70 : vector<8x3xf32>
    %c0_44 = arith.constant 0 : index
    %c0_45 = arith.constant 0 : index
    %72 = vector.load %arg11[%c0_44, %c0_45] : memref<3x3xbf16, #tpu.memory_space<vmem>>, vector<3x3xbf16>
    %73 = arith.truncf %21 : vector<8x3xf32> to vector<8x3xbf16>
    %cst_46 = arith.constant dense<0.000000e+00> : vector<8x3xf32>
    %74 = tpu.matmul %73, %72, %cst_46 {dimension_numbers = #tpu.dot_dimension_numbers<[1], [0], [0], [1], [0, 0, 1, 1], [], []>} : vector<8x3xbf16>, vector<3x3xbf16>, vector<8x3xf32> -> vector<8x3xf32>
    %c0_47 = arith.constant 0 : index
    %c0_48 = arith.constant 0 : index
    %75 = vector.load %arg12[%c0_47, %c0_48] : memref<3x3xbf16, #tpu.memory_space<vmem>>, vector<3x3xbf16>
    %76 = arith.truncf %71 : vector<8x3xf32> to vector<8x3xbf16>
    %cst_49 = arith.constant dense<0.000000e+00> : vector<8x3xf32>
    %77 = tpu.matmul %76, %75, %cst_49 {dimension_numbers = #tpu.dot_dimension_numbers<[1], [0], [0], [1], [0, 0, 1, 1], [], []>} : vector<8x3xbf16>, vector<3x3xbf16>, vector<8x3xf32> -> vector<8x3xf32>
    %78 = arith.addf %74, %77 : vector<8x3xf32>
    %c0_50 = arith.constant 0 : index
    %c0_51 = arith.constant 0 : index
    %79 = vector.load %arg13[%c0_50, %c0_51] : memref<1x3xf32, #tpu.memory_space<vmem>>, vector<1x3xf32>
    %80 = vector.broadcast %79 : vector<1x3xf32> to vector<8x3xf32>
    %81 = arith.addf %78, %80 : vector<8x3xf32>
    %cst_52 = arith.constant 0.000000e+00 : f32
    %82 = vector.broadcast %cst_52 : f32 to vector<8x3xf32>
    %83 = arith.maximumf %81, %82 : vector<8x3xf32>
    %cst_53 = arith.constant dense<0xFF800000> : vector<8xf32>
    %84 = vector.multi_reduction <maximumf>, %83, %cst_53 [1] : vector<8x3xf32> to vector<8xf32>
    %85 = vector.shape_cast %84 : vector<8xf32> to vector<8x1xf32>
    %86 = vector.broadcast %85 : vector<8x1xf32> to vector<8x3xf32>
    %87 = arith.subf %83, %86 : vector<8x3xf32>
    %88 = math.exp %87 : vector<8x3xf32>
    %cst_54 = arith.constant dense<0.000000e+00> : vector<8xf32>
    %89 = vector.multi_reduction <add>, %88, %cst_54 [1] : vector<8x3xf32> to vector<8xf32>
    %90 = vector.shape_cast %89 : vector<8xf32> to vector<8x1xf32>
    %91 = tpu.reciprocal %90 {approx = true} : vector<8x1xf32> -> vector<8x1xf32>
    %92 = vector.broadcast %91 : vector<8x1xf32> to vector<8x3xf32>
    %93 = arith.mulf %88, %92 : vector<8x3xf32>
    %cst_55 = arith.constant 1.000000e-01 : f32
    %94 = vector.broadcast %cst_55 : f32 to vector<8x3xf32>
    %95 = arith.maximumf %66, %94 : vector<8x3xf32>
    %96 = arith.mulf %95, %21 : vector<8x3xf32>
    %cst_56 = arith.constant 1.000000e+00 : f32
    %97 = vector.broadcast %cst_56 : f32 to vector<8x3xf32>
    %98 = arith.subf %97, %95 : vector<8x3xf32>
    %99 = arith.mulf %98, %93 : vector<8x3xf32>
    %100 = arith.addf %96, %99 : vector<8x3xf32>
    %c0_57 = arith.constant 0 : index
    %c0_58 = arith.constant 0 : index
    %c0_59 = arith.constant 0 : index
    %101 = vector.load %arg14[%c0_57, %c0_58, %c0_59] : memref<1x8x3xf32, #tpu.memory_space<vmem>>, vector<1x8x3xf32>
    %102 = vector.shape_cast %101 : vector<1x8x3xf32> to vector<8x3xf32>
    %103 = vector.shape_cast %100 : vector<8x3xf32> to vector<1x8x3xf32>
    tpu.vector_store %arg14[%c0_57, %c0_58, %c0_59], %103 {strides = array<i32>} : memref<1x8x3xf32, #tpu.memory_space<vmem>>, vector<1x8x3xf32>,
    return
  }
  func.func @transform_0(%arg0: i32, %arg1: i32) -> (i32, i32, i32) {
    %c0_i32 = arith.constant 0 : i32
    %c0_i32_0 = arith.constant 0 : i32
    return %arg0, %arg1, %c0_i32 : i32, i32, i32
  }
  func.func @transform_1(%arg0: i32, %arg1: i32) -> (i32, i32, i32) {
    %c0_i32 = arith.constant 0 : i32
    %c0_i32_0 = arith.constant 0 : i32
    %c0_i32_1 = arith.constant 0 : i32
    return %arg0, %c0_i32, %c0_i32_0 : i32, i32, i32
  }
  func.func @transform_2(%arg0: i32, %arg1: i32) -> (i32, i32, i32) {
    %c0_i32 = arith.constant 0 : i32
    %c0_i32_0 = arith.constant 0 : i32
    return %arg0, %arg1, %c0_i32 : i32, i32, i32
  }
  func.func @transform_3(%arg0: i32, %arg1: i32) -> (i32, i32) {
    %c0_i32 = arith.constant 0 : i32
    %c0_i32_0 = arith.constant 0 : i32
    %c0_i32_1 = arith.constant 0 : i32
    return %c0_i32, %c0_i32_0 : i32, i32
  }
  func.func @transform_4(%arg0: i32, %arg1: i32) -> (i32, i32, i32) {
    %c0_i32 = arith.constant 0 : i32
    %c0_i32_0 = arith.constant 0 : i32
    %c0_i32_1 = arith.constant 0 : i32
    %c0_i32_2 = arith.constant 0 : i32
    return %c0_i32, %c0_i32_0, %c0_i32_1 : i32, i32, i32
  }
  func.func @transform_5(%arg0: i32, %arg1: i32) -> (i32, i32) {
    %c0_i32 = arith.constant 0 : i32
    %c0_i32_0 = arith.constant 0 : i32
    %c0_i32_1 = arith.constant 0 : i32
    return %c0_i32, %c0_i32_0 : i32, i32
  }
  func.func @transform_6(%arg0: i32, %arg1: i32) -> (i32, i32) {
    %c0_i32 = arith.constant 0 : i32
    %c0_i32_0 = arith.constant 0 : i32
    %c0_i32_1 = arith.constant 0 : i32
    return %c0_i32, %c0_i32_0 : i32, i32
  }
  func.func @transform_7(%arg0: i32, %arg1: i32) -> (i32, i32, i32) {
    %c0_i32 = arith.constant 0 : i32
    %c0_i32_0 = arith.constant 0 : i32
    %c0_i32_1 = arith.constant 0 : i32
    %c0_i32_2 = arith.constant 0 : i32
    return %c0_i32, %c0_i32_0, %c0_i32_1 : i32, i32, i32
  }
  func.func @transform_8(%arg0: i32, %arg1: i32) -> (i32, i32) {
    %c0_i32 = arith.constant 0 : i32
    %c0_i32_0 = arith.constant 0 : i32
    %c0_i32_1 = arith.constant 0 : i32
    return %c0_i32, %c0_i32_0 : i32, i32
  }
  func.func @transform_9(%arg0: i32, %arg1: i32) -> (i32, i32) {
    %c0_i32 = arith.constant 0 : i32
    %c0_i32_0 = arith.constant 0 : i32
    %c0_i32_1 = arith.constant 0 : i32
    return %c0_i32, %c0_i32_0 : i32, i32
  }
  func.func @transform_10(%arg0: i32, %arg1: i32) -> (i32, i32) {
    %c0_i32 = arith.constant 0 : i32
    %c0_i32_0 = arith.constant 0 : i32
    %c0_i32_1 = arith.constant 0 : i32
    return %c0_i32, %c0_i32_0 : i32, i32
  }
  func.func @transform_11(%arg0: i32, %arg1: i32) -> (i32, i32) {
    %c0_i32 = arith.constant 0 : i32
    %c0_i32_0 = arith.constant 0 : i32
    %c0_i32_1 = arith.constant 0 : i32
    return %c0_i32, %c0_i32_0 : i32, i32
  }
  func.func @transform_12(%arg0: i32, %arg1: i32) -> (i32, i32, i32) {
    %c0_i32 = arith.constant 0 : i32
    %c0_i32_0 = arith.constant 0 : i32
    return %arg0, %arg1, %c0_i32 : i32, i32, i32
  }
}

module attributes {stable_mosaic.version = 11 : i64} {
  func.func @_up2bottom_kernel(%arg0: i32, %arg1: memref<1x8x32xf32, #tpu.memory_space<vmem>>, %arg2: memref<1x1x32xf32, #tpu.memory_space<vmem>>, %arg3: memref<1x3x32xf32, #tpu.memory_space<vmem>>, %arg4: memref<1x8x3xf32, #tpu.memory_space<vmem>>, %arg5: memref<1x8x8xbf16, #tpu.memory_space<vmem>>, %arg6: memref<1x8x8xbf16, #tpu.memory_space<vmem>>, %arg7: memref<1x1x8xbf16, #tpu.memory_space<vmem>>, %arg8: memref<32x32xbf16, #tpu.memory_space<vmem>>, %arg9: memref<1x32xf32, #tpu.memory_space<vmem>>, %arg10: memref<32x32xbf16, #tpu.memory_space<vmem>>, %arg11: memref<1x32xf32, #tpu.memory_space<vmem>>, %arg12: memref<32x32xbf16, #tpu.memory_space<vmem>>, %arg13: memref<1x32xf32, #tpu.memory_space<vmem>>, %arg14: memref<96x32xbf16, #tpu.memory_space<vmem>>, %arg15: memref<1x32xf32, #tpu.memory_space<vmem>>, %arg16: memref<32x32xbf16, #tpu.memory_space<vmem>>, %arg17: memref<1x32xf32, #tpu.memory_space<vmem>>, %arg18: memref<64x32xbf16, #tpu.memory_space<vmem>>, %arg19: memref<1x32xf32, #tpu.memory_space<vmem>>, %arg20: memref<1x1x32xf32, #tpu.memory_space<vmem>>) attributes {dimension_semantics = [#tpu.dimension_semantics<parallel>], iteration_bounds = array<i64: 2>, scalar_prefetch = 0 : i64, scratch_operands = 0 : i64, tpu.core_type = #tpu.core_type<tc>, window_params = [{transform_indices = @transform_0, window_bounds = array<i64: 1, 8, 32>}, {transform_indices = @transform_1, window_bounds = array<i64: 1, 1, 32>}, {transform_indices = @transform_2, window_bounds = array<i64: 1, 3, 32>}, {transform_indices = @transform_3, window_bounds = array<i64: 1, 8, 3>}, {transform_indices = @transform_4, window_bounds = array<i64: 1, 8, 8>}, {transform_indices = @transform_5, window_bounds = array<i64: 1, 8, 8>}, {transform_indices = @transform_6, window_bounds = array<i64: 1, 1, 8>}, {pipeline_mode = #tpu.pipeline_mode<synchronous>, transform_indices = @transform_7, window_bounds = array<i64: 32, 32>}, {pipeline_mode = #tpu.pipeline_mode<synchronous>, transform_indices = @transform_8, window_bounds = array<i64: 1, 32>}, {pipeline_mode = #tpu.pipeline_mode<synchronous>, transform_indices = @transform_9, window_bounds = array<i64: 32, 32>}, {pipeline_mode = #tpu.pipeline_mode<synchronous>, transform_indices = @transform_10, window_bounds = array<i64: 1, 32>}, {pipeline_mode = #tpu.pipeline_mode<synchronous>, transform_indices = @transform_11, window_bounds = array<i64: 32, 32>}, {pipeline_mode = #tpu.pipeline_mode<synchronous>, transform_indices = @transform_12, window_bounds = array<i64: 1, 32>}, {pipeline_mode = #tpu.pipeline_mode<synchronous>, transform_indices = @transform_13, window_bounds = array<i64: 96, 32>}, {pipeline_mode = #tpu.pipeline_mode<synchronous>, transform_indices = @transform_14, window_bounds = array<i64: 1, 32>}, {pipeline_mode = #tpu.pipeline_mode<synchronous>, transform_indices = @transform_15, window_bounds = array<i64: 32, 32>}, {pipeline_mode = #tpu.pipeline_mode<synchronous>, transform_indices = @transform_16, window_bounds = array<i64: 1, 32>}, {pipeline_mode = #tpu.pipeline_mode<synchronous>, transform_indices = @transform_17, window_bounds = array<i64: 64, 32>}, {pipeline_mode = #tpu.pipeline_mode<synchronous>, transform_indices = @transform_18, window_bounds = array<i64: 1, 32>}, {transform_indices = @transform_19, window_bounds = array<i64: 1, 1, 32>}]} {
    %c0 = arith.constant 0 : index
    %c0_0 = arith.constant 0 : index
    %c0_1 = arith.constant 0 : index
    %0 = vector.load %arg1[%c0, %c0_0, %c0_1] : memref<1x8x32xf32, #tpu.memory_space<vmem>>, vector<1x8x32xf32>
    %1 = vector.shape_cast %0 : vector<1x8x32xf32> to vector<8x32xf32>
    %c0_2 = arith.constant 0 : index
    %c0_3 = arith.constant 0 : index
    %c0_4 = arith.constant 0 : index
    %2 = vector.load %arg2[%c0_2, %c0_3, %c0_4] : memref<1x1x32xf32, #tpu.memory_space<vmem>>, vector<1x1x32xf32>
    %3 = vector.shape_cast %2 : vector<1x1x32xf32> to vector<1x32xf32>
    %c0_5 = arith.constant 0 : index
    %c0_6 = arith.constant 0 : index
    %c0_7 = arith.constant 0 : index
    %4 = vector.load %arg3[%c0_5, %c0_6, %c0_7] : memref<1x3x32xf32, #tpu.memory_space<vmem>>, vector<1x3x32xf32>
    %5 = vector.shape_cast %4 : vector<1x3x32xf32> to vector<3x32xf32>
    %c0_8 = arith.constant 0 : index
    %c0_9 = arith.constant 0 : index
    %c0_10 = arith.constant 0 : index
    %6 = vector.load %arg4[%c0_8, %c0_9, %c0_10] : memref<1x8x3xf32, #tpu.memory_space<vmem>>, vector<1x8x3xf32>
    %7 = vector.shape_cast %6 : vector<1x8x3xf32> to vector<8x3xf32>
    %c0_11 = arith.constant 0 : index
    %c0_12 = arith.constant 0 : index
    %8 = vector.load %arg8[%c0_11, %c0_12] : memref<32x32xbf16, #tpu.memory_space<vmem>>, vector<32x32xbf16>
    %9 = arith.truncf %5 : vector<3x32xf32> to vector<3x32xbf16>
    %cst = arith.constant dense<0.000000e+00> : vector<3x32xf32>
    %10 = tpu.matmul %9, %8, %cst {dimension_numbers = #tpu.dot_dimension_numbers<[1], [0], [0], [1], [0, 0, 1, 1], [], []>} : vector<3x32xbf16>, vector<32x32xbf16>, vector<3x32xf32> -> vector<3x32xf32>
    %c0_13 = arith.constant 0 : index
    %c0_14 = arith.constant 0 : index
    %11 = vector.load %arg9[%c0_13, %c0_14] : memref<1x32xf32, #tpu.memory_space<vmem>>, vector<1x32xf32>
    %12 = vector.broadcast %11 : vector<1x32xf32> to vector<3x32xf32>
    %13 = arith.addf %10, %12 : vector<3x32xf32>
    %14 = arith.truncf %7 : vector<8x3xf32> to vector<8x3xbf16>
    %15 = arith.truncf %13 : vector<3x32xf32> to vector<3x32xbf16>
    %cst_15 = arith.constant dense<0.000000e+00> : vector<8x32xf32>
    %16 = tpu.matmul %14, %15, %cst_15 {dimension_numbers = #tpu.dot_dimension_numbers<[1], [0], [0], [1], [0, 0, 1, 1], [], []>} : vector<8x3xbf16>, vector<3x32xbf16>, vector<8x32xf32> -> vector<8x32xf32>
    %17 = arith.mulf %16, %16 : vector<8x32xf32>
    %cst_16 = arith.constant dense<0.000000e+00> : vector<8xf32>
    %18 = vector.multi_reduction <add>, %17, %cst_16 [1] : vector<8x32xf32> to vector<8xf32>
    %19 = vector.shape_cast %18 : vector<8xf32> to vector<8x1xf32>
    %cst_17 = arith.constant 1.000000e-30 : f32
    %20 = vector.broadcast %cst_17 : f32 to vector<8x1xf32>
    %21 = arith.addf %19, %20 : vector<8x1xf32>
    %22 = math.rsqrt %21 : vector<8x1xf32>
    %23 = vector.broadcast %22 : vector<8x1xf32> to vector<8x32xf32>
    %24 = arith.mulf %16, %23 : vector<8x32xf32>
    %c0_18 = arith.constant 0 : index
    %c0_19 = arith.constant 0 : index
    %25 = vector.load %arg10[%c0_18, %c0_19] : memref<32x32xbf16, #tpu.memory_space<vmem>>, vector<32x32xbf16>
    %26 = arith.truncf %1 : vector<8x32xf32> to vector<8x32xbf16>
    %cst_20 = arith.constant dense<0.000000e+00> : vector<8x32xf32>
    %27 = tpu.matmul %26, %25, %cst_20 {dimension_numbers = #tpu.dot_dimension_numbers<[1], [0], [0], [1], [0, 0, 1, 1], [], []>} : vector<8x32xbf16>, vector<32x32xbf16>, vector<8x32xf32> -> vector<8x32xf32>
    %c0_21 = arith.constant 0 : index
    %c0_22 = arith.constant 0 : index
    %28 = vector.load %arg11[%c0_21, %c0_22] : memref<1x32xf32, #tpu.memory_space<vmem>>, vector<1x32xf32>
    %29 = vector.broadcast %28 : vector<1x32xf32> to vector<8x32xf32>
    %30 = arith.addf %27, %29 : vector<8x32xf32>
    %c0_23 = arith.constant 0 : index
    %c0_24 = arith.constant 0 : index
    %c0_25 = arith.constant 0 : index
    %31 = vector.load %arg5[%c0_23, %c0_24, %c0_25] : memref<1x8x8xbf16, #tpu.memory_space<vmem>>, vector<1x8x8xbf16>
    %32 = vector.shape_cast %31 : vector<1x8x8xbf16> to vector<8x8xbf16>
    %33 = arith.truncf %30 : vector<8x32xf32> to vector<8x32xbf16>
    %cst_26 = arith.constant dense<0.000000e+00> : vector<8x32xf32>
    %34 = tpu.matmul %32, %33, %cst_26 {dimension_numbers = #tpu.dot_dimension_numbers<[1], [0], [0], [1], [0, 0, 1, 1], [], []>} : vector<8x8xbf16>, vector<8x32xbf16>, vector<8x32xf32> -> vector<8x32xf32>
    %35 = arith.mulf %34, %34 : vector<8x32xf32>
    %cst_27 = arith.constant dense<0.000000e+00> : vector<8xf32>
    %36 = vector.multi_reduction <add>, %35, %cst_27 [1] : vector<8x32xf32> to vector<8xf32>
    %37 = vector.shape_cast %36 : vector<8xf32> to vector<8x1xf32>
    %cst_28 = arith.constant 1.000000e-30 : f32
    %38 = vector.broadcast %cst_28 : f32 to vector<8x1xf32>
    %39 = arith.addf %37, %38 : vector<8x1xf32>
    %40 = math.rsqrt %39 : vector<8x1xf32>
    %41 = vector.broadcast %40 : vector<8x1xf32> to vector<8x32xf32>
    %42 = arith.mulf %34, %41 : vector<8x32xf32>
    %c0_29 = arith.constant 0 : index
    %c0_30 = arith.constant 0 : index
    %43 = vector.load %arg12[%c0_29, %c0_30] : memref<32x32xbf16, #tpu.memory_space<vmem>>, vector<32x32xbf16>
    %44 = arith.truncf %1 : vector<8x32xf32> to vector<8x32xbf16>
    %cst_31 = arith.constant dense<0.000000e+00> : vector<8x32xf32>
    %45 = tpu.matmul %44, %43, %cst_31 {dimension_numbers = #tpu.dot_dimension_numbers<[1], [0], [0], [1], [0, 0, 1, 1], [], []>} : vector<8x32xbf16>, vector<32x32xbf16>, vector<8x32xf32> -> vector<8x32xf32>
    %c0_32 = arith.constant 0 : index
    %c0_33 = arith.constant 0 : index
    %46 = vector.load %arg13[%c0_32, %c0_33] : memref<1x32xf32, #tpu.memory_space<vmem>>, vector<1x32xf32>
    %47 = vector.broadcast %46 : vector<1x32xf32> to vector<8x32xf32>
    %48 = arith.addf %45, %47 : vector<8x32xf32>
    %c0_34 = arith.constant 0 : index
    %c0_35 = arith.constant 0 : index
    %c0_36 = arith.constant 0 : index
    %49 = vector.load %arg6[%c0_34, %c0_35, %c0_36] : memref<1x8x8xbf16, #tpu.memory_space<vmem>>, vector<1x8x8xbf16>
    %50 = vector.shape_cast %49 : vector<1x8x8xbf16> to vector<8x8xbf16>
    %51 = arith.truncf %48 : vector<8x32xf32> to vector<8x32xbf16>
    %cst_37 = arith.constant dense<0.000000e+00> : vector<8x32xf32>
    %52 = tpu.matmul %50, %51, %cst_37 {dimension_numbers = #tpu.dot_dimension_numbers<[1], [0], [0], [1], [0, 0, 1, 1], [], []>} : vector<8x8xbf16>, vector<8x32xbf16>, vector<8x32xf32> -> vector<8x32xf32>
    %53 = arith.mulf %52, %52 : vector<8x32xf32>
    %cst_38 = arith.constant dense<0.000000e+00> : vector<8xf32>
    %54 = vector.multi_reduction <add>, %53, %cst_38 [1] : vector<8x32xf32> to vector<8xf32>
    %55 = vector.shape_cast %54 : vector<8xf32> to vector<8x1xf32>
    %cst_39 = arith.constant 1.000000e-30 : f32
    %56 = vector.broadcast %cst_39 : f32 to vector<8x1xf32>
    %57 = arith.addf %55, %56 : vector<8x1xf32>
    %58 = math.rsqrt %57 : vector<8x1xf32>
    %59 = vector.broadcast %58 : vector<8x1xf32> to vector<8x32xf32>
    %60 = arith.mulf %52, %59 : vector<8x32xf32>
    %c0_40 = arith.constant 0 : index
    %c0_41 = arith.constant 0 : index
    %61 = vector.load %arg14[%c0_40, %c0_41] : memref<96x32xbf16, #tpu.memory_space<vmem>>, vector<32x32xbf16>
    %62 = arith.truncf %24 : vector<8x32xf32> to vector<8x32xbf16>
    %cst_42 = arith.constant dense<0.000000e+00> : vector<8x32xf32>
    %63 = tpu.matmul %62, %61, %cst_42 {dimension_numbers = #tpu.dot_dimension_numbers<[1], [0], [0], [1], [0, 0, 1, 1], [], []>} : vector<8x32xbf16>, vector<32x32xbf16>, vector<8x32xf32> -> vector<8x32xf32>
    %c32 = arith.constant 32 : index
    %c0_43 = arith.constant 0 : index
    %64 = vector.load %arg14[%c32, %c0_43] : memref<96x32xbf16, #tpu.memory_space<vmem>>, vector<32x32xbf16>
    %65 = arith.truncf %42 : vector<8x32xf32> to vector<8x32xbf16>
    %cst_44 = arith.constant dense<0.000000e+00> : vector<8x32xf32>
    %66 = tpu.matmul %65, %64, %cst_44 {dimension_numbers = #tpu.dot_dimension_numbers<[1], [0], [0], [1], [0, 0, 1, 1], [], []>} : vector<8x32xbf16>, vector<32x32xbf16>, vector<8x32xf32> -> vector<8x32xf32>
    %67 = arith.addf %63, %66 : vector<8x32xf32>
    %c64 = arith.constant 64 : index
    %c0_45 = arith.constant 0 : index
    %68 = vector.load %arg14[%c64, %c0_45] : memref<96x32xbf16, #tpu.memory_space<vmem>>, vector<32x32xbf16>
    %69 = arith.truncf %60 : vector<8x32xf32> to vector<8x32xbf16>
    %cst_46 = arith.constant dense<0.000000e+00> : vector<8x32xf32>
    %70 = tpu.matmul %69, %68, %cst_46 {dimension_numbers = #tpu.dot_dimension_numbers<[1], [0], [0], [1], [0, 0, 1, 1], [], []>} : vector<8x32xbf16>, vector<32x32xbf16>, vector<8x32xf32> -> vector<8x32xf32>
    %71 = arith.addf %67, %70 : vector<8x32xf32>
    %c0_47 = arith.constant 0 : index
    %c0_48 = arith.constant 0 : index
    %72 = vector.load %arg15[%c0_47, %c0_48] : memref<1x32xf32, #tpu.memory_space<vmem>>, vector<1x32xf32>
    %73 = vector.broadcast %72 : vector<1x32xf32> to vector<8x32xf32>
    %74 = arith.addf %71, %73 : vector<8x32xf32>
    %cst_49 = arith.constant 0.000000e+00 : f32
    %75 = vector.broadcast %cst_49 : f32 to vector<8x32xf32>
    %76 = arith.maximumf %74, %75 : vector<8x32xf32>
    %c0_50 = arith.constant 0 : index
    %c0_51 = arith.constant 0 : index
    %c0_52 = arith.constant 0 : index
    %77 = vector.load %arg7[%c0_50, %c0_51, %c0_52] : memref<1x1x8xbf16, #tpu.memory_space<vmem>>, vector<1x1x8xbf16>
    %78 = vector.shape_cast %77 : vector<1x1x8xbf16> to vector<1x8xbf16>
    %79 = arith.truncf %76 : vector<8x32xf32> to vector<8x32xbf16>
    %cst_53 = arith.constant dense<0.000000e+00> : vector<1x32xf32>
    %80 = tpu.matmul %78, %79, %cst_53 {dimension_numbers = #tpu.dot_dimension_numbers<[1], [0], [0], [1], [0, 0, 1, 1], [], []>} : vector<1x8xbf16>, vector<8x32xbf16>, vector<1x32xf32> -> vector<1x32xf32>
    %c0_54 = arith.constant 0 : index
    %c0_55 = arith.constant 0 : index
    %81 = vector.load %arg16[%c0_54, %c0_55] : memref<32x32xbf16, #tpu.memory_space<vmem>>, vector<32x32xbf16>
    %82 = arith.truncf %80 : vector<1x32xf32> to vector<1x32xbf16>
    %cst_56 = arith.constant dense<0.000000e+00> : vector<1x32xf32>
    %83 = tpu.matmul %82, %81, %cst_56 {dimension_numbers = #tpu.dot_dimension_numbers<[1], [0], [0], [1], [0, 0, 1, 1], [], []>} : vector<1x32xbf16>, vector<32x32xbf16>, vector<1x32xf32> -> vector<1x32xf32>
    %c0_57 = arith.constant 0 : index
    %c0_58 = arith.constant 0 : index
    %84 = vector.load %arg17[%c0_57, %c0_58] : memref<1x32xf32, #tpu.memory_space<vmem>>, vector<1x32xf32>
    %85 = arith.addf %83, %84 : vector<1x32xf32>
    %cst_59 = arith.constant 0.000000e+00 : f32
    %86 = vector.broadcast %cst_59 : f32 to vector<1x32xf32>
    %87 = arith.maximumf %85, %86 : vector<1x32xf32>
    %c0_60 = arith.constant 0 : index
    %c0_61 = arith.constant 0 : index
    %88 = vector.load %arg18[%c0_60, %c0_61] : memref<64x32xbf16, #tpu.memory_space<vmem>>, vector<32x32xbf16>
    %89 = arith.truncf %80 : vector<1x32xf32> to vector<1x32xbf16>
    %cst_62 = arith.constant dense<0.000000e+00> : vector<1x32xf32>
    %90 = tpu.matmul %89, %88, %cst_62 {dimension_numbers = #tpu.dot_dimension_numbers<[1], [0], [0], [1], [0, 0, 1, 1], [], []>} : vector<1x32xbf16>, vector<32x32xbf16>, vector<1x32xf32> -> vector<1x32xf32>
    %c32_63 = arith.constant 32 : index
    %c0_64 = arith.constant 0 : index
    %91 = vector.load %arg18[%c32_63, %c0_64] : memref<64x32xbf16, #tpu.memory_space<vmem>>, vector<32x32xbf16>
    %92 = arith.truncf %3 : vector<1x32xf32> to vector<1x32xbf16>
    %cst_65 = arith.constant dense<0.000000e+00> : vector<1x32xf32>
    %93 = tpu.matmul %92, %91, %cst_65 {dimension_numbers = #tpu.dot_dimension_numbers<[1], [0], [0], [1], [0, 0, 1, 1], [], []>} : vector<1x32xbf16>, vector<32x32xbf16>, vector<1x32xf32> -> vector<1x32xf32>
    %94 = arith.addf %90, %93 : vector<1x32xf32>
    %c0_66 = arith.constant 0 : index
    %c0_67 = arith.constant 0 : index
    %95 = vector.load %arg19[%c0_66, %c0_67] : memref<1x32xf32, #tpu.memory_space<vmem>>, vector<1x32xf32>
    %96 = arith.addf %94, %95 : vector<1x32xf32>
    %97 = arith.negf %96 : vector<1x32xf32>
    %98 = math.exp %97 : vector<1x32xf32>
    %cst_68 = arith.constant 1.000000e+00 : f32
    %99 = vector.broadcast %cst_68 : f32 to vector<1x32xf32>
    %100 = arith.addf %99, %98 : vector<1x32xf32>
    %101 = arith.divf %99, %100 : vector<1x32xf32>
    %cst_69 = arith.constant 1.000000e-01 : f32
    %102 = vector.broadcast %cst_69 : f32 to vector<1x32xf32>
    %103 = arith.maximumf %101, %102 : vector<1x32xf32>
    %104 = arith.mulf %103, %3 : vector<1x32xf32>
    %cst_70 = arith.constant 1.000000e+00 : f32
    %105 = vector.broadcast %cst_70 : f32 to vector<1x32xf32>
    %106 = arith.subf %105, %101 : vector<1x32xf32>
    %107 = arith.mulf %106, %87 : vector<1x32xf32>
    %108 = arith.addf %104, %107 : vector<1x32xf32>
    %c0_71 = arith.constant 0 : index
    %c0_72 = arith.constant 0 : index
    %c0_73 = arith.constant 0 : index
    %109 = vector.load %arg20[%c0_71, %c0_72, %c0_73] : memref<1x1x32xf32, #tpu.memory_space<vmem>>, vector<1x1x32xf32>
    %110 = vector.shape_cast %109 : vector<1x1x32xf32> to vector<1x32xf32>
    %111 = vector.shape_cast %108 : vector<1x32xf32> to vector<1x1x32xf32>
    tpu.vector_store %arg20[%c0_71, %c0_72, %c0_73], %111 {strides = array<i32>} : memref<1x1x32xf32, #tpu.memory_space<vmem>>, vector<1x1x32xf32>,
    return
  }
  func.func @transform_0(%arg0: i32) -> (i32, i32, i32) {
    %c0_i32 = arith.constant 0 : i32
    %c0_i32_0 = arith.constant 0 : i32
    %c0_i32_1 = arith.constant 0 : i32
    return %arg0, %c0_i32, %c0_i32_0 : i32, i32, i32
  }
  func.func @transform_1(%arg0: i32) -> (i32, i32, i32) {
    %c0_i32 = arith.constant 0 : i32
    %c0_i32_0 = arith.constant 0 : i32
    %c0_i32_1 = arith.constant 0 : i32
    return %arg0, %c0_i32, %c0_i32_0 : i32, i32, i32
  }
  func.func @transform_2(%arg0: i32) -> (i32, i32, i32) {
    %c0_i32 = arith.constant 0 : i32
    %c0_i32_0 = arith.constant 0 : i32
    %c0_i32_1 = arith.constant 0 : i32
    return %arg0, %c0_i32, %c0_i32_0 : i32, i32, i32
  }
  func.func @transform_3(%arg0: i32) -> (i32, i32, i32) {
    %c0_i32 = arith.constant 0 : i32
    %c0_i32_0 = arith.constant 0 : i32
    %c0_i32_1 = arith.constant 0 : i32
    return %arg0, %c0_i32, %c0_i32_0 : i32, i32, i32
  }
  func.func @transform_4(%arg0: i32) -> (i32, i32, i32) {
    %c0_i32 = arith.constant 0 : i32
    %c0_i32_0 = arith.constant 0 : i32
    %c0_i32_1 = arith.constant 0 : i32
    return %arg0, %c0_i32, %c0_i32_0 : i32, i32, i32
  }
  func.func @transform_5(%arg0: i32) -> (i32, i32, i32) {
    %c0_i32 = arith.constant 0 : i32
    %c0_i32_0 = arith.constant 0 : i32
    %c0_i32_1 = arith.constant 0 : i32
    return %arg0, %c0_i32, %c0_i32_0 : i32, i32, i32
  }
  func.func @transform_6(%arg0: i32) -> (i32, i32, i32) {
    %c0_i32 = arith.constant 0 : i32
    %c0_i32_0 = arith.constant 0 : i32
    %c0_i32_1 = arith.constant 0 : i32
    return %arg0, %c0_i32, %c0_i32_0 : i32, i32, i32
  }
  func.func @transform_7(%arg0: i32) -> (i32, i32) {
    %c0_i32 = arith.constant 0 : i32
    %c0_i32_0 = arith.constant 0 : i32
    %c0_i32_1 = arith.constant 0 : i32
    return %c0_i32, %c0_i32_0 : i32, i32
  }
  func.func @transform_8(%arg0: i32) -> (i32, i32) {
    %c0_i32 = arith.constant 0 : i32
    %c0_i32_0 = arith.constant 0 : i32
    %c0_i32_1 = arith.constant 0 : i32
    return %c0_i32, %c0_i32_0 : i32, i32
  }
  func.func @transform_9(%arg0: i32) -> (i32, i32) {
    %c0_i32 = arith.constant 0 : i32
    %c0_i32_0 = arith.constant 0 : i32
    %c0_i32_1 = arith.constant 0 : i32
    return %c0_i32, %c0_i32_0 : i32, i32
  }
  func.func @transform_10(%arg0: i32) -> (i32, i32) {
    %c0_i32 = arith.constant 0 : i32
    %c0_i32_0 = arith.constant 0 : i32
    %c0_i32_1 = arith.constant 0 : i32
    return %c0_i32, %c0_i32_0 : i32, i32
  }
  func.func @transform_11(%arg0: i32) -> (i32, i32) {
    %c0_i32 = arith.constant 0 : i32
    %c0_i32_0 = arith.constant 0 : i32
    %c0_i32_1 = arith.constant 0 : i32
    return %c0_i32, %c0_i32_0 : i32, i32
  }
  func.func @transform_12(%arg0: i32) -> (i32, i32) {
    %c0_i32 = arith.constant 0 : i32
    %c0_i32_0 = arith.constant 0 : i32
    %c0_i32_1 = arith.constant 0 : i32
    return %c0_i32, %c0_i32_0 : i32, i32
  }
  func.func @transform_13(%arg0: i32) -> (i32, i32) {
    %c0_i32 = arith.constant 0 : i32
    %c0_i32_0 = arith.constant 0 : i32
    %c0_i32_1 = arith.constant 0 : i32
    return %c0_i32, %c0_i32_0 : i32, i32
  }
  func.func @transform_14(%arg0: i32) -> (i32, i32) {
    %c0_i32 = arith.constant 0 : i32
    %c0_i32_0 = arith.constant 0 : i32
    %c0_i32_1 = arith.constant 0 : i32
    return %c0_i32, %c0_i32_0 : i32, i32
  }
  func.func @transform_15(%arg0: i32) -> (i32, i32) {
    %c0_i32 = arith.constant 0 : i32
    %c0_i32_0 = arith.constant 0 : i32
    %c0_i32_1 = arith.constant 0 : i32
    return %c0_i32, %c0_i32_0 : i32, i32
  }
  func.func @transform_16(%arg0: i32) -> (i32, i32) {
    %c0_i32 = arith.constant 0 : i32
    %c0_i32_0 = arith.constant 0 : i32
    %c0_i32_1 = arith.constant 0 : i32
    return %c0_i32, %c0_i32_0 : i32, i32
  }
  func.func @transform_17(%arg0: i32) -> (i32, i32) {
    %c0_i32 = arith.constant 0 : i32
    %c0_i32_0 = arith.constant 0 : i32
    %c0_i32_1 = arith.constant 0 : i32
    return %c0_i32, %c0_i32_0 : i32, i32
  }
  func.func @transform_18(%arg0: i32) -> (i32, i32) {
    %c0_i32 = arith.constant 0 : i32
    %c0_i32_0 = arith.constant 0 : i32
    %c0_i32_1 = arith.constant 0 : i32
    return %c0_i32, %c0_i32_0 : i32, i32
  }
  func.func @transform_19(%arg0: i32) -> (i32, i32, i32) {
    %c0_i32 = arith.constant 0 : i32
    %c0_i32_0 = arith.constant 0 : i32
    %c0_i32_1 = arith.constant 0 : i32
    return %arg0, %c0_i32, %c0_i32_0 : i32, i32, i32
  }
}

module attributes {stable_mosaic.version = 11 : i64} {
  func.func @_score_kernel(%arg0: i32, %arg1: memref<1x1x32xf32, #tpu.memory_space<vmem>>, %arg2: memref<1x1x32xf32, #tpu.memory_space<vmem>>, %arg3: memref<1x5x32xf32, #tpu.memory_space<vmem>>, %arg4: memref<32x32xbf16, #tpu.memory_space<vmem>>, %arg5: memref<32x32xbf16, #tpu.memory_space<vmem>>, %arg6: memref<32x32xbf16, #tpu.memory_space<vmem>>, %arg7: memref<1x32xf32, #tpu.memory_space<vmem>>, %arg8: memref<1x32xf32, #tpu.memory_space<vmem>>, %arg9: memref<1x1xf32, #tpu.memory_space<vmem>>, %arg10: memref<1x5x1xf32, #tpu.memory_space<vmem>>) attributes {dimension_semantics = [#tpu.dimension_semantics<parallel>], iteration_bounds = array<i64: 2>, scalar_prefetch = 0 : i64, scratch_operands = 0 : i64, tpu.core_type = #tpu.core_type<tc>, window_params = [{transform_indices = @transform_0, window_bounds = array<i64: 1, 1, 32>}, {transform_indices = @transform_1, window_bounds = array<i64: 1, 1, 32>}, {transform_indices = @transform_2, window_bounds = array<i64: 1, 5, 32>}, {pipeline_mode = #tpu.pipeline_mode<synchronous>, transform_indices = @transform_3, window_bounds = array<i64: 32, 32>}, {pipeline_mode = #tpu.pipeline_mode<synchronous>, transform_indices = @transform_4, window_bounds = array<i64: 32, 32>}, {pipeline_mode = #tpu.pipeline_mode<synchronous>, transform_indices = @transform_5, window_bounds = array<i64: 32, 32>}, {pipeline_mode = #tpu.pipeline_mode<synchronous>, transform_indices = @transform_6, window_bounds = array<i64: 1, 32>}, {pipeline_mode = #tpu.pipeline_mode<synchronous>, transform_indices = @transform_7, window_bounds = array<i64: 1, 32>}, {pipeline_mode = #tpu.pipeline_mode<synchronous>, transform_indices = @transform_8, window_bounds = array<i64: 1, 1>}, {transform_indices = @transform_9, window_bounds = array<i64: 1, 5, 1>}]} {
    %c0 = arith.constant 0 : index
    %c0_0 = arith.constant 0 : index
    %c0_1 = arith.constant 0 : index
    %0 = vector.load %arg1[%c0, %c0_0, %c0_1] : memref<1x1x32xf32, #tpu.memory_space<vmem>>, vector<1x1x32xf32>
    %1 = vector.shape_cast %0 : vector<1x1x32xf32> to vector<1x32xf32>
    %c0_2 = arith.constant 0 : index
    %c0_3 = arith.constant 0 : index
    %2 = vector.load %arg4[%c0_2, %c0_3] : memref<32x32xbf16, #tpu.memory_space<vmem>>, vector<32x32xbf16>
    %3 = arith.truncf %1 : vector<1x32xf32> to vector<1x32xbf16>
    %cst = arith.constant dense<0.000000e+00> : vector<1x32xf32>
    %4 = tpu.matmul %3, %2, %cst {dimension_numbers = #tpu.dot_dimension_numbers<[1], [0], [0], [1], [0, 0, 1, 1], [], []>} : vector<1x32xbf16>, vector<32x32xbf16>, vector<1x32xf32> -> vector<1x32xf32>
    %c0_4 = arith.constant 0 : index
    %c0_5 = arith.constant 0 : index
    %c0_6 = arith.constant 0 : index
    %5 = vector.load %arg2[%c0_4, %c0_5, %c0_6] : memref<1x1x32xf32, #tpu.memory_space<vmem>>, vector<1x1x32xf32>
    %6 = vector.shape_cast %5 : vector<1x1x32xf32> to vector<1x32xf32>
    %c0_7 = arith.constant 0 : index
    %c0_8 = arith.constant 0 : index
    %7 = vector.load %arg5[%c0_7, %c0_8] : memref<32x32xbf16, #tpu.memory_space<vmem>>, vector<32x32xbf16>
    %8 = arith.truncf %6 : vector<1x32xf32> to vector<1x32xbf16>
    %cst_9 = arith.constant dense<0.000000e+00> : vector<1x32xf32>
    %9 = tpu.matmul %8, %7, %cst_9 {dimension_numbers = #tpu.dot_dimension_numbers<[1], [0], [0], [1], [0, 0, 1, 1], [], []>} : vector<1x32xbf16>, vector<32x32xbf16>, vector<1x32xf32> -> vector<1x32xf32>
    %10 = arith.addf %4, %9 : vector<1x32xf32>
    %c0_10 = arith.constant 0 : index
    %c0_11 = arith.constant 0 : index
    %11 = vector.load %arg7[%c0_10, %c0_11] : memref<1x32xf32, #tpu.memory_space<vmem>>, vector<1x32xf32>
    %12 = arith.addf %10, %11 : vector<1x32xf32>
    %c0_12 = arith.constant 0 : index
    %c0_13 = arith.constant 0 : index
    %c0_14 = arith.constant 0 : index
    %13 = vector.load %arg3[%c0_12, %c0_13, %c0_14] : memref<1x5x32xf32, #tpu.memory_space<vmem>>, vector<1x5x32xf32>
    %14 = vector.shape_cast %13 : vector<1x5x32xf32> to vector<5x32xf32>
    %c0_15 = arith.constant 0 : index
    %c0_16 = arith.constant 0 : index
    %15 = vector.load %arg6[%c0_15, %c0_16] : memref<32x32xbf16, #tpu.memory_space<vmem>>, vector<32x32xbf16>
    %16 = arith.truncf %14 : vector<5x32xf32> to vector<5x32xbf16>
    %cst_17 = arith.constant dense<0.000000e+00> : vector<5x32xf32>
    %17 = tpu.matmul %16, %15, %cst_17 {dimension_numbers = #tpu.dot_dimension_numbers<[1], [0], [0], [1], [0, 0, 1, 1], [], []>} : vector<5x32xbf16>, vector<32x32xbf16>, vector<5x32xf32> -> vector<5x32xf32>
    %18 = vector.broadcast %12 : vector<1x32xf32> to vector<5x32xf32>
    %19 = arith.addf %17, %18 : vector<5x32xf32>
    %cst_18 = arith.constant 0.000000e+00 : f32
    %20 = vector.broadcast %cst_18 : f32 to vector<5x32xf32>
    %21 = arith.cmpf oge, %19, %20 : vector<5x32xf32>
    %cst_19 = arith.constant 0.00999999977 : f32
    %22 = vector.broadcast %cst_19 : f32 to vector<5x32xf32>
    %23 = arith.mulf %22, %19 : vector<5x32xf32>
    %24 = arith.select %21, %19, %23 : vector<5x32xi1>, vector<5x32xf32>
    %c0_20 = arith.constant 0 : index
    %c0_21 = arith.constant 0 : index
    %25 = vector.load %arg8[%c0_20, %c0_21] : memref<1x32xf32, #tpu.memory_space<vmem>>, vector<1x32xf32>
    %26 = vector.broadcast %25 : vector<1x32xf32> to vector<5x32xf32>
    %27 = arith.mulf %24, %26 : vector<5x32xf32>
    %cst_22 = arith.constant dense<0.000000e+00> : vector<5xf32>
    %28 = vector.multi_reduction <add>, %27, %cst_22 [1] : vector<5x32xf32> to vector<5xf32>
    %29 = vector.shape_cast %28 : vector<5xf32> to vector<5x1xf32>
    %c0_23 = arith.constant 0 : index
    %c0_24 = arith.constant 0 : index
    %30 = vector.load %arg9[%c0_23, %c0_24] : memref<1x1xf32, #tpu.memory_space<vmem>>, vector<1x1xf32>
    %31 = vector.broadcast %30 : vector<1x1xf32> to vector<5x1xf32>
    %32 = arith.addf %29, %31 : vector<5x1xf32>
    %c0_25 = arith.constant 0 : index
    %c0_26 = arith.constant 0 : index
    %c0_27 = arith.constant 0 : index
    %33 = vector.load %arg10[%c0_25, %c0_26, %c0_27] : memref<1x5x1xf32, #tpu.memory_space<vmem>>, vector<1x5x1xf32>
    %34 = vector.shape_cast %33 : vector<1x5x1xf32> to vector<5x1xf32>
    %35 = vector.shape_cast %32 : vector<5x1xf32> to vector<1x5x1xf32>
    tpu.vector_store %arg10[%c0_25, %c0_26, %c0_27], %35 {strides = array<i32>} : memref<1x5x1xf32, #tpu.memory_space<vmem>>, vector<1x5x1xf32>,
    return
  }
  func.func @transform_0(%arg0: i32) -> (i32, i32, i32) {
    %c0_i32 = arith.constant 0 : i32
    %c0_i32_0 = arith.constant 0 : i32
    %c0_i32_1 = arith.constant 0 : i32
    return %arg0, %c0_i32, %c0_i32_0 : i32, i32, i32
  }
  func.func @transform_1(%arg0: i32) -> (i32, i32, i32) {
    %c0_i32 = arith.constant 0 : i32
    %c0_i32_0 = arith.constant 0 : i32
    %c0_i32_1 = arith.constant 0 : i32
    return %arg0, %c0_i32, %c0_i32_0 : i32, i32, i32
  }
  func.func @transform_2(%arg0: i32) -> (i32, i32, i32) {
    %c0_i32 = arith.constant 0 : i32
    %c0_i32_0 = arith.constant 0 : i32
    %c0_i32_1 = arith.constant 0 : i32
    return %arg0, %c0_i32, %c0_i32_0 : i32, i32, i32
  }
  func.func @transform_3(%arg0: i32) -> (i32, i32) {
    %c0_i32 = arith.constant 0 : i32
    %c0_i32_0 = arith.constant 0 : i32
    %c0_i32_1 = arith.constant 0 : i32
    return %c0_i32, %c0_i32_0 : i32, i32
  }
  func.func @transform_4(%arg0: i32) -> (i32, i32) {
    %c0_i32 = arith.constant 0 : i32
    %c0_i32_0 = arith.constant 0 : i32
    %c0_i32_1 = arith.constant 0 : i32
    return %c0_i32, %c0_i32_0 : i32, i32
  }
  func.func @transform_5(%arg0: i32) -> (i32, i32) {
    %c0_i32 = arith.constant 0 : i32
    %c0_i32_0 = arith.constant 0 : i32
    %c0_i32_1 = arith.constant 0 : i32
    return %c0_i32, %c0_i32_0 : i32, i32
  }
  func.func @transform_6(%arg0: i32) -> (i32, i32) {
    %c0_i32 = arith.constant 0 : i32
    %c0_i32_0 = arith.constant 0 : i32
    %c0_i32_1 = arith.constant 0 : i32
    return %c0_i32, %c0_i32_0 : i32, i32
  }
  func.func @transform_7(%arg0: i32) -> (i32, i32) {
    %c0_i32 = arith.constant 0 : i32
    %c0_i32_0 = arith.constant 0 : i32
    %c0_i32_1 = arith.constant 0 : i32
    return %c0_i32, %c0_i32_0 : i32, i32
  }
  func.func @transform_8(%arg0: i32) -> (i32, i32) {
    %c0_i32 = arith.constant 0 : i32
    %c0_i32_0 = arith.constant 0 : i32
    %c0_i32_1 = arith.constant 0 : i32
    return %c0_i32, %c0_i32_0 : i32, i32
  }
  func.func @transform_9(%arg0: i32) -> (i32, i32, i32) {
    %c0_i32 = arith.constant 0 : i32
    %c0_i32_0 = arith.constant 0 : i32
    %c0_i32_1 = arith.constant 0 : i32
    return %arg0, %c0_i32, %c0_i32_0 : i32, i32, i32
  }
}

module attributes {stable_mosaic.version = 11 : i64} {
  func.func @_gen_prob_kernel(%arg0: memref<2x32xf32, #tpu.memory_space<vmem>>, %arg1: memref<2x32xf32, #tpu.memory_space<vmem>>, %arg2: memref<1x32xf32, #tpu.memory_space<vmem>>, %arg3: memref<1x32xf32, #tpu.memory_space<vmem>>, %arg4: memref<1x1xf32, #tpu.memory_space<vmem>>, %arg5: memref<2x1xf32, #tpu.memory_space<vmem>>) attributes {dimension_semantics = [], scalar_prefetch = 0 : i64, scratch_operands = 0 : i64, tpu.core_type = #tpu.core_type<tc>} {
    %c0 = arith.constant 0 : index
    %c0_0 = arith.constant 0 : index
    %0 = vector.load %arg0[%c0, %c0_0] : memref<2x32xf32, #tpu.memory_space<vmem>>, vector<2x32xf32>
    %c0_1 = arith.constant 0 : index
    %c0_2 = arith.constant 0 : index
    %1 = vector.load %arg2[%c0_1, %c0_2] : memref<1x32xf32, #tpu.memory_space<vmem>>, vector<1x32xf32>
    %2 = vector.broadcast %1 : vector<1x32xf32> to vector<2x32xf32>
    %3 = arith.mulf %0, %2 : vector<2x32xf32>
    %cst = arith.constant dense<0.000000e+00> : vector<2xf32>
    %4 = vector.multi_reduction <add>, %3, %cst [1] : vector<2x32xf32> to vector<2xf32>
    %5 = vector.shape_cast %4 : vector<2xf32> to vector<2x1xf32>
    %c0_3 = arith.constant 0 : index
    %c0_4 = arith.constant 0 : index
    %6 = vector.load %arg1[%c0_3, %c0_4] : memref<2x32xf32, #tpu.memory_space<vmem>>, vector<2x32xf32>
    %c0_5 = arith.constant 0 : index
    %c0_6 = arith.constant 0 : index
    %7 = vector.load %arg3[%c0_5, %c0_6] : memref<1x32xf32, #tpu.memory_space<vmem>>, vector<1x32xf32>
    %8 = vector.broadcast %7 : vector<1x32xf32> to vector<2x32xf32>
    %9 = arith.mulf %6, %8 : vector<2x32xf32>
    %cst_7 = arith.constant dense<0.000000e+00> : vector<2xf32>
    %10 = vector.multi_reduction <add>, %9, %cst_7 [1] : vector<2x32xf32> to vector<2xf32>
    %11 = vector.shape_cast %10 : vector<2xf32> to vector<2x1xf32>
    %12 = arith.addf %5, %11 : vector<2x1xf32>
    %c0_8 = arith.constant 0 : index
    %c0_9 = arith.constant 0 : index
    %13 = vector.load %arg4[%c0_8, %c0_9] : memref<1x1xf32, #tpu.memory_space<vmem>>, vector<1x1xf32>
    %14 = vector.broadcast %13 : vector<1x1xf32> to vector<2x1xf32>
    %15 = arith.addf %12, %14 : vector<2x1xf32>
    %16 = arith.negf %15 : vector<2x1xf32>
    %17 = math.exp %16 : vector<2x1xf32>
    %cst_10 = arith.constant 1.000000e+00 : f32
    %18 = vector.broadcast %cst_10 : f32 to vector<2x1xf32>
    %19 = arith.addf %18, %17 : vector<2x1xf32>
    %20 = arith.divf %18, %19 : vector<2x1xf32>
    %c0_11 = arith.constant 0 : index
    %c0_12 = arith.constant 0 : index
    %21 = vector.load %arg5[%c0_11, %c0_12] : memref<2x1xf32, #tpu.memory_space<vmem>>, vector<2x1xf32>
    tpu.vector_store %arg5[%c0_11, %c0_12], %20 {strides = array<i32>} : memref<2x1xf32, #tpu.memory_space<vmem>>, vector<2x1xf32>,
    return
  }
}

module attributes {stable_mosaic.version = 11 : i64} {
  func.func @_score_kernel(%arg0: i32, %arg1: memref<1x1x32xf32, #tpu.memory_space<vmem>>, %arg2: memref<1x1x32xf32, #tpu.memory_space<vmem>>, %arg3: memref<1x4x32xf32, #tpu.memory_space<vmem>>, %arg4: memref<32x32xbf16, #tpu.memory_space<vmem>>, %arg5: memref<32x32xbf16, #tpu.memory_space<vmem>>, %arg6: memref<32x32xbf16, #tpu.memory_space<vmem>>, %arg7: memref<1x32xf32, #tpu.memory_space<vmem>>, %arg8: memref<1x32xf32, #tpu.memory_space<vmem>>, %arg9: memref<1x1xf32, #tpu.memory_space<vmem>>, %arg10: memref<1x4x1xf32, #tpu.memory_space<vmem>>) attributes {dimension_semantics = [#tpu.dimension_semantics<parallel>], iteration_bounds = array<i64: 2>, scalar_prefetch = 0 : i64, scratch_operands = 0 : i64, tpu.core_type = #tpu.core_type<tc>, window_params = [{transform_indices = @transform_0, window_bounds = array<i64: 1, 1, 32>}, {transform_indices = @transform_1, window_bounds = array<i64: 1, 1, 32>}, {transform_indices = @transform_2, window_bounds = array<i64: 1, 4, 32>}, {pipeline_mode = #tpu.pipeline_mode<synchronous>, transform_indices = @transform_3, window_bounds = array<i64: 32, 32>}, {pipeline_mode = #tpu.pipeline_mode<synchronous>, transform_indices = @transform_4, window_bounds = array<i64: 32, 32>}, {pipeline_mode = #tpu.pipeline_mode<synchronous>, transform_indices = @transform_5, window_bounds = array<i64: 32, 32>}, {pipeline_mode = #tpu.pipeline_mode<synchronous>, transform_indices = @transform_6, window_bounds = array<i64: 1, 32>}, {pipeline_mode = #tpu.pipeline_mode<synchronous>, transform_indices = @transform_7, window_bounds = array<i64: 1, 32>}, {pipeline_mode = #tpu.pipeline_mode<synchronous>, transform_indices = @transform_8, window_bounds = array<i64: 1, 1>}, {transform_indices = @transform_9, window_bounds = array<i64: 1, 4, 1>}]} {
    %c0 = arith.constant 0 : index
    %c0_0 = arith.constant 0 : index
    %c0_1 = arith.constant 0 : index
    %0 = vector.load %arg1[%c0, %c0_0, %c0_1] : memref<1x1x32xf32, #tpu.memory_space<vmem>>, vector<1x1x32xf32>
    %1 = vector.shape_cast %0 : vector<1x1x32xf32> to vector<1x32xf32>
    %c0_2 = arith.constant 0 : index
    %c0_3 = arith.constant 0 : index
    %2 = vector.load %arg4[%c0_2, %c0_3] : memref<32x32xbf16, #tpu.memory_space<vmem>>, vector<32x32xbf16>
    %3 = arith.truncf %1 : vector<1x32xf32> to vector<1x32xbf16>
    %cst = arith.constant dense<0.000000e+00> : vector<1x32xf32>
    %4 = tpu.matmul %3, %2, %cst {dimension_numbers = #tpu.dot_dimension_numbers<[1], [0], [0], [1], [0, 0, 1, 1], [], []>} : vector<1x32xbf16>, vector<32x32xbf16>, vector<1x32xf32> -> vector<1x32xf32>
    %c0_4 = arith.constant 0 : index
    %c0_5 = arith.constant 0 : index
    %c0_6 = arith.constant 0 : index
    %5 = vector.load %arg2[%c0_4, %c0_5, %c0_6] : memref<1x1x32xf32, #tpu.memory_space<vmem>>, vector<1x1x32xf32>
    %6 = vector.shape_cast %5 : vector<1x1x32xf32> to vector<1x32xf32>
    %c0_7 = arith.constant 0 : index
    %c0_8 = arith.constant 0 : index
    %7 = vector.load %arg5[%c0_7, %c0_8] : memref<32x32xbf16, #tpu.memory_space<vmem>>, vector<32x32xbf16>
    %8 = arith.truncf %6 : vector<1x32xf32> to vector<1x32xbf16>
    %cst_9 = arith.constant dense<0.000000e+00> : vector<1x32xf32>
    %9 = tpu.matmul %8, %7, %cst_9 {dimension_numbers = #tpu.dot_dimension_numbers<[1], [0], [0], [1], [0, 0, 1, 1], [], []>} : vector<1x32xbf16>, vector<32x32xbf16>, vector<1x32xf32> -> vector<1x32xf32>
    %10 = arith.addf %4, %9 : vector<1x32xf32>
    %c0_10 = arith.constant 0 : index
    %c0_11 = arith.constant 0 : index
    %11 = vector.load %arg7[%c0_10, %c0_11] : memref<1x32xf32, #tpu.memory_space<vmem>>, vector<1x32xf32>
    %12 = arith.addf %10, %11 : vector<1x32xf32>
    %c0_12 = arith.constant 0 : index
    %c0_13 = arith.constant 0 : index
    %c0_14 = arith.constant 0 : index
    %13 = vector.load %arg3[%c0_12, %c0_13, %c0_14] : memref<1x4x32xf32, #tpu.memory_space<vmem>>, vector<1x4x32xf32>
    %14 = vector.shape_cast %13 : vector<1x4x32xf32> to vector<4x32xf32>
    %c0_15 = arith.constant 0 : index
    %c0_16 = arith.constant 0 : index
    %15 = vector.load %arg6[%c0_15, %c0_16] : memref<32x32xbf16, #tpu.memory_space<vmem>>, vector<32x32xbf16>
    %16 = arith.truncf %14 : vector<4x32xf32> to vector<4x32xbf16>
    %cst_17 = arith.constant dense<0.000000e+00> : vector<4x32xf32>
    %17 = tpu.matmul %16, %15, %cst_17 {dimension_numbers = #tpu.dot_dimension_numbers<[1], [0], [0], [1], [0, 0, 1, 1], [], []>} : vector<4x32xbf16>, vector<32x32xbf16>, vector<4x32xf32> -> vector<4x32xf32>
    %18 = vector.broadcast %12 : vector<1x32xf32> to vector<4x32xf32>
    %19 = arith.addf %17, %18 : vector<4x32xf32>
    %cst_18 = arith.constant 0.000000e+00 : f32
    %20 = vector.broadcast %cst_18 : f32 to vector<4x32xf32>
    %21 = arith.cmpf oge, %19, %20 : vector<4x32xf32>
    %cst_19 = arith.constant 0.00999999977 : f32
    %22 = vector.broadcast %cst_19 : f32 to vector<4x32xf32>
    %23 = arith.mulf %22, %19 : vector<4x32xf32>
    %24 = arith.select %21, %19, %23 : vector<4x32xi1>, vector<4x32xf32>
    %c0_20 = arith.constant 0 : index
    %c0_21 = arith.constant 0 : index
    %25 = vector.load %arg8[%c0_20, %c0_21] : memref<1x32xf32, #tpu.memory_space<vmem>>, vector<1x32xf32>
    %26 = vector.broadcast %25 : vector<1x32xf32> to vector<4x32xf32>
    %27 = arith.mulf %24, %26 : vector<4x32xf32>
    %cst_22 = arith.constant dense<0.000000e+00> : vector<4xf32>
    %28 = vector.multi_reduction <add>, %27, %cst_22 [1] : vector<4x32xf32> to vector<4xf32>
    %29 = vector.shape_cast %28 : vector<4xf32> to vector<4x1xf32>
    %c0_23 = arith.constant 0 : index
    %c0_24 = arith.constant 0 : index
    %30 = vector.load %arg9[%c0_23, %c0_24] : memref<1x1xf32, #tpu.memory_space<vmem>>, vector<1x1xf32>
    %31 = vector.broadcast %30 : vector<1x1xf32> to vector<4x1xf32>
    %32 = arith.addf %29, %31 : vector<4x1xf32>
    %c0_25 = arith.constant 0 : index
    %c0_26 = arith.constant 0 : index
    %c0_27 = arith.constant 0 : index
    %33 = vector.load %arg10[%c0_25, %c0_26, %c0_27] : memref<1x4x1xf32, #tpu.memory_space<vmem>>, vector<1x4x1xf32>
    %34 = vector.shape_cast %33 : vector<1x4x1xf32> to vector<4x1xf32>
    %35 = vector.shape_cast %32 : vector<4x1xf32> to vector<1x4x1xf32>
    tpu.vector_store %arg10[%c0_25, %c0_26, %c0_27], %35 {strides = array<i32>} : memref<1x4x1xf32, #tpu.memory_space<vmem>>, vector<1x4x1xf32>,
    return
  }
  func.func @transform_0(%arg0: i32) -> (i32, i32, i32) {
    %c0_i32 = arith.constant 0 : i32
    %c0_i32_0 = arith.constant 0 : i32
    %c0_i32_1 = arith.constant 0 : i32
    return %arg0, %c0_i32, %c0_i32_0 : i32, i32, i32
  }
  func.func @transform_1(%arg0: i32) -> (i32, i32, i32) {
    %c0_i32 = arith.constant 0 : i32
    %c0_i32_0 = arith.constant 0 : i32
    %c0_i32_1 = arith.constant 0 : i32
    return %arg0, %c0_i32, %c0_i32_0 : i32, i32, i32
  }
  func.func @transform_2(%arg0: i32) -> (i32, i32, i32) {
    %c0_i32 = arith.constant 0 : i32
    %c0_i32_0 = arith.constant 0 : i32
    %c0_i32_1 = arith.constant 0 : i32
    return %arg0, %c0_i32, %c0_i32_0 : i32, i32, i32
  }
  func.func @transform_3(%arg0: i32) -> (i32, i32) {
    %c0_i32 = arith.constant 0 : i32
    %c0_i32_0 = arith.constant 0 : i32
    %c0_i32_1 = arith.constant 0 : i32
    return %c0_i32, %c0_i32_0 : i32, i32
  }
  func.func @transform_4(%arg0: i32) -> (i32, i32) {
    %c0_i32 = arith.constant 0 : i32
    %c0_i32_0 = arith.constant 0 : i32
    %c0_i32_1 = arith.constant 0 : i32
    return %c0_i32, %c0_i32_0 : i32, i32
  }
  func.func @transform_5(%arg0: i32) -> (i32, i32) {
    %c0_i32 = arith.constant 0 : i32
    %c0_i32_0 = arith.constant 0 : i32
    %c0_i32_1 = arith.constant 0 : i32
    return %c0_i32, %c0_i32_0 : i32, i32
  }
  func.func @transform_6(%arg0: i32) -> (i32, i32) {
    %c0_i32 = arith.constant 0 : i32
    %c0_i32_0 = arith.constant 0 : i32
    %c0_i32_1 = arith.constant 0 : i32
    return %c0_i32, %c0_i32_0 : i32, i32
  }
  func.func @transform_7(%arg0: i32) -> (i32, i32) {
    %c0_i32 = arith.constant 0 : i32
    %c0_i32_0 = arith.constant 0 : i32
    %c0_i32_1 = arith.constant 0 : i32
    return %c0_i32, %c0_i32_0 : i32, i32
  }
  func.func @transform_8(%arg0: i32) -> (i32, i32) {
    %c0_i32 = arith.constant 0 : i32
    %c0_i32_0 = arith.constant 0 : i32
    %c0_i32_1 = arith.constant 0 : i32
    return %c0_i32, %c0_i32_0 : i32, i32
  }
  func.func @transform_9(%arg0: i32) -> (i32, i32, i32) {
    %c0_i32 = arith.constant 0 : i32
    %c0_i32_0 = arith.constant 0 : i32
    %c0_i32_1 = arith.constant 0 : i32
    return %arg0, %c0_i32, %c0_i32_0 : i32, i32, i32
  }
}

</mosaic_0001>

<llo_original>
// kernel: predict_model_forward.9
$region0: #{predict_model_forward.9}
  #allocation0 [shape = 'u32[]', space=smem, size = 0x4, offset = 0x4, fixed_abs, tag = 'smem constant byte address 0x4 - core index']
  #allocation1 [shape = 'u32[144,128]{1,0:T(1,128)}', space=vmem, size = 0x12000, scoped, tag = 'internal scratch']
  #allocation2 [shape = 'f32[1,1]{1,0:T(1,128)S(1)}', space=vmem, size = 0x200, scoped, tag = 'scoped memory for predict_model_forward.9']
  %s0 = inlined_call_operand.vmem [shape: f32[2,1,32], index: 0, kind: input, shape index: {}]
  %s1 = inlined_call_operand.vmem [shape: f32[2,2,4,32], index: 1, kind: input, shape index: {}]
  %s2 = inlined_call_operand.vmem [shape: f32[2,2,4,1], index: 2, kind: input, shape index: {}]
  %s3 = inlined_call_operand.vmem [shape: bf16[32,32], index: 3, kind: input, shape index: {}]
  %s4 = inlined_call_operand.vmem [shape: bf16[32,32], index: 4, kind: input, shape index: {}]
  %s5 = inlined_call_operand.vmem [shape: f32[1,32], index: 5, kind: input, shape index: {}]
  %s6 = inlined_call_operand.vmem [shape: f32[1,32], index: 6, kind: input, shape index: {}]
  %s7 = inlined_call_operand.<no memory space> [shape: f32[1,1], index: 7, kind: input, shape index: {}]
  %s8 = inlined_call_operand.vmem [shape: f32[2,2,4,1], index: 8, kind: output, shape index: {0}]
  %s9 = inlined_call_operand.vmem [shape: f32[2,2,1,32], index: 9, kind: output, shape index: {1}]
  %10 = xla_tuple %s8, %s9
  %s11 = sld [smem:[#allocation0]]
  $region73: #{predict_model_forward.9} parent=0
    _
  %s13 = ssub.s32 1, %s11
  %s14 = scalar_select 0, %s13, %s11
  %v15 = vstv %s7
  %16 = vst [vmem:[#allocation2] sm:$0x1] %v15
  loop: start=0, step=1, limit=6
  $region2: #{predict_model_forward.9} parent=0 // loop_pre_header
    _
  $region3: #{predict_model_forward.9} parent=0 // loop_header
    %s18 = sphi 0, %s22
    %p19 = scmp.ge.s32.totalorder %s18, 6
    %s25 = sphi 0, %s37
    %s26 = sphi 0, %s33
    %s27 = sphi 0, %s25
    %s28 = sphi 0, %s26
    %s29 = sphi 0, %s27
    %s30 = sphi 0, %s28
    %s40 = sphi 0, %s42
    %s43 = sphi 0, %s40
    %s44 = sphi 0, %s43
    %s60 = sphi 0, %s44
    %s68 = sphi 0, %s70
    %s71 = sphi 0, %s68
    %s72 = sphi 0, %s71
    %s88 = sphi 0, %s72
    %s96 = sphi 0, %s98
    %s99 = sphi 0, %s96
    %s100 = sphi 0, %s99
    %s116 = sphi 0, %s100
    %s120 = sphi 0, %s120
    %s122 = sphi 0, %s120
    %s123 = sphi 0, %s122
    %s137 = sphi 0, %s123
    %s141 = sphi 0, %s141
    %s143 = sphi 0, %s141
    %s144 = sphi 0, %s143
    %s158 = sphi 0, %s144
    %s162 = sphi 0, %s162
    %s164 = sphi 0, %s162
    %s165 = sphi 0, %s164
    %s179 = sphi 0, %s165
    %s183 = sphi 0, %s183
    %s185 = sphi 0, %s183
    %s186 = sphi 0, %s185
    %s200 = sphi 0, %s186
    %s204 = sphi 0, %s204
    %s206 = sphi 0, %s204
    %s207 = sphi 0, %s206
    %s221 = sphi 0, %s207
    %s229 = sphi 0, %s231
    %s232 = sphi 0, %s229
    %s233 = sphi 0, %s232
    %s249 = sphi 0, %s233
    %s257 = sphi 0, %s259
    %s260 = sphi 0, %s257
    %s261 = sphi 0, %s260
    %s277 = sphi 0, %s261
  $region4: #{predict_model_forward.9} parent=0 // loop_header_branch
    %21 = sbr.rel (%p19) target = $region8
  $region5: #{predict_model_forward.9} parent=0 // loop_body
    %s23 = ssub.s32 %s18, 1
    %s24 = ssub.s32 %s18, 2
    %s31 = sadd.s32 1, %s26
    %p32 = scmp.ge.s32.totalorder %s31, 2
    %s33 = scalar_select %p32, 0, %s31
    %s34 = sadd.s32 1, %s25
    %s35 = scalar_select %p32, %s34, %s25
    %p36 = scmp.ge.s32.totalorder %s35, 2
    %s37 = scalar_select %p36, 0, %s35
    %s38 = ssub.s32 %s25, %s37
    %p39 = scmp.eq.s32.totalorder %s38, 0
    %s41 = sadd.s32 %s40, 1
    %s42 = scalar_select %p39, %s40, %s41
    %p45 = pneg %p39
    %p46 = scmp.eq.s32.totalorder %s18, 3
    %p47 = por %p45, %p46
    %p48 = scmp.ne.s32.totalorder %s40, %s43
    %p49 = scmp.eq.s32.totalorder %s18, 0
    %p50 = por %p48, %p49
    %p51 = scmp.ne.s32.totalorder %s40, %s43
    %p52 = scmp.eq.s32.totalorder %s23, 3
    %p53 = por %p51, %p52
    %p54 = scmp.ne.s32.totalorder %s43, %s44
    %p55 = scmp.eq.s32.totalorder %s23, 0
    %p56 = por %p54, %p55
    %p57 = scmp.ne.s32.totalorder %s43, %s44
    %p58 = scmp.eq.s32.totalorder %s24, 3
    %p59 = por %p57, %p58
    %p61 = scmp.ne.s32.totalorder %s44, %s60
    %p62 = scmp.eq.s32.totalorder %s24, 0
    %p63 = por %p61, %p62
    %s64 = ssub.s32 %s25, %s37
    %s65 = ssub.s32 %s26, %s33
    %s66 = sor.u32 %s64, %s65
    %p67 = scmp.eq.s32.totalorder %s66, 0
    %s69 = sadd.s32 %s68, 1
    %s70 = scalar_select %p67, %s68, %s69
    %p73 = pneg %p67
    %p74 = scmp.eq.s32.totalorder %s18, 3
    %p75 = por %p73, %p74
    %p76 = scmp.ne.s32.totalorder %s68, %s71
    %p77 = scmp.eq.s32.totalorder %s18, 0
    %p78 = por %p76, %p77
    %p79 = scmp.ne.s32.totalorder %s68, %s71
    %p80 = scmp.eq.s32.totalorder %s23, 3
    %p81 = por %p79, %p80
    %p82 = scmp.ne.s32.totalorder %s71, %s72
    %p83 = scmp.eq.s32.totalorder %s23, 0
    %p84 = por %p82, %p83
    %p85 = scmp.ne.s32.totalorder %s71, %s72
    %p86 = scmp.eq.s32.totalorder %s24, 3
    %p87 = por %p85, %p86
    %p89 = scmp.ne.s32.totalorder %s72, %s88
    %p90 = scmp.eq.s32.totalorder %s24, 0
    %p91 = por %p89, %p90
    %s92 = ssub.s32 %s25, %s37
    %s93 = ssub.s32 %s26, %s33
    %s94 = sor.u32 %s92, %s93
    %p95 = scmp.eq.s32.totalorder %s94, 0
    %s97 = sadd.s32 %s96, 1
    %s98 = scalar_select %p95, %s96, %s97
    %p101 = pneg %p95
    %p102 = scmp.eq.s32.totalorder %s18, 3
    %p103 = por %p101, %p102
    %p104 = scmp.ne.s32.totalorder %s96, %s99
    %p105 = scmp.eq.s32.totalorder %s18, 0
    %p106 = por %p104, %p105
    %p107 = scmp.ne.s32.totalorder %s96, %s99
    %p108 = scmp.eq.s32.totalorder %s23, 3
    %p109 = por %p107, %p108
    %p110 = scmp.ne.s32.totalorder %s99, %s100
    %p111 = scmp.eq.s32.totalorder %s23, 0
    %p112 = por %p110, %p111
    %p113 = scmp.ne.s32.totalorder %s99, %s100
    %p114 = scmp.eq.s32.totalorder %s24, 3
    %p115 = por %p113, %p114
    %p117 = scmp.ne.s32.totalorder %s100, %s116
    %p118 = scmp.eq.s32.totalorder %s24, 0
    %p119 = por %p117, %p118
    %s121 = sadd.s32 %s120, 1
    %p124 = scmp.eq.s32.totalorder %s18, 3
    %p125 = scmp.ne.s32.totalorder %s120, %s122
    %p126 = scmp.eq.s32.totalorder %s18, 0
    %p127 = por %p125, %p126
    %p128 = scmp.ne.s32.totalorder %s120, %s122
    %p129 = scmp.eq.s32.totalorder %s23, 3
    %p130 = por %p128, %p129
    %p131 = scmp.ne.s32.totalorder %s122, %s123
    %p132 = scmp.eq.s32.totalorder %s23, 0
    %p133 = por %p131, %p132
    %p134 = scmp.ne.s32.totalorder %s122, %s123
    %p135 = scmp.eq.s32.totalorder %s24, 3
    %p136 = por %p134, %p135
    %p138 = scmp.ne.s32.totalorder %s123, %s137
    %p139 = scmp.eq.s32.totalorder %s24, 0
    %p140 = por %p138, %p139
    %s142 = sadd.s32 %s141, 1
    %p145 = scmp.eq.s32.totalorder %s18, 3
    %p146 = scmp.ne.s32.totalorder %s141, %s143
    %p147 = scmp.eq.s32.totalorder %s18, 0
    %p148 = por %p146, %p147
    %p149 = scmp.ne.s32.totalorder %s141, %s143
    %p150 = scmp.eq.s32.totalorder %s23, 3
    %p151 = por %p149, %p150
    %p152 = scmp.ne.s32.totalorder %s143, %s144
    %p153 = scmp.eq.s32.totalorder %s23, 0
    %p154 = por %p152, %p153
    %p155 = scmp.ne.s32.totalorder %s143, %s144
    %p156 = scmp.eq.s32.totalorder %s24, 3
    %p157 = por %p155, %p156
    %p159 = scmp.ne.s32.totalorder %s144, %s158
    %p160 = scmp.eq.s32.totalorder %s24, 0
    %p161 = por %p159, %p160
    %s163 = sadd.s32 %s162, 1
    %p166 = scmp.eq.s32.totalorder %s18, 3
    %p167 = scmp.ne.s32.totalorder %s162, %s164
    %p168 = scmp.eq.s32.totalorder %s18, 0
    %p169 = por %p167, %p168
    %p170 = scmp.ne.s32.totalorder %s162, %s164
    %p171 = scmp.eq.s32.totalorder %s23, 3
    %p172 = por %p170, %p171
    %p173 = scmp.ne.s32.totalorder %s164, %s165
    %p174 = scmp.eq.s32.totalorder %s23, 0
    %p175 = por %p173, %p174
    %p176 = scmp.ne.s32.totalorder %s164, %s165
    %p177 = scmp.eq.s32.totalorder %s24, 3
    %p178 = por %p176, %p177
    %p180 = scmp.ne.s32.totalorder %s165, %s179
    %p181 = scmp.eq.s32.totalorder %s24, 0
    %p182 = por %p180, %p181
    %s184 = sadd.s32 %s183, 1
    %p187 = scmp.eq.s32.totalorder %s18, 3
    %p188 = scmp.ne.s32.totalorder %s183, %s185
    %p189 = scmp.eq.s32.totalorder %s18, 0
    %p190 = por %p188, %p189
    %p191 = scmp.ne.s32.totalorder %s183, %s185
    %p192 = scmp.eq.s32.totalorder %s23, 3
    %p193 = por %p191, %p192
    %p194 = scmp.ne.s32.totalorder %s185, %s186
    %p195 = scmp.eq.s32.totalorder %s23, 0
    %p196 = por %p194, %p195
    %p197 = scmp.ne.s32.totalorder %s185, %s186
    %p198 = scmp.eq.s32.totalorder %s24, 3
    %p199 = por %p197, %p198
    %p201 = scmp.ne.s32.totalorder %s186, %s200
    %p202 = scmp.eq.s32.totalorder %s24, 0
    %p203 = por %p201, %p202
    %s205 = sadd.s32 %s204, 1
    %p208 = scmp.eq.s32.totalorder %s18, 3
    %p209 = scmp.ne.s32.totalorder %s204, %s206
    %p210 = scmp.eq.s32.totalorder %s18, 0
    %p211 = por %p209, %p210
    %p212 = scmp.ne.s32.totalorder %s204, %s206
    %p213 = scmp.eq.s32.totalorder %s23, 3
    %p214 = por %p212, %p213
    %p215 = scmp.ne.s32.totalorder %s206, %s207
    %p216 = scmp.eq.s32.totalorder %s23, 0
    %p217 = por %p215, %p216
    %p218 = scmp.ne.s32.totalorder %s206, %s207
    %p219 = scmp.eq.s32.totalorder %s24, 3
    %p220 = por %p218, %p219
    %p222 = scmp.ne.s32.totalorder %s207, %s221
    %p223 = scmp.eq.s32.totalorder %s24, 0
    %p224 = por %p222, %p223
    %s225 = ssub.s32 %s25, %s37
    %s226 = ssub.s32 %s26, %s33
    %s227 = sor.u32 %s225, %s226
    %p228 = scmp.eq.s32.totalorder %s227, 0
    %s230 = sadd.s32 %s229, 1
    %s231 = scalar_select %p228, %s229, %s230
    %p234 = pneg %p228
    %p235 = scmp.eq.s32.totalorder %s18, 3
    %p236 = por %p234, %p235
    %p237 = scmp.ne.s32.totalorder %s229, %s232
    %p238 = scmp.eq.s32.totalorder %s18, 0
    %p239 = por %p237, %p238
    %p240 = scmp.ne.s32.totalorder %s229, %s232
    %p241 = scmp.eq.s32.totalorder %s23, 3
    %p242 = por %p240, %p241
    %p243 = scmp.ne.s32.totalorder %s232, %s233
    %p244 = scmp.eq.s32.totalorder %s23, 0
    %p245 = por %p243, %p244
    %p246 = scmp.ne.s32.totalorder %s232, %s233
    %p247 = scmp.eq.s32.totalorder %s24, 3
    %p248 = por %p246, %p247
    %p250 = scmp.ne.s32.totalorder %s233, %s249
    %p251 = scmp.eq.s32.totalorder %s24, 0
    %p252 = por %p250, %p251
    %s253 = ssub.s32 %s25, %s37
    %s254 = ssub.s32 %s26, %s33
    %s255 = sor.u32 %s253, %s254
    %p256 = scmp.eq.s32.totalorder %s255, 0
    %s258 = sadd.s32 %s257, 1
    %s259 = scalar_select %p256, %s257, %s258
    %p262 = pneg %p256
    %p263 = scmp.eq.s32.totalorder %s18, 3
    %p264 = por %p262, %p263
    %p265 = scmp.ne.s32.totalorder %s257, %s260
    %p266 = scmp.eq.s32.totalorder %s18, 0
    %p267 = por %p265, %p266
    %p268 = scmp.ne.s32.totalorder %s257, %s260
    %p269 = scmp.eq.s32.totalorder %s23, 3
    %p270 = por %p268, %p269
    %p271 = scmp.ne.s32.totalorder %s260, %s261
    %p272 = scmp.eq.s32.totalorder %s23, 0
    %p273 = por %p271, %p272
    %p274 = scmp.ne.s32.totalorder %s260, %s261
    %p275 = scmp.eq.s32.totalorder %s24, 3
    %p276 = por %p274, %p275
    %p278 = scmp.ne.s32.totalorder %s261, %s277
    %p279 = scmp.eq.s32.totalorder %s24, 0
    %p280 = por %p278, %p279
    %p281 = scmp.le.s32.totalorder 1, %s18
    %p282 = scmp.lt.s32.totalorder %s18, 5
    %p283 = pnand %p281, %p282
    %p284 = pneg %p283
    // Predicated region
    $region9: #{predict_model_forward.9} parent=5 // pred_check
      _
    $region10: #{predict_model_forward.9} parent=5 // pred_check_branch
      %286 = sbr.rel (%p283) target = $region12
    $region11: #{predict_model_forward.9} parent=5 // pred_region
      %s287 = ssub.s32 %s18, 1
      // Predicated region
      $region13: #{predict_model_forward.9} parent=11 // pred_check
        %p288 = pneg %p133
      $region14: #{predict_model_forward.9} parent=11 // pred_check_branch
        %290 = sbr.rel (%p288) target = $region16
      $region15: #{predict_model_forward.9} parent=11 // pred_region
        _
      $region16: #{predict_model_forward.9} parent=11 // pred_fallthru
        _
      // Predicated region
      $region17: #{predict_model_forward.9} parent=11 // pred_check
        %p291 = pneg %p154
      $region18: #{predict_model_forward.9} parent=11 // pred_check_branch
        %293 = sbr.rel (%p291) target = $region20
      $region19: #{predict_model_forward.9} parent=11 // pred_region
        _
      $region20: #{predict_model_forward.9} parent=11 // pred_fallthru
        _
      // Predicated region
      $region21: #{predict_model_forward.9} parent=11 // pred_check
        %p294 = pneg %p175
      $region22: #{predict_model_forward.9} parent=11 // pred_check_branch
        %296 = sbr.rel (%p294) target = $region24
      $region23: #{predict_model_forward.9} parent=11 // pred_region
        _
      $region24: #{predict_model_forward.9} parent=11 // pred_fallthru
        _
      // Predicated region
      $region25: #{predict_model_forward.9} parent=11 // pred_check
        %p297 = pneg %p196
      $region26: #{predict_model_forward.9} parent=11 // pred_check_branch
        %299 = sbr.rel (%p297) target = $region28
      $region27: #{predict_model_forward.9} parent=11 // pred_region
        _
      $region28: #{predict_model_forward.9} parent=11 // pred_fallthru
        _
      // Predicated region
      $region29: #{predict_model_forward.9} parent=11 // pred_check
        %p300 = pneg %p217
      $region30: #{predict_model_forward.9} parent=11 // pred_check_branch
        %302 = sbr.rel (%p300) target = $region32
      $region31: #{predict_model_forward.9} parent=11 // pred_region
        _
      $region32: #{predict_model_forward.9} parent=11 // pred_fallthru
        _
    $region12: #{predict_model_forward.9} parent=5 // pred_fallthru
      _
    %p303 = scmp.lt.s32.totalorder %s18, 4
    // Predicated region
    $region33: #{predict_model_forward.9} parent=5 // pred_check
      %p304 = pneg %p303
    $region34: #{predict_model_forward.9} parent=5 // pred_check_branch
      %306 = sbr.rel (%p304) target = $region36
    $region35: #{predict_model_forward.9} parent=5 // pred_region
      // Predicated region
      $region37: #{predict_model_forward.9} parent=35 // pred_check
        %p307 = pneg %p50
      $region38: #{predict_model_forward.9} parent=35 // pred_check_branch
        %309 = sbr.rel (%p307) target = $region40
      $region39: #{predict_model_forward.9} parent=35 // pred_region
        %p310 = scmp.lt.s32.totalorder %s25, 1
        %s311 = scalar_select %p310, %s25, 1
        %s312 = scalar_lea.vmem %s0, %s311
      $region40: #{predict_model_forward.9} parent=35 // pred_fallthru
        _
      // Predicated region
      $region41: #{predict_model_forward.9} parent=35 // pred_check
        %p313 = pneg %p78
      $region42: #{predict_model_forward.9} parent=35 // pred_check_branch
        %315 = sbr.rel (%p313) target = $region44
      $region43: #{predict_model_forward.9} parent=35 // pred_region
        %p316 = scmp.lt.s32.totalorder %s25, 1
        %s317 = scalar_select %p316, %s25, 1
        %p318 = scmp.lt.s32.totalorder %s26, 1
        %s319 = scalar_select %p318, %s26, 1
        %s320 = smul.addr %s317, 2
        %s321 = sadd.s32 %s319, %s320
        %s322 = smul.addr %s321, 4
        %s323 = scalar_lea.vmem %s1, %s322
      $region44: #{predict_model_forward.9} parent=35 // pred_fallthru
        _
      // Predicated region
      $region45: #{predict_model_forward.9} parent=35 // pred_check
        %p324 = pneg %p106
      $region46: #{predict_model_forward.9} parent=35 // pred_check_branch
        %326 = sbr.rel (%p324) target = $region48
      $region47: #{predict_model_forward.9} parent=35 // pred_region
        %p327 = scmp.lt.s32.totalorder %s25, 1
        %s328 = scalar_select %p327, %s25, 1
        %p329 = scmp.lt.s32.totalorder %s26, 1
        %s330 = scalar_select %p329, %s26, 1
        %s331 = smul.addr %s328, 2
        %s332 = sadd.s32 %s330, %s331
        %s333 = smul.addr %s332, 4
        %s334 = scalar_lea.vmem %s2, %s333
      $region48: #{predict_model_forward.9} parent=35 // pred_fallthru
        _
    $region36: #{predict_model_forward.9} parent=5 // pred_fallthru
      _
    %p335 = scmp.le.s32.totalorder 1, %s18
    %p336 = scmp.lt.s32.totalorder %s18, 5
    %p337 = pnand %p335, %p336
    %p338 = pneg %p337
    // Predicated region
    $region49: #{predict_model_forward.9} parent=5 // pred_check
      _
    $region50: #{predict_model_forward.9} parent=5 // pred_check_branch
      %340 = sbr.rel (%p337) target = $region52
    $region51: #{predict_model_forward.9} parent=5 // pred_region
      %s341 = ssub.s32 %s18, 1
      %p342 = scmp.lt.s32.totalorder %s27, 1
      %s343 = scalar_select %p342, %s27, 1
      %s344 = scalar_lea.vmem %s0, %s343
      %p345 = pneg %p56
      %p346 = pneg %p53
      %p347 = scmp.lt.s32.totalorder %s27, 1
      %s348 = scalar_select %p347, %s27, 1
      %p349 = scmp.lt.s32.totalorder %s28, 1
      %s350 = scalar_select %p349, %s28, 1
      %s351 = smul.addr %s348, 2
      %s352 = sadd.s32 %s350, %s351
      %s353 = smul.addr %s352, 4
      %s354 = scalar_lea.vmem %s1, %s353
      %p355 = pneg %p84
      %p356 = pneg %p81
      %p357 = scmp.lt.s32.totalorder %s27, 1
      %s358 = scalar_select %p357, %s27, 1
      %p359 = scmp.lt.s32.totalorder %s28, 1
      %s360 = scalar_select %p359, %s28, 1
      %s361 = smul.addr %s358, 2
      %s362 = sadd.s32 %s360, %s361
      %s363 = smul.addr %s362, 4
      %s364 = scalar_lea.vmem %s2, %s363
      %p365 = pneg %p112
      %p366 = pneg %p109
      %p367 = pneg %p133
      %p368 = pneg %p130
      %p369 = pneg %p154
      %p370 = pneg %p151
      %p371 = pneg %p175
      %p372 = pneg %p172
      %p373 = pneg %p196
      %p374 = pneg %p193
      %p375 = pneg %p217
      %p376 = pneg %p214
      %p377 = pneg %p245
      %p378 = pneg %p242
      %p379 = scmp.lt.s32.totalorder %s27, 1
      %s380 = scalar_select %p379, %s27, 1
      %p381 = scmp.lt.s32.totalorder %s28, 1
      %s382 = scalar_select %p381, %s28, 1
      %s383 = smul.addr %s380, 2
      %s384 = sadd.s32 %s382, %s383
      %s385 = smul.addr %s384, 4
      %s386 = scalar_lea.vmem %s8, %s385
      %p387 = pneg %p273
      %p388 = pneg %p270
      %p389 = scmp.lt.s32.totalorder %s27, 1
      %s390 = scalar_select %p389, %s27, 1
      %p391 = scmp.lt.s32.totalorder %s28, 1
      %s392 = scalar_select %p391, %s28, 1
      %s393 = smul.addr %s390, 2
      %s394 = sadd.s32 %s392, %s393
      %s395 = scalar_lea.vmem %s9, %s394
      %p396 = scmp.lt.s32.totalorder %s27, 1
      %s397 = scalar_select %p396, %s27, 1
      %s398 = scalar_lea.vmem %s0, %s397
      %p399 = scmp.lt.s32.totalorder %s27, 1
      %s400 = scalar_select %p399, %s27, 1
      %p401 = scmp.lt.s32.totalorder %s28, 1
      %s402 = scalar_select %p401, %s28, 1
      %s403 = smul.addr %s400, 2
      %s404 = sadd.s32 %s402, %s403
      %s405 = smul.addr %s404, 4
      %s406 = scalar_lea.vmem %s1, %s405
      %p407 = scmp.lt.s32.totalorder %s27, 1
      %s408 = scalar_select %p407, %s27, 1
      %p409 = scmp.lt.s32.totalorder %s28, 1
      %s410 = scalar_select %p409, %s28, 1
      %s411 = smul.addr %s408, 2
      %s412 = sadd.s32 %s410, %s411
      %s413 = smul.addr %s412, 4
      %s414 = scalar_lea.vmem %s2, %s413
      %p415 = scmp.lt.s32.totalorder %s27, 1
      %s416 = scalar_select %p415, %s27, 1
      %p417 = scmp.lt.s32.totalorder %s28, 1
      %s418 = scalar_select %p417, %s28, 1
      %s419 = smul.addr %s416, 2
      %s420 = sadd.s32 %s418, %s419
      %s421 = smul.addr %s420, 4
      %s422 = scalar_lea.vmem %s8, %s421
      %p423 = scmp.lt.s32.totalorder %s27, 1
      %s424 = scalar_select %p423, %s27, 1
      %p425 = scmp.lt.s32.totalorder %s28, 1
      %s426 = scalar_select %p425, %s28, 1
      %s427 = smul.addr %s424, 2
      %s428 = sadd.s32 %s426, %s427
      %s429 = scalar_lea.vmem %s9, %s428
      %v431 = vld [vmem:[%s398] sm:$0x1]
      %v432 = vld [vmem:[%s406] sm:$0xf]
      %v433 = vld [vmem:[%s4] sm:$0xf]
      %v434 = vld [vmem:[%s4 + $0x4] sm:$0xf]
      %v435 = vld [vmem:[%s4 + $0x8] sm:$0xf]
      %v436 = vld [vmem:[%s4 + $0xc] sm:$0xf]
      %v437 = vpack.c.bf16 %v432, %v432
      %v438 = vld [vmem:[%s3] sm:$0xf]
      %v439 = vld [vmem:[%s3 + $0x4] sm:$0xf]
      %v440 = vld [vmem:[%s3 + $0x8] sm:$0xf]
      %v441 = vld [vmem:[%s3 + $0xc] sm:$0xf]
      %v442 = vpack.c.bf16 %v431, %v431
      %v447 = vunpack.c.l.b16 %v438
      %v448 = vunpack.c.l.b16 %v439
      %v449 = vunpack.c.l.b16 %v440
      %v450 = vunpack.c.l.b16 %v441
      %v451 = vpack.c.b16 %v448, %v447
      %v452 = vpack.c.b16 %v450, %v449
      %vm455 = vcmask 261120
      %v457 = vsel %vm455, %v442, 0
      %459 = vmatprep.subr.bf16.mxu0 0
      %460 = vmatpush1.bf16.msra.mxu0 0
      %461 = vmatprep.subr.bf16.mxu0 0
      %462 = vmatpush1.bf16.msra.mxu0 0
      %463 = vmatprep.subr.bf16.mxu0 0
      %464 = vmatpush1.bf16.msra.mxu0 0
      %465 = vmatprep.subr.bf16.mxu0 0
      %466 = vmatpush1.bf16.msra.mxu0 0
      %467 = vmatprep.subr.bf16.mxu0 0
      %468 = vmatpush1.bf16.msra.mxu0 0
      %469 = vmatprep.subr.bf16.mxu0 0
      %470 = vmatpush1.bf16.msra.mxu0 0
      %471 = vmatprep.subr.bf16.mxu0 0
      %472 = vmatpush1.bf16.msra.mxu0 %v452
      %473 = vmatprep.subr.bf16.mxu0 0
      %474 = vmatpush1.bf16.msra.mxu0 %v451
      %475 = vmatprep.subr.bf16.mxu0 0
      %476 = vmatpush2.bf16.msra.mxu0 0
      %477 = vmatprep.subr.bf16.mxu0 0
      %478 = vmatpush2.bf16.msra.mxu0 0
      %479 = vmatprep.subr.bf16.mxu0 0
      %480 = vmatpush2.bf16.msra.mxu0 0
      %481 = vmatprep.subr.bf16.mxu0 0
      %482 = vmatpush2.bf16.msra.mxu0 0
      %483 = vmatprep.subr.bf16.mxu0 0
      %484 = vmatpush2.bf16.msra.mxu0 0
      %485 = vmatprep.subr.bf16.mxu0 0
      %486 = vmatpush2.bf16.msra.mxu0 0
      %487 = vmatprep.subr.bf16.mxu0 0
      %488 = vmatpush2.bf16.msra.mxu0 0
      %489 = vmatprep.subr.bf16.mxu0 0
      %490 = vmatpush2.bf16.msra.mxu0 0
      %491 = vmatprep.mubr.bf16.mxu0 0
      %492 = vmatmul.mubr.bf16.gmra.mxu0 %v457
      %v493 = vpop.f32.mrf.mxu0
      %v494 = vadd.f32 0.0, %v493
      %v495 = vpop.f32.mrf.mxu0
      %v496 = vpop.f32.mrf.mxu0
      %v497 = vpop.f32.mrf.mxu0
      %498 = vdwg.mxu0
      %v499 = vlaneseq
      %v500 = vshrl.u32 %v499, 7
      %v501 = vsub.s32 0, %v500
      %v502 = vrot.slane %v494, %v501
      %v507 = vunpack.c.l.b16 %v433
      %v508 = vunpack.c.l.b16 %v434
      %v509 = vunpack.c.l.b16 %v435
      %v510 = vunpack.c.l.b16 %v436
      %v511 = vpack.c.b16 %v508, %v507
      %v512 = vpack.c.b16 %v510, %v509
      %v516 = vsel %vm455, %v437, 0
      %518 = vmatprep.subr.bf16.mxu0 0
      %519 = vmatpush1.bf16.msra.mxu0 0
      %520 = vmatprep.subr.bf16.mxu0 0
      %521 = vmatpush1.bf16.msra.mxu0 0
      %522 = vmatprep.subr.bf16.mxu0 0
      %523 = vmatpush1.bf16.msra.mxu0 0
      %524 = vmatprep.subr.bf16.mxu0 0
      %525 = vmatpush1.bf16.msra.mxu0 0
      %526 = vmatprep.subr.bf16.mxu0 0
      %527 = vmatpush1.bf16.msra.mxu0 0
      %528 = vmatprep.subr.bf16.mxu0 0
      %529 = vmatpush1.bf16.msra.mxu0 0
      %530 = vmatprep.subr.bf16.mxu0 0
      %531 = vmatpush1.bf16.msra.mxu0 %v512
      %532 = vmatprep.subr.bf16.mxu0 0
      %533 = vmatpush1.bf16.msra.mxu0 %v511
      %534 = vmatprep.subr.bf16.mxu0 0
      %535 = vmatpush2.bf16.msra.mxu0 0
      %536 = vmatprep.subr.bf16.mxu0 0
      %537 = vmatpush2.bf16.msra.mxu0 0
      %538 = vmatprep.subr.bf16.mxu0 0
      %539 = vmatpush2.bf16.msra.mxu0 0
      %540 = vmatprep.subr.bf16.mxu0 0
      %541 = vmatpush2.bf16.msra.mxu0 0
      %542 = vmatprep.subr.bf16.mxu0 0
      %543 = vmatpush2.bf16.msra.mxu0 0
      %544 = vmatprep.subr.bf16.mxu0 0
      %545 = vmatpush2.bf16.msra.mxu0 0
      %546 = vmatprep.subr.bf16.mxu0 0
      %547 = vmatpush2.bf16.msra.mxu0 0
      %548 = vmatprep.subr.bf16.mxu0 0
      %549 = vmatpush2.bf16.msra.mxu0 0
      %550 = vmatprep.mubr.bf16.mxu0 0
      %551 = vmatmul.mubr.bf16.gmra.mxu0 %v516
      %v552 = vpop.f32.mrf.mxu0
      %v553 = vadd.f32 %v502, %v552
      %v554 = vpop.f32.mrf.mxu0
      %v555 = vpop.f32.mrf.mxu0
      %v556 = vpop.f32.mrf.mxu0
      %557 = vdwg.mxu0
      %v558 = vld [vmem:[%s5] sm:$0x1]
      %v560 = vlaneseq
      %v561 = vshrl.u32 %v560, 7
      %v562 = vsub.s32 0, %v561
      %v563 = vrot.slane %v558, %v562
      %v565 = vadd.f32 %v553, %v563
      %v566 = vtanh.pop %v565
      %v567 = vld [vmem:[%s6] sm:$0x1]
      %v569 = vlaneseq
      %v570 = vshrl.u32 %v569, 7
      %v571 = vsub.s32 0, %v570
      %v572 = vrot.slane %v567, %v571
      %v574 = vmul.f32 %v566, %v572
      %vm575 = vcmask 257024
      %v576 = vsel %vm575, %v574, 0.0
      %577 = vadd.xlane.f32.xlu0 %v576
      %v578 = vpop.xlane.xlu0 %577
      %v579 = vld [vmem:[#allocation2] sm:$0x1]
      %v581 = vlaneseq
      %v582 = vshrl.u32 %v581, 7
      %v583 = vsub.s32 0, %v582
      %v584 = vrot.slane %v579, %v583
      %v586 = vadd.f32 %v578, %v584
      %v587 = vld [vmem:[%s414] sm:$0xf]
      %vm588 = vcmp.gt.f32.partialorder %v587, 0.5
      %v589 = vsel %vm588, -inf, %v586
      %vm590 = vcmask 3072
      %v591 = vsel %vm590, %v589, -inf
      %v592 = vrot.slane %v591, 4
      %v593 = vmax.f32 %v591, %v592
      %v594 = vrot.slane %v593, 2
      %v595 = vmax.f32 %v593, %v594
      %v596 = vrot.slane %v595, 1
      %v597 = vmax.f32 %v595, %v596
      %v598 = vsub.f32 %v589, %v597
      %v599 = vmul.f32 %v598, 1.442695
      %v600 = vpow.pop %v599
      %v601 = vsel %vm590, %v600, 0.0
      %v602 = vrot.slane %v601, 4
      %v603 = vadd.f32 %v601, %v602
      %v604 = vrot.slane %v603, 2
      %v605 = vadd.f32 %v603, %v604
      %v606 = vrot.slane %v605, 1
      %v607 = vadd.f32 %v605, %v606
      %v608 = vrcp.pop %v607
      %v609 = vmul.f32 %v600, %v608
      %610 = vst.msk [vmem:[%s422] sm:$0xf] %vm590, %v609
      %612 = vset.pattern.permute.xlu0 0
      %613 = vperm.xlu0 %612, %v609
      %v614 = vpop.permute.xlu0 %613
      %v616 = vmul.f32 %v614, %v432
      %v617 = vsel %vm575, %v616, 0.0
      %v618 = vrot.slane %v617, 4
      %v619 = vadd.f32 %v617, %v618
      %v620 = vrot.slane %v619, 2
      %v621 = vadd.f32 %v619, %v620
      %v622 = vrot.slane %v621, 1
      %v623 = vadd.f32 %v621, %v622
      %vm624 = vcmask 253952
      %625 = vst.msk [vmem:[%s429] sm:$0x1] %vm624, %v623
      %p626 = scmp.lt.s32.totalorder %s27, 1
      %s627 = scalar_select %p626, %s27, 1
      %p628 = scmp.lt.s32.totalorder %s28, 1
      %s629 = scalar_select %p628, %s28, 1
      %s630 = smul.addr %s627, 2
      %s631 = sadd.s32 %s629, %s630
      %s632 = smul.addr %s631, 4
      %s633 = scalar_lea.vmem %s8, %s632
      %p634 = scmp.lt.s32.totalorder %s27, 1
      %s635 = scalar_select %p634, %s27, 1
      %p636 = scmp.lt.s32.totalorder %s28, 1
      %s637 = scalar_select %p636, %s28, 1
      %s638 = smul.addr %s635, 2
      %s639 = sadd.s32 %s637, %s638
      %s640 = scalar_lea.vmem %s9, %s639
      // Predicated region
      $region53: #{predict_model_forward.9} parent=51 // pred_check
        %p641 = pneg %p242
      $region54: #{predict_model_forward.9} parent=51 // pred_check_branch
        %643 = sbr.rel (%p641) target = $region56
      $region55: #{predict_model_forward.9} parent=51 // pred_region
        _
      $region56: #{predict_model_forward.9} parent=51 // pred_fallthru
        _
      // Predicated region
      $region57: #{predict_model_forward.9} parent=51 // pred_check
        %p644 = pneg %p270
      $region58: #{predict_model_forward.9} parent=51 // pred_check_branch
        %646 = sbr.rel (%p644) target = $region60
      $region59: #{predict_model_forward.9} parent=51 // pred_region
        _
      $region60: #{predict_model_forward.9} parent=51 // pred_fallthru
        _
    $region52: #{predict_model_forward.9} parent=5 // pred_fallthru
      _
    %p647 = scmp.le.s32.totalorder 2, %s18
    // Predicated region
    $region61: #{predict_model_forward.9} parent=5 // pred_check
      %p648 = pneg %p647
    $region62: #{predict_model_forward.9} parent=5 // pred_check_branch
      %650 = sbr.rel (%p648) target = $region64
    $region63: #{predict_model_forward.9} parent=5 // pred_region
      %s651 = ssub.s32 %s18, 2
      // Predicated region
      $region65: #{predict_model_forward.9} parent=63 // pred_check
        %p652 = pneg %p248
      $region66: #{predict_model_forward.9} parent=63 // pred_check_branch
        %654 = sbr.rel (%p652) target = $region68
      $region67: #{predict_model_forward.9} parent=63 // pred_region
        %p655 = scmp.lt.s32.totalorder %s29, 1
        %s656 = scalar_select %p655, %s29, 1
        %p657 = scmp.lt.s32.totalorder %s30, 1
        %s658 = scalar_select %p657, %s30, 1
        %s659 = smul.addr %s656, 2
        %s660 = sadd.s32 %s658, %s659
        %s661 = smul.addr %s660, 4
        %s662 = scalar_lea.vmem %s8, %s661
      $region68: #{predict_model_forward.9} parent=63 // pred_fallthru
        _
      // Predicated region
      $region69: #{predict_model_forward.9} parent=63 // pred_check
        %p663 = pneg %p276
      $region70: #{predict_model_forward.9} parent=63 // pred_check_branch
        %665 = sbr.rel (%p663) target = $region72
      $region71: #{predict_model_forward.9} parent=63 // pred_region
        %p666 = scmp.lt.s32.totalorder %s29, 1
        %s667 = scalar_select %p666, %s29, 1
        %p668 = scmp.lt.s32.totalorder %s30, 1
        %s669 = scalar_select %p668, %s30, 1
        %s670 = smul.addr %s667, 2
        %s671 = sadd.s32 %s669, %s670
        %s672 = scalar_lea.vmem %s9, %s671
      $region72: #{predict_model_forward.9} parent=63 // pred_fallthru
        _
    $region64: #{predict_model_forward.9} parent=5 // pred_fallthru
      _
  $region6: #{predict_model_forward.9} parent=0 // loop_footer
    %s22 = sadd.s32 1, %s18
  $region7: #{predict_model_forward.9} parent=0 // loop_footer_branch
    %17 = sbr.rel target = $region3
  $region8: #{predict_model_forward.9} parent=0 // loop_exit
    _

// kernel: predict_model_forward.10
$region0: #{predict_model_forward.10}
  #allocation0 [shape = 'u32[]', space=smem, size = 0x4, offset = 0x4, fixed_abs, tag = 'smem constant byte address 0x4 - core index']
  #allocation1 [shape = 'u32[144,128]{1,0:T(1,128)}', space=vmem, size = 0x12000, scoped, tag = 'internal scratch']
  #allocation2 [shape = 'f32[1,1]{1,0:T(1,128)S(1)}', space=vmem, size = 0x200, scoped, tag = 'scoped memory for predict_model_forward.10']
  %s0 = inlined_call_operand.vmem [shape: f32[2,1,32], index: 0, kind: input, shape index: {}]
  %s1 = inlined_call_operand.vmem [shape: f32[2,1,2,32], index: 1, kind: input, shape index: {}]
  %s2 = inlined_call_operand.vmem [shape: f32[2,1,2,1], index: 2, kind: input, shape index: {}]
  %s3 = inlined_call_operand.vmem [shape: bf16[32,32], index: 3, kind: input, shape index: {}]
  %s4 = inlined_call_operand.vmem [shape: bf16[32,32], index: 4, kind: input, shape index: {}]
  %s5 = inlined_call_operand.vmem [shape: f32[1,32], index: 5, kind: input, shape index: {}]
  %s6 = inlined_call_operand.vmem [shape: f32[1,32], index: 6, kind: input, shape index: {}]
  %s7 = inlined_call_operand.<no memory space> [shape: f32[1,1], index: 7, kind: input, shape index: {}]
  %s8 = inlined_call_operand.vmem [shape: f32[2,1,2,1], index: 8, kind: output, shape index: {0}]
  %s9 = inlined_call_operand.hbm [shape: f32[2,1,1,32], index: 9, kind: output, shape index: {1}]
  %10 = xla_tuple %s8, %s9
  %s11 = sld [smem:[#allocation0]]
  $region73: #{predict_model_forward.10} parent=0
    _
  %s13 = ssub.s32 1, %s11
  %s14 = scalar_select 0, %s13, %s11
  %v15 = vstv %s7
  %16 = vst [vmem:[#allocation2] sm:$0x1] %v15
  $region1: #{predict_model_forward.10} parent=0
    #allocation3 [shape = 'u8[1024]{0}', space=vmem, size = 0x400, scoped, tag = 'output window, operand 1']
    #allocation4 [shape = 's32[2]{0}', space=sflag, size = 0x8, scoped, tag = 'scoped memory for predict_model_forward.10']
    %17 = vsyncpa [#allocation4], 0
    %s18 = scalar_lea.sflag [#allocation4], 1
    %19 = vsyncpa %s18, 0
    loop: start=0, step=1, limit=4
    $region2: #{predict_model_forward.10} parent=1 // loop_pre_header
      _
    $region3: #{predict_model_forward.10} parent=1 // loop_header
      %s21 = sphi 0, %s25
      %p22 = scmp.ge.s32.totalorder %s21, 4
      %s28 = sphi 0, %s40
      %s29 = sphi 0, %s36
      %s30 = sphi 0, %s28
      %s31 = sphi 0, %s29
      %s32 = sphi 0, %s30
      %s33 = sphi 0, %s31
      %s43 = sphi 0, %s45
      %s46 = sphi 0, %s43
      %s47 = sphi 0, %s46
      %s63 = sphi 0, %s47
      %s71 = sphi 0, %s73
      %s74 = sphi 0, %s71
      %s75 = sphi 0, %s74
      %s91 = sphi 0, %s75
      %s99 = sphi 0, %s101
      %s102 = sphi 0, %s99
      %s103 = sphi 0, %s102
      %s119 = sphi 0, %s103
      %s123 = sphi 0, %s123
      %s125 = sphi 0, %s123
      %s126 = sphi 0, %s125
      %s140 = sphi 0, %s126
      %s144 = sphi 0, %s144
      %s146 = sphi 0, %s144
      %s147 = sphi 0, %s146
      %s161 = sphi 0, %s147
      %s165 = sphi 0, %s165
      %s167 = sphi 0, %s165
      %s168 = sphi 0, %s167
      %s182 = sphi 0, %s168
      %s186 = sphi 0, %s186
      %s188 = sphi 0, %s186
      %s189 = sphi 0, %s188
      %s203 = sphi 0, %s189
      %s207 = sphi 0, %s207
      %s209 = sphi 0, %s207
      %s210 = sphi 0, %s209
      %s224 = sphi 0, %s210
      %s232 = sphi 0, %s234
      %s235 = sphi 0, %s232
      %s236 = sphi 0, %s235
      %s252 = sphi 0, %s236
      %s260 = sphi 0, %s262
      %s263 = sphi 0, %s260
      %s264 = sphi 0, %s263
      %s280 = sphi 0, %s264
    $region4: #{predict_model_forward.10} parent=1 // loop_header_branch
      %24 = sbr.rel (%p22) target = $region8
    $region5: #{predict_model_forward.10} parent=1 // loop_body
      %s26 = ssub.s32 %s21, 1
      %s27 = ssub.s32 %s21, 2
      %s34 = sadd.s32 1, %s29
      %p35 = scmp.ge.s32.totalorder %s34, 1
      %s36 = scalar_select %p35, 0, %s34
      %s37 = sadd.s32 1, %s28
      %s38 = scalar_select %p35, %s37, %s28
      %p39 = scmp.ge.s32.totalorder %s38, 2
      %s40 = scalar_select %p39, 0, %s38
      %s41 = ssub.s32 %s28, %s40
      %p42 = scmp.eq.s32.totalorder %s41, 0
      %s44 = sadd.s32 %s43, 1
      %s45 = scalar_select %p42, %s43, %s44
      %p48 = pneg %p42
      %p49 = scmp.eq.s32.totalorder %s21, 1
      %p50 = por %p48, %p49
      %p51 = scmp.ne.s32.totalorder %s43, %s46
      %p52 = scmp.eq.s32.totalorder %s21, 0
      %p53 = por %p51, %p52
      %p54 = scmp.ne.s32.totalorder %s43, %s46
      %p55 = scmp.eq.s32.totalorder %s26, 1
      %p56 = por %p54, %p55
      %p57 = scmp.ne.s32.totalorder %s46, %s47
      %p58 = scmp.eq.s32.totalorder %s26, 0
      %p59 = por %p57, %p58
      %p60 = scmp.ne.s32.totalorder %s46, %s47
      %p61 = scmp.eq.s32.totalorder %s27, 1
      %p62 = por %p60, %p61
      %p64 = scmp.ne.s32.totalorder %s47, %s63
      %p65 = scmp.eq.s32.totalorder %s27, 0
      %p66 = por %p64, %p65
      %s67 = ssub.s32 %s28, %s40
      %s68 = ssub.s32 %s29, %s36
      %s69 = sor.u32 %s67, %s68
      %p70 = scmp.eq.s32.totalorder %s69, 0
      %s72 = sadd.s32 %s71, 1
      %s73 = scalar_select %p70, %s71, %s72
      %p76 = pneg %p70
      %p77 = scmp.eq.s32.totalorder %s21, 1
      %p78 = por %p76, %p77
      %p79 = scmp.ne.s32.totalorder %s71, %s74
      %p80 = scmp.eq.s32.totalorder %s21, 0
      %p81 = por %p79, %p80
      %p82 = scmp.ne.s32.totalorder %s71, %s74
      %p83 = scmp.eq.s32.totalorder %s26, 1
      %p84 = por %p82, %p83
      %p85 = scmp.ne.s32.totalorder %s74, %s75
      %p86 = scmp.eq.s32.totalorder %s26, 0
      %p87 = por %p85, %p86
      %p88 = scmp.ne.s32.totalorder %s74, %s75
      %p89 = scmp.eq.s32.totalorder %s27, 1
      %p90 = por %p88, %p89
      %p92 = scmp.ne.s32.totalorder %s75, %s91
      %p93 = scmp.eq.s32.totalorder %s27, 0
      %p94 = por %p92, %p93
      %s95 = ssub.s32 %s28, %s40
      %s96 = ssub.s32 %s29, %s36
      %s97 = sor.u32 %s95, %s96
      %p98 = scmp.eq.s32.totalorder %s97, 0
      %s100 = sadd.s32 %s99, 1
      %s101 = scalar_select %p98, %s99, %s100
      %p104 = pneg %p98
      %p105 = scmp.eq.s32.totalorder %s21, 1
      %p106 = por %p104, %p105
      %p107 = scmp.ne.s32.totalorder %s99, %s102
      %p108 = scmp.eq.s32.totalorder %s21, 0
      %p109 = por %p107, %p108
      %p110 = scmp.ne.s32.totalorder %s99, %s102
      %p111 = scmp.eq.s32.totalorder %s26, 1
      %p112 = por %p110, %p111
      %p113 = scmp.ne.s32.totalorder %s102, %s103
      %p114 = scmp.eq.s32.totalorder %s26, 0
      %p115 = por %p113, %p114
      %p116 = scmp.ne.s32.totalorder %s102, %s103
      %p117 = scmp.eq.s32.totalorder %s27, 1
      %p118 = por %p116, %p117
      %p120 = scmp.ne.s32.totalorder %s103, %s119
      %p121 = scmp.eq.s32.totalorder %s27, 0
      %p122 = por %p120, %p121
      %s124 = sadd.s32 %s123, 1
      %p127 = scmp.eq.s32.totalorder %s21, 1
      %p128 = scmp.ne.s32.totalorder %s123, %s125
      %p129 = scmp.eq.s32.totalorder %s21, 0
      %p130 = por %p128, %p129
      %p131 = scmp.ne.s32.totalorder %s123, %s125
      %p132 = scmp.eq.s32.totalorder %s26, 1
      %p133 = por %p131, %p132
      %p134 = scmp.ne.s32.totalorder %s125, %s126
      %p135 = scmp.eq.s32.totalorder %s26, 0
      %p136 = por %p134, %p135
      %p137 = scmp.ne.s32.totalorder %s125, %s126
      %p138 = scmp.eq.s32.totalorder %s27, 1
      %p139 = por %p137, %p138
      %p141 = scmp.ne.s32.totalorder %s126, %s140
      %p142 = scmp.eq.s32.totalorder %s27, 0
      %p143 = por %p141, %p142
      %s145 = sadd.s32 %s144, 1
      %p148 = scmp.eq.s32.totalorder %s21, 1
      %p149 = scmp.ne.s32.totalorder %s144, %s146
      %p150 = scmp.eq.s32.totalorder %s21, 0
      %p151 = por %p149, %p150
      %p152 = scmp.ne.s32.totalorder %s144, %s146
      %p153 = scmp.eq.s32.totalorder %s26, 1
      %p154 = por %p152, %p153
      %p155 = scmp.ne.s32.totalorder %s146, %s147
      %p156 = scmp.eq.s32.totalorder %s26, 0
      %p157 = por %p155, %p156
      %p158 = scmp.ne.s32.totalorder %s146, %s147
      %p159 = scmp.eq.s32.totalorder %s27, 1
      %p160 = por %p158, %p159
      %p162 = scmp.ne.s32.totalorder %s147, %s161
      %p163 = scmp.eq.s32.totalorder %s27, 0
      %p164 = por %p162, %p163
      %s166 = sadd.s32 %s165, 1
      %p169 = scmp.eq.s32.totalorder %s21, 1
      %p170 = scmp.ne.s32.totalorder %s165, %s167
      %p171 = scmp.eq.s32.totalorder %s21, 0
      %p172 = por %p170, %p171
      %p173 = scmp.ne.s32.totalorder %s165, %s167
      %p174 = scmp.eq.s32.totalorder %s26, 1
      %p175 = por %p173, %p174
      %p176 = scmp.ne.s32.totalorder %s167, %s168
      %p177 = scmp.eq.s32.totalorder %s26, 0
      %p178 = por %p176, %p177
      %p179 = scmp.ne.s32.totalorder %s167, %s168
      %p180 = scmp.eq.s32.totalorder %s27, 1
      %p181 = por %p179, %p180
      %p183 = scmp.ne.s32.totalorder %s168, %s182
      %p184 = scmp.eq.s32.totalorder %s27, 0
      %p185 = por %p183, %p184
      %s187 = sadd.s32 %s186, 1
      %p190 = scmp.eq.s32.totalorder %s21, 1
      %p191 = scmp.ne.s32.totalorder %s186, %s188
      %p192 = scmp.eq.s32.totalorder %s21, 0
      %p193 = por %p191, %p192
      %p194 = scmp.ne.s32.totalorder %s186, %s188
      %p195 = scmp.eq.s32.totalorder %s26, 1
      %p196 = por %p194, %p195
      %p197 = scmp.ne.s32.totalorder %s188, %s189
      %p198 = scmp.eq.s32.totalorder %s26, 0
      %p199 = por %p197, %p198
      %p200 = scmp.ne.s32.totalorder %s188, %s189
      %p201 = scmp.eq.s32.totalorder %s27, 1
      %p202 = por %p200, %p201
      %p204 = scmp.ne.s32.totalorder %s189, %s203
      %p205 = scmp.eq.s32.totalorder %s27, 0
      %p206 = por %p204, %p205
      %s208 = sadd.s32 %s207, 1
      %p211 = scmp.eq.s32.totalorder %s21, 1
      %p212 = scmp.ne.s32.totalorder %s207, %s209
      %p213 = scmp.eq.s32.totalorder %s21, 0
      %p214 = por %p212, %p213
      %p215 = scmp.ne.s32.totalorder %s207, %s209
      %p216 = scmp.eq.s32.totalorder %s26, 1
      %p217 = por %p215, %p216
      %p218 = scmp.ne.s32.totalorder %s209, %s210
      %p219 = scmp.eq.s32.totalorder %s26, 0
      %p220 = por %p218, %p219
      %p221 = scmp.ne.s32.totalorder %s209, %s210
      %p222 = scmp.eq.s32.totalorder %s27, 1
      %p223 = por %p221, %p222
      %p225 = scmp.ne.s32.totalorder %s210, %s224
      %p226 = scmp.eq.s32.totalorder %s27, 0
      %p227 = por %p225, %p226
      %s228 = ssub.s32 %s28, %s40
      %s229 = ssub.s32 %s29, %s36
      %s230 = sor.u32 %s228, %s229
      %p231 = scmp.eq.s32.totalorder %s230, 0
      %s233 = sadd.s32 %s232, 1
      %s234 = scalar_select %p231, %s232, %s233
      %p237 = pneg %p231
      %p238 = scmp.eq.s32.totalorder %s21, 1
      %p239 = por %p237, %p238
      %p240 = scmp.ne.s32.totalorder %s232, %s235
      %p241 = scmp.eq.s32.totalorder %s21, 0
      %p242 = por %p240, %p241
      %p243 = scmp.ne.s32.totalorder %s232, %s235
      %p244 = scmp.eq.s32.totalorder %s26, 1
      %p245 = por %p243, %p244
      %p246 = scmp.ne.s32.totalorder %s235, %s236
      %p247 = scmp.eq.s32.totalorder %s26, 0
      %p248 = por %p246, %p247
      %p249 = scmp.ne.s32.totalorder %s235, %s236
      %p250 = scmp.eq.s32.totalorder %s27, 1
      %p251 = por %p249, %p250
      %p253 = scmp.ne.s32.totalorder %s236, %s252
      %p254 = scmp.eq.s32.totalorder %s27, 0
      %p255 = por %p253, %p254
      %s256 = ssub.s32 %s28, %s40
      %s257 = ssub.s32 %s29, %s36
      %s258 = sor.u32 %s256, %s257
      %p259 = scmp.eq.s32.totalorder %s258, 0
      %s261 = sadd.s32 %s260, 1
      %s262 = scalar_select %p259, %s260, %s261
      %p265 = pneg %p259
      %p266 = scmp.eq.s32.totalorder %s21, 1
      %p267 = por %p265, %p266
      %p268 = scmp.ne.s32.totalorder %s260, %s263
      %p269 = scmp.eq.s32.totalorder %s21, 0
      %p270 = por %p268, %p269
      %p271 = scmp.ne.s32.totalorder %s260, %s263
      %p272 = scmp.eq.s32.totalorder %s26, 1
      %p273 = por %p271, %p272
      %p274 = scmp.ne.s32.totalorder %s263, %s264
      %p275 = scmp.eq.s32.totalorder %s26, 0
      %p276 = por %p274, %p275
      %p277 = scmp.ne.s32.totalorder %s263, %s264
      %p278 = scmp.eq.s32.totalorder %s27, 1
      %p279 = por %p277, %p278
      %p281 = scmp.ne.s32.totalorder %s264, %s280
      %p282 = scmp.eq.s32.totalorder %s27, 0
      %p283 = por %p281, %p282
      %p284 = scmp.le.s32.totalorder 1, %s21
      %p285 = scmp.lt.s32.totalorder %s21, 3
      %p286 = pnand %p284, %p285
      %p287 = pneg %p286
      // Predicated region
      $region9: #{predict_model_forward.10} parent=5 // pred_check
        _
      $region10: #{predict_model_forward.10} parent=5 // pred_check_branch
        %289 = sbr.rel (%p286) target = $region12
      $region11: #{predict_model_forward.10} parent=5 // pred_region
        %s290 = ssub.s32 %s21, 1
        // Predicated region
        $region13: #{predict_model_forward.10} parent=11 // pred_check
          %p291 = pneg %p136
        $region14: #{predict_model_forward.10} parent=11 // pred_check_branch
          %293 = sbr.rel (%p291) target = $region16
        $region15: #{predict_model_forward.10} parent=11 // pred_region
          _
        $region16: #{predict_model_forward.10} parent=11 // pred_fallthru
          _
        // Predicated region
        $region17: #{predict_model_forward.10} parent=11 // pred_check
          %p294 = pneg %p157
        $region18: #{predict_model_forward.10} parent=11 // pred_check_branch
          %296 = sbr.rel (%p294) target = $region20
        $region19: #{predict_model_forward.10} parent=11 // pred_region
          _
        $region20: #{predict_model_forward.10} parent=11 // pred_fallthru
          _
        // Predicated region
        $region21: #{predict_model_forward.10} parent=11 // pred_check
          %p297 = pneg %p178
        $region22: #{predict_model_forward.10} parent=11 // pred_check_branch
          %299 = sbr.rel (%p297) target = $region24
        $region23: #{predict_model_forward.10} parent=11 // pred_region
          _
        $region24: #{predict_model_forward.10} parent=11 // pred_fallthru
          _
        // Predicated region
        $region25: #{predict_model_forward.10} parent=11 // pred_check
          %p300 = pneg %p199
        $region26: #{predict_model_forward.10} parent=11 // pred_check_branch
          %302 = sbr.rel (%p300) target = $region28
        $region27: #{predict_model_forward.10} parent=11 // pred_region
          _
        $region28: #{predict_model_forward.10} parent=11 // pred_fallthru
          _
        // Predicated region
        $region29: #{predict_model_forward.10} parent=11 // pred_check
          %p303 = pneg %p220
        $region30: #{predict_model_forward.10} parent=11 // pred_check_branch
          %305 = sbr.rel (%p303) target = $region32
        $region31: #{predict_model_forward.10} parent=11 // pred_region
          _
        $region32: #{predict_model_forward.10} parent=11 // pred_fallthru
          _
      $region12: #{predict_model_forward.10} parent=5 // pred_fallthru
        _
      %p306 = scmp.lt.s32.totalorder %s21, 2
      // Predicated region
      $region33: #{predict_model_forward.10} parent=5 // pred_check
        %p307 = pneg %p306
      $region34: #{predict_model_forward.10} parent=5 // pred_check_branch
        %309 = sbr.rel (%p307) target = $region36
      $region35: #{predict_model_forward.10} parent=5 // pred_region
        // Predicated region
        $region37: #{predict_model_forward.10} parent=35 // pred_check
          %p310 = pneg %p53
        $region38: #{predict_model_forward.10} parent=35 // pred_check_branch
          %312 = sbr.rel (%p310) target = $region40
        $region39: #{predict_model_forward.10} parent=35 // pred_region
          %p313 = scmp.lt.s32.totalorder %s28, 1
          %s314 = scalar_select %p313, %s28, 1
          %s315 = scalar_lea.vmem %s0, %s314
        $region40: #{predict_model_forward.10} parent=35 // pred_fallthru
          _
        // Predicated region
        $region41: #{predict_model_forward.10} parent=35 // pred_check
          %p316 = pneg %p81
        $region42: #{predict_model_forward.10} parent=35 // pred_check_branch
          %318 = sbr.rel (%p316) target = $region44
        $region43: #{predict_model_forward.10} parent=35 // pred_region
          %p319 = scmp.lt.s32.totalorder %s28, 1
          %s320 = scalar_select %p319, %s28, 1
          %p321 = scmp.lt.s32.totalorder %s29, 0
          %s322 = scalar_select %p321, %s29, 0
          %s323 = sadd.s32 %s322, %s320
          %s324 = smul.addr %s323, 2
          %s325 = scalar_lea.vmem %s1, %s324
        $region44: #{predict_model_forward.10} parent=35 // pred_fallthru
          _
        // Predicated region
        $region45: #{predict_model_forward.10} parent=35 // pred_check
          %p326 = pneg %p109
        $region46: #{predict_model_forward.10} parent=35 // pred_check_branch
          %328 = sbr.rel (%p326) target = $region48
        $region47: #{predict_model_forward.10} parent=35 // pred_region
          %p329 = scmp.lt.s32.totalorder %s28, 1
          %s330 = scalar_select %p329, %s28, 1
          %p331 = scmp.lt.s32.totalorder %s29, 0
          %s332 = scalar_select %p331, %s29, 0
          %s333 = sadd.s32 %s332, %s330
          %s334 = smul.addr %s333, 2
          %s335 = scalar_lea.vmem %s2, %s334
        $region48: #{predict_model_forward.10} parent=35 // pred_fallthru
          _
      $region36: #{predict_model_forward.10} parent=5 // pred_fallthru
        _
      %p336 = scmp.le.s32.totalorder 1, %s21
      %p337 = scmp.lt.s32.totalorder %s21, 3
      %p338 = pnand %p336, %p337
      %p339 = pneg %p338
      // Predicated region
      $region49: #{predict_model_forward.10} parent=5 // pred_check
        _
      $region50: #{predict_model_forward.10} parent=5 // pred_check_branch
        %341 = sbr.rel (%p338) target = $region52
      $region51: #{predict_model_forward.10} parent=5 // pred_region
        %s342 = ssub.s32 %s21, 1
        %p343 = scmp.lt.s32.totalorder %s30, 1
        %s344 = scalar_select %p343, %s30, 1
        %s345 = scalar_lea.vmem %s0, %s344
        %p346 = pneg %p59
        %p347 = pneg %p56
        %p348 = scmp.lt.s32.totalorder %s30, 1
        %s349 = scalar_select %p348, %s30, 1
        %p350 = scmp.lt.s32.totalorder %s31, 0
        %s351 = scalar_select %p350, %s31, 0
        %s352 = sadd.s32 %s351, %s349
        %s353 = smul.addr %s352, 2
        %s354 = scalar_lea.vmem %s1, %s353
        %p355 = pneg %p87
        %p356 = pneg %p84
        %p357 = scmp.lt.s32.totalorder %s30, 1
        %s358 = scalar_select %p357, %s30, 1
        %p359 = scmp.lt.s32.totalorder %s31, 0
        %s360 = scalar_select %p359, %s31, 0
        %s361 = sadd.s32 %s360, %s358
        %s362 = smul.addr %s361, 2
        %s363 = scalar_lea.vmem %s2, %s362
        %p364 = pneg %p115
        %p365 = pneg %p112
        %p366 = pneg %p136
        %p367 = pneg %p133
        %p368 = pneg %p157
        %p369 = pneg %p154
        %p370 = pneg %p178
        %p371 = pneg %p175
        %p372 = pneg %p199
        %p373 = pneg %p196
        %p374 = pneg %p220
        %p375 = pneg %p217
        %p376 = pneg %p248
        %p377 = pneg %p245
        %p378 = scmp.lt.s32.totalorder %s30, 1
        %s379 = scalar_select %p378, %s30, 1
        %p380 = scmp.lt.s32.totalorder %s31, 0
        %s381 = scalar_select %p380, %s31, 0
        %s382 = sadd.s32 %s381, %s379
        %s383 = smul.addr %s382, 2
        %s384 = scalar_lea.vmem %s8, %s383
        %p385 = pneg %p276
        %p386 = pneg %p273
        %s387 = sand.u32 %s263, 1
        %s388 = scalar_lea.sflag [#allocation4], %s387
        %s389 = sand.u32 %s263, 1
        %s390 = scalar_lea.vmem [#allocation3], %s389
        %p391 = scmp.lt.s32.totalorder %s30, 1
        %s392 = scalar_select %p391, %s30, 1
        %s393 = scalar_lea.vmem %s0, %s392
        %p394 = scmp.lt.s32.totalorder %s30, 1
        %s395 = scalar_select %p394, %s30, 1
        %p396 = scmp.lt.s32.totalorder %s31, 0
        %s397 = scalar_select %p396, %s31, 0
        %s398 = sadd.s32 %s397, %s395
        %s399 = smul.addr %s398, 2
        %s400 = scalar_lea.vmem %s1, %s399
        %p401 = scmp.lt.s32.totalorder %s30, 1
        %s402 = scalar_select %p401, %s30, 1
        %p403 = scmp.lt.s32.totalorder %s31, 0
        %s404 = scalar_select %p403, %s31, 0
        %s405 = sadd.s32 %s404, %s402
        %s406 = smul.addr %s405, 2
        %s407 = scalar_lea.vmem %s2, %s406
        %p408 = scmp.lt.s32.totalorder %s30, 1
        %s409 = scalar_select %p408, %s30, 1
        %p410 = scmp.lt.s32.totalorder %s31, 0
        %s411 = scalar_select %p410, %s31, 0
        %s412 = sadd.s32 %s411, %s409
        %s413 = smul.addr %s412, 2
        %s414 = scalar_lea.vmem %s8, %s413
        %v416 = vld [vmem:[%s393] sm:$0x1]
        %v417 = vld [vmem:[%s400] sm:$0x3]
        %v418 = vld [vmem:[%s4] sm:$0xf]
        %v419 = vld [vmem:[%s4 + $0x4] sm:$0xf]
        %v420 = vld [vmem:[%s4 + $0x8] sm:$0xf]
        %v421 = vld [vmem:[%s4 + $0xc] sm:$0xf]
        %v422 = vpack.c.bf16 %v417, %v417
        %v423 = vld [vmem:[%s3] sm:$0xf]
        %v424 = vld [vmem:[%s3 + $0x4] sm:$0xf]
        %v425 = vld [vmem:[%s3 + $0x8] sm:$0xf]
        %v426 = vld [vmem:[%s3 + $0xc] sm:$0xf]
        %v427 = vpack.c.bf16 %v416, %v416
        %v432 = vunpack.c.l.b16 %v423
        %v433 = vunpack.c.l.b16 %v424
        %v434 = vunpack.c.l.b16 %v425
        %v435 = vunpack.c.l.b16 %v426
        %v436 = vpack.c.b16 %v433, %v432
        %v437 = vpack.c.b16 %v435, %v434
        %vm440 = vcmask 261120
        %v442 = vsel %vm440, %v427, 0
        %444 = vmatprep.subr.bf16.mxu0 0
        %445 = vmatpush1.bf16.msra.mxu0 0
        %446 = vmatprep.subr.bf16.mxu0 0
        %447 = vmatpush1.bf16.msra.mxu0 0
        %448 = vmatprep.subr.bf16.mxu0 0
        %449 = vmatpush1.bf16.msra.mxu0 0
        %450 = vmatprep.subr.bf16.mxu0 0
        %451 = vmatpush1.bf16.msra.mxu0 0
        %452 = vmatprep.subr.bf16.mxu0 0
        %453 = vmatpush1.bf16.msra.mxu0 0
        %454 = vmatprep.subr.bf16.mxu0 0
        %455 = vmatpush1.bf16.msra.mxu0 0
        %456 = vmatprep.subr.bf16.mxu0 0
        %457 = vmatpush1.bf16.msra.mxu0 %v437
        %458 = vmatprep.subr.bf16.mxu0 0
        %459 = vmatpush1.bf16.msra.mxu0 %v436
        %460 = vmatprep.subr.bf16.mxu0 0
        %461 = vmatpush2.bf16.msra.mxu0 0
        %462 = vmatprep.subr.bf16.mxu0 0
        %463 = vmatpush2.bf16.msra.mxu0 0
        %464 = vmatprep.subr.bf16.mxu0 0
        %465 = vmatpush2.bf16.msra.mxu0 0
        %466 = vmatprep.subr.bf16.mxu0 0
        %467 = vmatpush2.bf16.msra.mxu0 0
        %468 = vmatprep.subr.bf16.mxu0 0
        %469 = vmatpush2.bf16.msra.mxu0 0
        %470 = vmatprep.subr.bf16.mxu0 0
        %471 = vmatpush2.bf16.msra.mxu0 0
        %472 = vmatprep.subr.bf16.mxu0 0
        %473 = vmatpush2.bf16.msra.mxu0 0
        %474 = vmatprep.subr.bf16.mxu0 0
        %475 = vmatpush2.bf16.msra.mxu0 0
        %476 = vmatprep.mubr.bf16.mxu0 0
        %477 = vmatmul.mubr.bf16.gmra.mxu0 %v442
        %v478 = vpop.f32.mrf.mxu0
        %v479 = vadd.f32 0.0, %v478
        %v480 = vpop.f32.mrf.mxu0
        %v481 = vpop.f32.mrf.mxu0
        %v482 = vpop.f32.mrf.mxu0
        %483 = vdwg.mxu0
        %v484 = vlaneseq
        %v485 = vshrl.u32 %v484, 7
        %v486 = vsub.s32 0, %v485
        %v487 = vrot.slane %v479, %v486
        %v492 = vunpack.c.l.b16 %v418
        %v493 = vunpack.c.l.b16 %v419
        %v494 = vunpack.c.l.b16 %v420
        %v495 = vunpack.c.l.b16 %v421
        %v496 = vpack.c.b16 %v493, %v492
        %v497 = vpack.c.b16 %v495, %v494
        %v501 = vsel %vm440, %v422, 0
        %503 = vmatprep.subr.bf16.mxu0 0
        %504 = vmatpush1.bf16.msra.mxu0 0
        %505 = vmatprep.subr.bf16.mxu0 0
        %506 = vmatpush1.bf16.msra.mxu0 0
        %507 = vmatprep.subr.bf16.mxu0 0
        %508 = vmatpush1.bf16.msra.mxu0 0
        %509 = vmatprep.subr.bf16.mxu0 0
        %510 = vmatpush1.bf16.msra.mxu0 0
        %511 = vmatprep.subr.bf16.mxu0 0
        %512 = vmatpush1.bf16.msra.mxu0 0
        %513 = vmatprep.subr.bf16.mxu0 0
        %514 = vmatpush1.bf16.msra.mxu0 0
        %515 = vmatprep.subr.bf16.mxu0 0
        %516 = vmatpush1.bf16.msra.mxu0 %v497
        %517 = vmatprep.subr.bf16.mxu0 0
        %518 = vmatpush1.bf16.msra.mxu0 %v496
        %519 = vmatprep.subr.bf16.mxu0 0
        %520 = vmatpush2.bf16.msra.mxu0 0
        %521 = vmatprep.subr.bf16.mxu0 0
        %522 = vmatpush2.bf16.msra.mxu0 0
        %523 = vmatprep.subr.bf16.mxu0 0
        %524 = vmatpush2.bf16.msra.mxu0 0
        %525 = vmatprep.subr.bf16.mxu0 0
        %526 = vmatpush2.bf16.msra.mxu0 0
        %527 = vmatprep.subr.bf16.mxu0 0
        %528 = vmatpush2.bf16.msra.mxu0 0
        %529 = vmatprep.subr.bf16.mxu0 0
        %530 = vmatpush2.bf16.msra.mxu0 0
        %531 = vmatprep.subr.bf16.mxu0 0
        %532 = vmatpush2.bf16.msra.mxu0 0
        %533 = vmatprep.subr.bf16.mxu0 0
        %534 = vmatpush2.bf16.msra.mxu0 0
        %535 = vmatprep.mubr.bf16.mxu0 0
        %536 = vmatmul.mubr.bf16.gmra.mxu0 %v501
        %v537 = vpop.f32.mrf.mxu0
        %v538 = vadd.f32 %v487, %v537
        %v539 = vpop.f32.mrf.mxu0
        %v540 = vpop.f32.mrf.mxu0
        %v541 = vpop.f32.mrf.mxu0
        %542 = vdwg.mxu0
        %v543 = vld [vmem:[%s5] sm:$0x1]
        %v545 = vlaneseq
        %v546 = vshrl.u32 %v545, 7
        %v547 = vsub.s32 0, %v546
        %v548 = vrot.slane %v543, %v547
        %v550 = vadd.f32 %v538, %v548
        %v551 = vtanh.pop %v550
        %v552 = vld [vmem:[%s6] sm:$0x1]
        %v554 = vlaneseq
        %v555 = vshrl.u32 %v554, 7
        %v556 = vsub.s32 0, %v555
        %v557 = vrot.slane %v552, %v556
        %v559 = vmul.f32 %v551, %v557
        %vm560 = vcmask 254976
        %v561 = vsel %vm560, %v559, 0.0
        %562 = vadd.xlane.f32.xlu0 %v561
        %v563 = vpop.xlane.xlu0 %562
        %v564 = vld [vmem:[#allocation2] sm:$0x1]
        %v566 = vlaneseq
        %v567 = vshrl.u32 %v566, 7
        %v568 = vsub.s32 0, %v567
        %v569 = vrot.slane %v564, %v568
        %v571 = vadd.f32 %v563, %v569
        %v572 = vld [vmem:[%s407] sm:$0x3]
        %vm573 = vcmp.gt.f32.partialorder %v572, 0.5
        %v574 = vsel %vm573, -inf, %v571
        %vm575 = vcmask 1024
        %v576 = vsel %vm575, %v574, -inf
        %v577 = vrot.slane %v576, 4
        %v578 = vmax.f32 %v576, %v577
        %v579 = vrot.slane %v578, 2
        %v580 = vmax.f32 %v578, %v579
        %v581 = vrot.slane %v580, 1
        %v582 = vmax.f32 %v580, %v581
        %v583 = vsub.f32 %v574, %v582
        %v584 = vmul.f32 %v583, 1.442695
        %v585 = vpow.pop %v584
        %v586 = vsel %vm575, %v585, 0.0
        %v587 = vrot.slane %v586, 4
        %v588 = vadd.f32 %v586, %v587
        %v589 = vrot.slane %v588, 2
        %v590 = vadd.f32 %v588, %v589
        %v591 = vrot.slane %v590, 1
        %v592 = vadd.f32 %v590, %v591
        %v593 = vrcp.pop %v592
        %v594 = vmul.f32 %v585, %v593
        %595 = vst.msk [vmem:[%s414] sm:$0x3] %vm575, %v594
        %597 = vset.pattern.permute.xlu0 0
        %598 = vperm.xlu0 %597, %v594
        %v599 = vpop.permute.xlu0 %598
        %v601 = vmul.f32 %v599, %v417
        %v602 = vsel %vm560, %v601, 0.0
        %v603 = vrot.slane %v602, 4
        %v604 = vadd.f32 %v602, %v603
        %v605 = vrot.slane %v604, 2
        %v606 = vadd.f32 %v604, %v605
        %v607 = vrot.slane %v606, 1
        %v608 = vadd.f32 %v606, %v607
        %vm609 = vcmask 253952
        %610 = vst.msk [vmem:[%s390] sm:$0x1] %vm609, %v608
        %p611 = scmp.lt.s32.totalorder %s30, 1
        %s612 = scalar_select %p611, %s30, 1
        %p613 = scmp.lt.s32.totalorder %s31, 0
        %s614 = scalar_select %p613, %s31, 0
        %s615 = sadd.s32 %s614, %s612
        %s616 = smul.addr %s615, 2
        %s617 = scalar_lea.vmem %s8, %s616
        %s618 = sand.u32 %s263, 1
        %s619 = scalar_lea.sflag [#allocation4], %s618
        %s620 = sand.u32 %s263, 1
        %s621 = scalar_lea.vmem [#allocation3], %s620
        // Predicated region
        $region53: #{predict_model_forward.10} parent=51 // pred_check
          %p622 = pneg %p245
        $region54: #{predict_model_forward.10} parent=51 // pred_check_branch
          %624 = sbr.rel (%p622) target = $region56
        $region55: #{predict_model_forward.10} parent=51 // pred_region
          _
        $region56: #{predict_model_forward.10} parent=51 // pred_fallthru
          _
        // Predicated region
        $region57: #{predict_model_forward.10} parent=51 // pred_check
          %p625 = pneg %p273
        $region58: #{predict_model_forward.10} parent=51 // pred_check_branch
          %627 = sbr.rel (%p625) target = $region60
        $region59: #{predict_model_forward.10} parent=51 // pred_region
          %s629 = ssub.s32 16, 16
          %630 = vsyncadd %s619, %s629
          %s631 = sadd.s32 %s31, %s30
          %s632 = smul.addr %s631, 16
          %s633 = scalar_lea.hbm %s9, %s632
          %s635 = sshll.u32 %s621, 4
          %s636 = int_to_ptr.vmem [resolvable:$true] %s635
          %638 = dma.vmem_to_hbm [thread:$0]  %s636, 16, %s633, %s619
        $region60: #{predict_model_forward.10} parent=51 // pred_fallthru
          _
      $region52: #{predict_model_forward.10} parent=5 // pred_fallthru
        _
      %p639 = scmp.le.s32.totalorder 2, %s21
      // Predicated region
      $region61: #{predict_model_forward.10} parent=5 // pred_check
        %p640 = pneg %p639
      $region62: #{predict_model_forward.10} parent=5 // pred_check_branch
        %642 = sbr.rel (%p640) target = $region64
      $region63: #{predict_model_forward.10} parent=5 // pred_region
        %s643 = ssub.s32 %s21, 2
        // Predicated region
        $region65: #{predict_model_forward.10} parent=63 // pred_check
          %p644 = pneg %p251
        $region66: #{predict_model_forward.10} parent=63 // pred_check_branch
          %646 = sbr.rel (%p644) target = $region68
        $region67: #{predict_model_forward.10} parent=63 // pred_region
          %p647 = scmp.lt.s32.totalorder %s32, 1
          %s648 = scalar_select %p647, %s32, 1
          %p649 = scmp.lt.s32.totalorder %s33, 0
          %s650 = scalar_select %p649, %s33, 0
          %s651 = sadd.s32 %s650, %s648
          %s652 = smul.addr %s651, 2
          %s653 = scalar_lea.vmem %s8, %s652
        $region68: #{predict_model_forward.10} parent=63 // pred_fallthru
          _
        // Predicated region
        $region69: #{predict_model_forward.10} parent=63 // pred_check
          %p654 = pneg %p279
        $region70: #{predict_model_forward.10} parent=63 // pred_check_branch
          %656 = sbr.rel (%p654) target = $region72
        $region71: #{predict_model_forward.10} parent=63 // pred_region
          %s657 = sand.u32 %s264, 1
          %s658 = scalar_lea.sflag [#allocation4], %s657
          %s659 = sand.u32 %s264, 1
          %s660 = scalar_lea.vmem [#allocation3], %s659
          %661 = dma.done %s658, 16
        $region72: #{predict_model_forward.10} parent=63 // pred_fallthru
          _
      $region64: #{predict_model_forward.10} parent=5 // pred_fallthru
        _
    $region6: #{predict_model_forward.10} parent=1 // loop_footer
      %s25 = sadd.s32 1, %s21
    $region7: #{predict_model_forward.10} parent=1 // loop_footer_branch
      %20 = sbr.rel target = $region3
    $region8: #{predict_model_forward.10} parent=1 // loop_exit
      _
    %662 = vsyncpa [#allocation4], 1
    %s663 = scalar_lea.sflag [#allocation4], 1
    %664 = vsyncpa %s663, 1

// kernel: predict_model_forward.11
$region0: #{predict_model_forward.11}
  #allocation0 [shape = 'u32[]', space=smem, size = 0x4, offset = 0x4, fixed_abs, tag = 'smem constant byte address 0x4 - core index']
  #allocation1 [shape = 'u32[144,128]{1,0:T(1,128)}', space=vmem, size = 0x12000, scoped, tag = 'internal scratch']
  %s0 = inlined_call_operand.vmem [shape: f32[2,8,8], index: 0, kind: input, shape index: {}]
  %s1 = inlined_call_operand.vmem [shape: f32[2,8,8], index: 1, kind: input, shape index: {}]
  %s2 = inlined_call_operand.vmem [shape: f32[2,8,8], index: 2, kind: input, shape index: {}]
  %s3 = inlined_call_operand.vmem [shape: f32[2,3,8], index: 3, kind: input, shape index: {}]
  %s4 = inlined_call_operand.vmem [shape: f32[2,1,8], index: 4, kind: input, shape index: {}]
  %s5 = inlined_call_operand.vmem [shape: bf16[2,8,8], index: 5, kind: output, shape index: {0}]
  %s6 = inlined_call_operand.vmem [shape: bf16[2,8,8], index: 6, kind: output, shape index: {1}]
  %s7 = inlined_call_operand.vmem [shape: bf16[2,3,8], index: 7, kind: output, shape index: {2}]
  %s8 = inlined_call_operand.vmem [shape: bf16[2,1,8], index: 8, kind: output, shape index: {3}]
  %9 = xla_tuple %s5, %s6, %s7, %s8
  %s10 = sld [smem:[#allocation0]]
  $region77: #{predict_model_forward.11} parent=0
    _
  %s12 = ssub.s32 1, %s10
  %s13 = scalar_select 0, %s12, %s10
  loop: start=0, step=1, limit=4
  $region2: #{predict_model_forward.11} parent=0 // loop_pre_header
    _
  $region3: #{predict_model_forward.11} parent=0 // loop_header
    %s15 = sphi 0, %s19
    %p16 = scmp.ge.s32.totalorder %s15, 4
    %s25 = sphi 0, %s27
    %s28 = sphi 0, %s25
    %s29 = sphi 0, %s28
    %s45 = sphi 0, %s29
    %s51 = sphi 0, %s53
    %s54 = sphi 0, %s51
    %s55 = sphi 0, %s54
    %s71 = sphi 0, %s55
    %s77 = sphi 0, %s79
    %s80 = sphi 0, %s77
    %s81 = sphi 0, %s80
    %s97 = sphi 0, %s81
    %s103 = sphi 0, %s105
    %s106 = sphi 0, %s103
    %s107 = sphi 0, %s106
    %s123 = sphi 0, %s107
    %s129 = sphi 0, %s131
    %s132 = sphi 0, %s129
    %s133 = sphi 0, %s132
    %s149 = sphi 0, %s133
    %s155 = sphi 0, %s157
    %s158 = sphi 0, %s155
    %s159 = sphi 0, %s158
    %s175 = sphi 0, %s159
    %s181 = sphi 0, %s183
    %s184 = sphi 0, %s181
    %s185 = sphi 0, %s184
    %s201 = sphi 0, %s185
    %s207 = sphi 0, %s209
    %s210 = sphi 0, %s207
    %s211 = sphi 0, %s210
    %s227 = sphi 0, %s211
    %s233 = sphi 0, %s235
    %s236 = sphi 0, %s233
    %s237 = sphi 0, %s236
    %s253 = sphi 0, %s237
  $region4: #{predict_model_forward.11} parent=0 // loop_header_branch
    %18 = sbr.rel (%p16) target = $region8
  $region5: #{predict_model_forward.11} parent=0 // loop_body
    %s20 = ssub.s32 %s15, 1
    %s21 = ssub.s32 %s15, 2
    %s22 = sadd.s32 %s15, 1
    %s23 = ssub.s32 %s15, %s22
    %p24 = scmp.eq.s32.totalorder %s23, 0
    %s26 = sadd.s32 %s25, 1
    %s27 = scalar_select %p24, %s25, %s26
    %p30 = pneg %p24
    %p31 = scmp.eq.s32.totalorder %s15, 1
    %p32 = por %p30, %p31
    %p33 = scmp.ne.s32.totalorder %s25, %s28
    %p34 = scmp.eq.s32.totalorder %s15, 0
    %p35 = por %p33, %p34
    %p36 = scmp.ne.s32.totalorder %s25, %s28
    %p37 = scmp.eq.s32.totalorder %s20, 1
    %p38 = por %p36, %p37
    %p39 = scmp.ne.s32.totalorder %s28, %s29
    %p40 = scmp.eq.s32.totalorder %s20, 0
    %p41 = por %p39, %p40
    %p42 = scmp.ne.s32.totalorder %s28, %s29
    %p43 = scmp.eq.s32.totalorder %s21, 1
    %p44 = por %p42, %p43
    %p46 = scmp.ne.s32.totalorder %s29, %s45
    %p47 = scmp.eq.s32.totalorder %s21, 0
    %p48 = por %p46, %p47
    %s49 = ssub.s32 %s15, %s22
    %p50 = scmp.eq.s32.totalorder %s49, 0
    %s52 = sadd.s32 %s51, 1
    %s53 = scalar_select %p50, %s51, %s52
    %p56 = pneg %p50
    %p57 = scmp.eq.s32.totalorder %s15, 1
    %p58 = por %p56, %p57
    %p59 = scmp.ne.s32.totalorder %s51, %s54
    %p60 = scmp.eq.s32.totalorder %s15, 0
    %p61 = por %p59, %p60
    %p62 = scmp.ne.s32.totalorder %s51, %s54
    %p63 = scmp.eq.s32.totalorder %s20, 1
    %p64 = por %p62, %p63
    %p65 = scmp.ne.s32.totalorder %s54, %s55
    %p66 = scmp.eq.s32.totalorder %s20, 0
    %p67 = por %p65, %p66
    %p68 = scmp.ne.s32.totalorder %s54, %s55
    %p69 = scmp.eq.s32.totalorder %s21, 1
    %p70 = por %p68, %p69
    %p72 = scmp.ne.s32.totalorder %s55, %s71
    %p73 = scmp.eq.s32.totalorder %s21, 0
    %p74 = por %p72, %p73
    %s75 = ssub.s32 %s15, %s22
    %p76 = scmp.eq.s32.totalorder %s75, 0
    %s78 = sadd.s32 %s77, 1
    %s79 = scalar_select %p76, %s77, %s78
    %p82 = pneg %p76
    %p83 = scmp.eq.s32.totalorder %s15, 1
    %p84 = por %p82, %p83
    %p85 = scmp.ne.s32.totalorder %s77, %s80
    %p86 = scmp.eq.s32.totalorder %s15, 0
    %p87 = por %p85, %p86
    %p88 = scmp.ne.s32.totalorder %s77, %s80
    %p89 = scmp.eq.s32.totalorder %s20, 1
    %p90 = por %p88, %p89
    %p91 = scmp.ne.s32.totalorder %s80, %s81
    %p92 = scmp.eq.s32.totalorder %s20, 0
    %p93 = por %p91, %p92
    %p94 = scmp.ne.s32.totalorder %s80, %s81
    %p95 = scmp.eq.s32.totalorder %s21, 1
    %p96 = por %p94, %p95
    %p98 = scmp.ne.s32.totalorder %s81, %s97
    %p99 = scmp.eq.s32.totalorder %s21, 0
    %p100 = por %p98, %p99
    %s101 = ssub.s32 %s15, %s22
    %p102 = scmp.eq.s32.totalorder %s101, 0
    %s104 = sadd.s32 %s103, 1
    %s105 = scalar_select %p102, %s103, %s104
    %p108 = pneg %p102
    %p109 = scmp.eq.s32.totalorder %s15, 1
    %p110 = por %p108, %p109
    %p111 = scmp.ne.s32.totalorder %s103, %s106
    %p112 = scmp.eq.s32.totalorder %s15, 0
    %p113 = por %p111, %p112
    %p114 = scmp.ne.s32.totalorder %s103, %s106
    %p115 = scmp.eq.s32.totalorder %s20, 1
    %p116 = por %p114, %p115
    %p117 = scmp.ne.s32.totalorder %s106, %s107
    %p118 = scmp.eq.s32.totalorder %s20, 0
    %p119 = por %p117, %p118
    %p120 = scmp.ne.s32.totalorder %s106, %s107
    %p121 = scmp.eq.s32.totalorder %s21, 1
    %p122 = por %p120, %p121
    %p124 = scmp.ne.s32.totalorder %s107, %s123
    %p125 = scmp.eq.s32.totalorder %s21, 0
    %p126 = por %p124, %p125
    %s127 = ssub.s32 %s15, %s22
    %p128 = scmp.eq.s32.totalorder %s127, 0
    %s130 = sadd.s32 %s129, 1
    %s131 = scalar_select %p128, %s129, %s130
    %p134 = pneg %p128
    %p135 = scmp.eq.s32.totalorder %s15, 1
    %p136 = por %p134, %p135
    %p137 = scmp.ne.s32.totalorder %s129, %s132
    %p138 = scmp.eq.s32.totalorder %s15, 0
    %p139 = por %p137, %p138
    %p140 = scmp.ne.s32.totalorder %s129, %s132
    %p141 = scmp.eq.s32.totalorder %s20, 1
    %p142 = por %p140, %p141
    %p143 = scmp.ne.s32.totalorder %s132, %s133
    %p144 = scmp.eq.s32.totalorder %s20, 0
    %p145 = por %p143, %p144
    %p146 = scmp.ne.s32.totalorder %s132, %s133
    %p147 = scmp.eq.s32.totalorder %s21, 1
    %p148 = por %p146, %p147
    %p150 = scmp.ne.s32.totalorder %s133, %s149
    %p151 = scmp.eq.s32.totalorder %s21, 0
    %p152 = por %p150, %p151
    %s153 = ssub.s32 %s15, %s22
    %p154 = scmp.eq.s32.totalorder %s153, 0
    %s156 = sadd.s32 %s155, 1
    %s157 = scalar_select %p154, %s155, %s156
    %p160 = pneg %p154
    %p161 = scmp.eq.s32.totalorder %s15, 1
    %p162 = por %p160, %p161
    %p163 = scmp.ne.s32.totalorder %s155, %s158
    %p164 = scmp.eq.s32.totalorder %s15, 0
    %p165 = por %p163, %p164
    %p166 = scmp.ne.s32.totalorder %s155, %s158
    %p167 = scmp.eq.s32.totalorder %s20, 1
    %p168 = por %p166, %p167
    %p169 = scmp.ne.s32.totalorder %s158, %s159
    %p170 = scmp.eq.s32.totalorder %s20, 0
    %p171 = por %p169, %p170
    %p172 = scmp.ne.s32.totalorder %s158, %s159
    %p173 = scmp.eq.s32.totalorder %s21, 1
    %p174 = por %p172, %p173
    %p176 = scmp.ne.s32.totalorder %s159, %s175
    %p177 = scmp.eq.s32.totalorder %s21, 0
    %p178 = por %p176, %p177
    %s179 = ssub.s32 %s15, %s22
    %p180 = scmp.eq.s32.totalorder %s179, 0
    %s182 = sadd.s32 %s181, 1
    %s183 = scalar_select %p180, %s181, %s182
    %p186 = pneg %p180
    %p187 = scmp.eq.s32.totalorder %s15, 1
    %p188 = por %p186, %p187
    %p189 = scmp.ne.s32.totalorder %s181, %s184
    %p190 = scmp.eq.s32.totalorder %s15, 0
    %p191 = por %p189, %p190
    %p192 = scmp.ne.s32.totalorder %s181, %s184
    %p193 = scmp.eq.s32.totalorder %s20, 1
    %p194 = por %p192, %p193
    %p195 = scmp.ne.s32.totalorder %s184, %s185
    %p196 = scmp.eq.s32.totalorder %s20, 0
    %p197 = por %p195, %p196
    %p198 = scmp.ne.s32.totalorder %s184, %s185
    %p199 = scmp.eq.s32.totalorder %s21, 1
    %p200 = por %p198, %p199
    %p202 = scmp.ne.s32.totalorder %s185, %s201
    %p203 = scmp.eq.s32.totalorder %s21, 0
    %p204 = por %p202, %p203
    %s205 = ssub.s32 %s15, %s22
    %p206 = scmp.eq.s32.totalorder %s205, 0
    %s208 = sadd.s32 %s207, 1
    %s209 = scalar_select %p206, %s207, %s208
    %p212 = pneg %p206
    %p213 = scmp.eq.s32.totalorder %s15, 1
    %p214 = por %p212, %p213
    %p215 = scmp.ne.s32.totalorder %s207, %s210
    %p216 = scmp.eq.s32.totalorder %s15, 0
    %p217 = por %p215, %p216
    %p218 = scmp.ne.s32.totalorder %s207, %s210
    %p219 = scmp.eq.s32.totalorder %s20, 1
    %p220 = por %p218, %p219
    %p221 = scmp.ne.s32.totalorder %s210, %s211
    %p222 = scmp.eq.s32.totalorder %s20, 0
    %p223 = por %p221, %p222
    %p224 = scmp.ne.s32.totalorder %s210, %s211
    %p225 = scmp.eq.s32.totalorder %s21, 1
    %p226 = por %p224, %p225
    %p228 = scmp.ne.s32.totalorder %s211, %s227
    %p229 = scmp.eq.s32.totalorder %s21, 0
    %p230 = por %p228, %p229
    %s231 = ssub.s32 %s15, %s22
    %p232 = scmp.eq.s32.totalorder %s231, 0
    %s234 = sadd.s32 %s233, 1
    %s235 = scalar_select %p232, %s233, %s234
    %p238 = pneg %p232
    %p239 = scmp.eq.s32.totalorder %s15, 1
    %p240 = por %p238, %p239
    %p241 = scmp.ne.s32.totalorder %s233, %s236
    %p242 = scmp.eq.s32.totalorder %s15, 0
    %p243 = por %p241, %p242
    %p244 = scmp.ne.s32.totalorder %s233, %s236
    %p245 = scmp.eq.s32.totalorder %s20, 1
    %p246 = por %p244, %p245
    %p247 = scmp.ne.s32.totalorder %s236, %s237
    %p248 = scmp.eq.s32.totalorder %s20, 0
    %p249 = por %p247, %p248
    %p250 = scmp.ne.s32.totalorder %s236, %s237
    %p251 = scmp.eq.s32.totalorder %s21, 1
    %p252 = por %p250, %p251
    %p254 = scmp.ne.s32.totalorder %s237, %s253
    %p255 = scmp.eq.s32.totalorder %s21, 0
    %p256 = por %p254, %p255
    %p257 = scmp.le.s32.totalorder 1, %s15
    %p258 = scmp.lt.s32.totalorder %s15, 3
    %p259 = pnand %p257, %p258
    %p260 = pneg %p259
    // Predicated region
    $region9: #{predict_model_forward.11} parent=5 // pred_check
      _
    $region10: #{predict_model_forward.11} parent=5 // pred_check_branch
      %262 = sbr.rel (%p259) target = $region12
    $region11: #{predict_model_forward.11} parent=5 // pred_region
      %s263 = ssub.s32 %s15, 1
    $region12: #{predict_model_forward.11} parent=5 // pred_fallthru
      _
    %p264 = scmp.lt.s32.totalorder %s15, 2
    // Predicated region
    $region13: #{predict_model_forward.11} parent=5 // pred_check
      %p265 = pneg %p264
    $region14: #{predict_model_forward.11} parent=5 // pred_check_branch
      %267 = sbr.rel (%p265) target = $region16
    $region15: #{predict_model_forward.11} parent=5 // pred_region
      // Predicated region
      $region17: #{predict_model_forward.11} parent=15 // pred_check
        %p268 = pneg %p35
      $region18: #{predict_model_forward.11} parent=15 // pred_check_branch
        %270 = sbr.rel (%p268) target = $region20
      $region19: #{predict_model_forward.11} parent=15 // pred_region
        %p271 = scmp.lt.s32.totalorder %s15, 1
        %s272 = scalar_select %p271, %s15, 1
        %s273 = smul.addr %s272, 8
        %s274 = scalar_lea.vmem %s0, %s273
      $region20: #{predict_model_forward.11} parent=15 // pred_fallthru
        _
      // Predicated region
      $region21: #{predict_model_forward.11} parent=15 // pred_check
        %p275 = pneg %p61
      $region22: #{predict_model_forward.11} parent=15 // pred_check_branch
        %277 = sbr.rel (%p275) target = $region24
      $region23: #{predict_model_forward.11} parent=15 // pred_region
        %p278 = scmp.lt.s32.totalorder %s15, 1
        %s279 = scalar_select %p278, %s15, 1
        %s280 = smul.addr %s279, 8
        %s281 = scalar_lea.vmem %s1, %s280
      $region24: #{predict_model_forward.11} parent=15 // pred_fallthru
        _
      // Predicated region
      $region25: #{predict_model_forward.11} parent=15 // pred_check
        %p282 = pneg %p87
      $region26: #{predict_model_forward.11} parent=15 // pred_check_branch
        %284 = sbr.rel (%p282) target = $region28
      $region27: #{predict_model_forward.11} parent=15 // pred_region
        %p285 = scmp.lt.s32.totalorder %s15, 1
        %s286 = scalar_select %p285, %s15, 1
        %s287 = smul.addr %s286, 8
        %s288 = scalar_lea.vmem %s2, %s287
      $region28: #{predict_model_forward.11} parent=15 // pred_fallthru
        _
      // Predicated region
      $region29: #{predict_model_forward.11} parent=15 // pred_check
        %p289 = pneg %p113
      $region30: #{predict_model_forward.11} parent=15 // pred_check_branch
        %291 = sbr.rel (%p289) target = $region32
      $region31: #{predict_model_forward.11} parent=15 // pred_region
        %p292 = scmp.lt.s32.totalorder %s15, 1
        %s293 = scalar_select %p292, %s15, 1
        %s294 = smul.addr %s293, 4
        %s295 = scalar_lea.vmem %s3, %s294
      $region32: #{predict_model_forward.11} parent=15 // pred_fallthru
        _
      // Predicated region
      $region33: #{predict_model_forward.11} parent=15 // pred_check
        %p296 = pneg %p139
      $region34: #{predict_model_forward.11} parent=15 // pred_check_branch
        %298 = sbr.rel (%p296) target = $region36
      $region35: #{predict_model_forward.11} parent=15 // pred_region
        %p299 = scmp.lt.s32.totalorder %s15, 1
        %s300 = scalar_select %p299, %s15, 1
        %s301 = scalar_lea.vmem %s4, %s300
      $region36: #{predict_model_forward.11} parent=15 // pred_fallthru
        _
    $region16: #{predict_model_forward.11} parent=5 // pred_fallthru
      _
    %p302 = scmp.le.s32.totalorder 1, %s15
    %p303 = scmp.lt.s32.totalorder %s15, 3
    %p304 = pnand %p302, %p303
    %p305 = pneg %p304
    // Predicated region
    $region37: #{predict_model_forward.11} parent=5 // pred_check
      _
    $region38: #{predict_model_forward.11} parent=5 // pred_check_branch
      %307 = sbr.rel (%p304) target = $region40
    $region39: #{predict_model_forward.11} parent=5 // pred_region
      %s308 = ssub.s32 %s15, 1
      %p309 = scmp.lt.s32.totalorder %s20, 1
      %s310 = scalar_select %p309, %s20, 1
      %s311 = smul.addr %s310, 8
      %s312 = scalar_lea.vmem %s0, %s311
      %p313 = pneg %p41
      %p314 = pneg %p38
      %p315 = scmp.lt.s32.totalorder %s20, 1
      %s316 = scalar_select %p315, %s20, 1
      %s317 = smul.addr %s316, 8
      %s318 = scalar_lea.vmem %s1, %s317
      %p319 = pneg %p67
      %p320 = pneg %p64
      %p321 = scmp.lt.s32.totalorder %s20, 1
      %s322 = scalar_select %p321, %s20, 1
      %s323 = smul.addr %s322, 8
      %s324 = scalar_lea.vmem %s2, %s323
      %p325 = pneg %p93
      %p326 = pneg %p90
      %p327 = scmp.lt.s32.totalorder %s20, 1
      %s328 = scalar_select %p327, %s20, 1
      %s329 = smul.addr %s328, 4
      %s330 = scalar_lea.vmem %s3, %s329
      %p331 = pneg %p119
      %p332 = pneg %p116
      %p333 = scmp.lt.s32.totalorder %s20, 1
      %s334 = scalar_select %p333, %s20, 1
      %s335 = scalar_lea.vmem %s4, %s334
      %p336 = pneg %p145
      %p337 = pneg %p142
      %p338 = pneg %p171
      %p339 = pneg %p168
      %p340 = scmp.lt.s32.totalorder %s20, 1
      %s341 = scalar_select %p340, %s20, 1
      %s342 = smul.addr %s341, 4
      %s343 = scalar_lea.vmem %s5, %s342
      %p344 = pneg %p197
      %p345 = pneg %p194
      %p346 = scmp.lt.s32.totalorder %s20, 1
      %s347 = scalar_select %p346, %s20, 1
      %s348 = smul.addr %s347, 4
      %s349 = scalar_lea.vmem %s6, %s348
      %p350 = pneg %p223
      %p351 = pneg %p220
      %p352 = scmp.lt.s32.totalorder %s20, 1
      %s353 = scalar_select %p352, %s20, 1
      %s354 = smul.addr %s353, 2
      %s355 = scalar_lea.vmem %s7, %s354
      %p356 = pneg %p249
      %p357 = pneg %p246
      %p358 = scmp.lt.s32.totalorder %s20, 1
      %s359 = scalar_select %p358, %s20, 1
      %s360 = scalar_lea.vmem %s8, %s359
      %p361 = scmp.lt.s32.totalorder %s20, 1
      %s362 = scalar_select %p361, %s20, 1
      %s363 = smul.addr %s362, 8
      %s364 = scalar_lea.vmem %s0, %s363
      %p365 = scmp.lt.s32.totalorder %s20, 1
      %s366 = scalar_select %p365, %s20, 1
      %s367 = smul.addr %s366, 8
      %s368 = scalar_lea.vmem %s1, %s367
      %p369 = scmp.lt.s32.totalorder %s20, 1
      %s370 = scalar_select %p369, %s20, 1
      %s371 = smul.addr %s370, 8
      %s372 = scalar_lea.vmem %s2, %s371
      %p373 = scmp.lt.s32.totalorder %s20, 1
      %s374 = scalar_select %p373, %s20, 1
      %s375 = smul.addr %s374, 4
      %s376 = scalar_lea.vmem %s3, %s375
      %p377 = scmp.lt.s32.totalorder %s20, 1
      %s378 = scalar_select %p377, %s20, 1
      %s379 = scalar_lea.vmem %s4, %s378
      %p380 = scmp.lt.s32.totalorder %s20, 1
      %s381 = scalar_select %p380, %s20, 1
      %s382 = smul.addr %s381, 4
      %s383 = scalar_lea.vmem %s5, %s382
      %p384 = scmp.lt.s32.totalorder %s20, 1
      %s385 = scalar_select %p384, %s20, 1
      %s386 = smul.addr %s385, 4
      %s387 = scalar_lea.vmem %s6, %s386
      %p388 = scmp.lt.s32.totalorder %s20, 1
      %s389 = scalar_select %p388, %s20, 1
      %s390 = smul.addr %s389, 2
      %s391 = scalar_lea.vmem %s7, %s390
      %p392 = scmp.lt.s32.totalorder %s20, 1
      %s393 = scalar_select %p392, %s20, 1
      %s394 = scalar_lea.vmem %s8, %s393
      %v395 = vld [vmem:[%s364] sm:$0xff]
      %v396 = vld [vmem:[%s368] sm:$0xff]
      %v397 = vmul.f32 %v395, %v396
      %vm398 = vcmp.ne.f32.partialorder %v397, 0.0
      %v399 = vsel %vm398, 1, 0
      %v400 = vcvt.s32.f32 %v399
      %vm401 = vcmask 64512
      %v402 = vsel %vm401, %v400, 0.0
      %403 = vadd.xlane.f32.xlu0 %v402
      %v404 = vpop.xlane.xlu0 %403
      %v405 = vadd.f32 %v404, 1e-30
      %v406 = vrcp.pop %v405
      %v407 = vmul.f32 %v397, %v406
      %v408 = vpack.c.bf16 %v407, %v407
      %vm409 = vcmask 60416
      %410 = vst.msk [vmem:[%s383] sm:$0xf] %vm409, %v408
      %v411 = vld [vmem:[%s372] sm:$0xff]
      %vm412 = vcmp.ne.f32.partialorder %v411, 0.0
      %v413 = vsel %vm412, 1, 0
      %v414 = vcvt.s32.f32 %v413
      %v415 = vsel %vm401, %v414, 0.0
      %416 = vadd.xlane.f32.xlu0 %v415
      %v417 = vpop.xlane.xlu0 %416
      %v418 = vadd.f32 %v417, 1e-30
      %v419 = vrcp.pop %v418
      %v420 = vmul.f32 %v411, %v419
      %v421 = vpack.c.bf16 %v420, %v420
      %422 = vst.msk [vmem:[%s387] sm:$0xf] %vm409, %v421
      %v423 = vld [vmem:[%s376] sm:$0x7]
      %vm424 = vcmp.ne.f32.partialorder %v423, 0.0
      %v425 = vsel %vm424, 1, 0
      %v426 = vcvt.s32.f32 %v425
      %vm427 = vcmask 59392
      %v428 = vsel %vm427, %v426, 0.0
      %429 = vadd.xlane.f32.xlu0 %v428
      %v430 = vpop.xlane.xlu0 %429
      %v431 = vadd.f32 %v430, 1e-30
      %v432 = vrcp.pop %v431
      %v433 = vmul.f32 %v423, %v432
      %v434 = vpack.c.bf16 %v433, %v433
      %vm435 = vcmask 58368
      %vm436 = vsmask.f32 1280
      %vm437 = vmand %vm435, %vm436
      %v438 = vld [vmem:[%s391] sm:$0x3]
      %v439 = vsel %vm437, %v434, %v438
      %440 = vst [vmem:[%s391] sm:$0x3] %v439
      %v441 = vld [vmem:[%s379] sm:$0x1]
      %vm442 = vcmp.ne.f32.partialorder %v441, 0.0
      %v443 = vsel %vm442, 1, 0
      %v444 = vcvt.s32.f32 %v443
      %vm445 = vcmask 57344
      %v446 = vsel %vm445, %v444, 0.0
      %447 = vadd.xlane.f32.xlu0 %v446
      %v448 = vpop.xlane.xlu0 %447
      %v449 = vadd.f32 %v448, 1e-30
      %v450 = vrcp.pop %v449
      %v451 = vmul.f32 %v441, %v450
      %v452 = vpack.c.bf16 %v451, %v451
      %vm453 = vcmask 57344
      %vm454 = vsmask.f32 256
      %vm455 = vmand %vm453, %vm454
      %v456 = vld [vmem:[%s394] sm:$0x1]
      %v457 = vsel %vm455, %v452, %v456
      %458 = vst [vmem:[%s394] sm:$0x1] %v457
      %p459 = scmp.lt.s32.totalorder %s20, 1
      %s460 = scalar_select %p459, %s20, 1
      %s461 = smul.addr %s460, 4
      %s462 = scalar_lea.vmem %s5, %s461
      %p463 = scmp.lt.s32.totalorder %s20, 1
      %s464 = scalar_select %p463, %s20, 1
      %s465 = smul.addr %s464, 4
      %s466 = scalar_lea.vmem %s6, %s465
      %p467 = scmp.lt.s32.totalorder %s20, 1
      %s468 = scalar_select %p467, %s20, 1
      %s469 = smul.addr %s468, 2
      %s470 = scalar_lea.vmem %s7, %s469
      %p471 = scmp.lt.s32.totalorder %s20, 1
      %s472 = scalar_select %p471, %s20, 1
      %s473 = scalar_lea.vmem %s8, %s472
      // Predicated region
      $region41: #{predict_model_forward.11} parent=39 // pred_check
        %p474 = pneg %p168
      $region42: #{predict_model_forward.11} parent=39 // pred_check_branch
        %476 = sbr.rel (%p474) target = $region44
      $region43: #{predict_model_forward.11} parent=39 // pred_region
        _
      $region44: #{predict_model_forward.11} parent=39 // pred_fallthru
        _
      // Predicated region
      $region45: #{predict_model_forward.11} parent=39 // pred_check
        %p477 = pneg %p194
      $region46: #{predict_model_forward.11} parent=39 // pred_check_branch
        %479 = sbr.rel (%p477) target = $region48
      $region47: #{predict_model_forward.11} parent=39 // pred_region
        _
      $region48: #{predict_model_forward.11} parent=39 // pred_fallthru
        _
      // Predicated region
      $region49: #{predict_model_forward.11} parent=39 // pred_check
        %p480 = pneg %p220
      $region50: #{predict_model_forward.11} parent=39 // pred_check_branch
        %482 = sbr.rel (%p480) target = $region52
      $region51: #{predict_model_forward.11} parent=39 // pred_region
        _
      $region52: #{predict_model_forward.11} parent=39 // pred_fallthru
        _
      // Predicated region
      $region53: #{predict_model_forward.11} parent=39 // pred_check
        %p483 = pneg %p246
      $region54: #{predict_model_forward.11} parent=39 // pred_check_branch
        %485 = sbr.rel (%p483) target = $region56
      $region55: #{predict_model_forward.11} parent=39 // pred_region
        _
      $region56: #{predict_model_forward.11} parent=39 // pred_fallthru
        _
    $region40: #{predict_model_forward.11} parent=5 // pred_fallthru
      _
    %p486 = scmp.le.s32.totalorder 2, %s15
    // Predicated region
    $region57: #{predict_model_forward.11} parent=5 // pred_check
      %p487 = pneg %p486
    $region58: #{predict_model_forward.11} parent=5 // pred_check_branch
      %489 = sbr.rel (%p487) target = $region60
    $region59: #{predict_model_forward.11} parent=5 // pred_region
      %s490 = ssub.s32 %s15, 2
      // Predicated region
      $region61: #{predict_model_forward.11} parent=59 // pred_check
        %p491 = pneg %p174
      $region62: #{predict_model_forward.11} parent=59 // pred_check_branch
        %493 = sbr.rel (%p491) target = $region64
      $region63: #{predict_model_forward.11} parent=59 // pred_region
        %p494 = scmp.lt.s32.totalorder %s21, 1
        %s495 = scalar_select %p494, %s21, 1
        %s496 = smul.addr %s495, 4
        %s497 = scalar_lea.vmem %s5, %s496
      $region64: #{predict_model_forward.11} parent=59 // pred_fallthru
        _
      // Predicated region
      $region65: #{predict_model_forward.11} parent=59 // pred_check
        %p498 = pneg %p200
      $region66: #{predict_model_forward.11} parent=59 // pred_check_branch
        %500 = sbr.rel (%p498) target = $region68
      $region67: #{predict_model_forward.11} parent=59 // pred_region
        %p501 = scmp.lt.s32.totalorder %s21, 1
        %s502 = scalar_select %p501, %s21, 1
        %s503 = smul.addr %s502, 4
        %s504 = scalar_lea.vmem %s6, %s503
      $region68: #{predict_model_forward.11} parent=59 // pred_fallthru
        _
      // Predicated region
      $region69: #{predict_model_forward.11} parent=59 // pred_check
        %p505 = pneg %p226
      $region70: #{predict_model_forward.11} parent=59 // pred_check_branch
        %507 = sbr.rel (%p505) target = $region72
      $region71: #{predict_model_forward.11} parent=59 // pred_region
        %p508 = scmp.lt.s32.totalorder %s21, 1
        %s509 = scalar_select %p508, %s21, 1
        %s510 = smul.addr %s509, 2
        %s511 = scalar_lea.vmem %s7, %s510
      $region72: #{predict_model_forward.11} parent=59 // pred_fallthru
        _
      // Predicated region
      $region73: #{predict_model_forward.11} parent=59 // pred_check
        %p512 = pneg %p252
      $region74: #{predict_model_forward.11} parent=59 // pred_check_branch
        %514 = sbr.rel (%p512) target = $region76
      $region75: #{predict_model_forward.11} parent=59 // pred_region
        %p515 = scmp.lt.s32.totalorder %s21, 1
        %s516 = scalar_select %p515, %s21, 1
        %s517 = scalar_lea.vmem %s8, %s516
      $region76: #{predict_model_forward.11} parent=59 // pred_fallthru
        _
    $region60: #{predict_model_forward.11} parent=5 // pred_fallthru
      _
  $region6: #{predict_model_forward.11} parent=0 // loop_footer
    %s19 = sadd.s32 1, %s15
  $region7: #{predict_model_forward.11} parent=0 // loop_footer_branch
    %14 = sbr.rel target = $region3
  $region8: #{predict_model_forward.11} parent=0 // loop_exit
    _

// kernel: predict_model_forward.13
$region0: #{predict_model_forward.13}
  #allocation0 [shape = 'u32[]', space=smem, size = 0x4, offset = 0x4, fixed_abs, tag = 'smem constant byte address 0x4 - core index']
  #allocation1 [shape = 'u32[144,128]{1,0:T(1,128)}', space=vmem, size = 0x12000, scoped, tag = 'internal scratch']
  %s0 = inlined_call_operand.vmem [shape: f32[2,8,32], index: 0, kind: input, shape index: {}]
  %s1 = inlined_call_operand.vmem [shape: f32[2,3,32], index: 1, kind: input, shape index: {}]
  %s2 = inlined_call_operand.vmem [shape: f32[2,8,3], index: 2, kind: input, shape index: {}]
  %s3 = inlined_call_operand.vmem [shape: bf16[32,3], index: 3, kind: input, shape index: {}]
  %s4 = inlined_call_operand.vmem [shape: bf16[3,32,3], index: 4, kind: input, shape index: {}]
  %s5 = inlined_call_operand.vmem [shape: f32[1,3], index: 5, kind: input, shape index: {}]
  %s6 = inlined_call_operand.vmem [shape: bf16[32,3], index: 6, kind: input, shape index: {}]
  %s7 = inlined_call_operand.vmem [shape: bf16[3,32,3], index: 7, kind: input, shape index: {}]
  %s8 = inlined_call_operand.vmem [shape: f32[1,3], index: 8, kind: input, shape index: {}]
  %s9 = inlined_call_operand.vmem [shape: bf16[3,3], index: 9, kind: input, shape index: {}]
  %s10 = inlined_call_operand.vmem [shape: bf16[3,3], index: 10, kind: input, shape index: {}]
  %s11 = inlined_call_operand.vmem [shape: f32[1,3], index: 11, kind: input, shape index: {}]
  %s12 = inlined_call_operand.vmem [shape: f32[2,8,3], index: 12, kind: output, shape index: {}]
  %s13 = sld [smem:[#allocation0]]
  $region81: #{predict_model_forward.13} parent=0
    _
  %s15 = ssub.s32 1, %s13
  %s16 = scalar_select 0, %s15, %s13
  loop: start=0, step=1, limit=4
  $region2: #{predict_model_forward.13} parent=0 // loop_pre_header
    _
  $region3: #{predict_model_forward.13} parent=0 // loop_header
    %s18 = sphi 0, %s22
    %p19 = scmp.ge.s32.totalorder %s18, 4
    %s25 = sphi 0, %s37
    %s26 = sphi 0, %s33
    %s27 = sphi 0, %s25
    %s28 = sphi 0, %s26
    %s29 = sphi 0, %s27
    %s30 = sphi 0, %s28
    %s42 = sphi 0, %s44
    %s45 = sphi 0, %s42
    %s46 = sphi 0, %s45
    %s62 = sphi 0, %s46
    %s68 = sphi 0, %s70
    %s71 = sphi 0, %s68
    %s72 = sphi 0, %s71
    %s88 = sphi 0, %s72
    %s96 = sphi 0, %s98
    %s99 = sphi 0, %s96
    %s100 = sphi 0, %s99
    %s116 = sphi 0, %s100
    %s120 = sphi 0, %s120
    %s122 = sphi 0, %s120
    %s123 = sphi 0, %s122
    %s137 = sphi 0, %s123
    %s141 = sphi 0, %s141
    %s143 = sphi 0, %s141
    %s144 = sphi 0, %s143
    %s158 = sphi 0, %s144
    %s162 = sphi 0, %s162
    %s164 = sphi 0, %s162
    %s165 = sphi 0, %s164
    %s179 = sphi 0, %s165
    %s183 = sphi 0, %s183
    %s185 = sphi 0, %s183
    %s186 = sphi 0, %s185
    %s200 = sphi 0, %s186
    %s204 = sphi 0, %s204
    %s206 = sphi 0, %s204
    %s207 = sphi 0, %s206
    %s221 = sphi 0, %s207
    %s225 = sphi 0, %s225
    %s227 = sphi 0, %s225
    %s228 = sphi 0, %s227
    %s242 = sphi 0, %s228
    %s246 = sphi 0, %s246
    %s248 = sphi 0, %s246
    %s249 = sphi 0, %s248
    %s263 = sphi 0, %s249
    %s267 = sphi 0, %s267
    %s269 = sphi 0, %s267
    %s270 = sphi 0, %s269
    %s284 = sphi 0, %s270
    %s288 = sphi 0, %s288
    %s290 = sphi 0, %s288
    %s291 = sphi 0, %s290
    %s305 = sphi 0, %s291
    %s313 = sphi 0, %s315
    %s316 = sphi 0, %s313
    %s317 = sphi 0, %s316
    %s333 = sphi 0, %s317
  $region4: #{predict_model_forward.13} parent=0 // loop_header_branch
    %21 = sbr.rel (%p19) target = $region8
  $region5: #{predict_model_forward.13} parent=0 // loop_body
    %s23 = ssub.s32 %s18, 1
    %s24 = ssub.s32 %s18, 2
    %s31 = sadd.s32 1, %s26
    %p32 = scmp.ge.s32.totalorder %s31, 1
    %s33 = scalar_select %p32, 0, %s31
    %s34 = sadd.s32 1, %s25
    %s35 = scalar_select %p32, %s34, %s25
    %p36 = scmp.ge.s32.totalorder %s35, 2
    %s37 = scalar_select %p36, 0, %s35
    %s38 = ssub.s32 %s25, %s37
    %s39 = ssub.s32 %s26, %s33
    %s40 = sor.u32 %s38, %s39
    %p41 = scmp.eq.s32.totalorder %s40, 0
    %s43 = sadd.s32 %s42, 1
    %s44 = scalar_select %p41, %s42, %s43
    %p47 = pneg %p41
    %p48 = scmp.eq.s32.totalorder %s18, 1
    %p49 = por %p47, %p48
    %p50 = scmp.ne.s32.totalorder %s42, %s45
    %p51 = scmp.eq.s32.totalorder %s18, 0
    %p52 = por %p50, %p51
    %p53 = scmp.ne.s32.totalorder %s42, %s45
    %p54 = scmp.eq.s32.totalorder %s23, 1
    %p55 = por %p53, %p54
    %p56 = scmp.ne.s32.totalorder %s45, %s46
    %p57 = scmp.eq.s32.totalorder %s23, 0
    %p58 = por %p56, %p57
    %p59 = scmp.ne.s32.totalorder %s45, %s46
    %p60 = scmp.eq.s32.totalorder %s24, 1
    %p61 = por %p59, %p60
    %p63 = scmp.ne.s32.totalorder %s46, %s62
    %p64 = scmp.eq.s32.totalorder %s24, 0
    %p65 = por %p63, %p64
    %s66 = ssub.s32 %s25, %s37
    %p67 = scmp.eq.s32.totalorder %s66, 0
    %s69 = sadd.s32 %s68, 1
    %s70 = scalar_select %p67, %s68, %s69
    %p73 = pneg %p67
    %p74 = scmp.eq.s32.totalorder %s18, 1
    %p75 = por %p73, %p74
    %p76 = scmp.ne.s32.totalorder %s68, %s71
    %p77 = scmp.eq.s32.totalorder %s18, 0
    %p78 = por %p76, %p77
    %p79 = scmp.ne.s32.totalorder %s68, %s71
    %p80 = scmp.eq.s32.totalorder %s23, 1
    %p81 = por %p79, %p80
    %p82 = scmp.ne.s32.totalorder %s71, %s72
    %p83 = scmp.eq.s32.totalorder %s23, 0
    %p84 = por %p82, %p83
    %p85 = scmp.ne.s32.totalorder %s71, %s72
    %p86 = scmp.eq.s32.totalorder %s24, 1
    %p87 = por %p85, %p86
    %p89 = scmp.ne.s32.totalorder %s72, %s88
    %p90 = scmp.eq.s32.totalorder %s24, 0
    %p91 = por %p89, %p90
    %s92 = ssub.s32 %s25, %s37
    %s93 = ssub.s32 %s26, %s33
    %s94 = sor.u32 %s92, %s93
    %p95 = scmp.eq.s32.totalorder %s94, 0
    %s97 = sadd.s32 %s96, 1
    %s98 = scalar_select %p95, %s96, %s97
    %p101 = pneg %p95
    %p102 = scmp.eq.s32.totalorder %s18, 1
    %p103 = por %p101, %p102
    %p104 = scmp.ne.s32.totalorder %s96, %s99
    %p105 = scmp.eq.s32.totalorder %s18, 0
    %p106 = por %p104, %p105
    %p107 = scmp.ne.s32.totalorder %s96, %s99
    %p108 = scmp.eq.s32.totalorder %s23, 1
    %p109 = por %p107, %p108
    %p110 = scmp.ne.s32.totalorder %s99, %s100
    %p111 = scmp.eq.s32.totalorder %s23, 0
    %p112 = por %p110, %p111
    %p113 = scmp.ne.s32.totalorder %s99, %s100
    %p114 = scmp.eq.s32.totalorder %s24, 1
    %p115 = por %p113, %p114
    %p117 = scmp.ne.s32.totalorder %s100, %s116
    %p118 = scmp.eq.s32.totalorder %s24, 0
    %p119 = por %p117, %p118
    %s121 = sadd.s32 %s120, 1
    %p124 = scmp.eq.s32.totalorder %s18, 1
    %p125 = scmp.ne.s32.totalorder %s120, %s122
    %p126 = scmp.eq.s32.totalorder %s18, 0
    %p127 = por %p125, %p126
    %p128 = scmp.ne.s32.totalorder %s120, %s122
    %p129 = scmp.eq.s32.totalorder %s23, 1
    %p130 = por %p128, %p129
    %p131 = scmp.ne.s32.totalorder %s122, %s123
    %p132 = scmp.eq.s32.totalorder %s23, 0
    %p133 = por %p131, %p132
    %p134 = scmp.ne.s32.totalorder %s122, %s123
    %p135 = scmp.eq.s32.totalorder %s24, 1
    %p136 = por %p134, %p135
    %p138 = scmp.ne.s32.totalorder %s123, %s137
    %p139 = scmp.eq.s32.totalorder %s24, 0
    %p140 = por %p138, %p139
    %s142 = sadd.s32 %s141, 1
    %p145 = scmp.eq.s32.totalorder %s18, 1
    %p146 = scmp.ne.s32.totalorder %s141, %s143
    %p147 = scmp.eq.s32.totalorder %s18, 0
    %p148 = por %p146, %p147
    %p149 = scmp.ne.s32.totalorder %s141, %s143
    %p150 = scmp.eq.s32.totalorder %s23, 1
    %p151 = por %p149, %p150
    %p152 = scmp.ne.s32.totalorder %s143, %s144
    %p153 = scmp.eq.s32.totalorder %s23, 0
    %p154 = por %p152, %p153
    %p155 = scmp.ne.s32.totalorder %s143, %s144
    %p156 = scmp.eq.s32.totalorder %s24, 1
    %p157 = por %p155, %p156
    %p159 = scmp.ne.s32.totalorder %s144, %s158
    %p160 = scmp.eq.s32.totalorder %s24, 0
    %p161 = por %p159, %p160
    %s163 = sadd.s32 %s162, 1
    %p166 = scmp.eq.s32.totalorder %s18, 1
    %p167 = scmp.ne.s32.totalorder %s162, %s164
    %p168 = scmp.eq.s32.totalorder %s18, 0
    %p169 = por %p167, %p168
    %p170 = scmp.ne.s32.totalorder %s162, %s164
    %p171 = scmp.eq.s32.totalorder %s23, 1
    %p172 = por %p170, %p171
    %p173 = scmp.ne.s32.totalorder %s164, %s165
    %p174 = scmp.eq.s32.totalorder %s23, 0
    %p175 = por %p173, %p174
    %p176 = scmp.ne.s32.totalorder %s164, %s165
    %p177 = scmp.eq.s32.totalorder %s24, 1
    %p178 = por %p176, %p177
    %p180 = scmp.ne.s32.totalorder %s165, %s179
    %p181 = scmp.eq.s32.totalorder %s24, 0
    %p182 = por %p180, %p181
    %s184 = sadd.s32 %s183, 1
    %p187 = scmp.eq.s32.totalorder %s18, 1
    %p188 = scmp.ne.s32.totalorder %s183, %s185
    %p189 = scmp.eq.s32.totalorder %s18, 0
    %p190 = por %p188, %p189
    %p191 = scmp.ne.s32.totalorder %s183, %s185
    %p192 = scmp.eq.s32.totalorder %s23, 1
    %p193 = por %p191, %p192
    %p194 = scmp.ne.s32.totalorder %s185, %s186
    %p195 = scmp.eq.s32.totalorder %s23, 0
    %p196 = por %p194, %p195
    %p197 = scmp.ne.s32.totalorder %s185, %s186
    %p198 = scmp.eq.s32.totalorder %s24, 1
    %p199 = por %p197, %p198
    %p201 = scmp.ne.s32.totalorder %s186, %s200
    %p202 = scmp.eq.s32.totalorder %s24, 0
    %p203 = por %p201, %p202
    %s205 = sadd.s32 %s204, 1
    %p208 = scmp.eq.s32.totalorder %s18, 1
    %p209 = scmp.ne.s32.totalorder %s204, %s206
    %p210 = scmp.eq.s32.totalorder %s18, 0
    %p211 = por %p209, %p210
    %p212 = scmp.ne.s32.totalorder %s204, %s206
    %p213 = scmp.eq.s32.totalorder %s23, 1
    %p214 = por %p212, %p213
    %p215 = scmp.ne.s32.totalorder %s206, %s207
    %p216 = scmp.eq.s32.totalorder %s23, 0
    %p217 = por %p215, %p216
    %p218 = scmp.ne.s32.totalorder %s206, %s207
    %p219 = scmp.eq.s32.totalorder %s24, 1
    %p220 = por %p218, %p219
    %p222 = scmp.ne.s32.totalorder %s207, %s221
    %p223 = scmp.eq.s32.totalorder %s24, 0
    %p224 = por %p222, %p223
    %s226 = sadd.s32 %s225, 1
    %p229 = scmp.eq.s32.totalorder %s18, 1
    %p230 = scmp.ne.s32.totalorder %s225, %s227
    %p231 = scmp.eq.s32.totalorder %s18, 0
    %p232 = por %p230, %p231
    %p233 = scmp.ne.s32.totalorder %s225, %s227
    %p234 = scmp.eq.s32.totalorder %s23, 1
    %p235 = por %p233, %p234
    %p236 = scmp.ne.s32.totalorder %s227, %s228
    %p237 = scmp.eq.s32.totalorder %s23, 0
    %p238 = por %p236, %p237
    %p239 = scmp.ne.s32.totalorder %s227, %s228
    %p240 = scmp.eq.s32.totalorder %s24, 1
    %p241 = por %p239, %p240
    %p243 = scmp.ne.s32.totalorder %s228, %s242
    %p244 = scmp.eq.s32.totalorder %s24, 0
    %p245 = por %p243, %p244
    %s247 = sadd.s32 %s246, 1
    %p250 = scmp.eq.s32.totalorder %s18, 1
    %p251 = scmp.ne.s32.totalorder %s246, %s248
    %p252 = scmp.eq.s32.totalorder %s18, 0
    %p253 = por %p251, %p252
    %p254 = scmp.ne.s32.totalorder %s246, %s248
    %p255 = scmp.eq.s32.totalorder %s23, 1
    %p256 = por %p254, %p255
    %p257 = scmp.ne.s32.totalorder %s248, %s249
    %p258 = scmp.eq.s32.totalorder %s23, 0
    %p259 = por %p257, %p258
    %p260 = scmp.ne.s32.totalorder %s248, %s249
    %p261 = scmp.eq.s32.totalorder %s24, 1
    %p262 = por %p260, %p261
    %p264 = scmp.ne.s32.totalorder %s249, %s263
    %p265 = scmp.eq.s32.totalorder %s24, 0
    %p266 = por %p264, %p265
    %s268 = sadd.s32 %s267, 1
    %p271 = scmp.eq.s32.totalorder %s18, 1
    %p272 = scmp.ne.s32.totalorder %s267, %s269
    %p273 = scmp.eq.s32.totalorder %s18, 0
    %p274 = por %p272, %p273
    %p275 = scmp.ne.s32.totalorder %s267, %s269
    %p276 = scmp.eq.s32.totalorder %s23, 1
    %p277 = por %p275, %p276
    %p278 = scmp.ne.s32.totalorder %s269, %s270
    %p279 = scmp.eq.s32.totalorder %s23, 0
    %p280 = por %p278, %p279
    %p281 = scmp.ne.s32.totalorder %s269, %s270
    %p282 = scmp.eq.s32.totalorder %s24, 1
    %p283 = por %p281, %p282
    %p285 = scmp.ne.s32.totalorder %s270, %s284
    %p286 = scmp.eq.s32.totalorder %s24, 0
    %p287 = por %p285, %p286
    %s289 = sadd.s32 %s288, 1
    %p292 = scmp.eq.s32.totalorder %s18, 1
    %p293 = scmp.ne.s32.totalorder %s288, %s290
    %p294 = scmp.eq.s32.totalorder %s18, 0
    %p295 = por %p293, %p294
    %p296 = scmp.ne.s32.totalorder %s288, %s290
    %p297 = scmp.eq.s32.totalorder %s23, 1
    %p298 = por %p296, %p297
    %p299 = scmp.ne.s32.totalorder %s290, %s291
    %p300 = scmp.eq.s32.totalorder %s23, 0
    %p301 = por %p299, %p300
    %p302 = scmp.ne.s32.totalorder %s290, %s291
    %p303 = scmp.eq.s32.totalorder %s24, 1
    %p304 = por %p302, %p303
    %p306 = scmp.ne.s32.totalorder %s291, %s305
    %p307 = scmp.eq.s32.totalorder %s24, 0
    %p308 = por %p306, %p307
    %s309 = ssub.s32 %s25, %s37
    %s310 = ssub.s32 %s26, %s33
    %s311 = sor.u32 %s309, %s310
    %p312 = scmp.eq.s32.totalorder %s311, 0
    %s314 = sadd.s32 %s313, 1
    %s315 = scalar_select %p312, %s313, %s314
    %p318 = pneg %p312
    %p319 = scmp.eq.s32.totalorder %s18, 1
    %p320 = por %p318, %p319
    %p321 = scmp.ne.s32.totalorder %s313, %s316
    %p322 = scmp.eq.s32.totalorder %s18, 0
    %p323 = por %p321, %p322
    %p324 = scmp.ne.s32.totalorder %s313, %s316
    %p325 = scmp.eq.s32.totalorder %s23, 1
    %p326 = por %p324, %p325
    %p327 = scmp.ne.s32.totalorder %s316, %s317
    %p328 = scmp.eq.s32.totalorder %s23, 0
    %p329 = por %p327, %p328
    %p330 = scmp.ne.s32.totalorder %s316, %s317
    %p331 = scmp.eq.s32.totalorder %s24, 1
    %p332 = por %p330, %p331
    %p334 = scmp.ne.s32.totalorder %s317, %s333
    %p335 = scmp.eq.s32.totalorder %s24, 0
    %p336 = por %p334, %p335
    %p337 = scmp.le.s32.totalorder 1, %s18
    %p338 = scmp.lt.s32.totalorder %s18, 3
    %p339 = pnand %p337, %p338
    %p340 = pneg %p339
    // Predicated region
    $region9: #{predict_model_forward.13} parent=5 // pred_check
      _
    $region10: #{predict_model_forward.13} parent=5 // pred_check_branch
      %342 = sbr.rel (%p339) target = $region12
    $region11: #{predict_model_forward.13} parent=5 // pred_region
      %s343 = ssub.s32 %s18, 1
      // Predicated region
      $region13: #{predict_model_forward.13} parent=11 // pred_check
        %p344 = pneg %p133
      $region14: #{predict_model_forward.13} parent=11 // pred_check_branch
        %346 = sbr.rel (%p344) target = $region16
      $region15: #{predict_model_forward.13} parent=11 // pred_region
        _
      $region16: #{predict_model_forward.13} parent=11 // pred_fallthru
        _
      // Predicated region
      $region17: #{predict_model_forward.13} parent=11 // pred_check
        %p347 = pneg %p154
      $region18: #{predict_model_forward.13} parent=11 // pred_check_branch
        %349 = sbr.rel (%p347) target = $region20
      $region19: #{predict_model_forward.13} parent=11 // pred_region
        _
      $region20: #{predict_model_forward.13} parent=11 // pred_fallthru
        _
      // Predicated region
      $region21: #{predict_model_forward.13} parent=11 // pred_check
        %p350 = pneg %p175
      $region22: #{predict_model_forward.13} parent=11 // pred_check_branch
        %352 = sbr.rel (%p350) target = $region24
      $region23: #{predict_model_forward.13} parent=11 // pred_region
        _
      $region24: #{predict_model_forward.13} parent=11 // pred_fallthru
        _
      // Predicated region
      $region25: #{predict_model_forward.13} parent=11 // pred_check
        %p353 = pneg %p196
      $region26: #{predict_model_forward.13} parent=11 // pred_check_branch
        %355 = sbr.rel (%p353) target = $region28
      $region27: #{predict_model_forward.13} parent=11 // pred_region
        _
      $region28: #{predict_model_forward.13} parent=11 // pred_fallthru
        _
      // Predicated region
      $region29: #{predict_model_forward.13} parent=11 // pred_check
        %p356 = pneg %p217
      $region30: #{predict_model_forward.13} parent=11 // pred_check_branch
        %358 = sbr.rel (%p356) target = $region32
      $region31: #{predict_model_forward.13} parent=11 // pred_region
        _
      $region32: #{predict_model_forward.13} parent=11 // pred_fallthru
        _
      // Predicated region
      $region33: #{predict_model_forward.13} parent=11 // pred_check
        %p359 = pneg %p238
      $region34: #{predict_model_forward.13} parent=11 // pred_check_branch
        %361 = sbr.rel (%p359) target = $region36
      $region35: #{predict_model_forward.13} parent=11 // pred_region
        _
      $region36: #{predict_model_forward.13} parent=11 // pred_fallthru
        _
      // Predicated region
      $region37: #{predict_model_forward.13} parent=11 // pred_check
        %p362 = pneg %p259
      $region38: #{predict_model_forward.13} parent=11 // pred_check_branch
        %364 = sbr.rel (%p362) target = $region40
      $region39: #{predict_model_forward.13} parent=11 // pred_region
        _
      $region40: #{predict_model_forward.13} parent=11 // pred_fallthru
        _
      // Predicated region
      $region41: #{predict_model_forward.13} parent=11 // pred_check
        %p365 = pneg %p280
      $region42: #{predict_model_forward.13} parent=11 // pred_check_branch
        %367 = sbr.rel (%p365) target = $region44
      $region43: #{predict_model_forward.13} parent=11 // pred_region
        _
      $region44: #{predict_model_forward.13} parent=11 // pred_fallthru
        _
      // Predicated region
      $region45: #{predict_model_forward.13} parent=11 // pred_check
        %p368 = pneg %p301
      $region46: #{predict_model_forward.13} parent=11 // pred_check_branch
        %370 = sbr.rel (%p368) target = $region48
      $region47: #{predict_model_forward.13} parent=11 // pred_region
        _
      $region48: #{predict_model_forward.13} parent=11 // pred_fallthru
        _
    $region12: #{predict_model_forward.13} parent=5 // pred_fallthru
      _
    %p371 = scmp.lt.s32.totalorder %s18, 2
    // Predicated region
    $region49: #{predict_model_forward.13} parent=5 // pred_check
      %p372 = pneg %p371
    $region50: #{predict_model_forward.13} parent=5 // pred_check_branch
      %374 = sbr.rel (%p372) target = $region52
    $region51: #{predict_model_forward.13} parent=5 // pred_region
      // Predicated region
      $region53: #{predict_model_forward.13} parent=51 // pred_check
        %p375 = pneg %p52
      $region54: #{predict_model_forward.13} parent=51 // pred_check_branch
        %377 = sbr.rel (%p375) target = $region56
      $region55: #{predict_model_forward.13} parent=51 // pred_region
        %p378 = scmp.lt.s32.totalorder %s25, 1
        %s379 = scalar_select %p378, %s25, 1
        %p380 = scmp.lt.s32.totalorder %s26, 0
        %s381 = scalar_select %p380, %s26, 0
        %s382 = sadd.s32 %s381, %s379
        %s383 = smul.addr %s382, 8
        %s384 = scalar_lea.vmem %s0, %s383
      $region56: #{predict_model_forward.13} parent=51 // pred_fallthru
        _
      // Predicated region
      $region57: #{predict_model_forward.13} parent=51 // pred_check
        %p385 = pneg %p78
      $region58: #{predict_model_forward.13} parent=51 // pred_check_branch
        %387 = sbr.rel (%p385) target = $region60
      $region59: #{predict_model_forward.13} parent=51 // pred_region
        %p388 = scmp.lt.s32.totalorder %s25, 1
        %s389 = scalar_select %p388, %s25, 1
        %s390 = smul.addr %s389, 4
        %s391 = scalar_lea.vmem %s1, %s390
      $region60: #{predict_model_forward.13} parent=51 // pred_fallthru
        _
      // Predicated region
      $region61: #{predict_model_forward.13} parent=51 // pred_check
        %p392 = pneg %p106
      $region62: #{predict_model_forward.13} parent=51 // pred_check_branch
        %394 = sbr.rel (%p392) target = $region64
      $region63: #{predict_model_forward.13} parent=51 // pred_region
        %p395 = scmp.lt.s32.totalorder %s25, 1
        %s396 = scalar_select %p395, %s25, 1
        %p397 = scmp.lt.s32.totalorder %s26, 0
        %s398 = scalar_select %p397, %s26, 0
        %s399 = sadd.s32 %s398, %s396
        %s400 = smul.addr %s399, 8
        %s401 = scalar_lea.vmem %s2, %s400
      $region64: #{predict_model_forward.13} parent=51 // pred_fallthru
        _
    $region52: #{predict_model_forward.13} parent=5 // pred_fallthru
      _
    %p402 = scmp.le.s32.totalorder 1, %s18
    %p403 = scmp.lt.s32.totalorder %s18, 3
    %p404 = pnand %p402, %p403
    %p405 = pneg %p404
    // Predicated region
    $region65: #{predict_model_forward.13} parent=5 // pred_check
      _
    $region66: #{predict_model_forward.13} parent=5 // pred_check_branch
      %407 = sbr.rel (%p404) target = $region68
    $region67: #{predict_model_forward.13} parent=5 // pred_region
      %s408 = ssub.s32 %s18, 1
      %p409 = scmp.lt.s32.totalorder %s27, 1
      %s410 = scalar_select %p409, %s27, 1
      %p411 = scmp.lt.s32.totalorder %s28, 0
      %s412 = scalar_select %p411, %s28, 0
      %s413 = sadd.s32 %s412, %s410
      %s414 = smul.addr %s413, 8
      %s415 = scalar_lea.vmem %s0, %s414
      %p416 = pneg %p58
      %p417 = pneg %p55
      %p418 = scmp.lt.s32.totalorder %s27, 1
      %s419 = scalar_select %p418, %s27, 1
      %s420 = smul.addr %s419, 4
      %s421 = scalar_lea.vmem %s1, %s420
      %p422 = pneg %p84
      %p423 = pneg %p81
      %p424 = scmp.lt.s32.totalorder %s27, 1
      %s425 = scalar_select %p424, %s27, 1
      %p426 = scmp.lt.s32.totalorder %s28, 0
      %s427 = scalar_select %p426, %s28, 0
      %s428 = sadd.s32 %s427, %s425
      %s429 = smul.addr %s428, 8
      %s430 = scalar_lea.vmem %s2, %s429
      %p431 = pneg %p112
      %p432 = pneg %p109
      %p433 = pneg %p133
      %p434 = pneg %p130
      %p435 = pneg %p154
      %p436 = pneg %p151
      %p437 = pneg %p175
      %p438 = pneg %p172
      %p439 = pneg %p196
      %p440 = pneg %p193
      %p441 = pneg %p217
      %p442 = pneg %p214
      %p443 = pneg %p238
      %p444 = pneg %p235
      %p445 = pneg %p259
      %p446 = pneg %p256
      %p447 = pneg %p280
      %p448 = pneg %p277
      %p449 = pneg %p301
      %p450 = pneg %p298
      %p451 = pneg %p329
      %p452 = pneg %p326
      %p453 = scmp.lt.s32.totalorder %s27, 1
      %s454 = scalar_select %p453, %s27, 1
      %p455 = scmp.lt.s32.totalorder %s28, 0
      %s456 = scalar_select %p455, %s28, 0
      %s457 = sadd.s32 %s456, %s454
      %s458 = smul.addr %s457, 8
      %s459 = scalar_lea.vmem %s12, %s458
      %p460 = scmp.lt.s32.totalorder %s27, 1
      %s461 = scalar_select %p460, %s27, 1
      %p462 = scmp.lt.s32.totalorder %s28, 0
      %s463 = scalar_select %p462, %s28, 0
      %s464 = sadd.s32 %s463, %s461
      %s465 = smul.addr %s464, 8
      %s466 = scalar_lea.vmem %s0, %s465
      %p467 = scmp.lt.s32.totalorder %s27, 1
      %s468 = scalar_select %p467, %s27, 1
      %s469 = smul.addr %s468, 4
      %s470 = scalar_lea.vmem %s1, %s469
      %p471 = scmp.lt.s32.totalorder %s27, 1
      %s472 = scalar_select %p471, %s27, 1
      %p473 = scmp.lt.s32.totalorder %s28, 0
      %s474 = scalar_select %p473, %s28, 0
      %s475 = sadd.s32 %s474, %s472
      %s476 = smul.addr %s475, 8
      %s477 = scalar_lea.vmem %s2, %s476
      %p478 = scmp.lt.s32.totalorder %s27, 1
      %s479 = scalar_select %p478, %s27, 1
      %p480 = scmp.lt.s32.totalorder %s28, 0
      %s481 = scalar_select %p480, %s28, 0
      %s482 = sadd.s32 %s481, %s479
      %s483 = smul.addr %s482, 8
      %s484 = scalar_lea.vmem %s12, %s483
      %v486 = vld [vmem:[%s466] sm:$0xff]
      %v487 = vmul.f32 %v486, %v486
      %vm488 = vcmask 261120
      %v489 = vsel %vm488, %v487, 0.0
      %490 = vadd.xlane.f32.xlu0 %v489
      %v491 = vpop.xlane.xlu0 %490
      %v492 = vadd.f32 %v491, 1e-30
      %v493 = vrsqrt.pop %v492
      %v494 = vmul.f32 %v486, %v493
      %v495 = vld [vmem:[%s470] sm:$0x7]
      %v496 = vmul.f32 %v495, %v495
      %vm497 = vcmask 256000
      %v498 = vsel %vm497, %v496, 0.0
      %499 = vadd.xlane.f32.xlu0 %v498
      %v500 = vpop.xlane.xlu0 %499
      %v501 = vadd.f32 %v500, 1e-30
      %v502 = vrsqrt.pop %v501
      %v503 = vmul.f32 %v495, %v502
      %v504 = vld [vmem:[%s477] sm:$0xff]
      %v505 = vld [vmem:[%s5] sm:$0x1]
      %v506 = vld [vmem:[%s8] sm:$0x1]
      %v507 = vld [vmem:[%s4] sm:$0xf]
      %v508 = vld [vmem:[%s4 + $0x4] sm:$0xf]
      %v509 = vld [vmem:[%s4 + $0x8] sm:$0xf]
      %v510 = vld [vmem:[%s4 + $0xc] sm:$0xf]
      %v511 = vpack.c.bf16 %v503, %v503
      %v516 = vunpack.c.l.b16 %v507
      %v517 = vunpack.c.l.b16 %v508
      %v518 = vunpack.c.l.b16 %v509
      %v519 = vunpack.c.l.b16 %v510
      %v520 = vpack.c.b16 %v517, %v516
      %v521 = vpack.c.b16 %v519, %v518
      %v525 = vsel %vm488, %v511, 0
      %527 = vmatprep.subr.bf16.mxu0 0
      %528 = vmatpush1.bf16.msra.mxu0 0
      %529 = vmatprep.subr.bf16.mxu0 0
      %530 = vmatpush1.bf16.msra.mxu0 0
      %531 = vmatprep.subr.bf16.mxu0 0
      %532 = vmatpush1.bf16.msra.mxu0 0
      %533 = vmatprep.subr.bf16.mxu0 0
      %534 = vmatpush1.bf16.msra.mxu0 0
      %535 = vmatprep.subr.bf16.mxu0 0
      %536 = vmatpush1.bf16.msra.mxu0 0
      %537 = vmatprep.subr.bf16.mxu0 0
      %538 = vmatpush1.bf16.msra.mxu0 0
      %539 = vmatprep.subr.bf16.mxu0 0
      %540 = vmatpush1.bf16.msra.mxu0 %v521
      %541 = vmatprep.subr.bf16.mxu0 0
      %542 = vmatpush1.bf16.msra.mxu0 %v520
      %543 = vmatprep.subr.bf16.mxu0 0
      %544 = vmatpush2.bf16.msra.mxu0 0
      %545 = vmatprep.subr.bf16.mxu0 0
      %546 = vmatpush2.bf16.msra.mxu0 0
      %547 = vmatprep.subr.bf16.mxu0 0
      %548 = vmatpush2.bf16.msra.mxu0 0
      %549 = vmatprep.subr.bf16.mxu0 0
      %550 = vmatpush2.bf16.msra.mxu0 0
      %551 = vmatprep.subr.bf16.mxu0 0
      %552 = vmatpush2.bf16.msra.mxu0 0
      %553 = vmatprep.subr.bf16.mxu0 0
      %554 = vmatpush2.bf16.msra.mxu0 0
      %555 = vmatprep.subr.bf16.mxu0 0
      %556 = vmatpush2.bf16.msra.mxu0 0
      %557 = vmatprep.subr.bf16.mxu0 0
      %558 = vmatpush2.bf16.msra.mxu0 0
      %559 = vmatprep.mubr.bf16.mxu0 0
      %560 = vmatmul.mubr.bf16.gmra.mxu0 %v525
      %v561 = vpop.f32.mrf.mxu0
      %v562 = vadd.f32 0.0, %v561
      %v563 = vpop.f32.mrf.mxu0
      %v564 = vpop.f32.mrf.mxu0
      %v565 = vpop.f32.mrf.mxu0
      %566 = vdwg.mxu0
      %v567 = vadd.f32 %v505, %v562
      %v568 = vld [vmem:[%s7] sm:$0xf]
      %v569 = vld [vmem:[%s7 + $0x4] sm:$0xf]
      %v570 = vld [vmem:[%s7 + $0x8] sm:$0xf]
      %v571 = vld [vmem:[%s7 + $0xc] sm:$0xf]
      %v576 = vunpack.c.l.b16 %v568
      %v577 = vunpack.c.l.b16 %v569
      %v578 = vunpack.c.l.b16 %v570
      %v579 = vunpack.c.l.b16 %v571
      %v580 = vpack.c.b16 %v577, %v576
      %v581 = vpack.c.b16 %v579, %v578
      %584 = vmatprep.subr.bf16.mxu0 0
      %585 = vmatpush1.bf16.msra.mxu0 0
      %586 = vmatprep.subr.bf16.mxu0 0
      %587 = vmatpush1.bf16.msra.mxu0 0
      %588 = vmatprep.subr.bf16.mxu0 0
      %589 = vmatpush1.bf16.msra.mxu0 0
      %590 = vmatprep.subr.bf16.mxu0 0
      %591 = vmatpush1.bf16.msra.mxu0 0
      %592 = vmatprep.subr.bf16.mxu0 0
      %593 = vmatpush1.bf16.msra.mxu0 0
      %594 = vmatprep.subr.bf16.mxu0 0
      %595 = vmatpush1.bf16.msra.mxu0 0
      %596 = vmatprep.subr.bf16.mxu0 0
      %597 = vmatpush1.bf16.msra.mxu0 %v581
      %598 = vmatprep.subr.bf16.mxu0 0
      %599 = vmatpush1.bf16.msra.mxu0 %v580
      %600 = vmatprep.subr.bf16.mxu0 0
      %601 = vmatpush2.bf16.msra.mxu0 0
      %602 = vmatprep.subr.bf16.mxu0 0
      %603 = vmatpush2.bf16.msra.mxu0 0
      %604 = vmatprep.subr.bf16.mxu0 0
      %605 = vmatpush2.bf16.msra.mxu0 0
      %606 = vmatprep.subr.bf16.mxu0 0
      %607 = vmatpush2.bf16.msra.mxu0 0
      %608 = vmatprep.subr.bf16.mxu0 0
      %609 = vmatpush2.bf16.msra.mxu0 0
      %610 = vmatprep.subr.bf16.mxu0 0
      %611 = vmatpush2.bf16.msra.mxu0 0
      %612 = vmatprep.subr.bf16.mxu0 0
      %613 = vmatpush2.bf16.msra.mxu0 0
      %614 = vmatprep.subr.bf16.mxu0 0
      %615 = vmatpush2.bf16.msra.mxu0 0
      %616 = vmatprep.mubr.bf16.mxu0 0
      %617 = vmatmul.mubr.bf16.gmra.mxu0 %v525
      %v618 = vpop.f32.mrf.mxu0
      %v619 = vadd.f32 0.0, %v618
      %v620 = vpop.f32.mrf.mxu0
      %v621 = vpop.f32.mrf.mxu0
      %v622 = vpop.f32.mrf.mxu0
      %623 = vdwg.mxu0
      %v624 = vadd.f32 %v506, %v619
      %s625 = scalar_lea.vmem %s4, 16
      %v626 = vld [vmem:[%s625] sm:$0xf]
      %v627 = vld [vmem:[%s625 + $0x4] sm:$0xf]
      %v628 = vld [vmem:[%s625 + $0x8] sm:$0xf]
      %v629 = vld [vmem:[%s625 + $0xc] sm:$0xf]
      %v630 = vshrl.u32 %v511, 16
      %v636 = vunpack.c.l.b16 %v626
      %v637 = vunpack.c.l.b16 %v627
      %v638 = vunpack.c.l.b16 %v628
      %v639 = vunpack.c.l.b16 %v629
      %v640 = vpack.c.b16 %v637, %v636
      %v641 = vpack.c.b16 %v639, %v638
      %v645 = vsel %vm488, %v630, 0
      %647 = vmatprep.subr.bf16.mxu0 0
      %648 = vmatpush1.bf16.msra.mxu0 0
      %649 = vmatprep.subr.bf16.mxu0 0
      %650 = vmatpush1.bf16.msra.mxu0 0
      %651 = vmatprep.subr.bf16.mxu0 0
      %652 = vmatpush1.bf16.msra.mxu0 0
      %653 = vmatprep.subr.bf16.mxu0 0
      %654 = vmatpush1.bf16.msra.mxu0 0
      %655 = vmatprep.subr.bf16.mxu0 0
      %656 = vmatpush1.bf16.msra.mxu0 0
      %657 = vmatprep.subr.bf16.mxu0 0
      %658 = vmatpush1.bf16.msra.mxu0 0
      %659 = vmatprep.subr.bf16.mxu0 0
      %660 = vmatpush1.bf16.msra.mxu0 %v641
      %661 = vmatprep.subr.bf16.mxu0 0
      %662 = vmatpush1.bf16.msra.mxu0 %v640
      %663 = vmatprep.subr.bf16.mxu0 0
      %664 = vmatpush2.bf16.msra.mxu0 0
      %665 = vmatprep.subr.bf16.mxu0 0
      %666 = vmatpush2.bf16.msra.mxu0 0
      %667 = vmatprep.subr.bf16.mxu0 0
      %668 = vmatpush2.bf16.msra.mxu0 0
      %669 = vmatprep.subr.bf16.mxu0 0
      %670 = vmatpush2.bf16.msra.mxu0 0
      %671 = vmatprep.subr.bf16.mxu0 0
      %672 = vmatpush2.bf16.msra.mxu0 0
      %673 = vmatprep.subr.bf16.mxu0 0
      %674 = vmatpush2.bf16.msra.mxu0 0
      %675 = vmatprep.subr.bf16.mxu0 0
      %676 = vmatpush2.bf16.msra.mxu0 0
      %677 = vmatprep.subr.bf16.mxu0 0
      %678 = vmatpush2.bf16.msra.mxu0 0
      %679 = vmatprep.mubr.bf16.mxu0 0
      %680 = vmatmul.mubr.bf16.gmra.mxu0 %v645
      %v681 = vpop.f32.mrf.mxu0
      %v682 = vadd.f32 0.0, %v681
      %v683 = vpop.f32.mrf.mxu0
      %v684 = vpop.f32.mrf.mxu0
      %v685 = vpop.f32.mrf.mxu0
      %686 = vdwg.mxu0
      %v687 = vadd.f32 %v567, %v682
      %s688 = scalar_lea.vmem %s7, 16
      %v689 = vld [vmem:[%s688] sm:$0xf]
      %v690 = vld [vmem:[%s688 + $0x4] sm:$0xf]
      %v691 = vld [vmem:[%s688 + $0x8] sm:$0xf]
      %v692 = vld [vmem:[%s688 + $0xc] sm:$0xf]
      %v697 = vunpack.c.l.b16 %v689
      %v698 = vunpack.c.l.b16 %v690
      %v699 = vunpack.c.l.b16 %v691
      %v700 = vunpack.c.l.b16 %v692
      %v701 = vpack.c.b16 %v698, %v697
      %v702 = vpack.c.b16 %v700, %v699
      %705 = vmatprep.subr.bf16.mxu0 0
      %706 = vmatpush1.bf16.msra.mxu0 0
      %707 = vmatprep.subr.bf16.mxu0 0
      %708 = vmatpush1.bf16.msra.mxu0 0
      %709 = vmatprep.subr.bf16.mxu0 0
      %710 = vmatpush1.bf16.msra.mxu0 0
      %711 = vmatprep.subr.bf16.mxu0 0
      %712 = vmatpush1.bf16.msra.mxu0 0
      %713 = vmatprep.subr.bf16.mxu0 0
      %714 = vmatpush1.bf16.msra.mxu0 0
      %715 = vmatprep.subr.bf16.mxu0 0
      %716 = vmatpush1.bf16.msra.mxu0 0
      %717 = vmatprep.subr.bf16.mxu0 0
      %718 = vmatpush1.bf16.msra.mxu0 %v702
      %719 = vmatprep.subr.bf16.mxu0 0
      %720 = vmatpush1.bf16.msra.mxu0 %v701
      %721 = vmatprep.subr.bf16.mxu0 0
      %722 = vmatpush2.bf16.msra.mxu0 0
      %723 = vmatprep.subr.bf16.mxu0 0
      %724 = vmatpush2.bf16.msra.mxu0 0
      %725 = vmatprep.subr.bf16.mxu0 0
      %726 = vmatpush2.bf16.msra.mxu0 0
      %727 = vmatprep.subr.bf16.mxu0 0
      %728 = vmatpush2.bf16.msra.mxu0 0
      %729 = vmatprep.subr.bf16.mxu0 0
      %730 = vmatpush2.bf16.msra.mxu0 0
      %731 = vmatprep.subr.bf16.mxu0 0
      %732 = vmatpush2.bf16.msra.mxu0 0
      %733 = vmatprep.subr.bf16.mxu0 0
      %734 = vmatpush2.bf16.msra.mxu0 0
      %735 = vmatprep.subr.bf16.mxu0 0
      %736 = vmatpush2.bf16.msra.mxu0 0
      %737 = vmatprep.mubr.bf16.mxu0 0
      %738 = vmatmul.mubr.bf16.gmra.mxu0 %v645
      %v739 = vpop.f32.mrf.mxu0
      %v740 = vadd.f32 0.0, %v739
      %v741 = vpop.f32.mrf.mxu0
      %v742 = vpop.f32.mrf.mxu0
      %v743 = vpop.f32.mrf.mxu0
      %744 = vdwg.mxu0
      %v745 = vadd.f32 %v624, %v740
      %s746 = scalar_lea.vmem %s4, 32
      %v747 = vld [vmem:[%s746] sm:$0xf]
      %v748 = vld [vmem:[%s746 + $0x4] sm:$0xf]
      %v749 = vld [vmem:[%s746 + $0x8] sm:$0xf]
      %v750 = vld [vmem:[%s746 + $0xc] sm:$0xf]
      %v752 = vrot.slane %v511, 1
      %v757 = vunpack.c.l.b16 %v747
      %v758 = vunpack.c.l.b16 %v748
      %v759 = vunpack.c.l.b16 %v749
      %v760 = vunpack.c.l.b16 %v750
      %v761 = vpack.c.b16 %v758, %v757
      %v762 = vpack.c.b16 %v760, %v759
      %v766 = vsel %vm488, %v752, 0
      %768 = vmatprep.subr.bf16.mxu0 0
      %769 = vmatpush1.bf16.msra.mxu0 0
      %770 = vmatprep.subr.bf16.mxu0 0
      %771 = vmatpush1.bf16.msra.mxu0 0
      %772 = vmatprep.subr.bf16.mxu0 0
      %773 = vmatpush1.bf16.msra.mxu0 0
      %774 = vmatprep.subr.bf16.mxu0 0
      %775 = vmatpush1.bf16.msra.mxu0 0
      %776 = vmatprep.subr.bf16.mxu0 0
      %777 = vmatpush1.bf16.msra.mxu0 0
      %778 = vmatprep.subr.bf16.mxu0 0
      %779 = vmatpush1.bf16.msra.mxu0 0
      %780 = vmatprep.subr.bf16.mxu0 0
      %781 = vmatpush1.bf16.msra.mxu0 %v762
      %782 = vmatprep.subr.bf16.mxu0 0
      %783 = vmatpush1.bf16.msra.mxu0 %v761
      %784 = vmatprep.subr.bf16.mxu0 0
      %785 = vmatpush2.bf16.msra.mxu0 0
      %786 = vmatprep.subr.bf16.mxu0 0
      %787 = vmatpush2.bf16.msra.mxu0 0
      %788 = vmatprep.subr.bf16.mxu0 0
      %789 = vmatpush2.bf16.msra.mxu0 0
      %790 = vmatprep.subr.bf16.mxu0 0
      %791 = vmatpush2.bf16.msra.mxu0 0
      %792 = vmatprep.subr.bf16.mxu0 0
      %793 = vmatpush2.bf16.msra.mxu0 0
      %794 = vmatprep.subr.bf16.mxu0 0
      %795 = vmatpush2.bf16.msra.mxu0 0
      %796 = vmatprep.subr.bf16.mxu0 0
      %797 = vmatpush2.bf16.msra.mxu0 0
      %798 = vmatprep.subr.bf16.mxu0 0
      %799 = vmatpush2.bf16.msra.mxu0 0
      %800 = vmatprep.mubr.bf16.mxu0 0
      %801 = vmatmul.mubr.bf16.gmra.mxu0 %v766
      %v802 = vpop.f32.mrf.mxu0
      %v803 = vadd.f32 0.0, %v802
      %v804 = vpop.f32.mrf.mxu0
      %v805 = vpop.f32.mrf.mxu0
      %v806 = vpop.f32.mrf.mxu0
      %807 = vdwg.mxu0
      %v808 = vadd.f32 %v687, %v803
      %s809 = scalar_lea.vmem %s7, 32
      %v810 = vld [vmem:[%s809] sm:$0xf]
      %v811 = vld [vmem:[%s809 + $0x4] sm:$0xf]
      %v812 = vld [vmem:[%s809 + $0x8] sm:$0xf]
      %v813 = vld [vmem:[%s809 + $0xc] sm:$0xf]
      %v818 = vunpack.c.l.b16 %v810
      %v819 = vunpack.c.l.b16 %v811
      %v820 = vunpack.c.l.b16 %v812
      %v821 = vunpack.c.l.b16 %v813
      %v822 = vpack.c.b16 %v819, %v818
      %v823 = vpack.c.b16 %v821, %v820
      %826 = vmatprep.subr.bf16.mxu0 0
      %827 = vmatpush1.bf16.msra.mxu0 0
      %828 = vmatprep.subr.bf16.mxu0 0
      %829 = vmatpush1.bf16.msra.mxu0 0
      %830 = vmatprep.subr.bf16.mxu0 0
      %831 = vmatpush1.bf16.msra.mxu0 0
      %832 = vmatprep.subr.bf16.mxu0 0
      %833 = vmatpush1.bf16.msra.mxu0 0
      %834 = vmatprep.subr.bf16.mxu0 0
      %835 = vmatpush1.bf16.msra.mxu0 0
      %836 = vmatprep.subr.bf16.mxu0 0
      %837 = vmatpush1.bf16.msra.mxu0 0
      %838 = vmatprep.subr.bf16.mxu0 0
      %839 = vmatpush1.bf16.msra.mxu0 %v823
      %840 = vmatprep.subr.bf16.mxu0 0
      %841 = vmatpush1.bf16.msra.mxu0 %v822
      %842 = vmatprep.subr.bf16.mxu0 0
      %843 = vmatpush2.bf16.msra.mxu0 0
      %844 = vmatprep.subr.bf16.mxu0 0
      %845 = vmatpush2.bf16.msra.mxu0 0
      %846 = vmatprep.subr.bf16.mxu0 0
      %847 = vmatpush2.bf16.msra.mxu0 0
      %848 = vmatprep.subr.bf16.mxu0 0
      %849 = vmatpush2.bf16.msra.mxu0 0
      %850 = vmatprep.subr.bf16.mxu0 0
      %851 = vmatpush2.bf16.msra.mxu0 0
      %852 = vmatprep.subr.bf16.mxu0 0
      %853 = vmatpush2.bf16.msra.mxu0 0
      %854 = vmatprep.subr.bf16.mxu0 0
      %855 = vmatpush2.bf16.msra.mxu0 0
      %856 = vmatprep.subr.bf16.mxu0 0
      %857 = vmatpush2.bf16.msra.mxu0 0
      %858 = vmatprep.mubr.bf16.mxu0 0
      %859 = vmatmul.mubr.bf16.gmra.mxu0 %v766
      %v860 = vpop.f32.mrf.mxu0
      %v861 = vadd.f32 0.0, %v860
      %v862 = vpop.f32.mrf.mxu0
      %v863 = vpop.f32.mrf.mxu0
      %v864 = vpop.f32.mrf.mxu0
      %865 = vdwg.mxu0
      %v866 = vadd.f32 %v745, %v861
      %v867 = vld [vmem:[%s3] sm:$0xf]
      %v868 = vld [vmem:[%s3 + $0x4] sm:$0xf]
      %v869 = vld [vmem:[%s3 + $0x8] sm:$0xf]
      %v870 = vld [vmem:[%s3 + $0xc] sm:$0xf]
      %v871 = vpack.c.bf16 %v494, %v494
      %v873 = vlaneseq
      %v874 = vshrl.u32 %v873, 7
      %v875 = vsub.s32 0, %v874
      %v876 = vrot.slane %v808, %v875
      %v882 = vunpack.c.l.b16 %v867
      %v883 = vunpack.c.l.b16 %v868
      %v884 = vunpack.c.l.b16 %v869
      %v885 = vunpack.c.l.b16 %v870
      %v886 = vpack.c.b16 %v883, %v882
      %v887 = vpack.c.b16 %v885, %v884
      %v891 = vsel %vm488, %v871, 0
      %893 = vmatprep.subr.bf16.mxu0 0
      %894 = vmatpush1.bf16.msra.mxu0 0
      %895 = vmatprep.subr.bf16.mxu0 0
      %896 = vmatpush1.bf16.msra.mxu0 0
      %897 = vmatprep.subr.bf16.mxu0 0
      %898 = vmatpush1.bf16.msra.mxu0 0
      %899 = vmatprep.subr.bf16.mxu0 0
      %900 = vmatpush1.bf16.msra.mxu0 0
      %901 = vmatprep.subr.bf16.mxu0 0
      %902 = vmatpush1.bf16.msra.mxu0 0
      %903 = vmatprep.subr.bf16.mxu0 0
      %904 = vmatpush1.bf16.msra.mxu0 0
      %905 = vmatprep.subr.bf16.mxu0 0
      %906 = vmatpush1.bf16.msra.mxu0 %v887
      %907 = vmatprep.subr.bf16.mxu0 0
      %908 = vmatpush1.bf16.msra.mxu0 %v886
      %909 = vmatprep.subr.bf16.mxu0 0
      %910 = vmatpush2.bf16.msra.mxu0 0
      %911 = vmatprep.subr.bf16.mxu0 0
      %912 = vmatpush2.bf16.msra.mxu0 0
      %913 = vmatprep.subr.bf16.mxu0 0
      %914 = vmatpush2.bf16.msra.mxu0 0
      %915 = vmatprep.subr.bf16.mxu0 0
      %916 = vmatpush2.bf16.msra.mxu0 0
      %917 = vmatprep.subr.bf16.mxu0 0
      %918 = vmatpush2.bf16.msra.mxu0 0
      %919 = vmatprep.subr.bf16.mxu0 0
      %920 = vmatpush2.bf16.msra.mxu0 0
      %921 = vmatprep.subr.bf16.mxu0 0
      %922 = vmatpush2.bf16.msra.mxu0 0
      %923 = vmatprep.subr.bf16.mxu0 0
      %924 = vmatpush2.bf16.msra.mxu0 0
      %925 = vmatprep.mubr.bf16.mxu0 0
      %926 = vmatmul.mubr.bf16.gmra.mxu0 %v891
      %v927 = vpop.f32.mrf.mxu0
      %v928 = vadd.f32 %v876, %v927
      %v929 = vpop.f32.mrf.mxu0
      %v930 = vpop.f32.mrf.mxu0
      %v931 = vpop.f32.mrf.mxu0
      %932 = vdwg.mxu0
      %v933 = vxor.u32 %v928, 2147483648
      %v934 = vmul.f32 %v933, 1.442695
      %v935 = vpow.pop %v934
      %v936 = vadd.f32 %v935, 1.0
      %v937 = vrcp.pop %v936
      %v938 = vmul.f32 1.0, %v937
      %v939 = vld [vmem:[%s6] sm:$0xf]
      %v940 = vld [vmem:[%s6 + $0x4] sm:$0xf]
      %v941 = vld [vmem:[%s6 + $0x8] sm:$0xf]
      %v942 = vld [vmem:[%s6 + $0xc] sm:$0xf]
      %v944 = vlaneseq
      %v945 = vshrl.u32 %v944, 7
      %v946 = vsub.s32 0, %v945
      %v947 = vrot.slane %v866, %v946
      %v953 = vunpack.c.l.b16 %v939
      %v954 = vunpack.c.l.b16 %v940
      %v955 = vunpack.c.l.b16 %v941
      %v956 = vunpack.c.l.b16 %v942
      %v957 = vpack.c.b16 %v954, %v953
      %v958 = vpack.c.b16 %v956, %v955
      %961 = vmatprep.subr.bf16.mxu0 0
      %962 = vmatpush1.bf16.msra.mxu0 0
      %963 = vmatprep.subr.bf16.mxu0 0
      %964 = vmatpush1.bf16.msra.mxu0 0
      %965 = vmatprep.subr.bf16.mxu0 0
      %966 = vmatpush1.bf16.msra.mxu0 0
      %967 = vmatprep.subr.bf16.mxu0 0
      %968 = vmatpush1.bf16.msra.mxu0 0
      %969 = vmatprep.subr.bf16.mxu0 0
      %970 = vmatpush1.bf16.msra.mxu0 0
      %971 = vmatprep.subr.bf16.mxu0 0
      %972 = vmatpush1.bf16.msra.mxu0 0
      %973 = vmatprep.subr.bf16.mxu0 0
      %974 = vmatpush1.bf16.msra.mxu0 %v958
      %975 = vmatprep.subr.bf16.mxu0 0
      %976 = vmatpush1.bf16.msra.mxu0 %v957
      %977 = vmatprep.subr.bf16.mxu0 0
      %978 = vmatpush2.bf16.msra.mxu0 0
      %979 = vmatprep.subr.bf16.mxu0 0
      %980 = vmatpush2.bf16.msra.mxu0 0
      %981 = vmatprep.subr.bf16.mxu0 0
      %982 = vmatpush2.bf16.msra.mxu0 0
      %983 = vmatprep.subr.bf16.mxu0 0
      %984 = vmatpush2.bf16.msra.mxu0 0
      %985 = vmatprep.subr.bf16.mxu0 0
      %986 = vmatpush2.bf16.msra.mxu0 0
      %987 = vmatprep.subr.bf16.mxu0 0
      %988 = vmatpush2.bf16.msra.mxu0 0
      %989 = vmatprep.subr.bf16.mxu0 0
      %990 = vmatpush2.bf16.msra.mxu0 0
      %991 = vmatprep.subr.bf16.mxu0 0
      %992 = vmatpush2.bf16.msra.mxu0 0
      %993 = vmatprep.mubr.bf16.mxu0 0
      %994 = vmatmul.mubr.bf16.gmra.mxu0 %v891
      %v995 = vpop.f32.mrf.mxu0
      %v996 = vadd.f32 %v947, %v995
      %v997 = vpop.f32.mrf.mxu0
      %v998 = vpop.f32.mrf.mxu0
      %v999 = vpop.f32.mrf.mxu0
      %1000 = vdwg.mxu0
      %v1001 = vld [vmem:[%s9] sm:$0x3]
      %v1002 = vpack.c.bf16 %v504, %v504
      %v1003 = vld [vmem:[%s10] sm:$0x3]
      %v1004 = vpack.c.bf16 %v996, %v996
      %vm1005 = vcmask 23552
      %v1007 = vsel %vm1005, %v1004, 0
      %vm1009 = vcmask 1040384
      %vm1010 = vcmask 1041408
      %v1011 = vsel %vm1009, 4294967295, 65535
      %v1012 = vsel %vm1010, %v1011, 0
      %v1014 = vand.u32 %v1003, %v1012
      %1016 = vmatprep.subr.bf16.mxu0 0
      %1017 = vmatpush1.bf16.msra.mxu0 0
      %1018 = vmatprep.subr.bf16.mxu0 0
      %1019 = vmatpush1.bf16.msra.mxu0 0
      %1020 = vmatprep.subr.bf16.mxu0 0
      %1021 = vmatpush1.bf16.msra.mxu0 0
      %1022 = vmatprep.subr.bf16.mxu0 0
      %1023 = vmatpush1.bf16.msra.mxu0 0
      %1024 = vmatprep.subr.bf16.mxu0 0
      %1025 = vmatpush1.bf16.msra.mxu0 0
      %1026 = vmatprep.subr.bf16.mxu0 0
      %1027 = vmatpush1.bf16.msra.mxu0 0
      %1028 = vmatprep.subr.bf16.mxu0 0
      %1029 = vmatpush1.bf16.msra.mxu0 0
      %1030 = vmatprep.subr.bf16.mxu0 0
      %1031 = vmatpush1.bf16.msra.mxu0 %v1014
      %1032 = vmatprep.subr.bf16.mxu0 0
      %1033 = vmatpush2.bf16.msra.mxu0 0
      %1034 = vmatprep.subr.bf16.mxu0 0
      %1035 = vmatpush2.bf16.msra.mxu0 0
      %1036 = vmatprep.subr.bf16.mxu0 0
      %1037 = vmatpush2.bf16.msra.mxu0 0
      %1038 = vmatprep.subr.bf16.mxu0 0
      %1039 = vmatpush2.bf16.msra.mxu0 0
      %1040 = vmatprep.subr.bf16.mxu0 0
      %1041 = vmatpush2.bf16.msra.mxu0 0
      %1042 = vmatprep.subr.bf16.mxu0 0
      %1043 = vmatpush2.bf16.msra.mxu0 0
      %1044 = vmatprep.subr.bf16.mxu0 0
      %1045 = vmatpush2.bf16.msra.mxu0 0
      %1046 = vmatprep.subr.bf16.mxu0 0
      %1047 = vmatpush2.bf16.msra.mxu0 0
      %1048 = vmatprep.mubr.bf16.mxu0 0
      %1049 = vmatmul.mubr.bf16.gmra.mxu0 %v1007
      %v1050 = vpop.f32.mrf.mxu0
      %v1051 = vadd.f32 0.0, %v1050
      %v1052 = vpop.f32.mrf.mxu0
      %v1053 = vpop.f32.mrf.mxu0
      %v1054 = vpop.f32.mrf.mxu0
      %1055 = vdwg.mxu0
      %v1057 = vsel %vm1005, %v1002, 0
      %v1060 = vand.u32 %v1001, %v1012
      %1062 = vmatprep.subr.bf16.mxu0 0
      %1063 = vmatpush1.bf16.msra.mxu0 0
      %1064 = vmatprep.subr.bf16.mxu0 0
      %1065 = vmatpush1.bf16.msra.mxu0 0
      %1066 = vmatprep.subr.bf16.mxu0 0
      %1067 = vmatpush1.bf16.msra.mxu0 0
      %1068 = vmatprep.subr.bf16.mxu0 0
      %1069 = vmatpush1.bf16.msra.mxu0 0
      %1070 = vmatprep.subr.bf16.mxu0 0
      %1071 = vmatpush1.bf16.msra.mxu0 0
      %1072 = vmatprep.subr.bf16.mxu0 0
      %1073 = vmatpush1.bf16.msra.mxu0 0
      %1074 = vmatprep.subr.bf16.mxu0 0
      %1075 = vmatpush1.bf16.msra.mxu0 0
      %1076 = vmatprep.subr.bf16.mxu0 0
      %1077 = vmatpush1.bf16.msra.mxu0 %v1060
      %1078 = vmatprep.subr.bf16.mxu0 0
      %1079 = vmatpush2.bf16.msra.mxu0 0
      %1080 = vmatprep.subr.bf16.mxu0 0
      %1081 = vmatpush2.bf16.msra.mxu0 0
      %1082 = vmatprep.subr.bf16.mxu0 0
      %1083 = vmatpush2.bf16.msra.mxu0 0
      %1084 = vmatprep.subr.bf16.mxu0 0
      %1085 = vmatpush2.bf16.msra.mxu0 0
      %1086 = vmatprep.subr.bf16.mxu0 0
      %1087 = vmatpush2.bf16.msra.mxu0 0
      %1088 = vmatprep.subr.bf16.mxu0 0
      %1089 = vmatpush2.bf16.msra.mxu0 0
      %1090 = vmatprep.subr.bf16.mxu0 0
      %1091 = vmatpush2.bf16.msra.mxu0 0
      %1092 = vmatprep.subr.bf16.mxu0 0
      %1093 = vmatpush2.bf16.msra.mxu0 0
      %1094 = vmatprep.mubr.bf16.mxu0 0
      %1095 = vmatmul.mubr.bf16.gmra.mxu0 %v1057
      %v1096 = vpop.f32.mrf.mxu0
      %v1097 = vadd.f32 %v1051, %v1096
      %v1098 = vpop.f32.mrf.mxu0
      %v1099 = vpop.f32.mrf.mxu0
      %v1100 = vpop.f32.mrf.mxu0
      %1101 = vdwg.mxu0
      %v1102 = vld [vmem:[%s11] sm:$0x1]
      %v1104 = vlaneseq
      %v1105 = vshrl.u32 %v1104, 7
      %v1106 = vsub.s32 0, %v1105
      %v1107 = vrot.slane %v1102, %v1106
      %v1109 = vadd.f32 %v1097, %v1107
      %v1110 = vmax.f32 %v1109, 0.0
      %v1111 = vsel %vm1005, %v1110, -inf
      %1112 = vmax.xlane.f32.xlu0 %v1111
      %v1113 = vpop.xlane.xlu0 %1112
      %v1114 = vsub.f32 %v1110, %v1113
      %v1115 = vmul.f32 %v1114, 1.442695
      %v1116 = vpow.pop %v1115
      %v1117 = vsel %vm1005, %v1116, 0.0
      %1118 = vadd.xlane.f32.xlu0 %v1117
      %v1119 = vpop.xlane.xlu0 %1118
      %v1120 = vrcp.pop %v1119
      %v1121 = vmul.f32 %v1116, %v1120
      %v1122 = vmax.f32 %v938, 0.1
      %v1123 = vmul.f32 %v1122, %v504
      %v1124 = vsub.f32 1.0, %v1122
      %v1125 = vmul.f32 %v1124, %v1121
      %v1126 = vadd.f32 %v1123, %v1125
      %1127 = vst.msk [vmem:[%s484] sm:$0xff] %vm1005, %v1126
      %p1128 = scmp.lt.s32.totalorder %s27, 1
      %s1129 = scalar_select %p1128, %s27, 1
      %p1130 = scmp.lt.s32.totalorder %s28, 0
      %s1131 = scalar_select %p1130, %s28, 0
      %s1132 = sadd.s32 %s1131, %s1129
      %s1133 = smul.addr %s1132, 8
      %s1134 = scalar_lea.vmem %s12, %s1133
      // Predicated region
      $region69: #{predict_model_forward.13} parent=67 // pred_check
        %p1135 = pneg %p326
      $region70: #{predict_model_forward.13} parent=67 // pred_check_branch
        %1137 = sbr.rel (%p1135) target = $region72
      $region71: #{predict_model_forward.13} parent=67 // pred_region
        _
      $region72: #{predict_model_forward.13} parent=67 // pred_fallthru
        _
    $region68: #{predict_model_forward.13} parent=5 // pred_fallthru
      _
    %p1138 = scmp.le.s32.totalorder 2, %s18
    // Predicated region
    $region73: #{predict_model_forward.13} parent=5 // pred_check
      %p1139 = pneg %p1138
    $region74: #{predict_model_forward.13} parent=5 // pred_check_branch
      %1141 = sbr.rel (%p1139) target = $region76
    $region75: #{predict_model_forward.13} parent=5 // pred_region
      %s1142 = ssub.s32 %s18, 2
      // Predicated region
      $region77: #{predict_model_forward.13} parent=75 // pred_check
        %p1143 = pneg %p332
      $region78: #{predict_model_forward.13} parent=75 // pred_check_branch
        %1145 = sbr.rel (%p1143) target = $region80
      $region79: #{predict_model_forward.13} parent=75 // pred_region
        %p1146 = scmp.lt.s32.totalorder %s29, 1
        %s1147 = scalar_select %p1146, %s29, 1
        %p1148 = scmp.lt.s32.totalorder %s30, 0
        %s1149 = scalar_select %p1148, %s30, 0
        %s1150 = sadd.s32 %s1149, %s1147
        %s1151 = smul.addr %s1150, 8
        %s1152 = scalar_lea.vmem %s12, %s1151
      $region80: #{predict_model_forward.13} parent=75 // pred_fallthru
        _
    $region76: #{predict_model_forward.13} parent=5 // pred_fallthru
      _
  $region6: #{predict_model_forward.13} parent=0 // loop_footer
    %s22 = sadd.s32 1, %s18
  $region7: #{predict_model_forward.13} parent=0 // loop_footer_branch
    %17 = sbr.rel target = $region3
  $region8: #{predict_model_forward.13} parent=0 // loop_exit
    _

// kernel: predict_model_forward.12
$region0: #{predict_model_forward.12}
  #allocation0 [shape = 'u32[]', space=smem, size = 0x4, offset = 0x4, fixed_abs, tag = 'smem constant byte address 0x4 - core index']
  #allocation1 [shape = 'u32[144,128]{1,0:T(1,128)}', space=vmem, size = 0x12000, scoped, tag = 'internal scratch']
  %s0 = inlined_call_operand.vmem [shape: f32[2,8,32], index: 0, kind: input, shape index: {}]
  %s1 = inlined_call_operand.vmem [shape: f32[2,1,32], index: 1, kind: input, shape index: {}]
  %s2 = inlined_call_operand.vmem [shape: f32[2,8,1], index: 2, kind: input, shape index: {}]
  %s3 = inlined_call_operand.vmem [shape: f32[2,3,32], index: 3, kind: input, shape index: {}]
  %s4 = inlined_call_operand.vmem [shape: bf16[2,8,8], index: 4, kind: input, shape index: {}]
  %s5 = inlined_call_operand.vmem [shape: bf16[2,8,8], index: 5, kind: input, shape index: {}]
  %s6 = inlined_call_operand.vmem [shape: bf16[2,3,8], index: 6, kind: input, shape index: {}]
  %s7 = inlined_call_operand.vmem [shape: bf16[32,32], index: 7, kind: input, shape index: {}]
  %s8 = inlined_call_operand.vmem [shape: f32[1,32], index: 8, kind: input, shape index: {}]
  %s9 = inlined_call_operand.vmem [shape: bf16[32,32], index: 9, kind: input, shape index: {}]
  %s10 = inlined_call_operand.vmem [shape: f32[1,32], index: 10, kind: input, shape index: {}]
  %s11 = inlined_call_operand.vmem [shape: bf16[32,32], index: 11, kind: input, shape index: {}]
  %s12 = inlined_call_operand.vmem [shape: f32[1,32], index: 12, kind: input, shape index: {}]
  %s13 = inlined_call_operand.vmem [shape: bf16[128,32], index: 13, kind: input, shape index: {}]
  %s14 = inlined_call_operand.vmem [shape: f32[1,32], index: 14, kind: input, shape index: {}]
  %s15 = inlined_call_operand.vmem [shape: bf16[96,32], index: 15, kind: input, shape index: {}]
  %s16 = inlined_call_operand.vmem [shape: f32[1,32], index: 16, kind: input, shape index: {}]
  %s17 = inlined_call_operand.vmem [shape: bf16[32,32], index: 17, kind: input, shape index: {}]
  %s18 = inlined_call_operand.vmem [shape: f32[1,32], index: 18, kind: input, shape index: {}]
  %s19 = inlined_call_operand.vmem [shape: bf16[64,32], index: 19, kind: input, shape index: {}]
  %s20 = inlined_call_operand.vmem [shape: f32[1,32], index: 20, kind: input, shape index: {}]
  %s21 = inlined_call_operand.vmem [shape: bf16[32,32], index: 21, kind: input, shape index: {}]
  %s22 = inlined_call_operand.vmem [shape: f32[1,32], index: 22, kind: input, shape index: {}]
  %s23 = inlined_call_operand.vmem [shape: f32[2,8,32], index: 23, kind: output, shape index: {0}]
  %s24 = inlined_call_operand.vmem [shape: f32[2,3,32], index: 24, kind: output, shape index: {1}]
  %25 = xla_tuple %s23, %s24
  %s26 = sld [smem:[#allocation0]]
  $region133: #{predict_model_forward.12} parent=0
    _
  %s28 = ssub.s32 1, %s26
  %s29 = scalar_select 0, %s28, %s26
  loop: start=0, step=1, limit=4
  $region2: #{predict_model_forward.12} parent=0 // loop_pre_header
    _
  $region3: #{predict_model_forward.12} parent=0 // loop_header
    %s31 = sphi 0, %s35
    %p32 = scmp.ge.s32.totalorder %s31, 4
    %s41 = sphi 0, %s43
    %s44 = sphi 0, %s41
    %s45 = sphi 0, %s44
    %s61 = sphi 0, %s45
    %s67 = sphi 0, %s69
    %s70 = sphi 0, %s67
    %s71 = sphi 0, %s70
    %s87 = sphi 0, %s71
    %s93 = sphi 0, %s95
    %s96 = sphi 0, %s93
    %s97 = sphi 0, %s96
    %s113 = sphi 0, %s97
    %s119 = sphi 0, %s121
    %s122 = sphi 0, %s119
    %s123 = sphi 0, %s122
    %s139 = sphi 0, %s123
    %s145 = sphi 0, %s147
    %s148 = sphi 0, %s145
    %s149 = sphi 0, %s148
    %s165 = sphi 0, %s149
    %s171 = sphi 0, %s173
    %s174 = sphi 0, %s171
    %s175 = sphi 0, %s174
    %s191 = sphi 0, %s175
    %s197 = sphi 0, %s199
    %s200 = sphi 0, %s197
    %s201 = sphi 0, %s200
    %s217 = sphi 0, %s201
    %s221 = sphi 0, %s221
    %s223 = sphi 0, %s221
    %s224 = sphi 0, %s223
    %s238 = sphi 0, %s224
    %s242 = sphi 0, %s242
    %s244 = sphi 0, %s242
    %s245 = sphi 0, %s244
    %s259 = sphi 0, %s245
    %s263 = sphi 0, %s263
    %s265 = sphi 0, %s263
    %s266 = sphi 0, %s265
    %s280 = sphi 0, %s266
    %s284 = sphi 0, %s284
    %s286 = sphi 0, %s284
    %s287 = sphi 0, %s286
    %s301 = sphi 0, %s287
    %s305 = sphi 0, %s305
    %s307 = sphi 0, %s305
    %s308 = sphi 0, %s307
    %s322 = sphi 0, %s308
    %s326 = sphi 0, %s326
    %s328 = sphi 0, %s326
    %s329 = sphi 0, %s328
    %s343 = sphi 0, %s329
    %s347 = sphi 0, %s347
    %s349 = sphi 0, %s347
    %s350 = sphi 0, %s349
    %s364 = sphi 0, %s350
    %s368 = sphi 0, %s368
    %s370 = sphi 0, %s368
    %s371 = sphi 0, %s370
    %s385 = sphi 0, %s371
    %s389 = sphi 0, %s389
    %s391 = sphi 0, %s389
    %s392 = sphi 0, %s391
    %s406 = sphi 0, %s392
    %s410 = sphi 0, %s410
    %s412 = sphi 0, %s410
    %s413 = sphi 0, %s412
    %s427 = sphi 0, %s413
    %s431 = sphi 0, %s431
    %s433 = sphi 0, %s431
    %s434 = sphi 0, %s433
    %s448 = sphi 0, %s434
    %s452 = sphi 0, %s452
    %s454 = sphi 0, %s452
    %s455 = sphi 0, %s454
    %s469 = sphi 0, %s455
    %s473 = sphi 0, %s473
    %s475 = sphi 0, %s473
    %s476 = sphi 0, %s475
    %s490 = sphi 0, %s476
    %s494 = sphi 0, %s494
    %s496 = sphi 0, %s494
    %s497 = sphi 0, %s496
    %s511 = sphi 0, %s497
    %s515 = sphi 0, %s515
    %s517 = sphi 0, %s515
    %s518 = sphi 0, %s517
    %s532 = sphi 0, %s518
    %s536 = sphi 0, %s536
    %s538 = sphi 0, %s536
    %s539 = sphi 0, %s538
    %s553 = sphi 0, %s539
    %s559 = sphi 0, %s561
    %s562 = sphi 0, %s559
    %s563 = sphi 0, %s562
    %s579 = sphi 0, %s563
    %s585 = sphi 0, %s587
    %s588 = sphi 0, %s585
    %s589 = sphi 0, %s588
    %s605 = sphi 0, %s589
  $region4: #{predict_model_forward.12} parent=0 // loop_header_branch
    %34 = sbr.rel (%p32) target = $region8
  $region5: #{predict_model_forward.12} parent=0 // loop_body
    %s36 = ssub.s32 %s31, 1
    %s37 = ssub.s32 %s31, 2
    %s38 = sadd.s32 %s31, 1
    %s39 = ssub.s32 %s31, %s38
    %p40 = scmp.eq.s32.totalorder %s39, 0
    %s42 = sadd.s32 %s41, 1
    %s43 = scalar_select %p40, %s41, %s42
    %p46 = pneg %p40
    %p47 = scmp.eq.s32.totalorder %s31, 1
    %p48 = por %p46, %p47
    %p49 = scmp.ne.s32.totalorder %s41, %s44
    %p50 = scmp.eq.s32.totalorder %s31, 0
    %p51 = por %p49, %p50
    %p52 = scmp.ne.s32.totalorder %s41, %s44
    %p53 = scmp.eq.s32.totalorder %s36, 1
    %p54 = por %p52, %p53
    %p55 = scmp.ne.s32.totalorder %s44, %s45
    %p56 = scmp.eq.s32.totalorder %s36, 0
    %p57 = por %p55, %p56
    %p58 = scmp.ne.s32.totalorder %s44, %s45
    %p59 = scmp.eq.s32.totalorder %s37, 1
    %p60 = por %p58, %p59
    %p62 = scmp.ne.s32.totalorder %s45, %s61
    %p63 = scmp.eq.s32.totalorder %s37, 0
    %p64 = por %p62, %p63
    %s65 = ssub.s32 %s31, %s38
    %p66 = scmp.eq.s32.totalorder %s65, 0
    %s68 = sadd.s32 %s67, 1
    %s69 = scalar_select %p66, %s67, %s68
    %p72 = pneg %p66
    %p73 = scmp.eq.s32.totalorder %s31, 1
    %p74 = por %p72, %p73
    %p75 = scmp.ne.s32.totalorder %s67, %s70
    %p76 = scmp.eq.s32.totalorder %s31, 0
    %p77 = por %p75, %p76
    %p78 = scmp.ne.s32.totalorder %s67, %s70
    %p79 = scmp.eq.s32.totalorder %s36, 1
    %p80 = por %p78, %p79
    %p81 = scmp.ne.s32.totalorder %s70, %s71
    %p82 = scmp.eq.s32.totalorder %s36, 0
    %p83 = por %p81, %p82
    %p84 = scmp.ne.s32.totalorder %s70, %s71
    %p85 = scmp.eq.s32.totalorder %s37, 1
    %p86 = por %p84, %p85
    %p88 = scmp.ne.s32.totalorder %s71, %s87
    %p89 = scmp.eq.s32.totalorder %s37, 0
    %p90 = por %p88, %p89
    %s91 = ssub.s32 %s31, %s38
    %p92 = scmp.eq.s32.totalorder %s91, 0
    %s94 = sadd.s32 %s93, 1
    %s95 = scalar_select %p92, %s93, %s94
    %p98 = pneg %p92
    %p99 = scmp.eq.s32.totalorder %s31, 1
    %p100 = por %p98, %p99
    %p101 = scmp.ne.s32.totalorder %s93, %s96
    %p102 = scmp.eq.s32.totalorder %s31, 0
    %p103 = por %p101, %p102
    %p104 = scmp.ne.s32.totalorder %s93, %s96
    %p105 = scmp.eq.s32.totalorder %s36, 1
    %p106 = por %p104, %p105
    %p107 = scmp.ne.s32.totalorder %s96, %s97
    %p108 = scmp.eq.s32.totalorder %s36, 0
    %p109 = por %p107, %p108
    %p110 = scmp.ne.s32.totalorder %s96, %s97
    %p111 = scmp.eq.s32.totalorder %s37, 1
    %p112 = por %p110, %p111
    %p114 = scmp.ne.s32.totalorder %s97, %s113
    %p115 = scmp.eq.s32.totalorder %s37, 0
    %p116 = por %p114, %p115
    %s117 = ssub.s32 %s31, %s38
    %p118 = scmp.eq.s32.totalorder %s117, 0
    %s120 = sadd.s32 %s119, 1
    %s121 = scalar_select %p118, %s119, %s120
    %p124 = pneg %p118
    %p125 = scmp.eq.s32.totalorder %s31, 1
    %p126 = por %p124, %p125
    %p127 = scmp.ne.s32.totalorder %s119, %s122
    %p128 = scmp.eq.s32.totalorder %s31, 0
    %p129 = por %p127, %p128
    %p130 = scmp.ne.s32.totalorder %s119, %s122
    %p131 = scmp.eq.s32.totalorder %s36, 1
    %p132 = por %p130, %p131
    %p133 = scmp.ne.s32.totalorder %s122, %s123
    %p134 = scmp.eq.s32.totalorder %s36, 0
    %p135 = por %p133, %p134
    %p136 = scmp.ne.s32.totalorder %s122, %s123
    %p137 = scmp.eq.s32.totalorder %s37, 1
    %p138 = por %p136, %p137
    %p140 = scmp.ne.s32.totalorder %s123, %s139
    %p141 = scmp.eq.s32.totalorder %s37, 0
    %p142 = por %p140, %p141
    %s143 = ssub.s32 %s31, %s38
    %p144 = scmp.eq.s32.totalorder %s143, 0
    %s146 = sadd.s32 %s145, 1
    %s147 = scalar_select %p144, %s145, %s146
    %p150 = pneg %p144
    %p151 = scmp.eq.s32.totalorder %s31, 1
    %p152 = por %p150, %p151
    %p153 = scmp.ne.s32.totalorder %s145, %s148
    %p154 = scmp.eq.s32.totalorder %s31, 0
    %p155 = por %p153, %p154
    %p156 = scmp.ne.s32.totalorder %s145, %s148
    %p157 = scmp.eq.s32.totalorder %s36, 1
    %p158 = por %p156, %p157
    %p159 = scmp.ne.s32.totalorder %s148, %s149
    %p160 = scmp.eq.s32.totalorder %s36, 0
    %p161 = por %p159, %p160
    %p162 = scmp.ne.s32.totalorder %s148, %s149
    %p163 = scmp.eq.s32.totalorder %s37, 1
    %p164 = por %p162, %p163
    %p166 = scmp.ne.s32.totalorder %s149, %s165
    %p167 = scmp.eq.s32.totalorder %s37, 0
    %p168 = por %p166, %p167
    %s169 = ssub.s32 %s31, %s38
    %p170 = scmp.eq.s32.totalorder %s169, 0
    %s172 = sadd.s32 %s171, 1
    %s173 = scalar_select %p170, %s171, %s172
    %p176 = pneg %p170
    %p177 = scmp.eq.s32.totalorder %s31, 1
    %p178 = por %p176, %p177
    %p179 = scmp.ne.s32.totalorder %s171, %s174
    %p180 = scmp.eq.s32.totalorder %s31, 0
    %p181 = por %p179, %p180
    %p182 = scmp.ne.s32.totalorder %s171, %s174
    %p183 = scmp.eq.s32.totalorder %s36, 1
    %p184 = por %p182, %p183
    %p185 = scmp.ne.s32.totalorder %s174, %s175
    %p186 = scmp.eq.s32.totalorder %s36, 0
    %p187 = por %p185, %p186
    %p188 = scmp.ne.s32.totalorder %s174, %s175
    %p189 = scmp.eq.s32.totalorder %s37, 1
    %p190 = por %p188, %p189
    %p192 = scmp.ne.s32.totalorder %s175, %s191
    %p193 = scmp.eq.s32.totalorder %s37, 0
    %p194 = por %p192, %p193
    %s195 = ssub.s32 %s31, %s38
    %p196 = scmp.eq.s32.totalorder %s195, 0
    %s198 = sadd.s32 %s197, 1
    %s199 = scalar_select %p196, %s197, %s198
    %p202 = pneg %p196
    %p203 = scmp.eq.s32.totalorder %s31, 1
    %p204 = por %p202, %p203
    %p205 = scmp.ne.s32.totalorder %s197, %s200
    %p206 = scmp.eq.s32.totalorder %s31, 0
    %p207 = por %p205, %p206
    %p208 = scmp.ne.s32.totalorder %s197, %s200
    %p209 = scmp.eq.s32.totalorder %s36, 1
    %p210 = por %p208, %p209
    %p211 = scmp.ne.s32.totalorder %s200, %s201
    %p212 = scmp.eq.s32.totalorder %s36, 0
    %p213 = por %p211, %p212
    %p214 = scmp.ne.s32.totalorder %s200, %s201
    %p215 = scmp.eq.s32.totalorder %s37, 1
    %p216 = por %p214, %p215
    %p218 = scmp.ne.s32.totalorder %s201, %s217
    %p219 = scmp.eq.s32.totalorder %s37, 0
    %p220 = por %p218, %p219
    %s222 = sadd.s32 %s221, 1
    %p225 = scmp.eq.s32.totalorder %s31, 1
    %p226 = scmp.ne.s32.totalorder %s221, %s223
    %p227 = scmp.eq.s32.totalorder %s31, 0
    %p228 = por %p226, %p227
    %p229 = scmp.ne.s32.totalorder %s221, %s223
    %p230 = scmp.eq.s32.totalorder %s36, 1
    %p231 = por %p229, %p230
    %p232 = scmp.ne.s32.totalorder %s223, %s224
    %p233 = scmp.eq.s32.totalorder %s36, 0
    %p234 = por %p232, %p233
    %p235 = scmp.ne.s32.totalorder %s223, %s224
    %p236 = scmp.eq.s32.totalorder %s37, 1
    %p237 = por %p235, %p236
    %p239 = scmp.ne.s32.totalorder %s224, %s238
    %p240 = scmp.eq.s32.totalorder %s37, 0
    %p241 = por %p239, %p240
    %s243 = sadd.s32 %s242, 1
    %p246 = scmp.eq.s32.totalorder %s31, 1
    %p247 = scmp.ne.s32.totalorder %s242, %s244
    %p248 = scmp.eq.s32.totalorder %s31, 0
    %p249 = por %p247, %p248
    %p250 = scmp.ne.s32.totalorder %s242, %s244
    %p251 = scmp.eq.s32.totalorder %s36, 1
    %p252 = por %p250, %p251
    %p253 = scmp.ne.s32.totalorder %s244, %s245
    %p254 = scmp.eq.s32.totalorder %s36, 0
    %p255 = por %p253, %p254
    %p256 = scmp.ne.s32.totalorder %s244, %s245
    %p257 = scmp.eq.s32.totalorder %s37, 1
    %p258 = por %p256, %p257
    %p260 = scmp.ne.s32.totalorder %s245, %s259
    %p261 = scmp.eq.s32.totalorder %s37, 0
    %p262 = por %p260, %p261
    %s264 = sadd.s32 %s263, 1
    %p267 = scmp.eq.s32.totalorder %s31, 1
    %p268 = scmp.ne.s32.totalorder %s263, %s265
    %p269 = scmp.eq.s32.totalorder %s31, 0
    %p270 = por %p268, %p269
    %p271 = scmp.ne.s32.totalorder %s263, %s265
    %p272 = scmp.eq.s32.totalorder %s36, 1
    %p273 = por %p271, %p272
    %p274 = scmp.ne.s32.totalorder %s265, %s266
    %p275 = scmp.eq.s32.totalorder %s36, 0
    %p276 = por %p274, %p275
    %p277 = scmp.ne.s32.totalorder %s265, %s266
    %p278 = scmp.eq.s32.totalorder %s37, 1
    %p279 = por %p277, %p278
    %p281 = scmp.ne.s32.totalorder %s266, %s280
    %p282 = scmp.eq.s32.totalorder %s37, 0
    %p283 = por %p281, %p282
    %s285 = sadd.s32 %s284, 1
    %p288 = scmp.eq.s32.totalorder %s31, 1
    %p289 = scmp.ne.s32.totalorder %s284, %s286
    %p290 = scmp.eq.s32.totalorder %s31, 0
    %p291 = por %p289, %p290
    %p292 = scmp.ne.s32.totalorder %s284, %s286
    %p293 = scmp.eq.s32.totalorder %s36, 1
    %p294 = por %p292, %p293
    %p295 = scmp.ne.s32.totalorder %s286, %s287
    %p296 = scmp.eq.s32.totalorder %s36, 0
    %p297 = por %p295, %p296
    %p298 = scmp.ne.s32.totalorder %s286, %s287
    %p299 = scmp.eq.s32.totalorder %s37, 1
    %p300 = por %p298, %p299
    %p302 = scmp.ne.s32.totalorder %s287, %s301
    %p303 = scmp.eq.s32.totalorder %s37, 0
    %p304 = por %p302, %p303
    %s306 = sadd.s32 %s305, 1
    %p309 = scmp.eq.s32.totalorder %s31, 1
    %p310 = scmp.ne.s32.totalorder %s305, %s307
    %p311 = scmp.eq.s32.totalorder %s31, 0
    %p312 = por %p310, %p311
    %p313 = scmp.ne.s32.totalorder %s305, %s307
    %p314 = scmp.eq.s32.totalorder %s36, 1
    %p315 = por %p313, %p314
    %p316 = scmp.ne.s32.totalorder %s307, %s308
    %p317 = scmp.eq.s32.totalorder %s36, 0
    %p318 = por %p316, %p317
    %p319 = scmp.ne.s32.totalorder %s307, %s308
    %p320 = scmp.eq.s32.totalorder %s37, 1
    %p321 = por %p319, %p320
    %p323 = scmp.ne.s32.totalorder %s308, %s322
    %p324 = scmp.eq.s32.totalorder %s37, 0
    %p325 = por %p323, %p324
    %s327 = sadd.s32 %s326, 1
    %p330 = scmp.eq.s32.totalorder %s31, 1
    %p331 = scmp.ne.s32.totalorder %s326, %s328
    %p332 = scmp.eq.s32.totalorder %s31, 0
    %p333 = por %p331, %p332
    %p334 = scmp.ne.s32.totalorder %s326, %s328
    %p335 = scmp.eq.s32.totalorder %s36, 1
    %p336 = por %p334, %p335
    %p337 = scmp.ne.s32.totalorder %s328, %s329
    %p338 = scmp.eq.s32.totalorder %s36, 0
    %p339 = por %p337, %p338
    %p340 = scmp.ne.s32.totalorder %s328, %s329
    %p341 = scmp.eq.s32.totalorder %s37, 1
    %p342 = por %p340, %p341
    %p344 = scmp.ne.s32.totalorder %s329, %s343
    %p345 = scmp.eq.s32.totalorder %s37, 0
    %p346 = por %p344, %p345
    %s348 = sadd.s32 %s347, 1
    %p351 = scmp.eq.s32.totalorder %s31, 1
    %p352 = scmp.ne.s32.totalorder %s347, %s349
    %p353 = scmp.eq.s32.totalorder %s31, 0
    %p354 = por %p352, %p353
    %p355 = scmp.ne.s32.totalorder %s347, %s349
    %p356 = scmp.eq.s32.totalorder %s36, 1
    %p357 = por %p355, %p356
    %p358 = scmp.ne.s32.totalorder %s349, %s350
    %p359 = scmp.eq.s32.totalorder %s36, 0
    %p360 = por %p358, %p359
    %p361 = scmp.ne.s32.totalorder %s349, %s350
    %p362 = scmp.eq.s32.totalorder %s37, 1
    %p363 = por %p361, %p362
    %p365 = scmp.ne.s32.totalorder %s350, %s364
    %p366 = scmp.eq.s32.totalorder %s37, 0
    %p367 = por %p365, %p366
    %s369 = sadd.s32 %s368, 1
    %p372 = scmp.eq.s32.totalorder %s31, 1
    %p373 = scmp.ne.s32.totalorder %s368, %s370
    %p374 = scmp.eq.s32.totalorder %s31, 0
    %p375 = por %p373, %p374
    %p376 = scmp.ne.s32.totalorder %s368, %s370
    %p377 = scmp.eq.s32.totalorder %s36, 1
    %p378 = por %p376, %p377
    %p379 = scmp.ne.s32.totalorder %s370, %s371
    %p380 = scmp.eq.s32.totalorder %s36, 0
    %p381 = por %p379, %p380
    %p382 = scmp.ne.s32.totalorder %s370, %s371
    %p383 = scmp.eq.s32.totalorder %s37, 1
    %p384 = por %p382, %p383
    %p386 = scmp.ne.s32.totalorder %s371, %s385
    %p387 = scmp.eq.s32.totalorder %s37, 0
    %p388 = por %p386, %p387
    %s390 = sadd.s32 %s389, 1
    %p393 = scmp.eq.s32.totalorder %s31, 1
    %p394 = scmp.ne.s32.totalorder %s389, %s391
    %p395 = scmp.eq.s32.totalorder %s31, 0
    %p396 = por %p394, %p395
    %p397 = scmp.ne.s32.totalorder %s389, %s391
    %p398 = scmp.eq.s32.totalorder %s36, 1
    %p399 = por %p397, %p398
    %p400 = scmp.ne.s32.totalorder %s391, %s392
    %p401 = scmp.eq.s32.totalorder %s36, 0
    %p402 = por %p400, %p401
    %p403 = scmp.ne.s32.totalorder %s391, %s392
    %p404 = scmp.eq.s32.totalorder %s37, 1
    %p405 = por %p403, %p404
    %p407 = scmp.ne.s32.totalorder %s392, %s406
    %p408 = scmp.eq.s32.totalorder %s37, 0
    %p409 = por %p407, %p408
    %s411 = sadd.s32 %s410, 1
    %p414 = scmp.eq.s32.totalorder %s31, 1
    %p415 = scmp.ne.s32.totalorder %s410, %s412
    %p416 = scmp.eq.s32.totalorder %s31, 0
    %p417 = por %p415, %p416
    %p418 = scmp.ne.s32.totalorder %s410, %s412
    %p419 = scmp.eq.s32.totalorder %s36, 1
    %p420 = por %p418, %p419
    %p421 = scmp.ne.s32.totalorder %s412, %s413
    %p422 = scmp.eq.s32.totalorder %s36, 0
    %p423 = por %p421, %p422
    %p424 = scmp.ne.s32.totalorder %s412, %s413
    %p425 = scmp.eq.s32.totalorder %s37, 1
    %p426 = por %p424, %p425
    %p428 = scmp.ne.s32.totalorder %s413, %s427
    %p429 = scmp.eq.s32.totalorder %s37, 0
    %p430 = por %p428, %p429
    %s432 = sadd.s32 %s431, 1
    %p435 = scmp.eq.s32.totalorder %s31, 1
    %p436 = scmp.ne.s32.totalorder %s431, %s433
    %p437 = scmp.eq.s32.totalorder %s31, 0
    %p438 = por %p436, %p437
    %p439 = scmp.ne.s32.totalorder %s431, %s433
    %p440 = scmp.eq.s32.totalorder %s36, 1
    %p441 = por %p439, %p440
    %p442 = scmp.ne.s32.totalorder %s433, %s434
    %p443 = scmp.eq.s32.totalorder %s36, 0
    %p444 = por %p442, %p443
    %p445 = scmp.ne.s32.totalorder %s433, %s434
    %p446 = scmp.eq.s32.totalorder %s37, 1
    %p447 = por %p445, %p446
    %p449 = scmp.ne.s32.totalorder %s434, %s448
    %p450 = scmp.eq.s32.totalorder %s37, 0
    %p451 = por %p449, %p450
    %s453 = sadd.s32 %s452, 1
    %p456 = scmp.eq.s32.totalorder %s31, 1
    %p457 = scmp.ne.s32.totalorder %s452, %s454
    %p458 = scmp.eq.s32.totalorder %s31, 0
    %p459 = por %p457, %p458
    %p460 = scmp.ne.s32.totalorder %s452, %s454
    %p461 = scmp.eq.s32.totalorder %s36, 1
    %p462 = por %p460, %p461
    %p463 = scmp.ne.s32.totalorder %s454, %s455
    %p464 = scmp.eq.s32.totalorder %s36, 0
    %p465 = por %p463, %p464
    %p466 = scmp.ne.s32.totalorder %s454, %s455
    %p467 = scmp.eq.s32.totalorder %s37, 1
    %p468 = por %p466, %p467
    %p470 = scmp.ne.s32.totalorder %s455, %s469
    %p471 = scmp.eq.s32.totalorder %s37, 0
    %p472 = por %p470, %p471
    %s474 = sadd.s32 %s473, 1
    %p477 = scmp.eq.s32.totalorder %s31, 1
    %p478 = scmp.ne.s32.totalorder %s473, %s475
    %p479 = scmp.eq.s32.totalorder %s31, 0
    %p480 = por %p478, %p479
    %p481 = scmp.ne.s32.totalorder %s473, %s475
    %p482 = scmp.eq.s32.totalorder %s36, 1
    %p483 = por %p481, %p482
    %p484 = scmp.ne.s32.totalorder %s475, %s476
    %p485 = scmp.eq.s32.totalorder %s36, 0
    %p486 = por %p484, %p485
    %p487 = scmp.ne.s32.totalorder %s475, %s476
    %p488 = scmp.eq.s32.totalorder %s37, 1
    %p489 = por %p487, %p488
    %p491 = scmp.ne.s32.totalorder %s476, %s490
    %p492 = scmp.eq.s32.totalorder %s37, 0
    %p493 = por %p491, %p492
    %s495 = sadd.s32 %s494, 1
    %p498 = scmp.eq.s32.totalorder %s31, 1
    %p499 = scmp.ne.s32.totalorder %s494, %s496
    %p500 = scmp.eq.s32.totalorder %s31, 0
    %p501 = por %p499, %p500
    %p502 = scmp.ne.s32.totalorder %s494, %s496
    %p503 = scmp.eq.s32.totalorder %s36, 1
    %p504 = por %p502, %p503
    %p505 = scmp.ne.s32.totalorder %s496, %s497
    %p506 = scmp.eq.s32.totalorder %s36, 0
    %p507 = por %p505, %p506
    %p508 = scmp.ne.s32.totalorder %s496, %s497
    %p509 = scmp.eq.s32.totalorder %s37, 1
    %p510 = por %p508, %p509
    %p512 = scmp.ne.s32.totalorder %s497, %s511
    %p513 = scmp.eq.s32.totalorder %s37, 0
    %p514 = por %p512, %p513
    %s516 = sadd.s32 %s515, 1
    %p519 = scmp.eq.s32.totalorder %s31, 1
    %p520 = scmp.ne.s32.totalorder %s515, %s517
    %p521 = scmp.eq.s32.totalorder %s31, 0
    %p522 = por %p520, %p521
    %p523 = scmp.ne.s32.totalorder %s515, %s517
    %p524 = scmp.eq.s32.totalorder %s36, 1
    %p525 = por %p523, %p524
    %p526 = scmp.ne.s32.totalorder %s517, %s518
    %p527 = scmp.eq.s32.totalorder %s36, 0
    %p528 = por %p526, %p527
    %p529 = scmp.ne.s32.totalorder %s517, %s518
    %p530 = scmp.eq.s32.totalorder %s37, 1
    %p531 = por %p529, %p530
    %p533 = scmp.ne.s32.totalorder %s518, %s532
    %p534 = scmp.eq.s32.totalorder %s37, 0
    %p535 = por %p533, %p534
    %s537 = sadd.s32 %s536, 1
    %p540 = scmp.eq.s32.totalorder %s31, 1
    %p541 = scmp.ne.s32.totalorder %s536, %s538
    %p542 = scmp.eq.s32.totalorder %s31, 0
    %p543 = por %p541, %p542
    %p544 = scmp.ne.s32.totalorder %s536, %s538
    %p545 = scmp.eq.s32.totalorder %s36, 1
    %p546 = por %p544, %p545
    %p547 = scmp.ne.s32.totalorder %s538, %s539
    %p548 = scmp.eq.s32.totalorder %s36, 0
    %p549 = por %p547, %p548
    %p550 = scmp.ne.s32.totalorder %s538, %s539
    %p551 = scmp.eq.s32.totalorder %s37, 1
    %p552 = por %p550, %p551
    %p554 = scmp.ne.s32.totalorder %s539, %s553
    %p555 = scmp.eq.s32.totalorder %s37, 0
    %p556 = por %p554, %p555
    %s557 = ssub.s32 %s31, %s38
    %p558 = scmp.eq.s32.totalorder %s557, 0
    %s560 = sadd.s32 %s559, 1
    %s561 = scalar_select %p558, %s559, %s560
    %p564 = pneg %p558
    %p565 = scmp.eq.s32.totalorder %s31, 1
    %p566 = por %p564, %p565
    %p567 = scmp.ne.s32.totalorder %s559, %s562
    %p568 = scmp.eq.s32.totalorder %s31, 0
    %p569 = por %p567, %p568
    %p570 = scmp.ne.s32.totalorder %s559, %s562
    %p571 = scmp.eq.s32.totalorder %s36, 1
    %p572 = por %p570, %p571
    %p573 = scmp.ne.s32.totalorder %s562, %s563
    %p574 = scmp.eq.s32.totalorder %s36, 0
    %p575 = por %p573, %p574
    %p576 = scmp.ne.s32.totalorder %s562, %s563
    %p577 = scmp.eq.s32.totalorder %s37, 1
    %p578 = por %p576, %p577
    %p580 = scmp.ne.s32.totalorder %s563, %s579
    %p581 = scmp.eq.s32.totalorder %s37, 0
    %p582 = por %p580, %p581
    %s583 = ssub.s32 %s31, %s38
    %p584 = scmp.eq.s32.totalorder %s583, 0
    %s586 = sadd.s32 %s585, 1
    %s587 = scalar_select %p584, %s585, %s586
    %p590 = pneg %p584
    %p591 = scmp.eq.s32.totalorder %s31, 1
    %p592 = por %p590, %p591
    %p593 = scmp.ne.s32.totalorder %s585, %s588
    %p594 = scmp.eq.s32.totalorder %s31, 0
    %p595 = por %p593, %p594
    %p596 = scmp.ne.s32.totalorder %s585, %s588
    %p597 = scmp.eq.s32.totalorder %s36, 1
    %p598 = por %p596, %p597
    %p599 = scmp.ne.s32.totalorder %s588, %s589
    %p600 = scmp.eq.s32.totalorder %s36, 0
    %p601 = por %p599, %p600
    %p602 = scmp.ne.s32.totalorder %s588, %s589
    %p603 = scmp.eq.s32.totalorder %s37, 1
    %p604 = por %p602, %p603
    %p606 = scmp.ne.s32.totalorder %s589, %s605
    %p607 = scmp.eq.s32.totalorder %s37, 0
    %p608 = por %p606, %p607
    %p609 = scmp.le.s32.totalorder 1, %s31
    %p610 = scmp.lt.s32.totalorder %s31, 3
    %p611 = pnand %p609, %p610
    %p612 = pneg %p611
    // Predicated region
    $region9: #{predict_model_forward.12} parent=5 // pred_check
      _
    $region10: #{predict_model_forward.12} parent=5 // pred_check_branch
      %614 = sbr.rel (%p611) target = $region12
    $region11: #{predict_model_forward.12} parent=5 // pred_region
      %s615 = ssub.s32 %s31, 1
      // Predicated region
      $region13: #{predict_model_forward.12} parent=11 // pred_check
        %p616 = pneg %p234
      $region14: #{predict_model_forward.12} parent=11 // pred_check_branch
        %618 = sbr.rel (%p616) target = $region16
      $region15: #{predict_model_forward.12} parent=11 // pred_region
        _
      $region16: #{predict_model_forward.12} parent=11 // pred_fallthru
        _
      // Predicated region
      $region17: #{predict_model_forward.12} parent=11 // pred_check
        %p619 = pneg %p255
      $region18: #{predict_model_forward.12} parent=11 // pred_check_branch
        %621 = sbr.rel (%p619) target = $region20
      $region19: #{predict_model_forward.12} parent=11 // pred_region
        _
      $region20: #{predict_model_forward.12} parent=11 // pred_fallthru
        _
      // Predicated region
      $region21: #{predict_model_forward.12} parent=11 // pred_check
        %p622 = pneg %p276
      $region22: #{predict_model_forward.12} parent=11 // pred_check_branch
        %624 = sbr.rel (%p622) target = $region24
      $region23: #{predict_model_forward.12} parent=11 // pred_region
        _
      $region24: #{predict_model_forward.12} parent=11 // pred_fallthru
        _
      // Predicated region
      $region25: #{predict_model_forward.12} parent=11 // pred_check
        %p625 = pneg %p297
      $region26: #{predict_model_forward.12} parent=11 // pred_check_branch
        %627 = sbr.rel (%p625) target = $region28
      $region27: #{predict_model_forward.12} parent=11 // pred_region
        _
      $region28: #{predict_model_forward.12} parent=11 // pred_fallthru
        _
      // Predicated region
      $region29: #{predict_model_forward.12} parent=11 // pred_check
        %p628 = pneg %p318
      $region30: #{predict_model_forward.12} parent=11 // pred_check_branch
        %630 = sbr.rel (%p628) target = $region32
      $region31: #{predict_model_forward.12} parent=11 // pred_region
        _
      $region32: #{predict_model_forward.12} parent=11 // pred_fallthru
        _
      // Predicated region
      $region33: #{predict_model_forward.12} parent=11 // pred_check
        %p631 = pneg %p339
      $region34: #{predict_model_forward.12} parent=11 // pred_check_branch
        %633 = sbr.rel (%p631) target = $region36
      $region35: #{predict_model_forward.12} parent=11 // pred_region
        _
      $region36: #{predict_model_forward.12} parent=11 // pred_fallthru
        _
      // Predicated region
      $region37: #{predict_model_forward.12} parent=11 // pred_check
        %p634 = pneg %p360
      $region38: #{predict_model_forward.12} parent=11 // pred_check_branch
        %636 = sbr.rel (%p634) target = $region40
      $region39: #{predict_model_forward.12} parent=11 // pred_region
        _
      $region40: #{predict_model_forward.12} parent=11 // pred_fallthru
        _
      // Predicated region
      $region41: #{predict_model_forward.12} parent=11 // pred_check
        %p637 = pneg %p381
      $region42: #{predict_model_forward.12} parent=11 // pred_check_branch
        %639 = sbr.rel (%p637) target = $region44
      $region43: #{predict_model_forward.12} parent=11 // pred_region
        _
      $region44: #{predict_model_forward.12} parent=11 // pred_fallthru
        _
      // Predicated region
      $region45: #{predict_model_forward.12} parent=11 // pred_check
        %p640 = pneg %p402
      $region46: #{predict_model_forward.12} parent=11 // pred_check_branch
        %642 = sbr.rel (%p640) target = $region48
      $region47: #{predict_model_forward.12} parent=11 // pred_region
        _
      $region48: #{predict_model_forward.12} parent=11 // pred_fallthru
        _
      // Predicated region
      $region49: #{predict_model_forward.12} parent=11 // pred_check
        %p643 = pneg %p423
      $region50: #{predict_model_forward.12} parent=11 // pred_check_branch
        %645 = sbr.rel (%p643) target = $region52
      $region51: #{predict_model_forward.12} parent=11 // pred_region
        _
      $region52: #{predict_model_forward.12} parent=11 // pred_fallthru
        _
      // Predicated region
      $region53: #{predict_model_forward.12} parent=11 // pred_check
        %p646 = pneg %p444
      $region54: #{predict_model_forward.12} parent=11 // pred_check_branch
        %648 = sbr.rel (%p646) target = $region56
      $region55: #{predict_model_forward.12} parent=11 // pred_region
        _
      $region56: #{predict_model_forward.12} parent=11 // pred_fallthru
        _
      // Predicated region
      $region57: #{predict_model_forward.12} parent=11 // pred_check
        %p649 = pneg %p465
      $region58: #{predict_model_forward.12} parent=11 // pred_check_branch
        %651 = sbr.rel (%p649) target = $region60
      $region59: #{predict_model_forward.12} parent=11 // pred_region
        _
      $region60: #{predict_model_forward.12} parent=11 // pred_fallthru
        _
      // Predicated region
      $region61: #{predict_model_forward.12} parent=11 // pred_check
        %p652 = pneg %p486
      $region62: #{predict_model_forward.12} parent=11 // pred_check_branch
        %654 = sbr.rel (%p652) target = $region64
      $region63: #{predict_model_forward.12} parent=11 // pred_region
        _
      $region64: #{predict_model_forward.12} parent=11 // pred_fallthru
        _
      // Predicated region
      $region65: #{predict_model_forward.12} parent=11 // pred_check
        %p655 = pneg %p507
      $region66: #{predict_model_forward.12} parent=11 // pred_check_branch
        %657 = sbr.rel (%p655) target = $region68
      $region67: #{predict_model_forward.12} parent=11 // pred_region
        _
      $region68: #{predict_model_forward.12} parent=11 // pred_fallthru
        _
      // Predicated region
      $region69: #{predict_model_forward.12} parent=11 // pred_check
        %p658 = pneg %p528
      $region70: #{predict_model_forward.12} parent=11 // pred_check_branch
        %660 = sbr.rel (%p658) target = $region72
      $region71: #{predict_model_forward.12} parent=11 // pred_region
        _
      $region72: #{predict_model_forward.12} parent=11 // pred_fallthru
        _
      // Predicated region
      $region73: #{predict_model_forward.12} parent=11 // pred_check
        %p661 = pneg %p549
      $region74: #{predict_model_forward.12} parent=11 // pred_check_branch
        %663 = sbr.rel (%p661) target = $region76
      $region75: #{predict_model_forward.12} parent=11 // pred_region
        _
      $region76: #{predict_model_forward.12} parent=11 // pred_fallthru
        _
    $region12: #{predict_model_forward.12} parent=5 // pred_fallthru
      _
    %p664 = scmp.lt.s32.totalorder %s31, 2
    // Predicated region
    $region77: #{predict_model_forward.12} parent=5 // pred_check
      %p665 = pneg %p664
    $region78: #{predict_model_forward.12} parent=5 // pred_check_branch
      %667 = sbr.rel (%p665) target = $region80
    $region79: #{predict_model_forward.12} parent=5 // pred_region
      // Predicated region
      $region81: #{predict_model_forward.12} parent=79 // pred_check
        %p668 = pneg %p51
      $region82: #{predict_model_forward.12} parent=79 // pred_check_branch
        %670 = sbr.rel (%p668) target = $region84
      $region83: #{predict_model_forward.12} parent=79 // pred_region
        %p671 = scmp.lt.s32.totalorder %s31, 1
        %s672 = scalar_select %p671, %s31, 1
        %s673 = smul.addr %s672, 8
        %s674 = scalar_lea.vmem %s0, %s673
      $region84: #{predict_model_forward.12} parent=79 // pred_fallthru
        _
      // Predicated region
      $region85: #{predict_model_forward.12} parent=79 // pred_check
        %p675 = pneg %p77
      $region86: #{predict_model_forward.12} parent=79 // pred_check_branch
        %677 = sbr.rel (%p675) target = $region88
      $region87: #{predict_model_forward.12} parent=79 // pred_region
        %p678 = scmp.lt.s32.totalorder %s31, 1
        %s679 = scalar_select %p678, %s31, 1
        %s680 = scalar_lea.vmem %s1, %s679
      $region88: #{predict_model_forward.12} parent=79 // pred_fallthru
        _
      // Predicated region
      $region89: #{predict_model_forward.12} parent=79 // pred_check
        %p681 = pneg %p103
      $region90: #{predict_model_forward.12} parent=79 // pred_check_branch
        %683 = sbr.rel (%p681) target = $region92
      $region91: #{predict_model_forward.12} parent=79 // pred_region
        %p684 = scmp.lt.s32.totalorder %s31, 1
        %s685 = scalar_select %p684, %s31, 1
        %s686 = smul.addr %s685, 8
        %s687 = scalar_lea.vmem %s2, %s686
      $region92: #{predict_model_forward.12} parent=79 // pred_fallthru
        _
      // Predicated region
      $region93: #{predict_model_forward.12} parent=79 // pred_check
        %p688 = pneg %p129
      $region94: #{predict_model_forward.12} parent=79 // pred_check_branch
        %690 = sbr.rel (%p688) target = $region96
      $region95: #{predict_model_forward.12} parent=79 // pred_region
        %p691 = scmp.lt.s32.totalorder %s31, 1
        %s692 = scalar_select %p691, %s31, 1
        %s693 = smul.addr %s692, 4
        %s694 = scalar_lea.vmem %s3, %s693
      $region96: #{predict_model_forward.12} parent=79 // pred_fallthru
        _
      // Predicated region
      $region97: #{predict_model_forward.12} parent=79 // pred_check
        %p695 = pneg %p155
      $region98: #{predict_model_forward.12} parent=79 // pred_check_branch
        %697 = sbr.rel (%p695) target = $region100
      $region99: #{predict_model_forward.12} parent=79 // pred_region
        %p698 = scmp.lt.s32.totalorder %s31, 1
        %s699 = scalar_select %p698, %s31, 1
        %s700 = smul.addr %s699, 4
        %s701 = scalar_lea.vmem %s4, %s700
      $region100: #{predict_model_forward.12} parent=79 // pred_fallthru
        _
      // Predicated region
      $region101: #{predict_model_forward.12} parent=79 // pred_check
        %p702 = pneg %p181
      $region102: #{predict_model_forward.12} parent=79 // pred_check_branch
        %704 = sbr.rel (%p702) target = $region104
      $region103: #{predict_model_forward.12} parent=79 // pred_region
        %p705 = scmp.lt.s32.totalorder %s31, 1
        %s706 = scalar_select %p705, %s31, 1
        %s707 = smul.addr %s706, 4
        %s708 = scalar_lea.vmem %s5, %s707
      $region104: #{predict_model_forward.12} parent=79 // pred_fallthru
        _
      // Predicated region
      $region105: #{predict_model_forward.12} parent=79 // pred_check
        %p709 = pneg %p207
      $region106: #{predict_model_forward.12} parent=79 // pred_check_branch
        %711 = sbr.rel (%p709) target = $region108
      $region107: #{predict_model_forward.12} parent=79 // pred_region
        %p712 = scmp.lt.s32.totalorder %s31, 1
        %s713 = scalar_select %p712, %s31, 1
        %s714 = smul.addr %s713, 2
        %s715 = scalar_lea.vmem %s6, %s714
      $region108: #{predict_model_forward.12} parent=79 // pred_fallthru
        _
    $region80: #{predict_model_forward.12} parent=5 // pred_fallthru
      _
    %p716 = scmp.le.s32.totalorder 1, %s31
    %p717 = scmp.lt.s32.totalorder %s31, 3
    %p718 = pnand %p716, %p717
    %p719 = pneg %p718
    // Predicated region
    $region109: #{predict_model_forward.12} parent=5 // pred_check
      _
    $region110: #{predict_model_forward.12} parent=5 // pred_check_branch
      %721 = sbr.rel (%p718) target = $region112
    $region111: #{predict_model_forward.12} parent=5 // pred_region
      %s722 = ssub.s32 %s31, 1
      %p723 = scmp.lt.s32.totalorder %s36, 1
      %s724 = scalar_select %p723, %s36, 1
      %s725 = smul.addr %s724, 8
      %s726 = scalar_lea.vmem %s0, %s725
      %p727 = pneg %p57
      %p728 = pneg %p54
      %p729 = scmp.lt.s32.totalorder %s36, 1
      %s730 = scalar_select %p729, %s36, 1
      %s731 = scalar_lea.vmem %s1, %s730
      %p732 = pneg %p83
      %p733 = pneg %p80
      %p734 = scmp.lt.s32.totalorder %s36, 1
      %s735 = scalar_select %p734, %s36, 1
      %s736 = smul.addr %s735, 8
      %s737 = scalar_lea.vmem %s2, %s736
      %p738 = pneg %p109
      %p739 = pneg %p106
      %p740 = scmp.lt.s32.totalorder %s36, 1
      %s741 = scalar_select %p740, %s36, 1
      %s742 = smul.addr %s741, 4
      %s743 = scalar_lea.vmem %s3, %s742
      %p744 = pneg %p135
      %p745 = pneg %p132
      %p746 = scmp.lt.s32.totalorder %s36, 1
      %s747 = scalar_select %p746, %s36, 1
      %s748 = smul.addr %s747, 4
      %s749 = scalar_lea.vmem %s4, %s748
      %p750 = pneg %p161
      %p751 = pneg %p158
      %p752 = scmp.lt.s32.totalorder %s36, 1
      %s753 = scalar_select %p752, %s36, 1
      %s754 = smul.addr %s753, 4
      %s755 = scalar_lea.vmem %s5, %s754
      %p756 = pneg %p187
      %p757 = pneg %p184
      %p758 = scmp.lt.s32.totalorder %s36, 1
      %s759 = scalar_select %p758, %s36, 1
      %s760 = smul.addr %s759, 2
      %s761 = scalar_lea.vmem %s6, %s760
      %p762 = pneg %p213
      %p763 = pneg %p210
      %p764 = pneg %p234
      %p765 = pneg %p231
      %p766 = pneg %p255
      %p767 = pneg %p252
      %p768 = pneg %p276
      %p769 = pneg %p273
      %p770 = pneg %p297
      %p771 = pneg %p294
      %p772 = pneg %p318
      %p773 = pneg %p315
      %p774 = pneg %p339
      %p775 = pneg %p336
      %p776 = pneg %p360
      %p777 = pneg %p357
      %p778 = pneg %p381
      %p779 = pneg %p378
      %p780 = pneg %p402
      %p781 = pneg %p399
      %p782 = pneg %p423
      %p783 = pneg %p420
      %p784 = pneg %p444
      %p785 = pneg %p441
      %p786 = pneg %p465
      %p787 = pneg %p462
      %p788 = pneg %p486
      %p789 = pneg %p483
      %p790 = pneg %p507
      %p791 = pneg %p504
      %p792 = pneg %p528
      %p793 = pneg %p525
      %p794 = pneg %p549
      %p795 = pneg %p546
      %p796 = pneg %p575
      %p797 = pneg %p572
      %p798 = scmp.lt.s32.totalorder %s36, 1
      %s799 = scalar_select %p798, %s36, 1
      %s800 = smul.addr %s799, 8
      %s801 = scalar_lea.vmem %s23, %s800
      %p802 = pneg %p601
      %p803 = pneg %p598
      %p804 = scmp.lt.s32.totalorder %s36, 1
      %s805 = scalar_select %p804, %s36, 1
      %s806 = smul.addr %s805, 4
      %s807 = scalar_lea.vmem %s24, %s806
      %p808 = scmp.lt.s32.totalorder %s36, 1
      %s809 = scalar_select %p808, %s36, 1
      %s810 = smul.addr %s809, 8
      %s811 = scalar_lea.vmem %s0, %s810
      %p812 = scmp.lt.s32.totalorder %s36, 1
      %s813 = scalar_select %p812, %s36, 1
      %s814 = scalar_lea.vmem %s1, %s813
      %p815 = scmp.lt.s32.totalorder %s36, 1
      %s816 = scalar_select %p815, %s36, 1
      %s817 = smul.addr %s816, 8
      %s818 = scalar_lea.vmem %s2, %s817
      %p819 = scmp.lt.s32.totalorder %s36, 1
      %s820 = scalar_select %p819, %s36, 1
      %s821 = smul.addr %s820, 4
      %s822 = scalar_lea.vmem %s3, %s821
      %p823 = scmp.lt.s32.totalorder %s36, 1
      %s824 = scalar_select %p823, %s36, 1
      %s825 = smul.addr %s824, 4
      %s826 = scalar_lea.vmem %s4, %s825
      %p827 = scmp.lt.s32.totalorder %s36, 1
      %s828 = scalar_select %p827, %s36, 1
      %s829 = smul.addr %s828, 4
      %s830 = scalar_lea.vmem %s5, %s829
      %p831 = scmp.lt.s32.totalorder %s36, 1
      %s832 = scalar_select %p831, %s36, 1
      %s833 = smul.addr %s832, 2
      %s834 = scalar_lea.vmem %s6, %s833
      %p835 = scmp.lt.s32.totalorder %s36, 1
      %s836 = scalar_select %p835, %s36, 1
      %s837 = smul.addr %s836, 8
      %s838 = scalar_lea.vmem %s23, %s837
      %p839 = scmp.lt.s32.totalorder %s36, 1
      %s840 = scalar_select %p839, %s36, 1
      %s841 = smul.addr %s840, 4
      %s842 = scalar_lea.vmem %s24, %s841
      %v844 = vld [vmem:[%s811] sm:$0xff]
      %v845 = vld [vmem:[%s814] sm:$0x1]
      %v846 = vld [vmem:[%s818] sm:$0xff]
      %v847 = vld [vmem:[%s822] sm:$0x7]
      %v848 = vld [vmem:[%s7] sm:$0xf]
      %v849 = vld [vmem:[%s7 + $0x4] sm:$0xf]
      %v850 = vld [vmem:[%s7 + $0x8] sm:$0xf]
      %v851 = vld [vmem:[%s7 + $0xc] sm:$0xf]
      %v852 = vpack.c.bf16 %v845, %v845
      %v853 = vld [vmem:[%s8] sm:$0x1]
      %v858 = vunpack.c.l.b16 %v848
      %v859 = vunpack.c.l.b16 %v849
      %v860 = vunpack.c.l.b16 %v850
      %v861 = vunpack.c.l.b16 %v851
      %v862 = vpack.c.b16 %v859, %v858
      %v863 = vpack.c.b16 %v861, %v860
      %vm866 = vcmask 261120
      %v868 = vsel %vm866, %v852, 0
      %870 = vmatprep.subr.bf16.mxu0 0
      %871 = vmatpush1.bf16.msra.mxu0 0
      %872 = vmatprep.subr.bf16.mxu0 0
      %873 = vmatpush1.bf16.msra.mxu0 0
      %874 = vmatprep.subr.bf16.mxu0 0
      %875 = vmatpush1.bf16.msra.mxu0 0
      %876 = vmatprep.subr.bf16.mxu0 0
      %877 = vmatpush1.bf16.msra.mxu0 0
      %878 = vmatprep.subr.bf16.mxu0 0
      %879 = vmatpush1.bf16.msra.mxu0 0
      %880 = vmatprep.subr.bf16.mxu0 0
      %881 = vmatpush1.bf16.msra.mxu0 0
      %882 = vmatprep.subr.bf16.mxu0 0
      %883 = vmatpush1.bf16.msra.mxu0 %v863
      %884 = vmatprep.subr.bf16.mxu0 0
      %885 = vmatpush1.bf16.msra.mxu0 %v862
      %886 = vmatprep.subr.bf16.mxu0 0
      %887 = vmatpush2.bf16.msra.mxu0 0
      %888 = vmatprep.subr.bf16.mxu0 0
      %889 = vmatpush2.bf16.msra.mxu0 0
      %890 = vmatprep.subr.bf16.mxu0 0
      %891 = vmatpush2.bf16.msra.mxu0 0
      %892 = vmatprep.subr.bf16.mxu0 0
      %893 = vmatpush2.bf16.msra.mxu0 0
      %894 = vmatprep.subr.bf16.mxu0 0
      %895 = vmatpush2.bf16.msra.mxu0 0
      %896 = vmatprep.subr.bf16.mxu0 0
      %897 = vmatpush2.bf16.msra.mxu0 0
      %898 = vmatprep.subr.bf16.mxu0 0
      %899 = vmatpush2.bf16.msra.mxu0 0
      %900 = vmatprep.subr.bf16.mxu0 0
      %901 = vmatpush2.bf16.msra.mxu0 0
      %902 = vmatprep.mubr.bf16.mxu0 0
      %903 = vmatmul.mubr.bf16.gmra.mxu0 %v868
      %v904 = vpop.f32.mrf.mxu0
      %v905 = vadd.f32 %v853, %v904
      %v906 = vpop.f32.mrf.mxu0
      %v907 = vpop.f32.mrf.mxu0
      %v908 = vpop.f32.mrf.mxu0
      %909 = vdwg.mxu0
      %v910 = vlaneseq
      %v911 = vshrl.u32 %v910, 7
      %v912 = vsub.s32 0, %v911
      %v913 = vrot.slane %v905, %v912
      %915 = vset.pattern.permute.xlu0 0
      %916 = vperm.xlu0 %915, %v846
      %v917 = vpop.permute.xlu0 %916
      %v919 = vmul.f32 %v913, %v917
      %v920 = vmul.f32 %v919, %v919
      %v921 = vsel %vm866, %v920, 0.0
      %922 = vadd.xlane.f32.xlu0 %v921
      %v923 = vpop.xlane.xlu0 %922
      %v924 = vadd.f32 %v923, 1e-30
      %v925 = vrsqrt.pop %v924
      %v926 = vmul.f32 %v919, %v925
      %v927 = vld [vmem:[%s9] sm:$0xf]
      %v928 = vld [vmem:[%s9 + $0x4] sm:$0xf]
      %v929 = vld [vmem:[%s9 + $0x8] sm:$0xf]
      %v930 = vld [vmem:[%s9 + $0xc] sm:$0xf]
      %v931 = vpack.c.bf16 %v844, %v844
      %v932 = vld [vmem:[%s10] sm:$0x1]
      %v934 = vlaneseq
      %v935 = vshrl.u32 %v934, 7
      %v936 = vsub.s32 0, %v935
      %v937 = vrot.slane %v932, %v936
      %v943 = vunpack.c.l.b16 %v927
      %v944 = vunpack.c.l.b16 %v928
      %v945 = vunpack.c.l.b16 %v929
      %v946 = vunpack.c.l.b16 %v930
      %v947 = vpack.c.b16 %v944, %v943
      %v948 = vpack.c.b16 %v946, %v945
      %v952 = vsel %vm866, %v931, 0
      %954 = vmatprep.subr.bf16.mxu0 0
      %955 = vmatpush1.bf16.msra.mxu0 0
      %956 = vmatprep.subr.bf16.mxu0 0
      %957 = vmatpush1.bf16.msra.mxu0 0
      %958 = vmatprep.subr.bf16.mxu0 0
      %959 = vmatpush1.bf16.msra.mxu0 0
      %960 = vmatprep.subr.bf16.mxu0 0
      %961 = vmatpush1.bf16.msra.mxu0 0
      %962 = vmatprep.subr.bf16.mxu0 0
      %963 = vmatpush1.bf16.msra.mxu0 0
      %964 = vmatprep.subr.bf16.mxu0 0
      %965 = vmatpush1.bf16.msra.mxu0 0
      %966 = vmatprep.subr.bf16.mxu0 0
      %967 = vmatpush1.bf16.msra.mxu0 %v948
      %968 = vmatprep.subr.bf16.mxu0 0
      %969 = vmatpush1.bf16.msra.mxu0 %v947
      %970 = vmatprep.subr.bf16.mxu0 0
      %971 = vmatpush2.bf16.msra.mxu0 0
      %972 = vmatprep.subr.bf16.mxu0 0
      %973 = vmatpush2.bf16.msra.mxu0 0
      %974 = vmatprep.subr.bf16.mxu0 0
      %975 = vmatpush2.bf16.msra.mxu0 0
      %976 = vmatprep.subr.bf16.mxu0 0
      %977 = vmatpush2.bf16.msra.mxu0 0
      %978 = vmatprep.subr.bf16.mxu0 0
      %979 = vmatpush2.bf16.msra.mxu0 0
      %980 = vmatprep.subr.bf16.mxu0 0
      %981 = vmatpush2.bf16.msra.mxu0 0
      %982 = vmatprep.subr.bf16.mxu0 0
      %983 = vmatpush2.bf16.msra.mxu0 0
      %984 = vmatprep.subr.bf16.mxu0 0
      %985 = vmatpush2.bf16.msra.mxu0 0
      %986 = vmatprep.mubr.bf16.mxu0 0
      %987 = vmatmul.mubr.bf16.gmra.mxu0 %v952
      %v988 = vpop.f32.mrf.mxu0
      %v989 = vadd.f32 %v937, %v988
      %v990 = vpop.f32.mrf.mxu0
      %v991 = vpop.f32.mrf.mxu0
      %v992 = vpop.f32.mrf.mxu0
      %993 = vdwg.mxu0
      %v994 = vld [vmem:[%s826] sm:$0xf]
      %v995 = vpack.c.bf16 %v989, %v989
      %vm996 = vcmask 64512
      %v998 = vsel %vm996, %v994, 0
      %vm1000 = vcmask 1043456
      %v1002 = vsel %vm1000, %v995, 0
      %1004 = vmatprep.subr.bf16.mxu0 0
      %1005 = vmatpush1.bf16.msra.mxu0 0
      %1006 = vmatprep.subr.bf16.mxu0 0
      %1007 = vmatpush1.bf16.msra.mxu0 0
      %1008 = vmatprep.subr.bf16.mxu0 0
      %1009 = vmatpush1.bf16.msra.mxu0 0
      %1010 = vmatprep.subr.bf16.mxu0 0
      %1011 = vmatpush1.bf16.msra.mxu0 0
      %1012 = vmatprep.subr.bf16.mxu0 0
      %1013 = vmatpush1.bf16.msra.mxu0 0
      %1014 = vmatprep.subr.bf16.mxu0 0
      %1015 = vmatpush1.bf16.msra.mxu0 0
      %1016 = vmatprep.subr.bf16.mxu0 0
      %1017 = vmatpush1.bf16.msra.mxu0 0
      %1018 = vmatprep.subr.bf16.mxu0 0
      %1019 = vmatpush1.bf16.msra.mxu0 %v1002
      %1020 = vmatprep.subr.bf16.mxu0 0
      %1021 = vmatpush2.bf16.msra.mxu0 0
      %1022 = vmatprep.subr.bf16.mxu0 0
      %1023 = vmatpush2.bf16.msra.mxu0 0
      %1024 = vmatprep.subr.bf16.mxu0 0
      %1025 = vmatpush2.bf16.msra.mxu0 0
      %1026 = vmatprep.subr.bf16.mxu0 0
      %1027 = vmatpush2.bf16.msra.mxu0 0
      %1028 = vmatprep.subr.bf16.mxu0 0
      %1029 = vmatpush2.bf16.msra.mxu0 0
      %1030 = vmatprep.subr.bf16.mxu0 0
      %1031 = vmatpush2.bf16.msra.mxu0 0
      %1032 = vmatprep.subr.bf16.mxu0 0
      %1033 = vmatpush2.bf16.msra.mxu0 0
      %1034 = vmatprep.subr.bf16.mxu0 0
      %1035 = vmatpush2.bf16.msra.mxu0 0
      %1036 = vmatprep.mubr.bf16.mxu0 0
      %1037 = vmatmul.mubr.bf16.gmra.mxu0 %v998
      %v1038 = vpop.f32.mrf.mxu0
      %v1039 = vadd.f32 0.0, %v1038
      %v1040 = vpop.f32.mrf.mxu0
      %v1041 = vpop.f32.mrf.mxu0
      %v1042 = vpop.f32.mrf.mxu0
      %1043 = vdwg.mxu0
      %v1044 = vmul.f32 %v1039, %v1039
      %v1045 = vsel %vm866, %v1044, 0.0
      %1046 = vadd.xlane.f32.xlu0 %v1045
      %v1047 = vpop.xlane.xlu0 %1046
      %v1048 = vadd.f32 %v1047, 1e-30
      %v1049 = vrsqrt.pop %v1048
      %v1050 = vmul.f32 %v1039, %v1049
      %v1051 = vld [vmem:[%s11] sm:$0xf]
      %v1052 = vld [vmem:[%s11 + $0x4] sm:$0xf]
      %v1053 = vld [vmem:[%s11 + $0x8] sm:$0xf]
      %v1054 = vld [vmem:[%s11 + $0xc] sm:$0xf]
      %v1055 = vld [vmem:[%s12] sm:$0x1]
      %v1057 = vlaneseq
      %v1058 = vshrl.u32 %v1057, 7
      %v1059 = vsub.s32 0, %v1058
      %v1060 = vrot.slane %v1055, %v1059
      %v1066 = vunpack.c.l.b16 %v1051
      %v1067 = vunpack.c.l.b16 %v1052
      %v1068 = vunpack.c.l.b16 %v1053
      %v1069 = vunpack.c.l.b16 %v1054
      %v1070 = vpack.c.b16 %v1067, %v1066
      %v1071 = vpack.c.b16 %v1069, %v1068
      %1074 = vmatprep.subr.bf16.mxu0 0
      %1075 = vmatpush1.bf16.msra.mxu0 0
      %1076 = vmatprep.subr.bf16.mxu0 0
      %1077 = vmatpush1.bf16.msra.mxu0 0
      %1078 = vmatprep.subr.bf16.mxu0 0
      %1079 = vmatpush1.bf16.msra.mxu0 0
      %1080 = vmatprep.subr.bf16.mxu0 0
      %1081 = vmatpush1.bf16.msra.mxu0 0
      %1082 = vmatprep.subr.bf16.mxu0 0
      %1083 = vmatpush1.bf16.msra.mxu0 0
      %1084 = vmatprep.subr.bf16.mxu0 0
      %1085 = vmatpush1.bf16.msra.mxu0 0
      %1086 = vmatprep.subr.bf16.mxu0 0
      %1087 = vmatpush1.bf16.msra.mxu0 %v1071
      %1088 = vmatprep.subr.bf16.mxu0 0
      %1089 = vmatpush1.bf16.msra.mxu0 %v1070
      %1090 = vmatprep.subr.bf16.mxu0 0
      %1091 = vmatpush2.bf16.msra.mxu0 0
      %1092 = vmatprep.subr.bf16.mxu0 0
      %1093 = vmatpush2.bf16.msra.mxu0 0
      %1094 = vmatprep.subr.bf16.mxu0 0
      %1095 = vmatpush2.bf16.msra.mxu0 0
      %1096 = vmatprep.subr.bf16.mxu0 0
      %1097 = vmatpush2.bf16.msra.mxu0 0
      %1098 = vmatprep.subr.bf16.mxu0 0
      %1099 = vmatpush2.bf16.msra.mxu0 0
      %1100 = vmatprep.subr.bf16.mxu0 0
      %1101 = vmatpush2.bf16.msra.mxu0 0
      %1102 = vmatprep.subr.bf16.mxu0 0
      %1103 = vmatpush2.bf16.msra.mxu0 0
      %1104 = vmatprep.subr.bf16.mxu0 0
      %1105 = vmatpush2.bf16.msra.mxu0 0
      %1106 = vmatprep.mubr.bf16.mxu0 0
      %1107 = vmatmul.mubr.bf16.gmra.mxu0 %v952
      %v1108 = vpop.f32.mrf.mxu0
      %v1109 = vadd.f32 %v1060, %v1108
      %v1110 = vpop.f32.mrf.mxu0
      %v1111 = vpop.f32.mrf.mxu0
      %v1112 = vpop.f32.mrf.mxu0
      %1113 = vdwg.mxu0
      %v1114 = vld [vmem:[%s830] sm:$0xf]
      %v1115 = vpack.c.bf16 %v1109, %v1109
      %v1117 = vsel %vm996, %v1114, 0
      %v1120 = vsel %vm1000, %v1115, 0
      %1122 = vmatprep.subr.bf16.mxu0 0
      %1123 = vmatpush1.bf16.msra.mxu0 0
      %1124 = vmatprep.subr.bf16.mxu0 0
      %1125 = vmatpush1.bf16.msra.mxu0 0
      %1126 = vmatprep.subr.bf16.mxu0 0
      %1127 = vmatpush1.bf16.msra.mxu0 0
      %1128 = vmatprep.subr.bf16.mxu0 0
      %1129 = vmatpush1.bf16.msra.mxu0 0
      %1130 = vmatprep.subr.bf16.mxu0 0
      %1131 = vmatpush1.bf16.msra.mxu0 0
      %1132 = vmatprep.subr.bf16.mxu0 0
      %1133 = vmatpush1.bf16.msra.mxu0 0
      %1134 = vmatprep.subr.bf16.mxu0 0
      %1135 = vmatpush1.bf16.msra.mxu0 0
      %1136 = vmatprep.subr.bf16.mxu0 0
      %1137 = vmatpush1.bf16.msra.mxu0 %v1120
      %1138 = vmatprep.subr.bf16.mxu0 0
      %1139 = vmatpush2.bf16.msra.mxu0 0
      %1140 = vmatprep.subr.bf16.mxu0 0
      %1141 = vmatpush2.bf16.msra.mxu0 0
      %1142 = vmatprep.subr.bf16.mxu0 0
      %1143 = vmatpush2.bf16.msra.mxu0 0
      %1144 = vmatprep.subr.bf16.mxu0 0
      %1145 = vmatpush2.bf16.msra.mxu0 0
      %1146 = vmatprep.subr.bf16.mxu0 0
      %1147 = vmatpush2.bf16.msra.mxu0 0
      %1148 = vmatprep.subr.bf16.mxu0 0
      %1149 = vmatpush2.bf16.msra.mxu0 0
      %1150 = vmatprep.subr.bf16.mxu0 0
      %1151 = vmatpush2.bf16.msra.mxu0 0
      %1152 = vmatprep.subr.bf16.mxu0 0
      %1153 = vmatpush2.bf16.msra.mxu0 0
      %1154 = vmatprep.mubr.bf16.mxu0 0
      %1155 = vmatmul.mubr.bf16.gmra.mxu0 %v1117
      %v1156 = vpop.f32.mrf.mxu0
      %v1157 = vadd.f32 0.0, %v1156
      %v1158 = vpop.f32.mrf.mxu0
      %v1159 = vpop.f32.mrf.mxu0
      %v1160 = vpop.f32.mrf.mxu0
      %1161 = vdwg.mxu0
      %v1162 = vmul.f32 %v1157, %v1157
      %v1163 = vsel %vm866, %v1162, 0.0
      %1164 = vadd.xlane.f32.xlu0 %v1163
      %v1165 = vpop.xlane.xlu0 %1164
      %v1166 = vadd.f32 %v1165, 1e-30
      %v1167 = vrsqrt.pop %v1166
      %v1168 = vmul.f32 %v1157, %v1167
      %v1169 = vld [vmem:[%s13] sm:$0xf]
      %v1170 = vld [vmem:[%s13 + $0x4] sm:$0xf]
      %v1171 = vld [vmem:[%s13 + $0x8] sm:$0xf]
      %v1172 = vld [vmem:[%s13 + $0xc] sm:$0xf]
      %v1173 = vld [vmem:[%s13 + $0x10] sm:$0xf]
      %v1174 = vld [vmem:[%s13 + $0x14] sm:$0xf]
      %v1175 = vld [vmem:[%s13 + $0x18] sm:$0xf]
      %v1176 = vld [vmem:[%s13 + $0x1c] sm:$0xf]
      %v1177 = vpack.c.bf16 %v926, %v926
      %v1182 = vunpack.c.l.b16 %v1173
      %v1183 = vunpack.c.l.b16 %v1174
      %v1184 = vunpack.c.l.b16 %v1175
      %v1185 = vunpack.c.l.b16 %v1176
      %v1186 = vpack.c.b16 %v1183, %v1182
      %v1187 = vpack.c.b16 %v1185, %v1184
      %v1191 = vsel %vm866, %v1177, 0
      %1193 = vmatprep.subr.bf16.mxu0 0
      %1194 = vmatpush1.bf16.msra.mxu0 0
      %1195 = vmatprep.subr.bf16.mxu0 0
      %1196 = vmatpush1.bf16.msra.mxu0 0
      %1197 = vmatprep.subr.bf16.mxu0 0
      %1198 = vmatpush1.bf16.msra.mxu0 0
      %1199 = vmatprep.subr.bf16.mxu0 0
      %1200 = vmatpush1.bf16.msra.mxu0 0
      %1201 = vmatprep.subr.bf16.mxu0 0
      %1202 = vmatpush1.bf16.msra.mxu0 0
      %1203 = vmatprep.subr.bf16.mxu0 0
      %1204 = vmatpush1.bf16.msra.mxu0 0
      %1205 = vmatprep.subr.bf16.mxu0 0
      %1206 = vmatpush1.bf16.msra.mxu0 %v1187
      %1207 = vmatprep.subr.bf16.mxu0 0
      %1208 = vmatpush1.bf16.msra.mxu0 %v1186
      %1209 = vmatprep.subr.bf16.mxu0 0
      %1210 = vmatpush2.bf16.msra.mxu0 0
      %1211 = vmatprep.subr.bf16.mxu0 0
      %1212 = vmatpush2.bf16.msra.mxu0 0
      %1213 = vmatprep.subr.bf16.mxu0 0
      %1214 = vmatpush2.bf16.msra.mxu0 0
      %1215 = vmatprep.subr.bf16.mxu0 0
      %1216 = vmatpush2.bf16.msra.mxu0 0
      %1217 = vmatprep.subr.bf16.mxu0 0
      %1218 = vmatpush2.bf16.msra.mxu0 0
      %1219 = vmatprep.subr.bf16.mxu0 0
      %1220 = vmatpush2.bf16.msra.mxu0 0
      %1221 = vmatprep.subr.bf16.mxu0 0
      %1222 = vmatpush2.bf16.msra.mxu0 0
      %1223 = vmatprep.subr.bf16.mxu0 0
      %1224 = vmatpush2.bf16.msra.mxu0 0
      %1225 = vmatprep.mubr.bf16.mxu0 0
      %1226 = vmatmul.mubr.bf16.gmra.mxu0 %v1191
      %v1227 = vpop.f32.mrf.mxu0
      %v1228 = vadd.f32 0.0, %v1227
      %v1229 = vpop.f32.mrf.mxu0
      %v1230 = vpop.f32.mrf.mxu0
      %v1231 = vpop.f32.mrf.mxu0
      %1232 = vdwg.mxu0
      %v1237 = vunpack.c.l.b16 %v1169
      %v1238 = vunpack.c.l.b16 %v1170
      %v1239 = vunpack.c.l.b16 %v1171
      %v1240 = vunpack.c.l.b16 %v1172
      %v1241 = vpack.c.b16 %v1238, %v1237
      %v1242 = vpack.c.b16 %v1240, %v1239
      %1245 = vmatprep.subr.bf16.mxu0 0
      %1246 = vmatpush1.bf16.msra.mxu0 0
      %1247 = vmatprep.subr.bf16.mxu0 0
      %1248 = vmatpush1.bf16.msra.mxu0 0
      %1249 = vmatprep.subr.bf16.mxu0 0
      %1250 = vmatpush1.bf16.msra.mxu0 0
      %1251 = vmatprep.subr.bf16.mxu0 0
      %1252 = vmatpush1.bf16.msra.mxu0 0
      %1253 = vmatprep.subr.bf16.mxu0 0
      %1254 = vmatpush1.bf16.msra.mxu0 0
      %1255 = vmatprep.subr.bf16.mxu0 0
      %1256 = vmatpush1.bf16.msra.mxu0 0
      %1257 = vmatprep.subr.bf16.mxu0 0
      %1258 = vmatpush1.bf16.msra.mxu0 %v1242
      %1259 = vmatprep.subr.bf16.mxu0 0
      %1260 = vmatpush1.bf16.msra.mxu0 %v1241
      %1261 = vmatprep.subr.bf16.mxu0 0
      %1262 = vmatpush2.bf16.msra.mxu0 0
      %1263 = vmatprep.subr.bf16.mxu0 0
      %1264 = vmatpush2.bf16.msra.mxu0 0
      %1265 = vmatprep.subr.bf16.mxu0 0
      %1266 = vmatpush2.bf16.msra.mxu0 0
      %1267 = vmatprep.subr.bf16.mxu0 0
      %1268 = vmatpush2.bf16.msra.mxu0 0
      %1269 = vmatprep.subr.bf16.mxu0 0
      %1270 = vmatpush2.bf16.msra.mxu0 0
      %1271 = vmatprep.subr.bf16.mxu0 0
      %1272 = vmatpush2.bf16.msra.mxu0 0
      %1273 = vmatprep.subr.bf16.mxu0 0
      %1274 = vmatpush2.bf16.msra.mxu0 0
      %1275 = vmatprep.subr.bf16.mxu0 0
      %1276 = vmatpush2.bf16.msra.mxu0 0
      %1277 = vmatprep.mubr.bf16.mxu0 0
      %1278 = vmatmul.mubr.bf16.gmra.mxu0 %v952
      %v1279 = vpop.f32.mrf.mxu0
      %v1280 = vadd.f32 %v1228, %v1279
      %v1281 = vpop.f32.mrf.mxu0
      %v1282 = vpop.f32.mrf.mxu0
      %v1283 = vpop.f32.mrf.mxu0
      %1284 = vdwg.mxu0
      %v1285 = vld [vmem:[%s13 + $0x20] sm:$0xf]
      %v1286 = vld [vmem:[%s13 + $0x24] sm:$0xf]
      %v1287 = vld [vmem:[%s13 + $0x28] sm:$0xf]
      %v1288 = vld [vmem:[%s13 + $0x2c] sm:$0xf]
      %v1289 = vpack.c.bf16 %v1050, %v1050
      %v1294 = vunpack.c.l.b16 %v1285
      %v1295 = vunpack.c.l.b16 %v1286
      %v1296 = vunpack.c.l.b16 %v1287
      %v1297 = vunpack.c.l.b16 %v1288
      %v1298 = vpack.c.b16 %v1295, %v1294
      %v1299 = vpack.c.b16 %v1297, %v1296
      %v1303 = vsel %vm866, %v1289, 0
      %1305 = vmatprep.subr.bf16.mxu0 0
      %1306 = vmatpush1.bf16.msra.mxu0 0
      %1307 = vmatprep.subr.bf16.mxu0 0
      %1308 = vmatpush1.bf16.msra.mxu0 0
      %1309 = vmatprep.subr.bf16.mxu0 0
      %1310 = vmatpush1.bf16.msra.mxu0 0
      %1311 = vmatprep.subr.bf16.mxu0 0
      %1312 = vmatpush1.bf16.msra.mxu0 0
      %1313 = vmatprep.subr.bf16.mxu0 0
      %1314 = vmatpush1.bf16.msra.mxu0 0
      %1315 = vmatprep.subr.bf16.mxu0 0
      %1316 = vmatpush1.bf16.msra.mxu0 0
      %1317 = vmatprep.subr.bf16.mxu0 0
      %1318 = vmatpush1.bf16.msra.mxu0 %v1299
      %1319 = vmatprep.subr.bf16.mxu0 0
      %1320 = vmatpush1.bf16.msra.mxu0 %v1298
      %1321 = vmatprep.subr.bf16.mxu0 0
      %1322 = vmatpush2.bf16.msra.mxu0 0
      %1323 = vmatprep.subr.bf16.mxu0 0
      %1324 = vmatpush2.bf16.msra.mxu0 0
      %1325 = vmatprep.subr.bf16.mxu0 0
      %1326 = vmatpush2.bf16.msra.mxu0 0
      %1327 = vmatprep.subr.bf16.mxu0 0
      %1328 = vmatpush2.bf16.msra.mxu0 0
      %1329 = vmatprep.subr.bf16.mxu0 0
      %1330 = vmatpush2.bf16.msra.mxu0 0
      %1331 = vmatprep.subr.bf16.mxu0 0
      %1332 = vmatpush2.bf16.msra.mxu0 0
      %1333 = vmatprep.subr.bf16.mxu0 0
      %1334 = vmatpush2.bf16.msra.mxu0 0
      %1335 = vmatprep.subr.bf16.mxu0 0
      %1336 = vmatpush2.bf16.msra.mxu0 0
      %1337 = vmatprep.mubr.bf16.mxu0 0
      %1338 = vmatmul.mubr.bf16.gmra.mxu0 %v1303
      %v1339 = vpop.f32.mrf.mxu0
      %v1340 = vadd.f32 0.0, %v1339
      %v1341 = vpop.f32.mrf.mxu0
      %v1342 = vpop.f32.mrf.mxu0
      %v1343 = vpop.f32.mrf.mxu0
      %1344 = vdwg.mxu0
      %v1345 = vadd.f32 %v1280, %v1340
      %v1346 = vld [vmem:[%s13 + $0x30] sm:$0xf]
      %v1347 = vld [vmem:[%s13 + $0x34] sm:$0xf]
      %v1348 = vld [vmem:[%s13 + $0x38] sm:$0xf]
      %v1349 = vld [vmem:[%s13 + $0x3c] sm:$0xf]
      %v1350 = vpack.c.bf16 %v1168, %v1168
      %v1355 = vunpack.c.l.b16 %v1346
      %v1356 = vunpack.c.l.b16 %v1347
      %v1357 = vunpack.c.l.b16 %v1348
      %v1358 = vunpack.c.l.b16 %v1349
      %v1359 = vpack.c.b16 %v1356, %v1355
      %v1360 = vpack.c.b16 %v1358, %v1357
      %v1364 = vsel %vm866, %v1350, 0
      %1366 = vmatprep.subr.bf16.mxu0 0
      %1367 = vmatpush1.bf16.msra.mxu0 0
      %1368 = vmatprep.subr.bf16.mxu0 0
      %1369 = vmatpush1.bf16.msra.mxu0 0
      %1370 = vmatprep.subr.bf16.mxu0 0
      %1371 = vmatpush1.bf16.msra.mxu0 0
      %1372 = vmatprep.subr.bf16.mxu0 0
      %1373 = vmatpush1.bf16.msra.mxu0 0
      %1374 = vmatprep.subr.bf16.mxu0 0
      %1375 = vmatpush1.bf16.msra.mxu0 0
      %1376 = vmatprep.subr.bf16.mxu0 0
      %1377 = vmatpush1.bf16.msra.mxu0 0
      %1378 = vmatprep.subr.bf16.mxu0 0
      %1379 = vmatpush1.bf16.msra.mxu0 %v1360
      %1380 = vmatprep.subr.bf16.mxu0 0
      %1381 = vmatpush1.bf16.msra.mxu0 %v1359
      %1382 = vmatprep.subr.bf16.mxu0 0
      %1383 = vmatpush2.bf16.msra.mxu0 0
      %1384 = vmatprep.subr.bf16.mxu0 0
      %1385 = vmatpush2.bf16.msra.mxu0 0
      %1386 = vmatprep.subr.bf16.mxu0 0
      %1387 = vmatpush2.bf16.msra.mxu0 0
      %1388 = vmatprep.subr.bf16.mxu0 0
      %1389 = vmatpush2.bf16.msra.mxu0 0
      %1390 = vmatprep.subr.bf16.mxu0 0
      %1391 = vmatpush2.bf16.msra.mxu0 0
      %1392 = vmatprep.subr.bf16.mxu0 0
      %1393 = vmatpush2.bf16.msra.mxu0 0
      %1394 = vmatprep.subr.bf16.mxu0 0
      %1395 = vmatpush2.bf16.msra.mxu0 0
      %1396 = vmatprep.subr.bf16.mxu0 0
      %1397 = vmatpush2.bf16.msra.mxu0 0
      %1398 = vmatprep.mubr.bf16.mxu0 0
      %1399 = vmatmul.mubr.bf16.gmra.mxu0 %v1364
      %v1400 = vpop.f32.mrf.mxu0
      %v1401 = vadd.f32 0.0, %v1400
      %v1402 = vpop.f32.mrf.mxu0
      %v1403 = vpop.f32.mrf.mxu0
      %v1404 = vpop.f32.mrf.mxu0
      %1405 = vdwg.mxu0
      %v1406 = vadd.f32 %v1345, %v1401
      %v1407 = vld [vmem:[%s14] sm:$0x1]
      %v1409 = vlaneseq
      %v1410 = vshrl.u32 %v1409, 7
      %v1411 = vsub.s32 0, %v1410
      %v1412 = vrot.slane %v1407, %v1411
      %v1414 = vadd.f32 %v1406, %v1412
      %v1415 = vxor.u32 %v1414, 2147483648
      %v1416 = vmul.f32 %v1415, 1.442695
      %v1417 = vpow.pop %v1416
      %v1418 = vadd.f32 %v1417, 1.0
      %v1419 = vrcp.pop %v1418
      %v1420 = vmul.f32 1.0, %v1419
      %v1421 = vld [vmem:[%s15] sm:$0xf]
      %v1422 = vld [vmem:[%s15 + $0x4] sm:$0xf]
      %v1423 = vld [vmem:[%s15 + $0x8] sm:$0xf]
      %v1424 = vld [vmem:[%s15 + $0xc] sm:$0xf]
      %v1425 = vld [vmem:[%s15 + $0x10] sm:$0xf]
      %v1426 = vld [vmem:[%s15 + $0x14] sm:$0xf]
      %v1427 = vld [vmem:[%s15 + $0x18] sm:$0xf]
      %v1428 = vld [vmem:[%s15 + $0x1c] sm:$0xf]
      %v1433 = vunpack.c.l.b16 %v1425
      %v1434 = vunpack.c.l.b16 %v1426
      %v1435 = vunpack.c.l.b16 %v1427
      %v1436 = vunpack.c.l.b16 %v1428
      %v1437 = vpack.c.b16 %v1434, %v1433
      %v1438 = vpack.c.b16 %v1436, %v1435
      %1441 = vmatprep.subr.bf16.mxu0 0
      %1442 = vmatpush1.bf16.msra.mxu0 0
      %1443 = vmatprep.subr.bf16.mxu0 0
      %1444 = vmatpush1.bf16.msra.mxu0 0
      %1445 = vmatprep.subr.bf16.mxu0 0
      %1446 = vmatpush1.bf16.msra.mxu0 0
      %1447 = vmatprep.subr.bf16.mxu0 0
      %1448 = vmatpush1.bf16.msra.mxu0 0
      %1449 = vmatprep.subr.bf16.mxu0 0
      %1450 = vmatpush1.bf16.msra.mxu0 0
      %1451 = vmatprep.subr.bf16.mxu0 0
      %1452 = vmatpush1.bf16.msra.mxu0 0
      %1453 = vmatprep.subr.bf16.mxu0 0
      %1454 = vmatpush1.bf16.msra.mxu0 %v1438
      %1455 = vmatprep.subr.bf16.mxu0 0
      %1456 = vmatpush1.bf16.msra.mxu0 %v1437
      %1457 = vmatprep.subr.bf16.mxu0 0
      %1458 = vmatpush2.bf16.msra.mxu0 0
      %1459 = vmatprep.subr.bf16.mxu0 0
      %1460 = vmatpush2.bf16.msra.mxu0 0
      %1461 = vmatprep.subr.bf16.mxu0 0
      %1462 = vmatpush2.bf16.msra.mxu0 0
      %1463 = vmatprep.subr.bf16.mxu0 0
      %1464 = vmatpush2.bf16.msra.mxu0 0
      %1465 = vmatprep.subr.bf16.mxu0 0
      %1466 = vmatpush2.bf16.msra.mxu0 0
      %1467 = vmatprep.subr.bf16.mxu0 0
      %1468 = vmatpush2.bf16.msra.mxu0 0
      %1469 = vmatprep.subr.bf16.mxu0 0
      %1470 = vmatpush2.bf16.msra.mxu0 0
      %1471 = vmatprep.subr.bf16.mxu0 0
      %1472 = vmatpush2.bf16.msra.mxu0 0
      %1473 = vmatprep.mubr.bf16.mxu0 0
      %1474 = vmatmul.mubr.bf16.gmra.mxu0 %v1303
      %v1475 = vpop.f32.mrf.mxu0
      %v1476 = vadd.f32 0.0, %v1475
      %v1477 = vpop.f32.mrf.mxu0
      %v1478 = vpop.f32.mrf.mxu0
      %v1479 = vpop.f32.mrf.mxu0
      %1480 = vdwg.mxu0
      %v1485 = vunpack.c.l.b16 %v1421
      %v1486 = vunpack.c.l.b16 %v1422
      %v1487 = vunpack.c.l.b16 %v1423
      %v1488 = vunpack.c.l.b16 %v1424
      %v1489 = vpack.c.b16 %v1486, %v1485
      %v1490 = vpack.c.b16 %v1488, %v1487
      %1493 = vmatprep.subr.bf16.mxu0 0
      %1494 = vmatpush1.bf16.msra.mxu0 0
      %1495 = vmatprep.subr.bf16.mxu0 0
      %1496 = vmatpush1.bf16.msra.mxu0 0
      %1497 = vmatprep.subr.bf16.mxu0 0
      %1498 = vmatpush1.bf16.msra.mxu0 0
      %1499 = vmatprep.subr.bf16.mxu0 0
      %1500 = vmatpush1.bf16.msra.mxu0 0
      %1501 = vmatprep.subr.bf16.mxu0 0
      %1502 = vmatpush1.bf16.msra.mxu0 0
      %1503 = vmatprep.subr.bf16.mxu0 0
      %1504 = vmatpush1.bf16.msra.mxu0 0
      %1505 = vmatprep.subr.bf16.mxu0 0
      %1506 = vmatpush1.bf16.msra.mxu0 %v1490
      %1507 = vmatprep.subr.bf16.mxu0 0
      %1508 = vmatpush1.bf16.msra.mxu0 %v1489
      %1509 = vmatprep.subr.bf16.mxu0 0
      %1510 = vmatpush2.bf16.msra.mxu0 0
      %1511 = vmatprep.subr.bf16.mxu0 0
      %1512 = vmatpush2.bf16.msra.mxu0 0
      %1513 = vmatprep.subr.bf16.mxu0 0
      %1514 = vmatpush2.bf16.msra.mxu0 0
      %1515 = vmatprep.subr.bf16.mxu0 0
      %1516 = vmatpush2.bf16.msra.mxu0 0
      %1517 = vmatprep.subr.bf16.mxu0 0
      %1518 = vmatpush2.bf16.msra.mxu0 0
      %1519 = vmatprep.subr.bf16.mxu0 0
      %1520 = vmatpush2.bf16.msra.mxu0 0
      %1521 = vmatprep.subr.bf16.mxu0 0
      %1522 = vmatpush2.bf16.msra.mxu0 0
      %1523 = vmatprep.subr.bf16.mxu0 0
      %1524 = vmatpush2.bf16.msra.mxu0 0
      %1525 = vmatprep.mubr.bf16.mxu0 0
      %1526 = vmatmul.mubr.bf16.gmra.mxu0 %v1191
      %v1527 = vpop.f32.mrf.mxu0
      %v1528 = vadd.f32 %v1476, %v1527
      %v1529 = vpop.f32.mrf.mxu0
      %v1530 = vpop.f32.mrf.mxu0
      %v1531 = vpop.f32.mrf.mxu0
      %1532 = vdwg.mxu0
      %v1533 = vld [vmem:[%s15 + $0x20] sm:$0xf]
      %v1534 = vld [vmem:[%s15 + $0x24] sm:$0xf]
      %v1535 = vld [vmem:[%s15 + $0x28] sm:$0xf]
      %v1536 = vld [vmem:[%s15 + $0x2c] sm:$0xf]
      %v1541 = vunpack.c.l.b16 %v1533
      %v1542 = vunpack.c.l.b16 %v1534
      %v1543 = vunpack.c.l.b16 %v1535
      %v1544 = vunpack.c.l.b16 %v1536
      %v1545 = vpack.c.b16 %v1542, %v1541
      %v1546 = vpack.c.b16 %v1544, %v1543
      %1549 = vmatprep.subr.bf16.mxu0 0
      %1550 = vmatpush1.bf16.msra.mxu0 0
      %1551 = vmatprep.subr.bf16.mxu0 0
      %1552 = vmatpush1.bf16.msra.mxu0 0
      %1553 = vmatprep.subr.bf16.mxu0 0
      %1554 = vmatpush1.bf16.msra.mxu0 0
      %1555 = vmatprep.subr.bf16.mxu0 0
      %1556 = vmatpush1.bf16.msra.mxu0 0
      %1557 = vmatprep.subr.bf16.mxu0 0
      %1558 = vmatpush1.bf16.msra.mxu0 0
      %1559 = vmatprep.subr.bf16.mxu0 0
      %1560 = vmatpush1.bf16.msra.mxu0 0
      %1561 = vmatprep.subr.bf16.mxu0 0
      %1562 = vmatpush1.bf16.msra.mxu0 %v1546
      %1563 = vmatprep.subr.bf16.mxu0 0
      %1564 = vmatpush1.bf16.msra.mxu0 %v1545
      %1565 = vmatprep.subr.bf16.mxu0 0
      %1566 = vmatpush2.bf16.msra.mxu0 0
      %1567 = vmatprep.subr.bf16.mxu0 0
      %1568 = vmatpush2.bf16.msra.mxu0 0
      %1569 = vmatprep.subr.bf16.mxu0 0
      %1570 = vmatpush2.bf16.msra.mxu0 0
      %1571 = vmatprep.subr.bf16.mxu0 0
      %1572 = vmatpush2.bf16.msra.mxu0 0
      %1573 = vmatprep.subr.bf16.mxu0 0
      %1574 = vmatpush2.bf16.msra.mxu0 0
      %1575 = vmatprep.subr.bf16.mxu0 0
      %1576 = vmatpush2.bf16.msra.mxu0 0
      %1577 = vmatprep.subr.bf16.mxu0 0
      %1578 = vmatpush2.bf16.msra.mxu0 0
      %1579 = vmatprep.subr.bf16.mxu0 0
      %1580 = vmatpush2.bf16.msra.mxu0 0
      %1581 = vmatprep.mubr.bf16.mxu0 0
      %1582 = vmatmul.mubr.bf16.gmra.mxu0 %v1364
      %v1583 = vpop.f32.mrf.mxu0
      %v1584 = vadd.f32 0.0, %v1583
      %v1585 = vpop.f32.mrf.mxu0
      %v1586 = vpop.f32.mrf.mxu0
      %v1587 = vpop.f32.mrf.mxu0
      %1588 = vdwg.mxu0
      %v1589 = vadd.f32 %v1528, %v1584
      %v1590 = vld [vmem:[%s16] sm:$0x1]
      %v1592 = vlaneseq
      %v1593 = vshrl.u32 %v1592, 7
      %v1594 = vsub.s32 0, %v1593
      %v1595 = vrot.slane %v1590, %v1594
      %v1597 = vadd.f32 %v1589, %v1595
      %v1598 = vmax.f32 %v1597, 0.0
      %v1599 = vmax.f32 %v1420, 0.1
      %v1600 = vmul.f32 %v1599, %v844
      %v1601 = vsub.f32 1.0, %v1420
      %v1602 = vmul.f32 %v1601, %v1598
      %v1603 = vadd.f32 %v1600, %v1602
      %1604 = vst.msk [vmem:[%s838] sm:$0xff] %vm866, %v1603
      %v1605 = vld [vmem:[%s17] sm:$0xf]
      %v1606 = vld [vmem:[%s17 + $0x4] sm:$0xf]
      %v1607 = vld [vmem:[%s17 + $0x8] sm:$0xf]
      %v1608 = vld [vmem:[%s17 + $0xc] sm:$0xf]
      %v1609 = vpack.c.bf16 %v1603, %v1603
      %v1610 = vld [vmem:[%s18] sm:$0x1]
      %v1612 = vlaneseq
      %v1613 = vshrl.u32 %v1612, 7
      %v1614 = vsub.s32 0, %v1613
      %v1615 = vrot.slane %v1610, %v1614
      %v1621 = vunpack.c.l.b16 %v1605
      %v1622 = vunpack.c.l.b16 %v1606
      %v1623 = vunpack.c.l.b16 %v1607
      %v1624 = vunpack.c.l.b16 %v1608
      %v1625 = vpack.c.b16 %v1622, %v1621
      %v1626 = vpack.c.b16 %v1624, %v1623
      %v1630 = vsel %vm866, %v1609, 0
      %1632 = vmatprep.subr.bf16.mxu0 0
      %1633 = vmatpush1.bf16.msra.mxu0 0
      %1634 = vmatprep.subr.bf16.mxu0 0
      %1635 = vmatpush1.bf16.msra.mxu0 0
      %1636 = vmatprep.subr.bf16.mxu0 0
      %1637 = vmatpush1.bf16.msra.mxu0 0
      %1638 = vmatprep.subr.bf16.mxu0 0
      %1639 = vmatpush1.bf16.msra.mxu0 0
      %1640 = vmatprep.subr.bf16.mxu0 0
      %1641 = vmatpush1.bf16.msra.mxu0 0
      %1642 = vmatprep.subr.bf16.mxu0 0
      %1643 = vmatpush1.bf16.msra.mxu0 0
      %1644 = vmatprep.subr.bf16.mxu0 0
      %1645 = vmatpush1.bf16.msra.mxu0 %v1626
      %1646 = vmatprep.subr.bf16.mxu0 0
      %1647 = vmatpush1.bf16.msra.mxu0 %v1625
      %1648 = vmatprep.subr.bf16.mxu0 0
      %1649 = vmatpush2.bf16.msra.mxu0 0
      %1650 = vmatprep.subr.bf16.mxu0 0
      %1651 = vmatpush2.bf16.msra.mxu0 0
      %1652 = vmatprep.subr.bf16.mxu0 0
      %1653 = vmatpush2.bf16.msra.mxu0 0
      %1654 = vmatprep.subr.bf16.mxu0 0
      %1655 = vmatpush2.bf16.msra.mxu0 0
      %1656 = vmatprep.subr.bf16.mxu0 0
      %1657 = vmatpush2.bf16.msra.mxu0 0
      %1658 = vmatprep.subr.bf16.mxu0 0
      %1659 = vmatpush2.bf16.msra.mxu0 0
      %1660 = vmatprep.subr.bf16.mxu0 0
      %1661 = vmatpush2.bf16.msra.mxu0 0
      %1662 = vmatprep.subr.bf16.mxu0 0
      %1663 = vmatpush2.bf16.msra.mxu0 0
      %1664 = vmatprep.mubr.bf16.mxu0 0
      %1665 = vmatmul.mubr.bf16.gmra.mxu0 %v1630
      %v1666 = vpop.f32.mrf.mxu0
      %v1667 = vadd.f32 %v1615, %v1666
      %v1668 = vpop.f32.mrf.mxu0
      %v1669 = vpop.f32.mrf.mxu0
      %v1670 = vpop.f32.mrf.mxu0
      %1671 = vdwg.mxu0
      %v1672 = vld [vmem:[%s834] sm:$0x3]
      %v1673 = vpack.c.bf16 %v1667, %v1667
      %v1675 = vsel %vm996, %v1672, 0
      %v1678 = vsel %vm1000, %v1673, 0
      %1680 = vmatprep.subr.bf16.mxu0 0
      %1681 = vmatpush1.bf16.msra.mxu0 0
      %1682 = vmatprep.subr.bf16.mxu0 0
      %1683 = vmatpush1.bf16.msra.mxu0 0
      %1684 = vmatprep.subr.bf16.mxu0 0
      %1685 = vmatpush1.bf16.msra.mxu0 0
      %1686 = vmatprep.subr.bf16.mxu0 0
      %1687 = vmatpush1.bf16.msra.mxu0 0
      %1688 = vmatprep.subr.bf16.mxu0 0
      %1689 = vmatpush1.bf16.msra.mxu0 0
      %1690 = vmatprep.subr.bf16.mxu0 0
      %1691 = vmatpush1.bf16.msra.mxu0 0
      %1692 = vmatprep.subr.bf16.mxu0 0
      %1693 = vmatpush1.bf16.msra.mxu0 0
      %1694 = vmatprep.subr.bf16.mxu0 0
      %1695 = vmatpush1.bf16.msra.mxu0 %v1678
      %1696 = vmatprep.subr.bf16.mxu0 0
      %1697 = vmatpush2.bf16.msra.mxu0 0
      %1698 = vmatprep.subr.bf16.mxu0 0
      %1699 = vmatpush2.bf16.msra.mxu0 0
      %1700 = vmatprep.subr.bf16.mxu0 0
      %1701 = vmatpush2.bf16.msra.mxu0 0
      %1702 = vmatprep.subr.bf16.mxu0 0
      %1703 = vmatpush2.bf16.msra.mxu0 0
      %1704 = vmatprep.subr.bf16.mxu0 0
      %1705 = vmatpush2.bf16.msra.mxu0 0
      %1706 = vmatprep.subr.bf16.mxu0 0
      %1707 = vmatpush2.bf16.msra.mxu0 0
      %1708 = vmatprep.subr.bf16.mxu0 0
      %1709 = vmatpush2.bf16.msra.mxu0 0
      %1710 = vmatprep.subr.bf16.mxu0 0
      %1711 = vmatpush2.bf16.msra.mxu0 0
      %1712 = vmatprep.mubr.bf16.mxu0 0
      %1713 = vmatmul.mubr.bf16.gmra.mxu0 %v1675
      %v1714 = vpop.f32.mrf.mxu0
      %v1715 = vadd.f32 0.0, %v1714
      %v1716 = vpop.f32.mrf.mxu0
      %v1717 = vpop.f32.mrf.mxu0
      %v1718 = vpop.f32.mrf.mxu0
      %1719 = vdwg.mxu0
      %v1720 = vld [vmem:[%s19] sm:$0xf]
      %v1721 = vld [vmem:[%s19 + $0x4] sm:$0xf]
      %v1722 = vld [vmem:[%s19 + $0x8] sm:$0xf]
      %v1723 = vld [vmem:[%s19 + $0xc] sm:$0xf]
      %v1724 = vpack.c.bf16 %v847, %v847
      %v1725 = vld [vmem:[%s19 + $0x10] sm:$0xf]
      %v1726 = vld [vmem:[%s19 + $0x14] sm:$0xf]
      %v1727 = vld [vmem:[%s19 + $0x18] sm:$0xf]
      %v1728 = vld [vmem:[%s19 + $0x1c] sm:$0xf]
      %v1729 = vpack.c.bf16 %v1715, %v1715
      %v1734 = vunpack.c.l.b16 %v1725
      %v1735 = vunpack.c.l.b16 %v1726
      %v1736 = vunpack.c.l.b16 %v1727
      %v1737 = vunpack.c.l.b16 %v1728
      %v1738 = vpack.c.b16 %v1735, %v1734
      %v1739 = vpack.c.b16 %v1737, %v1736
      %v1743 = vsel %vm866, %v1729, 0
      %1745 = vmatprep.subr.bf16.mxu0 0
      %1746 = vmatpush1.bf16.msra.mxu0 0
      %1747 = vmatprep.subr.bf16.mxu0 0
      %1748 = vmatpush1.bf16.msra.mxu0 0
      %1749 = vmatprep.subr.bf16.mxu0 0
      %1750 = vmatpush1.bf16.msra.mxu0 0
      %1751 = vmatprep.subr.bf16.mxu0 0
      %1752 = vmatpush1.bf16.msra.mxu0 0
      %1753 = vmatprep.subr.bf16.mxu0 0
      %1754 = vmatpush1.bf16.msra.mxu0 0
      %1755 = vmatprep.subr.bf16.mxu0 0
      %1756 = vmatpush1.bf16.msra.mxu0 0
      %1757 = vmatprep.subr.bf16.mxu0 0
      %1758 = vmatpush1.bf16.msra.mxu0 %v1739
      %1759 = vmatprep.subr.bf16.mxu0 0
      %1760 = vmatpush1.bf16.msra.mxu0 %v1738
      %1761 = vmatprep.subr.bf16.mxu0 0
      %1762 = vmatpush2.bf16.msra.mxu0 0
      %1763 = vmatprep.subr.bf16.mxu0 0
      %1764 = vmatpush2.bf16.msra.mxu0 0
      %1765 = vmatprep.subr.bf16.mxu0 0
      %1766 = vmatpush2.bf16.msra.mxu0 0
      %1767 = vmatprep.subr.bf16.mxu0 0
      %1768 = vmatpush2.bf16.msra.mxu0 0
      %1769 = vmatprep.subr.bf16.mxu0 0
      %1770 = vmatpush2.bf16.msra.mxu0 0
      %1771 = vmatprep.subr.bf16.mxu0 0
      %1772 = vmatpush2.bf16.msra.mxu0 0
      %1773 = vmatprep.subr.bf16.mxu0 0
      %1774 = vmatpush2.bf16.msra.mxu0 0
      %1775 = vmatprep.subr.bf16.mxu0 0
      %1776 = vmatpush2.bf16.msra.mxu0 0
      %1777 = vmatprep.mubr.bf16.mxu0 0
      %1778 = vmatmul.mubr.bf16.gmra.mxu0 %v1743
      %v1779 = vpop.f32.mrf.mxu0
      %v1780 = vadd.f32 0.0, %v1779
      %v1781 = vpop.f32.mrf.mxu0
      %v1782 = vpop.f32.mrf.mxu0
      %v1783 = vpop.f32.mrf.mxu0
      %1784 = vdwg.mxu0
      %v1789 = vunpack.c.l.b16 %v1720
      %v1790 = vunpack.c.l.b16 %v1721
      %v1791 = vunpack.c.l.b16 %v1722
      %v1792 = vunpack.c.l.b16 %v1723
      %v1793 = vpack.c.b16 %v1790, %v1789
      %v1794 = vpack.c.b16 %v1792, %v1791
      %v1798 = vsel %vm866, %v1724, 0
      %1800 = vmatprep.subr.bf16.mxu0 0
      %1801 = vmatpush1.bf16.msra.mxu0 0
      %1802 = vmatprep.subr.bf16.mxu0 0
      %1803 = vmatpush1.bf16.msra.mxu0 0
      %1804 = vmatprep.subr.bf16.mxu0 0
      %1805 = vmatpush1.bf16.msra.mxu0 0
      %1806 = vmatprep.subr.bf16.mxu0 0
      %1807 = vmatpush1.bf16.msra.mxu0 0
      %1808 = vmatprep.subr.bf16.mxu0 0
      %1809 = vmatpush1.bf16.msra.mxu0 0
      %1810 = vmatprep.subr.bf16.mxu0 0
      %1811 = vmatpush1.bf16.msra.mxu0 0
      %1812 = vmatprep.subr.bf16.mxu0 0
      %1813 = vmatpush1.bf16.msra.mxu0 %v1794
      %1814 = vmatprep.subr.bf16.mxu0 0
      %1815 = vmatpush1.bf16.msra.mxu0 %v1793
      %1816 = vmatprep.subr.bf16.mxu0 0
      %1817 = vmatpush2.bf16.msra.mxu0 0
      %1818 = vmatprep.subr.bf16.mxu0 0
      %1819 = vmatpush2.bf16.msra.mxu0 0
      %1820 = vmatprep.subr.bf16.mxu0 0
      %1821 = vmatpush2.bf16.msra.mxu0 0
      %1822 = vmatprep.subr.bf16.mxu0 0
      %1823 = vmatpush2.bf16.msra.mxu0 0
      %1824 = vmatprep.subr.bf16.mxu0 0
      %1825 = vmatpush2.bf16.msra.mxu0 0
      %1826 = vmatprep.subr.bf16.mxu0 0
      %1827 = vmatpush2.bf16.msra.mxu0 0
      %1828 = vmatprep.subr.bf16.mxu0 0
      %1829 = vmatpush2.bf16.msra.mxu0 0
      %1830 = vmatprep.subr.bf16.mxu0 0
      %1831 = vmatpush2.bf16.msra.mxu0 0
      %1832 = vmatprep.mubr.bf16.mxu0 0
      %1833 = vmatmul.mubr.bf16.gmra.mxu0 %v1798
      %v1834 = vpop.f32.mrf.mxu0
      %v1835 = vadd.f32 %v1780, %v1834
      %v1836 = vpop.f32.mrf.mxu0
      %v1837 = vpop.f32.mrf.mxu0
      %v1838 = vpop.f32.mrf.mxu0
      %1839 = vdwg.mxu0
      %v1840 = vld [vmem:[%s20] sm:$0x1]
      %v1842 = vlaneseq
      %v1843 = vshrl.u32 %v1842, 7
      %v1844 = vsub.s32 0, %v1843
      %v1845 = vrot.slane %v1840, %v1844
      %v1847 = vadd.f32 %v1835, %v1845
      %v1848 = vxor.u32 %v1847, 2147483648
      %v1849 = vmul.f32 %v1848, 1.442695
      %v1850 = vpow.pop %v1849
      %v1851 = vadd.f32 %v1850, 1.0
      %v1852 = vrcp.pop %v1851
      %v1853 = vmul.f32 1.0, %v1852
      %v1854 = vld [vmem:[%s21] sm:$0xf]
      %v1855 = vld [vmem:[%s21 + $0x4] sm:$0xf]
      %v1856 = vld [vmem:[%s21 + $0x8] sm:$0xf]
      %v1857 = vld [vmem:[%s21 + $0xc] sm:$0xf]
      %v1858 = vld [vmem:[%s22] sm:$0x1]
      %v1860 = vlaneseq
      %v1861 = vshrl.u32 %v1860, 7
      %v1862 = vsub.s32 0, %v1861
      %v1863 = vrot.slane %v1858, %v1862
      %v1869 = vunpack.c.l.b16 %v1854
      %v1870 = vunpack.c.l.b16 %v1855
      %v1871 = vunpack.c.l.b16 %v1856
      %v1872 = vunpack.c.l.b16 %v1857
      %v1873 = vpack.c.b16 %v1870, %v1869
      %v1874 = vpack.c.b16 %v1872, %v1871
      %1877 = vmatprep.subr.bf16.mxu0 0
      %1878 = vmatpush1.bf16.msra.mxu0 0
      %1879 = vmatprep.subr.bf16.mxu0 0
      %1880 = vmatpush1.bf16.msra.mxu0 0
      %1881 = vmatprep.subr.bf16.mxu0 0
      %1882 = vmatpush1.bf16.msra.mxu0 0
      %1883 = vmatprep.subr.bf16.mxu0 0
      %1884 = vmatpush1.bf16.msra.mxu0 0
      %1885 = vmatprep.subr.bf16.mxu0 0
      %1886 = vmatpush1.bf16.msra.mxu0 0
      %1887 = vmatprep.subr.bf16.mxu0 0
      %1888 = vmatpush1.bf16.msra.mxu0 0
      %1889 = vmatprep.subr.bf16.mxu0 0
      %1890 = vmatpush1.bf16.msra.mxu0 %v1874
      %1891 = vmatprep.subr.bf16.mxu0 0
      %1892 = vmatpush1.bf16.msra.mxu0 %v1873
      %1893 = vmatprep.subr.bf16.mxu0 0
      %1894 = vmatpush2.bf16.msra.mxu0 0
      %1895 = vmatprep.subr.bf16.mxu0 0
      %1896 = vmatpush2.bf16.msra.mxu0 0
      %1897 = vmatprep.subr.bf16.mxu0 0
      %1898 = vmatpush2.bf16.msra.mxu0 0
      %1899 = vmatprep.subr.bf16.mxu0 0
      %1900 = vmatpush2.bf16.msra.mxu0 0
      %1901 = vmatprep.subr.bf16.mxu0 0
      %1902 = vmatpush2.bf16.msra.mxu0 0
      %1903 = vmatprep.subr.bf16.mxu0 0
      %1904 = vmatpush2.bf16.msra.mxu0 0
      %1905 = vmatprep.subr.bf16.mxu0 0
      %1906 = vmatpush2.bf16.msra.mxu0 0
      %1907 = vmatprep.subr.bf16.mxu0 0
      %1908 = vmatpush2.bf16.msra.mxu0 0
      %1909 = vmatprep.mubr.bf16.mxu0 0
      %1910 = vmatmul.mubr.bf16.gmra.mxu0 %v1743
      %v1911 = vpop.f32.mrf.mxu0
      %v1912 = vadd.f32 %v1863, %v1911
      %v1913 = vpop.f32.mrf.mxu0
      %v1914 = vpop.f32.mrf.mxu0
      %v1915 = vpop.f32.mrf.mxu0
      %1916 = vdwg.mxu0
      %v1917 = vmax.f32 %v1912, 0.0
      %v1918 = vmax.f32 %v1853, 0.1
      %v1919 = vmul.f32 %v1918, %v847
      %v1920 = vsub.f32 1.0, %v1853
      %v1921 = vmul.f32 %v1920, %v1917
      %v1922 = vadd.f32 %v1919, %v1921
      %vm1923 = vcmask 256000
      %1924 = vst.msk [vmem:[%s842] sm:$0x7] %vm1923, %v1922
      %p1925 = scmp.lt.s32.totalorder %s36, 1
      %s1926 = scalar_select %p1925, %s36, 1
      %s1927 = smul.addr %s1926, 8
      %s1928 = scalar_lea.vmem %s23, %s1927
      %p1929 = scmp.lt.s32.totalorder %s36, 1
      %s1930 = scalar_select %p1929, %s36, 1
      %s1931 = smul.addr %s1930, 4
      %s1932 = scalar_lea.vmem %s24, %s1931
      // Predicated region
      $region113: #{predict_model_forward.12} parent=111 // pred_check
        %p1933 = pneg %p572
      $region114: #{predict_model_forward.12} parent=111 // pred_check_branch
        %1935 = sbr.rel (%p1933) target = $region116
      $region115: #{predict_model_forward.12} parent=111 // pred_region
        _
      $region116: #{predict_model_forward.12} parent=111 // pred_fallthru
        _
      // Predicated region
      $region117: #{predict_model_forward.12} parent=111 // pred_check
        %p1936 = pneg %p598
      $region118: #{predict_model_forward.12} parent=111 // pred_check_branch
        %1938 = sbr.rel (%p1936) target = $region120
      $region119: #{predict_model_forward.12} parent=111 // pred_region
        _
      $region120: #{predict_model_forward.12} parent=111 // pred_fallthru
        _
    $region112: #{predict_model_forward.12} parent=5 // pred_fallthru
      _
    %p1939 = scmp.le.s32.totalorder 2, %s31
    // Predicated region
    $region121: #{predict_model_forward.12} parent=5 // pred_check
      %p1940 = pneg %p1939
    $region122: #{predict_model_forward.12} parent=5 // pred_check_branch
      %1942 = sbr.rel (%p1940) target = $region124
    $region123: #{predict_model_forward.12} parent=5 // pred_region
      %s1943 = ssub.s32 %s31, 2
      // Predicated region
      $region125: #{predict_model_forward.12} parent=123 // pred_check
        %p1944 = pneg %p578
      $region126: #{predict_model_forward.12} parent=123 // pred_check_branch
        %1946 = sbr.rel (%p1944) target = $region128
      $region127: #{predict_model_forward.12} parent=123 // pred_region
        %p1947 = scmp.lt.s32.totalorder %s37, 1
        %s1948 = scalar_select %p1947, %s37, 1
        %s1949 = smul.addr %s1948, 8
        %s1950 = scalar_lea.vmem %s23, %s1949
      $region128: #{predict_model_forward.12} parent=123 // pred_fallthru
        _
      // Predicated region
      $region129: #{predict_model_forward.12} parent=123 // pred_check
        %p1951 = pneg %p604
      $region130: #{predict_model_forward.12} parent=123 // pred_check_branch
        %1953 = sbr.rel (%p1951) target = $region132
      $region131: #{predict_model_forward.12} parent=123 // pred_region
        %p1954 = scmp.lt.s32.totalorder %s37, 1
        %s1955 = scalar_select %p1954, %s37, 1
        %s1956 = smul.addr %s1955, 4
        %s1957 = scalar_lea.vmem %s24, %s1956
      $region132: #{predict_model_forward.12} parent=123 // pred_fallthru
        _
    $region124: #{predict_model_forward.12} parent=5 // pred_fallthru
      _
  $region6: #{predict_model_forward.12} parent=0 // loop_footer
    %s35 = sadd.s32 1, %s31
  $region7: #{predict_model_forward.12} parent=0 // loop_footer_branch
    %30 = sbr.rel target = $region3
  $region8: #{predict_model_forward.12} parent=0 // loop_exit
    _

// kernel: predict_model_forward.14
$region0: #{predict_model_forward.14}
  #allocation0 [shape = 'u32[]', space=smem, size = 0x4, offset = 0x4, fixed_abs, tag = 'smem constant byte address 0x4 - core index']
  #allocation1 [shape = 'u32[144,128]{1,0:T(1,128)}', space=vmem, size = 0x12000, scoped, tag = 'internal scratch']
  %s0 = inlined_call_operand.vmem [shape: f32[2,8,32], index: 0, kind: input, shape index: {}]
  %s1 = inlined_call_operand.vmem [shape: f32[2,1,32], index: 1, kind: input, shape index: {}]
  %s2 = inlined_call_operand.vmem [shape: f32[2,3,32], index: 2, kind: input, shape index: {}]
  %s3 = inlined_call_operand.vmem [shape: f32[2,8,3], index: 3, kind: input, shape index: {}]
  %s4 = inlined_call_operand.vmem [shape: bf16[2,8,8], index: 4, kind: input, shape index: {}]
  %s5 = inlined_call_operand.vmem [shape: bf16[2,8,8], index: 5, kind: input, shape index: {}]
  %s6 = inlined_call_operand.vmem [shape: bf16[2,1,8], index: 6, kind: input, shape index: {}]
  %s7 = inlined_call_operand.vmem [shape: bf16[32,32], index: 7, kind: input, shape index: {}]
  %s8 = inlined_call_operand.vmem [shape: f32[1,32], index: 8, kind: input, shape index: {}]
  %s9 = inlined_call_operand.vmem [shape: bf16[32,32], index: 9, kind: input, shape index: {}]
  %s10 = inlined_call_operand.vmem [shape: f32[1,32], index: 10, kind: input, shape index: {}]
  %s11 = inlined_call_operand.vmem [shape: bf16[32,32], index: 11, kind: input, shape index: {}]
  %s12 = inlined_call_operand.vmem [shape: f32[1,32], index: 12, kind: input, shape index: {}]
  %s13 = inlined_call_operand.vmem [shape: bf16[96,32], index: 13, kind: input, shape index: {}]
  %s14 = inlined_call_operand.vmem [shape: f32[1,32], index: 14, kind: input, shape index: {}]
  %s15 = inlined_call_operand.vmem [shape: bf16[32,32], index: 15, kind: input, shape index: {}]
  %s16 = inlined_call_operand.vmem [shape: f32[1,32], index: 16, kind: input, shape index: {}]
  %s17 = inlined_call_operand.vmem [shape: bf16[64,32], index: 17, kind: input, shape index: {}]
  %s18 = inlined_call_operand.vmem [shape: f32[1,32], index: 18, kind: input, shape index: {}]
  %s19 = inlined_call_operand.hbm [shape: f32[2,1,32], index: 19, kind: output, shape index: {}]
  %s20 = sld [smem:[#allocation0]]
  $region109: #{predict_model_forward.14} parent=0
    _
  %s22 = ssub.s32 1, %s20
  %s23 = scalar_select 0, %s22, %s20
  $region1: #{predict_model_forward.14} parent=0
    #allocation2 [shape = 'u8[1024]{0}', space=vmem, size = 0x400, scoped, tag = 'output window, operand 0']
    #allocation3 [shape = 's32[2]{0}', space=sflag, size = 0x8, scoped, tag = 'scoped memory for predict_model_forward.14']
    %24 = vsyncpa [#allocation3], 0
    %s25 = scalar_lea.sflag [#allocation3], 1
    %26 = vsyncpa %s25, 0
    loop: start=0, step=1, limit=4
    $region2: #{predict_model_forward.14} parent=1 // loop_pre_header
      _
    $region3: #{predict_model_forward.14} parent=1 // loop_header
      %s28 = sphi 0, %s32
      %p29 = scmp.ge.s32.totalorder %s28, 4
      %s38 = sphi 0, %s40
      %s41 = sphi 0, %s38
      %s42 = sphi 0, %s41
      %s58 = sphi 0, %s42
      %s64 = sphi 0, %s66
      %s67 = sphi 0, %s64
      %s68 = sphi 0, %s67
      %s84 = sphi 0, %s68
      %s90 = sphi 0, %s92
      %s93 = sphi 0, %s90
      %s94 = sphi 0, %s93
      %s110 = sphi 0, %s94
      %s116 = sphi 0, %s118
      %s119 = sphi 0, %s116
      %s120 = sphi 0, %s119
      %s136 = sphi 0, %s120
      %s142 = sphi 0, %s144
      %s145 = sphi 0, %s142
      %s146 = sphi 0, %s145
      %s162 = sphi 0, %s146
      %s168 = sphi 0, %s170
      %s171 = sphi 0, %s168
      %s172 = sphi 0, %s171
      %s188 = sphi 0, %s172
      %s194 = sphi 0, %s196
      %s197 = sphi 0, %s194
      %s198 = sphi 0, %s197
      %s214 = sphi 0, %s198
      %s218 = sphi 0, %s218
      %s220 = sphi 0, %s218
      %s221 = sphi 0, %s220
      %s235 = sphi 0, %s221
      %s239 = sphi 0, %s239
      %s241 = sphi 0, %s239
      %s242 = sphi 0, %s241
      %s256 = sphi 0, %s242
      %s260 = sphi 0, %s260
      %s262 = sphi 0, %s260
      %s263 = sphi 0, %s262
      %s277 = sphi 0, %s263
      %s281 = sphi 0, %s281
      %s283 = sphi 0, %s281
      %s284 = sphi 0, %s283
      %s298 = sphi 0, %s284
      %s302 = sphi 0, %s302
      %s304 = sphi 0, %s302
      %s305 = sphi 0, %s304
      %s319 = sphi 0, %s305
      %s323 = sphi 0, %s323
      %s325 = sphi 0, %s323
      %s326 = sphi 0, %s325
      %s340 = sphi 0, %s326
      %s344 = sphi 0, %s344
      %s346 = sphi 0, %s344
      %s347 = sphi 0, %s346
      %s361 = sphi 0, %s347
      %s365 = sphi 0, %s365
      %s367 = sphi 0, %s365
      %s368 = sphi 0, %s367
      %s382 = sphi 0, %s368
      %s386 = sphi 0, %s386
      %s388 = sphi 0, %s386
      %s389 = sphi 0, %s388
      %s403 = sphi 0, %s389
      %s407 = sphi 0, %s407
      %s409 = sphi 0, %s407
      %s410 = sphi 0, %s409
      %s424 = sphi 0, %s410
      %s428 = sphi 0, %s428
      %s430 = sphi 0, %s428
      %s431 = sphi 0, %s430
      %s445 = sphi 0, %s431
      %s449 = sphi 0, %s449
      %s451 = sphi 0, %s449
      %s452 = sphi 0, %s451
      %s466 = sphi 0, %s452
      %s472 = sphi 0, %s474
      %s475 = sphi 0, %s472
      %s476 = sphi 0, %s475
      %s492 = sphi 0, %s476
    $region4: #{predict_model_forward.14} parent=1 // loop_header_branch
      %31 = sbr.rel (%p29) target = $region8
    $region5: #{predict_model_forward.14} parent=1 // loop_body
      %s33 = ssub.s32 %s28, 1
      %s34 = ssub.s32 %s28, 2
      %s35 = sadd.s32 %s28, 1
      %s36 = ssub.s32 %s28, %s35
      %p37 = scmp.eq.s32.totalorder %s36, 0
      %s39 = sadd.s32 %s38, 1
      %s40 = scalar_select %p37, %s38, %s39
      %p43 = pneg %p37
      %p44 = scmp.eq.s32.totalorder %s28, 1
      %p45 = por %p43, %p44
      %p46 = scmp.ne.s32.totalorder %s38, %s41
      %p47 = scmp.eq.s32.totalorder %s28, 0
      %p48 = por %p46, %p47
      %p49 = scmp.ne.s32.totalorder %s38, %s41
      %p50 = scmp.eq.s32.totalorder %s33, 1
      %p51 = por %p49, %p50
      %p52 = scmp.ne.s32.totalorder %s41, %s42
      %p53 = scmp.eq.s32.totalorder %s33, 0
      %p54 = por %p52, %p53
      %p55 = scmp.ne.s32.totalorder %s41, %s42
      %p56 = scmp.eq.s32.totalorder %s34, 1
      %p57 = por %p55, %p56
      %p59 = scmp.ne.s32.totalorder %s42, %s58
      %p60 = scmp.eq.s32.totalorder %s34, 0
      %p61 = por %p59, %p60
      %s62 = ssub.s32 %s28, %s35
      %p63 = scmp.eq.s32.totalorder %s62, 0
      %s65 = sadd.s32 %s64, 1
      %s66 = scalar_select %p63, %s64, %s65
      %p69 = pneg %p63
      %p70 = scmp.eq.s32.totalorder %s28, 1
      %p71 = por %p69, %p70
      %p72 = scmp.ne.s32.totalorder %s64, %s67
      %p73 = scmp.eq.s32.totalorder %s28, 0
      %p74 = por %p72, %p73
      %p75 = scmp.ne.s32.totalorder %s64, %s67
      %p76 = scmp.eq.s32.totalorder %s33, 1
      %p77 = por %p75, %p76
      %p78 = scmp.ne.s32.totalorder %s67, %s68
      %p79 = scmp.eq.s32.totalorder %s33, 0
      %p80 = por %p78, %p79
      %p81 = scmp.ne.s32.totalorder %s67, %s68
      %p82 = scmp.eq.s32.totalorder %s34, 1
      %p83 = por %p81, %p82
      %p85 = scmp.ne.s32.totalorder %s68, %s84
      %p86 = scmp.eq.s32.totalorder %s34, 0
      %p87 = por %p85, %p86
      %s88 = ssub.s32 %s28, %s35
      %p89 = scmp.eq.s32.totalorder %s88, 0
      %s91 = sadd.s32 %s90, 1
      %s92 = scalar_select %p89, %s90, %s91
      %p95 = pneg %p89
      %p96 = scmp.eq.s32.totalorder %s28, 1
      %p97 = por %p95, %p96
      %p98 = scmp.ne.s32.totalorder %s90, %s93
      %p99 = scmp.eq.s32.totalorder %s28, 0
      %p100 = por %p98, %p99
      %p101 = scmp.ne.s32.totalorder %s90, %s93
      %p102 = scmp.eq.s32.totalorder %s33, 1
      %p103 = por %p101, %p102
      %p104 = scmp.ne.s32.totalorder %s93, %s94
      %p105 = scmp.eq.s32.totalorder %s33, 0
      %p106 = por %p104, %p105
      %p107 = scmp.ne.s32.totalorder %s93, %s94
      %p108 = scmp.eq.s32.totalorder %s34, 1
      %p109 = por %p107, %p108
      %p111 = scmp.ne.s32.totalorder %s94, %s110
      %p112 = scmp.eq.s32.totalorder %s34, 0
      %p113 = por %p111, %p112
      %s114 = ssub.s32 %s28, %s35
      %p115 = scmp.eq.s32.totalorder %s114, 0
      %s117 = sadd.s32 %s116, 1
      %s118 = scalar_select %p115, %s116, %s117
      %p121 = pneg %p115
      %p122 = scmp.eq.s32.totalorder %s28, 1
      %p123 = por %p121, %p122
      %p124 = scmp.ne.s32.totalorder %s116, %s119
      %p125 = scmp.eq.s32.totalorder %s28, 0
      %p126 = por %p124, %p125
      %p127 = scmp.ne.s32.totalorder %s116, %s119
      %p128 = scmp.eq.s32.totalorder %s33, 1
      %p129 = por %p127, %p128
      %p130 = scmp.ne.s32.totalorder %s119, %s120
      %p131 = scmp.eq.s32.totalorder %s33, 0
      %p132 = por %p130, %p131
      %p133 = scmp.ne.s32.totalorder %s119, %s120
      %p134 = scmp.eq.s32.totalorder %s34, 1
      %p135 = por %p133, %p134
      %p137 = scmp.ne.s32.totalorder %s120, %s136
      %p138 = scmp.eq.s32.totalorder %s34, 0
      %p139 = por %p137, %p138
      %s140 = ssub.s32 %s28, %s35
      %p141 = scmp.eq.s32.totalorder %s140, 0
      %s143 = sadd.s32 %s142, 1
      %s144 = scalar_select %p141, %s142, %s143
      %p147 = pneg %p141
      %p148 = scmp.eq.s32.totalorder %s28, 1
      %p149 = por %p147, %p148
      %p150 = scmp.ne.s32.totalorder %s142, %s145
      %p151 = scmp.eq.s32.totalorder %s28, 0
      %p152 = por %p150, %p151
      %p153 = scmp.ne.s32.totalorder %s142, %s145
      %p154 = scmp.eq.s32.totalorder %s33, 1
      %p155 = por %p153, %p154
      %p156 = scmp.ne.s32.totalorder %s145, %s146
      %p157 = scmp.eq.s32.totalorder %s33, 0
      %p158 = por %p156, %p157
      %p159 = scmp.ne.s32.totalorder %s145, %s146
      %p160 = scmp.eq.s32.totalorder %s34, 1
      %p161 = por %p159, %p160
      %p163 = scmp.ne.s32.totalorder %s146, %s162
      %p164 = scmp.eq.s32.totalorder %s34, 0
      %p165 = por %p163, %p164
      %s166 = ssub.s32 %s28, %s35
      %p167 = scmp.eq.s32.totalorder %s166, 0
      %s169 = sadd.s32 %s168, 1
      %s170 = scalar_select %p167, %s168, %s169
      %p173 = pneg %p167
      %p174 = scmp.eq.s32.totalorder %s28, 1
      %p175 = por %p173, %p174
      %p176 = scmp.ne.s32.totalorder %s168, %s171
      %p177 = scmp.eq.s32.totalorder %s28, 0
      %p178 = por %p176, %p177
      %p179 = scmp.ne.s32.totalorder %s168, %s171
      %p180 = scmp.eq.s32.totalorder %s33, 1
      %p181 = por %p179, %p180
      %p182 = scmp.ne.s32.totalorder %s171, %s172
      %p183 = scmp.eq.s32.totalorder %s33, 0
      %p184 = por %p182, %p183
      %p185 = scmp.ne.s32.totalorder %s171, %s172
      %p186 = scmp.eq.s32.totalorder %s34, 1
      %p187 = por %p185, %p186
      %p189 = scmp.ne.s32.totalorder %s172, %s188
      %p190 = scmp.eq.s32.totalorder %s34, 0
      %p191 = por %p189, %p190
      %s192 = ssub.s32 %s28, %s35
      %p193 = scmp.eq.s32.totalorder %s192, 0
      %s195 = sadd.s32 %s194, 1
      %s196 = scalar_select %p193, %s194, %s195
      %p199 = pneg %p193
      %p200 = scmp.eq.s32.totalorder %s28, 1
      %p201 = por %p199, %p200
      %p202 = scmp.ne.s32.totalorder %s194, %s197
      %p203 = scmp.eq.s32.totalorder %s28, 0
      %p204 = por %p202, %p203
      %p205 = scmp.ne.s32.totalorder %s194, %s197
      %p206 = scmp.eq.s32.totalorder %s33, 1
      %p207 = por %p205, %p206
      %p208 = scmp.ne.s32.totalorder %s197, %s198
      %p209 = scmp.eq.s32.totalorder %s33, 0
      %p210 = por %p208, %p209
      %p211 = scmp.ne.s32.totalorder %s197, %s198
      %p212 = scmp.eq.s32.totalorder %s34, 1
      %p213 = por %p211, %p212
      %p215 = scmp.ne.s32.totalorder %s198, %s214
      %p216 = scmp.eq.s32.totalorder %s34, 0
      %p217 = por %p215, %p216
      %s219 = sadd.s32 %s218, 1
      %p222 = scmp.eq.s32.totalorder %s28, 1
      %p223 = scmp.ne.s32.totalorder %s218, %s220
      %p224 = scmp.eq.s32.totalorder %s28, 0
      %p225 = por %p223, %p224
      %p226 = scmp.ne.s32.totalorder %s218, %s220
      %p227 = scmp.eq.s32.totalorder %s33, 1
      %p228 = por %p226, %p227
      %p229 = scmp.ne.s32.totalorder %s220, %s221
      %p230 = scmp.eq.s32.totalorder %s33, 0
      %p231 = por %p229, %p230
      %p232 = scmp.ne.s32.totalorder %s220, %s221
      %p233 = scmp.eq.s32.totalorder %s34, 1
      %p234 = por %p232, %p233
      %p236 = scmp.ne.s32.totalorder %s221, %s235
      %p237 = scmp.eq.s32.totalorder %s34, 0
      %p238 = por %p236, %p237
      %s240 = sadd.s32 %s239, 1
      %p243 = scmp.eq.s32.totalorder %s28, 1
      %p244 = scmp.ne.s32.totalorder %s239, %s241
      %p245 = scmp.eq.s32.totalorder %s28, 0
      %p246 = por %p244, %p245
      %p247 = scmp.ne.s32.totalorder %s239, %s241
      %p248 = scmp.eq.s32.totalorder %s33, 1
      %p249 = por %p247, %p248
      %p250 = scmp.ne.s32.totalorder %s241, %s242
      %p251 = scmp.eq.s32.totalorder %s33, 0
      %p252 = por %p250, %p251
      %p253 = scmp.ne.s32.totalorder %s241, %s242
      %p254 = scmp.eq.s32.totalorder %s34, 1
      %p255 = por %p253, %p254
      %p257 = scmp.ne.s32.totalorder %s242, %s256
      %p258 = scmp.eq.s32.totalorder %s34, 0
      %p259 = por %p257, %p258
      %s261 = sadd.s32 %s260, 1
      %p264 = scmp.eq.s32.totalorder %s28, 1
      %p265 = scmp.ne.s32.totalorder %s260, %s262
      %p266 = scmp.eq.s32.totalorder %s28, 0
      %p267 = por %p265, %p266
      %p268 = scmp.ne.s32.totalorder %s260, %s262
      %p269 = scmp.eq.s32.totalorder %s33, 1
      %p270 = por %p268, %p269
      %p271 = scmp.ne.s32.totalorder %s262, %s263
      %p272 = scmp.eq.s32.totalorder %s33, 0
      %p273 = por %p271, %p272
      %p274 = scmp.ne.s32.totalorder %s262, %s263
      %p275 = scmp.eq.s32.totalorder %s34, 1
      %p276 = por %p274, %p275
      %p278 = scmp.ne.s32.totalorder %s263, %s277
      %p279 = scmp.eq.s32.totalorder %s34, 0
      %p280 = por %p278, %p279
      %s282 = sadd.s32 %s281, 1
      %p285 = scmp.eq.s32.totalorder %s28, 1
      %p286 = scmp.ne.s32.totalorder %s281, %s283
      %p287 = scmp.eq.s32.totalorder %s28, 0
      %p288 = por %p286, %p287
      %p289 = scmp.ne.s32.totalorder %s281, %s283
      %p290 = scmp.eq.s32.totalorder %s33, 1
      %p291 = por %p289, %p290
      %p292 = scmp.ne.s32.totalorder %s283, %s284
      %p293 = scmp.eq.s32.totalorder %s33, 0
      %p294 = por %p292, %p293
      %p295 = scmp.ne.s32.totalorder %s283, %s284
      %p296 = scmp.eq.s32.totalorder %s34, 1
      %p297 = por %p295, %p296
      %p299 = scmp.ne.s32.totalorder %s284, %s298
      %p300 = scmp.eq.s32.totalorder %s34, 0
      %p301 = por %p299, %p300
      %s303 = sadd.s32 %s302, 1
      %p306 = scmp.eq.s32.totalorder %s28, 1
      %p307 = scmp.ne.s32.totalorder %s302, %s304
      %p308 = scmp.eq.s32.totalorder %s28, 0
      %p309 = por %p307, %p308
      %p310 = scmp.ne.s32.totalorder %s302, %s304
      %p311 = scmp.eq.s32.totalorder %s33, 1
      %p312 = por %p310, %p311
      %p313 = scmp.ne.s32.totalorder %s304, %s305
      %p314 = scmp.eq.s32.totalorder %s33, 0
      %p315 = por %p313, %p314
      %p316 = scmp.ne.s32.totalorder %s304, %s305
      %p317 = scmp.eq.s32.totalorder %s34, 1
      %p318 = por %p316, %p317
      %p320 = scmp.ne.s32.totalorder %s305, %s319
      %p321 = scmp.eq.s32.totalorder %s34, 0
      %p322 = por %p320, %p321
      %s324 = sadd.s32 %s323, 1
      %p327 = scmp.eq.s32.totalorder %s28, 1
      %p328 = scmp.ne.s32.totalorder %s323, %s325
      %p329 = scmp.eq.s32.totalorder %s28, 0
      %p330 = por %p328, %p329
      %p331 = scmp.ne.s32.totalorder %s323, %s325
      %p332 = scmp.eq.s32.totalorder %s33, 1
      %p333 = por %p331, %p332
      %p334 = scmp.ne.s32.totalorder %s325, %s326
      %p335 = scmp.eq.s32.totalorder %s33, 0
      %p336 = por %p334, %p335
      %p337 = scmp.ne.s32.totalorder %s325, %s326
      %p338 = scmp.eq.s32.totalorder %s34, 1
      %p339 = por %p337, %p338
      %p341 = scmp.ne.s32.totalorder %s326, %s340
      %p342 = scmp.eq.s32.totalorder %s34, 0
      %p343 = por %p341, %p342
      %s345 = sadd.s32 %s344, 1
      %p348 = scmp.eq.s32.totalorder %s28, 1
      %p349 = scmp.ne.s32.totalorder %s344, %s346
      %p350 = scmp.eq.s32.totalorder %s28, 0
      %p351 = por %p349, %p350
      %p352 = scmp.ne.s32.totalorder %s344, %s346
      %p353 = scmp.eq.s32.totalorder %s33, 1
      %p354 = por %p352, %p353
      %p355 = scmp.ne.s32.totalorder %s346, %s347
      %p356 = scmp.eq.s32.totalorder %s33, 0
      %p357 = por %p355, %p356
      %p358 = scmp.ne.s32.totalorder %s346, %s347
      %p359 = scmp.eq.s32.totalorder %s34, 1
      %p360 = por %p358, %p359
      %p362 = scmp.ne.s32.totalorder %s347, %s361
      %p363 = scmp.eq.s32.totalorder %s34, 0
      %p364 = por %p362, %p363
      %s366 = sadd.s32 %s365, 1
      %p369 = scmp.eq.s32.totalorder %s28, 1
      %p370 = scmp.ne.s32.totalorder %s365, %s367
      %p371 = scmp.eq.s32.totalorder %s28, 0
      %p372 = por %p370, %p371
      %p373 = scmp.ne.s32.totalorder %s365, %s367
      %p374 = scmp.eq.s32.totalorder %s33, 1
      %p375 = por %p373, %p374
      %p376 = scmp.ne.s32.totalorder %s367, %s368
      %p377 = scmp.eq.s32.totalorder %s33, 0
      %p378 = por %p376, %p377
      %p379 = scmp.ne.s32.totalorder %s367, %s368
      %p380 = scmp.eq.s32.totalorder %s34, 1
      %p381 = por %p379, %p380
      %p383 = scmp.ne.s32.totalorder %s368, %s382
      %p384 = scmp.eq.s32.totalorder %s34, 0
      %p385 = por %p383, %p384
      %s387 = sadd.s32 %s386, 1
      %p390 = scmp.eq.s32.totalorder %s28, 1
      %p391 = scmp.ne.s32.totalorder %s386, %s388
      %p392 = scmp.eq.s32.totalorder %s28, 0
      %p393 = por %p391, %p392
      %p394 = scmp.ne.s32.totalorder %s386, %s388
      %p395 = scmp.eq.s32.totalorder %s33, 1
      %p396 = por %p394, %p395
      %p397 = scmp.ne.s32.totalorder %s388, %s389
      %p398 = scmp.eq.s32.totalorder %s33, 0
      %p399 = por %p397, %p398
      %p400 = scmp.ne.s32.totalorder %s388, %s389
      %p401 = scmp.eq.s32.totalorder %s34, 1
      %p402 = por %p400, %p401
      %p404 = scmp.ne.s32.totalorder %s389, %s403
      %p405 = scmp.eq.s32.totalorder %s34, 0
      %p406 = por %p404, %p405
      %s408 = sadd.s32 %s407, 1
      %p411 = scmp.eq.s32.totalorder %s28, 1
      %p412 = scmp.ne.s32.totalorder %s407, %s409
      %p413 = scmp.eq.s32.totalorder %s28, 0
      %p414 = por %p412, %p413
      %p415 = scmp.ne.s32.totalorder %s407, %s409
      %p416 = scmp.eq.s32.totalorder %s33, 1
      %p417 = por %p415, %p416
      %p418 = scmp.ne.s32.totalorder %s409, %s410
      %p419 = scmp.eq.s32.totalorder %s33, 0
      %p420 = por %p418, %p419
      %p421 = scmp.ne.s32.totalorder %s409, %s410
      %p422 = scmp.eq.s32.totalorder %s34, 1
      %p423 = por %p421, %p422
      %p425 = scmp.ne.s32.totalorder %s410, %s424
      %p426 = scmp.eq.s32.totalorder %s34, 0
      %p427 = por %p425, %p426
      %s429 = sadd.s32 %s428, 1
      %p432 = scmp.eq.s32.totalorder %s28, 1
      %p433 = scmp.ne.s32.totalorder %s428, %s430
      %p434 = scmp.eq.s32.totalorder %s28, 0
      %p435 = por %p433, %p434
      %p436 = scmp.ne.s32.totalorder %s428, %s430
      %p437 = scmp.eq.s32.totalorder %s33, 1
      %p438 = por %p436, %p437
      %p439 = scmp.ne.s32.totalorder %s430, %s431
      %p440 = scmp.eq.s32.totalorder %s33, 0
      %p441 = por %p439, %p440
      %p442 = scmp.ne.s32.totalorder %s430, %s431
      %p443 = scmp.eq.s32.totalorder %s34, 1
      %p444 = por %p442, %p443
      %p446 = scmp.ne.s32.totalorder %s431, %s445
      %p447 = scmp.eq.s32.totalorder %s34, 0
      %p448 = por %p446, %p447
      %s450 = sadd.s32 %s449, 1
      %p453 = scmp.eq.s32.totalorder %s28, 1
      %p454 = scmp.ne.s32.totalorder %s449, %s451
      %p455 = scmp.eq.s32.totalorder %s28, 0
      %p456 = por %p454, %p455
      %p457 = scmp.ne.s32.totalorder %s449, %s451
      %p458 = scmp.eq.s32.totalorder %s33, 1
      %p459 = por %p457, %p458
      %p460 = scmp.ne.s32.totalorder %s451, %s452
      %p461 = scmp.eq.s32.totalorder %s33, 0
      %p462 = por %p460, %p461
      %p463 = scmp.ne.s32.totalorder %s451, %s452
      %p464 = scmp.eq.s32.totalorder %s34, 1
      %p465 = por %p463, %p464
      %p467 = scmp.ne.s32.totalorder %s452, %s466
      %p468 = scmp.eq.s32.totalorder %s34, 0
      %p469 = por %p467, %p468
      %s470 = ssub.s32 %s28, %s35
      %p471 = scmp.eq.s32.totalorder %s470, 0
      %s473 = sadd.s32 %s472, 1
      %s474 = scalar_select %p471, %s472, %s473
      %p477 = pneg %p471
      %p478 = scmp.eq.s32.totalorder %s28, 1
      %p479 = por %p477, %p478
      %p480 = scmp.ne.s32.totalorder %s472, %s475
      %p481 = scmp.eq.s32.totalorder %s28, 0
      %p482 = por %p480, %p481
      %p483 = scmp.ne.s32.totalorder %s472, %s475
      %p484 = scmp.eq.s32.totalorder %s33, 1
      %p485 = por %p483, %p484
      %p486 = scmp.ne.s32.totalorder %s475, %s476
      %p487 = scmp.eq.s32.totalorder %s33, 0
      %p488 = por %p486, %p487
      %p489 = scmp.ne.s32.totalorder %s475, %s476
      %p490 = scmp.eq.s32.totalorder %s34, 1
      %p491 = por %p489, %p490
      %p493 = scmp.ne.s32.totalorder %s476, %s492
      %p494 = scmp.eq.s32.totalorder %s34, 0
      %p495 = por %p493, %p494
      %p496 = scmp.le.s32.totalorder 1, %s28
      %p497 = scmp.lt.s32.totalorder %s28, 3
      %p498 = pnand %p496, %p497
      %p499 = pneg %p498
      // Predicated region
      $region9: #{predict_model_forward.14} parent=5 // pred_check
        _
      $region10: #{predict_model_forward.14} parent=5 // pred_check_branch
        %501 = sbr.rel (%p498) target = $region12
      $region11: #{predict_model_forward.14} parent=5 // pred_region
        %s502 = ssub.s32 %s28, 1
        // Predicated region
        $region13: #{predict_model_forward.14} parent=11 // pred_check
          %p503 = pneg %p231
        $region14: #{predict_model_forward.14} parent=11 // pred_check_branch
          %505 = sbr.rel (%p503) target = $region16
        $region15: #{predict_model_forward.14} parent=11 // pred_region
          _
        $region16: #{predict_model_forward.14} parent=11 // pred_fallthru
          _
        // Predicated region
        $region17: #{predict_model_forward.14} parent=11 // pred_check
          %p506 = pneg %p252
        $region18: #{predict_model_forward.14} parent=11 // pred_check_branch
          %508 = sbr.rel (%p506) target = $region20
        $region19: #{predict_model_forward.14} parent=11 // pred_region
          _
        $region20: #{predict_model_forward.14} parent=11 // pred_fallthru
          _
        // Predicated region
        $region21: #{predict_model_forward.14} parent=11 // pred_check
          %p509 = pneg %p273
        $region22: #{predict_model_forward.14} parent=11 // pred_check_branch
          %511 = sbr.rel (%p509) target = $region24
        $region23: #{predict_model_forward.14} parent=11 // pred_region
          _
        $region24: #{predict_model_forward.14} parent=11 // pred_fallthru
          _
        // Predicated region
        $region25: #{predict_model_forward.14} parent=11 // pred_check
          %p512 = pneg %p294
        $region26: #{predict_model_forward.14} parent=11 // pred_check_branch
          %514 = sbr.rel (%p512) target = $region28
        $region27: #{predict_model_forward.14} parent=11 // pred_region
          _
        $region28: #{predict_model_forward.14} parent=11 // pred_fallthru
          _
        // Predicated region
        $region29: #{predict_model_forward.14} parent=11 // pred_check
          %p515 = pneg %p315
        $region30: #{predict_model_forward.14} parent=11 // pred_check_branch
          %517 = sbr.rel (%p515) target = $region32
        $region31: #{predict_model_forward.14} parent=11 // pred_region
          _
        $region32: #{predict_model_forward.14} parent=11 // pred_fallthru
          _
        // Predicated region
        $region33: #{predict_model_forward.14} parent=11 // pred_check
          %p518 = pneg %p336
        $region34: #{predict_model_forward.14} parent=11 // pred_check_branch
          %520 = sbr.rel (%p518) target = $region36
        $region35: #{predict_model_forward.14} parent=11 // pred_region
          _
        $region36: #{predict_model_forward.14} parent=11 // pred_fallthru
          _
        // Predicated region
        $region37: #{predict_model_forward.14} parent=11 // pred_check
          %p521 = pneg %p357
        $region38: #{predict_model_forward.14} parent=11 // pred_check_branch
          %523 = sbr.rel (%p521) target = $region40
        $region39: #{predict_model_forward.14} parent=11 // pred_region
          _
        $region40: #{predict_model_forward.14} parent=11 // pred_fallthru
          _
        // Predicated region
        $region41: #{predict_model_forward.14} parent=11 // pred_check
          %p524 = pneg %p378
        $region42: #{predict_model_forward.14} parent=11 // pred_check_branch
          %526 = sbr.rel (%p524) target = $region44
        $region43: #{predict_model_forward.14} parent=11 // pred_region
          _
        $region44: #{predict_model_forward.14} parent=11 // pred_fallthru
          _
        // Predicated region
        $region45: #{predict_model_forward.14} parent=11 // pred_check
          %p527 = pneg %p399
        $region46: #{predict_model_forward.14} parent=11 // pred_check_branch
          %529 = sbr.rel (%p527) target = $region48
        $region47: #{predict_model_forward.14} parent=11 // pred_region
          _
        $region48: #{predict_model_forward.14} parent=11 // pred_fallthru
          _
        // Predicated region
        $region49: #{predict_model_forward.14} parent=11 // pred_check
          %p530 = pneg %p420
        $region50: #{predict_model_forward.14} parent=11 // pred_check_branch
          %532 = sbr.rel (%p530) target = $region52
        $region51: #{predict_model_forward.14} parent=11 // pred_region
          _
        $region52: #{predict_model_forward.14} parent=11 // pred_fallthru
          _
        // Predicated region
        $region53: #{predict_model_forward.14} parent=11 // pred_check
          %p533 = pneg %p441
        $region54: #{predict_model_forward.14} parent=11 // pred_check_branch
          %535 = sbr.rel (%p533) target = $region56
        $region55: #{predict_model_forward.14} parent=11 // pred_region
          _
        $region56: #{predict_model_forward.14} parent=11 // pred_fallthru
          _
        // Predicated region
        $region57: #{predict_model_forward.14} parent=11 // pred_check
          %p536 = pneg %p462
        $region58: #{predict_model_forward.14} parent=11 // pred_check_branch
          %538 = sbr.rel (%p536) target = $region60
        $region59: #{predict_model_forward.14} parent=11 // pred_region
          _
        $region60: #{predict_model_forward.14} parent=11 // pred_fallthru
          _
      $region12: #{predict_model_forward.14} parent=5 // pred_fallthru
        _
      %p539 = scmp.lt.s32.totalorder %s28, 2
      // Predicated region
      $region61: #{predict_model_forward.14} parent=5 // pred_check
        %p540 = pneg %p539
      $region62: #{predict_model_forward.14} parent=5 // pred_check_branch
        %542 = sbr.rel (%p540) target = $region64
      $region63: #{predict_model_forward.14} parent=5 // pred_region
        // Predicated region
        $region65: #{predict_model_forward.14} parent=63 // pred_check
          %p543 = pneg %p48
        $region66: #{predict_model_forward.14} parent=63 // pred_check_branch
          %545 = sbr.rel (%p543) target = $region68
        $region67: #{predict_model_forward.14} parent=63 // pred_region
          %p546 = scmp.lt.s32.totalorder %s28, 1
          %s547 = scalar_select %p546, %s28, 1
          %s548 = smul.addr %s547, 8
          %s549 = scalar_lea.vmem %s0, %s548
        $region68: #{predict_model_forward.14} parent=63 // pred_fallthru
          _
        // Predicated region
        $region69: #{predict_model_forward.14} parent=63 // pred_check
          %p550 = pneg %p74
        $region70: #{predict_model_forward.14} parent=63 // pred_check_branch
          %552 = sbr.rel (%p550) target = $region72
        $region71: #{predict_model_forward.14} parent=63 // pred_region
          %p553 = scmp.lt.s32.totalorder %s28, 1
          %s554 = scalar_select %p553, %s28, 1
          %s555 = scalar_lea.vmem %s1, %s554
        $region72: #{predict_model_forward.14} parent=63 // pred_fallthru
          _
        // Predicated region
        $region73: #{predict_model_forward.14} parent=63 // pred_check
          %p556 = pneg %p100
        $region74: #{predict_model_forward.14} parent=63 // pred_check_branch
          %558 = sbr.rel (%p556) target = $region76
        $region75: #{predict_model_forward.14} parent=63 // pred_region
          %p559 = scmp.lt.s32.totalorder %s28, 1
          %s560 = scalar_select %p559, %s28, 1
          %s561 = smul.addr %s560, 4
          %s562 = scalar_lea.vmem %s2, %s561
        $region76: #{predict_model_forward.14} parent=63 // pred_fallthru
          _
        // Predicated region
        $region77: #{predict_model_forward.14} parent=63 // pred_check
          %p563 = pneg %p126
        $region78: #{predict_model_forward.14} parent=63 // pred_check_branch
          %565 = sbr.rel (%p563) target = $region80
        $region79: #{predict_model_forward.14} parent=63 // pred_region
          %p566 = scmp.lt.s32.totalorder %s28, 1
          %s567 = scalar_select %p566, %s28, 1
          %s568 = smul.addr %s567, 8
          %s569 = scalar_lea.vmem %s3, %s568
        $region80: #{predict_model_forward.14} parent=63 // pred_fallthru
          _
        // Predicated region
        $region81: #{predict_model_forward.14} parent=63 // pred_check
          %p570 = pneg %p152
        $region82: #{predict_model_forward.14} parent=63 // pred_check_branch
          %572 = sbr.rel (%p570) target = $region84
        $region83: #{predict_model_forward.14} parent=63 // pred_region
          %p573 = scmp.lt.s32.totalorder %s28, 1
          %s574 = scalar_select %p573, %s28, 1
          %s575 = smul.addr %s574, 4
          %s576 = scalar_lea.vmem %s4, %s575
        $region84: #{predict_model_forward.14} parent=63 // pred_fallthru
          _
        // Predicated region
        $region85: #{predict_model_forward.14} parent=63 // pred_check
          %p577 = pneg %p178
        $region86: #{predict_model_forward.14} parent=63 // pred_check_branch
          %579 = sbr.rel (%p577) target = $region88
        $region87: #{predict_model_forward.14} parent=63 // pred_region
          %p580 = scmp.lt.s32.totalorder %s28, 1
          %s581 = scalar_select %p580, %s28, 1
          %s582 = smul.addr %s581, 4
          %s583 = scalar_lea.vmem %s5, %s582
        $region88: #{predict_model_forward.14} parent=63 // pred_fallthru
          _
        // Predicated region
        $region89: #{predict_model_forward.14} parent=63 // pred_check
          %p584 = pneg %p204
        $region90: #{predict_model_forward.14} parent=63 // pred_check_branch
          %586 = sbr.rel (%p584) target = $region92
        $region91: #{predict_model_forward.14} parent=63 // pred_region
          %p587 = scmp.lt.s32.totalorder %s28, 1
          %s588 = scalar_select %p587, %s28, 1
          %s589 = scalar_lea.vmem %s6, %s588
        $region92: #{predict_model_forward.14} parent=63 // pred_fallthru
          _
      $region64: #{predict_model_forward.14} parent=5 // pred_fallthru
        _
      %p590 = scmp.le.s32.totalorder 1, %s28
      %p591 = scmp.lt.s32.totalorder %s28, 3
      %p592 = pnand %p590, %p591
      %p593 = pneg %p592
      // Predicated region
      $region93: #{predict_model_forward.14} parent=5 // pred_check
        _
      $region94: #{predict_model_forward.14} parent=5 // pred_check_branch
        %595 = sbr.rel (%p592) target = $region96
      $region95: #{predict_model_forward.14} parent=5 // pred_region
        %s596 = ssub.s32 %s28, 1
        %p597 = scmp.lt.s32.totalorder %s33, 1
        %s598 = scalar_select %p597, %s33, 1
        %s599 = smul.addr %s598, 8
        %s600 = scalar_lea.vmem %s0, %s599
        %p601 = pneg %p54
        %p602 = pneg %p51
        %p603 = scmp.lt.s32.totalorder %s33, 1
        %s604 = scalar_select %p603, %s33, 1
        %s605 = scalar_lea.vmem %s1, %s604
        %p606 = pneg %p80
        %p607 = pneg %p77
        %p608 = scmp.lt.s32.totalorder %s33, 1
        %s609 = scalar_select %p608, %s33, 1
        %s610 = smul.addr %s609, 4
        %s611 = scalar_lea.vmem %s2, %s610
        %p612 = pneg %p106
        %p613 = pneg %p103
        %p614 = scmp.lt.s32.totalorder %s33, 1
        %s615 = scalar_select %p614, %s33, 1
        %s616 = smul.addr %s615, 8
        %s617 = scalar_lea.vmem %s3, %s616
        %p618 = pneg %p132
        %p619 = pneg %p129
        %p620 = scmp.lt.s32.totalorder %s33, 1
        %s621 = scalar_select %p620, %s33, 1
        %s622 = smul.addr %s621, 4
        %s623 = scalar_lea.vmem %s4, %s622
        %p624 = pneg %p158
        %p625 = pneg %p155
        %p626 = scmp.lt.s32.totalorder %s33, 1
        %s627 = scalar_select %p626, %s33, 1
        %s628 = smul.addr %s627, 4
        %s629 = scalar_lea.vmem %s5, %s628
        %p630 = pneg %p184
        %p631 = pneg %p181
        %p632 = scmp.lt.s32.totalorder %s33, 1
        %s633 = scalar_select %p632, %s33, 1
        %s634 = scalar_lea.vmem %s6, %s633
        %p635 = pneg %p210
        %p636 = pneg %p207
        %p637 = pneg %p231
        %p638 = pneg %p228
        %p639 = pneg %p252
        %p640 = pneg %p249
        %p641 = pneg %p273
        %p642 = pneg %p270
        %p643 = pneg %p294
        %p644 = pneg %p291
        %p645 = pneg %p315
        %p646 = pneg %p312
        %p647 = pneg %p336
        %p648 = pneg %p333
        %p649 = pneg %p357
        %p650 = pneg %p354
        %p651 = pneg %p378
        %p652 = pneg %p375
        %p653 = pneg %p399
        %p654 = pneg %p396
        %p655 = pneg %p420
        %p656 = pneg %p417
        %p657 = pneg %p441
        %p658 = pneg %p438
        %p659 = pneg %p462
        %p660 = pneg %p459
        %p661 = pneg %p488
        %p662 = pneg %p485
        %s663 = sand.u32 %s475, 1
        %s664 = scalar_lea.sflag [#allocation3], %s663
        %s665 = sand.u32 %s475, 1
        %s666 = scalar_lea.vmem [#allocation2], %s665
        %p667 = scmp.lt.s32.totalorder %s33, 1
        %s668 = scalar_select %p667, %s33, 1
        %s669 = smul.addr %s668, 8
        %s670 = scalar_lea.vmem %s0, %s669
        %p671 = scmp.lt.s32.totalorder %s33, 1
        %s672 = scalar_select %p671, %s33, 1
        %s673 = scalar_lea.vmem %s1, %s672
        %p674 = scmp.lt.s32.totalorder %s33, 1
        %s675 = scalar_select %p674, %s33, 1
        %s676 = smul.addr %s675, 4
        %s677 = scalar_lea.vmem %s2, %s676
        %p678 = scmp.lt.s32.totalorder %s33, 1
        %s679 = scalar_select %p678, %s33, 1
        %s680 = smul.addr %s679, 8
        %s681 = scalar_lea.vmem %s3, %s680
        %p682 = scmp.lt.s32.totalorder %s33, 1
        %s683 = scalar_select %p682, %s33, 1
        %s684 = smul.addr %s683, 4
        %s685 = scalar_lea.vmem %s4, %s684
        %p686 = scmp.lt.s32.totalorder %s33, 1
        %s687 = scalar_select %p686, %s33, 1
        %s688 = smul.addr %s687, 4
        %s689 = scalar_lea.vmem %s5, %s688
        %p690 = scmp.lt.s32.totalorder %s33, 1
        %s691 = scalar_select %p690, %s33, 1
        %s692 = scalar_lea.vmem %s6, %s691
        %v694 = vld [vmem:[%s670] sm:$0xff]
        %v695 = vld [vmem:[%s673] sm:$0x1]
        %v696 = vld [vmem:[%s677] sm:$0x7]
        %v697 = vld [vmem:[%s681] sm:$0xff]
        %v698 = vld [vmem:[%s7] sm:$0xf]
        %v699 = vld [vmem:[%s7 + $0x4] sm:$0xf]
        %v700 = vld [vmem:[%s7 + $0x8] sm:$0xf]
        %v701 = vld [vmem:[%s7 + $0xc] sm:$0xf]
        %v702 = vpack.c.bf16 %v696, %v696
        %v703 = vld [vmem:[%s8] sm:$0x1]
        %v705 = vlaneseq
        %v706 = vshrl.u32 %v705, 7
        %v707 = vsub.s32 0, %v706
        %v708 = vrot.slane %v703, %v707
        %v714 = vunpack.c.l.b16 %v698
        %v715 = vunpack.c.l.b16 %v699
        %v716 = vunpack.c.l.b16 %v700
        %v717 = vunpack.c.l.b16 %v701
        %v718 = vpack.c.b16 %v715, %v714
        %v719 = vpack.c.b16 %v717, %v716
        %vm722 = vcmask 261120
        %v724 = vsel %vm722, %v702, 0
        %726 = vmatprep.subr.bf16.mxu0 0
        %727 = vmatpush1.bf16.msra.mxu0 0
        %728 = vmatprep.subr.bf16.mxu0 0
        %729 = vmatpush1.bf16.msra.mxu0 0
        %730 = vmatprep.subr.bf16.mxu0 0
        %731 = vmatpush1.bf16.msra.mxu0 0
        %732 = vmatprep.subr.bf16.mxu0 0
        %733 = vmatpush1.bf16.msra.mxu0 0
        %734 = vmatprep.subr.bf16.mxu0 0
        %735 = vmatpush1.bf16.msra.mxu0 0
        %736 = vmatprep.subr.bf16.mxu0 0
        %737 = vmatpush1.bf16.msra.mxu0 0
        %738 = vmatprep.subr.bf16.mxu0 0
        %739 = vmatpush1.bf16.msra.mxu0 %v719
        %740 = vmatprep.subr.bf16.mxu0 0
        %741 = vmatpush1.bf16.msra.mxu0 %v718
        %742 = vmatprep.subr.bf16.mxu0 0
        %743 = vmatpush2.bf16.msra.mxu0 0
        %744 = vmatprep.subr.bf16.mxu0 0
        %745 = vmatpush2.bf16.msra.mxu0 0
        %746 = vmatprep.subr.bf16.mxu0 0
        %747 = vmatpush2.bf16.msra.mxu0 0
        %748 = vmatprep.subr.bf16.mxu0 0
        %749 = vmatpush2.bf16.msra.mxu0 0
        %750 = vmatprep.subr.bf16.mxu0 0
        %751 = vmatpush2.bf16.msra.mxu0 0
        %752 = vmatprep.subr.bf16.mxu0 0
        %753 = vmatpush2.bf16.msra.mxu0 0
        %754 = vmatprep.subr.bf16.mxu0 0
        %755 = vmatpush2.bf16.msra.mxu0 0
        %756 = vmatprep.subr.bf16.mxu0 0
        %757 = vmatpush2.bf16.msra.mxu0 0
        %758 = vmatprep.mubr.bf16.mxu0 0
        %759 = vmatmul.mubr.bf16.gmra.mxu0 %v724
        %v760 = vpop.f32.mrf.mxu0
        %v761 = vadd.f32 %v708, %v760
        %v762 = vpop.f32.mrf.mxu0
        %v763 = vpop.f32.mrf.mxu0
        %v764 = vpop.f32.mrf.mxu0
        %765 = vdwg.mxu0
        %v766 = vpack.c.bf16 %v697, %v697
        %v767 = vpack.c.bf16 %v761, %v761
        %vm768 = vcmask 23552
        %v770 = vsel %vm768, %v766, 0
        %vm772 = vcmask 1040384
        %vm773 = vcmask 1041408
        %v774 = vsel %vm772, 4294967295, 65535
        %v775 = vsel %vm773, %v774, 0
        %v777 = vand.u32 %v767, %v775
        %779 = vmatprep.subr.bf16.mxu0 0
        %780 = vmatpush1.bf16.msra.mxu0 0
        %781 = vmatprep.subr.bf16.mxu0 0
        %782 = vmatpush1.bf16.msra.mxu0 0
        %783 = vmatprep.subr.bf16.mxu0 0
        %784 = vmatpush1.bf16.msra.mxu0 0
        %785 = vmatprep.subr.bf16.mxu0 0
        %786 = vmatpush1.bf16.msra.mxu0 0
        %787 = vmatprep.subr.bf16.mxu0 0
        %788 = vmatpush1.bf16.msra.mxu0 0
        %789 = vmatprep.subr.bf16.mxu0 0
        %790 = vmatpush1.bf16.msra.mxu0 0
        %791 = vmatprep.subr.bf16.mxu0 0
        %792 = vmatpush1.bf16.msra.mxu0 0
        %793 = vmatprep.subr.bf16.mxu0 0
        %794 = vmatpush1.bf16.msra.mxu0 %v777
        %795 = vmatprep.subr.bf16.mxu0 0
        %796 = vmatpush2.bf16.msra.mxu0 0
        %797 = vmatprep.subr.bf16.mxu0 0
        %798 = vmatpush2.bf16.msra.mxu0 0
        %799 = vmatprep.subr.bf16.mxu0 0
        %800 = vmatpush2.bf16.msra.mxu0 0
        %801 = vmatprep.subr.bf16.mxu0 0
        %802 = vmatpush2.bf16.msra.mxu0 0
        %803 = vmatprep.subr.bf16.mxu0 0
        %804 = vmatpush2.bf16.msra.mxu0 0
        %805 = vmatprep.subr.bf16.mxu0 0
        %806 = vmatpush2.bf16.msra.mxu0 0
        %807 = vmatprep.subr.bf16.mxu0 0
        %808 = vmatpush2.bf16.msra.mxu0 0
        %809 = vmatprep.subr.bf16.mxu0 0
        %810 = vmatpush2.bf16.msra.mxu0 0
        %811 = vmatprep.mubr.bf16.mxu0 0
        %812 = vmatmul.mubr.bf16.gmra.mxu0 %v770
        %v813 = vpop.f32.mrf.mxu0
        %v814 = vadd.f32 0.0, %v813
        %v815 = vpop.f32.mrf.mxu0
        %v816 = vpop.f32.mrf.mxu0
        %v817 = vpop.f32.mrf.mxu0
        %818 = vdwg.mxu0
        %v819 = vmul.f32 %v814, %v814
        %v820 = vsel %vm722, %v819, 0.0
        %821 = vadd.xlane.f32.xlu0 %v820
        %v822 = vpop.xlane.xlu0 %821
        %v823 = vadd.f32 %v822, 1e-30
        %v824 = vrsqrt.pop %v823
        %v825 = vmul.f32 %v814, %v824
        %v826 = vld [vmem:[%s9] sm:$0xf]
        %v827 = vld [vmem:[%s9 + $0x4] sm:$0xf]
        %v828 = vld [vmem:[%s9 + $0x8] sm:$0xf]
        %v829 = vld [vmem:[%s9 + $0xc] sm:$0xf]
        %v830 = vpack.c.bf16 %v694, %v694
        %v831 = vld [vmem:[%s10] sm:$0x1]
        %v833 = vlaneseq
        %v834 = vshrl.u32 %v833, 7
        %v835 = vsub.s32 0, %v834
        %v836 = vrot.slane %v831, %v835
        %v842 = vunpack.c.l.b16 %v826
        %v843 = vunpack.c.l.b16 %v827
        %v844 = vunpack.c.l.b16 %v828
        %v845 = vunpack.c.l.b16 %v829
        %v846 = vpack.c.b16 %v843, %v842
        %v847 = vpack.c.b16 %v845, %v844
        %v851 = vsel %vm722, %v830, 0
        %853 = vmatprep.subr.bf16.mxu0 0
        %854 = vmatpush1.bf16.msra.mxu0 0
        %855 = vmatprep.subr.bf16.mxu0 0
        %856 = vmatpush1.bf16.msra.mxu0 0
        %857 = vmatprep.subr.bf16.mxu0 0
        %858 = vmatpush1.bf16.msra.mxu0 0
        %859 = vmatprep.subr.bf16.mxu0 0
        %860 = vmatpush1.bf16.msra.mxu0 0
        %861 = vmatprep.subr.bf16.mxu0 0
        %862 = vmatpush1.bf16.msra.mxu0 0
        %863 = vmatprep.subr.bf16.mxu0 0
        %864 = vmatpush1.bf16.msra.mxu0 0
        %865 = vmatprep.subr.bf16.mxu0 0
        %866 = vmatpush1.bf16.msra.mxu0 %v847
        %867 = vmatprep.subr.bf16.mxu0 0
        %868 = vmatpush1.bf16.msra.mxu0 %v846
        %869 = vmatprep.subr.bf16.mxu0 0
        %870 = vmatpush2.bf16.msra.mxu0 0
        %871 = vmatprep.subr.bf16.mxu0 0
        %872 = vmatpush2.bf16.msra.mxu0 0
        %873 = vmatprep.subr.bf16.mxu0 0
        %874 = vmatpush2.bf16.msra.mxu0 0
        %875 = vmatprep.subr.bf16.mxu0 0
        %876 = vmatpush2.bf16.msra.mxu0 0
        %877 = vmatprep.subr.bf16.mxu0 0
        %878 = vmatpush2.bf16.msra.mxu0 0
        %879 = vmatprep.subr.bf16.mxu0 0
        %880 = vmatpush2.bf16.msra.mxu0 0
        %881 = vmatprep.subr.bf16.mxu0 0
        %882 = vmatpush2.bf16.msra.mxu0 0
        %883 = vmatprep.subr.bf16.mxu0 0
        %884 = vmatpush2.bf16.msra.mxu0 0
        %885 = vmatprep.mubr.bf16.mxu0 0
        %886 = vmatmul.mubr.bf16.gmra.mxu0 %v851
        %v887 = vpop.f32.mrf.mxu0
        %v888 = vadd.f32 %v836, %v887
        %v889 = vpop.f32.mrf.mxu0
        %v890 = vpop.f32.mrf.mxu0
        %v891 = vpop.f32.mrf.mxu0
        %892 = vdwg.mxu0
        %v893 = vld [vmem:[%s685] sm:$0xf]
        %v894 = vpack.c.bf16 %v888, %v888
        %vm895 = vcmask 64512
        %v897 = vsel %vm895, %v893, 0
        %vm899 = vcmask 1043456
        %v901 = vsel %vm899, %v894, 0
        %903 = vmatprep.subr.bf16.mxu0 0
        %904 = vmatpush1.bf16.msra.mxu0 0
        %905 = vmatprep.subr.bf16.mxu0 0
        %906 = vmatpush1.bf16.msra.mxu0 0
        %907 = vmatprep.subr.bf16.mxu0 0
        %908 = vmatpush1.bf16.msra.mxu0 0
        %909 = vmatprep.subr.bf16.mxu0 0
        %910 = vmatpush1.bf16.msra.mxu0 0
        %911 = vmatprep.subr.bf16.mxu0 0
        %912 = vmatpush1.bf16.msra.mxu0 0
        %913 = vmatprep.subr.bf16.mxu0 0
        %914 = vmatpush1.bf16.msra.mxu0 0
        %915 = vmatprep.subr.bf16.mxu0 0
        %916 = vmatpush1.bf16.msra.mxu0 0
        %917 = vmatprep.subr.bf16.mxu0 0
        %918 = vmatpush1.bf16.msra.mxu0 %v901
        %919 = vmatprep.subr.bf16.mxu0 0
        %920 = vmatpush2.bf16.msra.mxu0 0
        %921 = vmatprep.subr.bf16.mxu0 0
        %922 = vmatpush2.bf16.msra.mxu0 0
        %923 = vmatprep.subr.bf16.mxu0 0
        %924 = vmatpush2.bf16.msra.mxu0 0
        %925 = vmatprep.subr.bf16.mxu0 0
        %926 = vmatpush2.bf16.msra.mxu0 0
        %927 = vmatprep.subr.bf16.mxu0 0
        %928 = vmatpush2.bf16.msra.mxu0 0
        %929 = vmatprep.subr.bf16.mxu0 0
        %930 = vmatpush2.bf16.msra.mxu0 0
        %931 = vmatprep.subr.bf16.mxu0 0
        %932 = vmatpush2.bf16.msra.mxu0 0
        %933 = vmatprep.subr.bf16.mxu0 0
        %934 = vmatpush2.bf16.msra.mxu0 0
        %935 = vmatprep.mubr.bf16.mxu0 0
        %936 = vmatmul.mubr.bf16.gmra.mxu0 %v897
        %v937 = vpop.f32.mrf.mxu0
        %v938 = vadd.f32 0.0, %v937
        %v939 = vpop.f32.mrf.mxu0
        %v940 = vpop.f32.mrf.mxu0
        %v941 = vpop.f32.mrf.mxu0
        %942 = vdwg.mxu0
        %v943 = vmul.f32 %v938, %v938
        %v944 = vsel %vm722, %v943, 0.0
        %945 = vadd.xlane.f32.xlu0 %v944
        %v946 = vpop.xlane.xlu0 %945
        %v947 = vadd.f32 %v946, 1e-30
        %v948 = vrsqrt.pop %v947
        %v949 = vmul.f32 %v938, %v948
        %v950 = vld [vmem:[%s11] sm:$0xf]
        %v951 = vld [vmem:[%s11 + $0x4] sm:$0xf]
        %v952 = vld [vmem:[%s11 + $0x8] sm:$0xf]
        %v953 = vld [vmem:[%s11 + $0xc] sm:$0xf]
        %v954 = vld [vmem:[%s12] sm:$0x1]
        %v956 = vlaneseq
        %v957 = vshrl.u32 %v956, 7
        %v958 = vsub.s32 0, %v957
        %v959 = vrot.slane %v954, %v958
        %v965 = vunpack.c.l.b16 %v950
        %v966 = vunpack.c.l.b16 %v951
        %v967 = vunpack.c.l.b16 %v952
        %v968 = vunpack.c.l.b16 %v953
        %v969 = vpack.c.b16 %v966, %v965
        %v970 = vpack.c.b16 %v968, %v967
        %973 = vmatprep.subr.bf16.mxu0 0
        %974 = vmatpush1.bf16.msra.mxu0 0
        %975 = vmatprep.subr.bf16.mxu0 0
        %976 = vmatpush1.bf16.msra.mxu0 0
        %977 = vmatprep.subr.bf16.mxu0 0
        %978 = vmatpush1.bf16.msra.mxu0 0
        %979 = vmatprep.subr.bf16.mxu0 0
        %980 = vmatpush1.bf16.msra.mxu0 0
        %981 = vmatprep.subr.bf16.mxu0 0
        %982 = vmatpush1.bf16.msra.mxu0 0
        %983 = vmatprep.subr.bf16.mxu0 0
        %984 = vmatpush1.bf16.msra.mxu0 0
        %985 = vmatprep.subr.bf16.mxu0 0
        %986 = vmatpush1.bf16.msra.mxu0 %v970
        %987 = vmatprep.subr.bf16.mxu0 0
        %988 = vmatpush1.bf16.msra.mxu0 %v969
        %989 = vmatprep.subr.bf16.mxu0 0
        %990 = vmatpush2.bf16.msra.mxu0 0
        %991 = vmatprep.subr.bf16.mxu0 0
        %992 = vmatpush2.bf16.msra.mxu0 0
        %993 = vmatprep.subr.bf16.mxu0 0
        %994 = vmatpush2.bf16.msra.mxu0 0
        %995 = vmatprep.subr.bf16.mxu0 0
        %996 = vmatpush2.bf16.msra.mxu0 0
        %997 = vmatprep.subr.bf16.mxu0 0
        %998 = vmatpush2.bf16.msra.mxu0 0
        %999 = vmatprep.subr.bf16.mxu0 0
        %1000 = vmatpush2.bf16.msra.mxu0 0
        %1001 = vmatprep.subr.bf16.mxu0 0
        %1002 = vmatpush2.bf16.msra.mxu0 0
        %1003 = vmatprep.subr.bf16.mxu0 0
        %1004 = vmatpush2.bf16.msra.mxu0 0
        %1005 = vmatprep.mubr.bf16.mxu0 0
        %1006 = vmatmul.mubr.bf16.gmra.mxu0 %v851
        %v1007 = vpop.f32.mrf.mxu0
        %v1008 = vadd.f32 %v959, %v1007
        %v1009 = vpop.f32.mrf.mxu0
        %v1010 = vpop.f32.mrf.mxu0
        %v1011 = vpop.f32.mrf.mxu0
        %1012 = vdwg.mxu0
        %v1013 = vld [vmem:[%s689] sm:$0xf]
        %v1014 = vpack.c.bf16 %v1008, %v1008
        %v1016 = vsel %vm895, %v1013, 0
        %v1019 = vsel %vm899, %v1014, 0
        %1021 = vmatprep.subr.bf16.mxu0 0
        %1022 = vmatpush1.bf16.msra.mxu0 0
        %1023 = vmatprep.subr.bf16.mxu0 0
        %1024 = vmatpush1.bf16.msra.mxu0 0
        %1025 = vmatprep.subr.bf16.mxu0 0
        %1026 = vmatpush1.bf16.msra.mxu0 0
        %1027 = vmatprep.subr.bf16.mxu0 0
        %1028 = vmatpush1.bf16.msra.mxu0 0
        %1029 = vmatprep.subr.bf16.mxu0 0
        %1030 = vmatpush1.bf16.msra.mxu0 0
        %1031 = vmatprep.subr.bf16.mxu0 0
        %1032 = vmatpush1.bf16.msra.mxu0 0
        %1033 = vmatprep.subr.bf16.mxu0 0
        %1034 = vmatpush1.bf16.msra.mxu0 0
        %1035 = vmatprep.subr.bf16.mxu0 0
        %1036 = vmatpush1.bf16.msra.mxu0 %v1019
        %1037 = vmatprep.subr.bf16.mxu0 0
        %1038 = vmatpush2.bf16.msra.mxu0 0
        %1039 = vmatprep.subr.bf16.mxu0 0
        %1040 = vmatpush2.bf16.msra.mxu0 0
        %1041 = vmatprep.subr.bf16.mxu0 0
        %1042 = vmatpush2.bf16.msra.mxu0 0
        %1043 = vmatprep.subr.bf16.mxu0 0
        %1044 = vmatpush2.bf16.msra.mxu0 0
        %1045 = vmatprep.subr.bf16.mxu0 0
        %1046 = vmatpush2.bf16.msra.mxu0 0
        %1047 = vmatprep.subr.bf16.mxu0 0
        %1048 = vmatpush2.bf16.msra.mxu0 0
        %1049 = vmatprep.subr.bf16.mxu0 0
        %1050 = vmatpush2.bf16.msra.mxu0 0
        %1051 = vmatprep.subr.bf16.mxu0 0
        %1052 = vmatpush2.bf16.msra.mxu0 0
        %1053 = vmatprep.mubr.bf16.mxu0 0
        %1054 = vmatmul.mubr.bf16.gmra.mxu0 %v1016
        %v1055 = vpop.f32.mrf.mxu0
        %v1056 = vadd.f32 0.0, %v1055
        %v1057 = vpop.f32.mrf.mxu0
        %v1058 = vpop.f32.mrf.mxu0
        %v1059 = vpop.f32.mrf.mxu0
        %1060 = vdwg.mxu0
        %v1061 = vmul.f32 %v1056, %v1056
        %v1062 = vsel %vm722, %v1061, 0.0
        %1063 = vadd.xlane.f32.xlu0 %v1062
        %v1064 = vpop.xlane.xlu0 %1063
        %v1065 = vadd.f32 %v1064, 1e-30
        %v1066 = vrsqrt.pop %v1065
        %v1067 = vmul.f32 %v1056, %v1066
        %v1068 = vld [vmem:[%s13] sm:$0xf]
        %v1069 = vld [vmem:[%s13 + $0x4] sm:$0xf]
        %v1070 = vld [vmem:[%s13 + $0x8] sm:$0xf]
        %v1071 = vld [vmem:[%s13 + $0xc] sm:$0xf]
        %v1072 = vpack.c.bf16 %v825, %v825
        %v1073 = vld [vmem:[%s13 + $0x10] sm:$0xf]
        %v1074 = vld [vmem:[%s13 + $0x14] sm:$0xf]
        %v1075 = vld [vmem:[%s13 + $0x18] sm:$0xf]
        %v1076 = vld [vmem:[%s13 + $0x1c] sm:$0xf]
        %v1077 = vpack.c.bf16 %v949, %v949
        %v1082 = vunpack.c.l.b16 %v1073
        %v1083 = vunpack.c.l.b16 %v1074
        %v1084 = vunpack.c.l.b16 %v1075
        %v1085 = vunpack.c.l.b16 %v1076
        %v1086 = vpack.c.b16 %v1083, %v1082
        %v1087 = vpack.c.b16 %v1085, %v1084
        %v1091 = vsel %vm722, %v1077, 0
        %1093 = vmatprep.subr.bf16.mxu0 0
        %1094 = vmatpush1.bf16.msra.mxu0 0
        %1095 = vmatprep.subr.bf16.mxu0 0
        %1096 = vmatpush1.bf16.msra.mxu0 0
        %1097 = vmatprep.subr.bf16.mxu0 0
        %1098 = vmatpush1.bf16.msra.mxu0 0
        %1099 = vmatprep.subr.bf16.mxu0 0
        %1100 = vmatpush1.bf16.msra.mxu0 0
        %1101 = vmatprep.subr.bf16.mxu0 0
        %1102 = vmatpush1.bf16.msra.mxu0 0
        %1103 = vmatprep.subr.bf16.mxu0 0
        %1104 = vmatpush1.bf16.msra.mxu0 0
        %1105 = vmatprep.subr.bf16.mxu0 0
        %1106 = vmatpush1.bf16.msra.mxu0 %v1087
        %1107 = vmatprep.subr.bf16.mxu0 0
        %1108 = vmatpush1.bf16.msra.mxu0 %v1086
        %1109 = vmatprep.subr.bf16.mxu0 0
        %1110 = vmatpush2.bf16.msra.mxu0 0
        %1111 = vmatprep.subr.bf16.mxu0 0
        %1112 = vmatpush2.bf16.msra.mxu0 0
        %1113 = vmatprep.subr.bf16.mxu0 0
        %1114 = vmatpush2.bf16.msra.mxu0 0
        %1115 = vmatprep.subr.bf16.mxu0 0
        %1116 = vmatpush2.bf16.msra.mxu0 0
        %1117 = vmatprep.subr.bf16.mxu0 0
        %1118 = vmatpush2.bf16.msra.mxu0 0
        %1119 = vmatprep.subr.bf16.mxu0 0
        %1120 = vmatpush2.bf16.msra.mxu0 0
        %1121 = vmatprep.subr.bf16.mxu0 0
        %1122 = vmatpush2.bf16.msra.mxu0 0
        %1123 = vmatprep.subr.bf16.mxu0 0
        %1124 = vmatpush2.bf16.msra.mxu0 0
        %1125 = vmatprep.mubr.bf16.mxu0 0
        %1126 = vmatmul.mubr.bf16.gmra.mxu0 %v1091
        %v1127 = vpop.f32.mrf.mxu0
        %v1128 = vadd.f32 0.0, %v1127
        %v1129 = vpop.f32.mrf.mxu0
        %v1130 = vpop.f32.mrf.mxu0
        %v1131 = vpop.f32.mrf.mxu0
        %1132 = vdwg.mxu0
        %v1137 = vunpack.c.l.b16 %v1068
        %v1138 = vunpack.c.l.b16 %v1069
        %v1139 = vunpack.c.l.b16 %v1070
        %v1140 = vunpack.c.l.b16 %v1071
        %v1141 = vpack.c.b16 %v1138, %v1137
        %v1142 = vpack.c.b16 %v1140, %v1139
        %v1146 = vsel %vm722, %v1072, 0
        %1148 = vmatprep.subr.bf16.mxu0 0
        %1149 = vmatpush1.bf16.msra.mxu0 0
        %1150 = vmatprep.subr.bf16.mxu0 0
        %1151 = vmatpush1.bf16.msra.mxu0 0
        %1152 = vmatprep.subr.bf16.mxu0 0
        %1153 = vmatpush1.bf16.msra.mxu0 0
        %1154 = vmatprep.subr.bf16.mxu0 0
        %1155 = vmatpush1.bf16.msra.mxu0 0
        %1156 = vmatprep.subr.bf16.mxu0 0
        %1157 = vmatpush1.bf16.msra.mxu0 0
        %1158 = vmatprep.subr.bf16.mxu0 0
        %1159 = vmatpush1.bf16.msra.mxu0 0
        %1160 = vmatprep.subr.bf16.mxu0 0
        %1161 = vmatpush1.bf16.msra.mxu0 %v1142
        %1162 = vmatprep.subr.bf16.mxu0 0
        %1163 = vmatpush1.bf16.msra.mxu0 %v1141
        %1164 = vmatprep.subr.bf16.mxu0 0
        %1165 = vmatpush2.bf16.msra.mxu0 0
        %1166 = vmatprep.subr.bf16.mxu0 0
        %1167 = vmatpush2.bf16.msra.mxu0 0
        %1168 = vmatprep.subr.bf16.mxu0 0
        %1169 = vmatpush2.bf16.msra.mxu0 0
        %1170 = vmatprep.subr.bf16.mxu0 0
        %1171 = vmatpush2.bf16.msra.mxu0 0
        %1172 = vmatprep.subr.bf16.mxu0 0
        %1173 = vmatpush2.bf16.msra.mxu0 0
        %1174 = vmatprep.subr.bf16.mxu0 0
        %1175 = vmatpush2.bf16.msra.mxu0 0
        %1176 = vmatprep.subr.bf16.mxu0 0
        %1177 = vmatpush2.bf16.msra.mxu0 0
        %1178 = vmatprep.subr.bf16.mxu0 0
        %1179 = vmatpush2.bf16.msra.mxu0 0
        %1180 = vmatprep.mubr.bf16.mxu0 0
        %1181 = vmatmul.mubr.bf16.gmra.mxu0 %v1146
        %v1182 = vpop.f32.mrf.mxu0
        %v1183 = vadd.f32 %v1128, %v1182
        %v1184 = vpop.f32.mrf.mxu0
        %v1185 = vpop.f32.mrf.mxu0
        %v1186 = vpop.f32.mrf.mxu0
        %1187 = vdwg.mxu0
        %v1188 = vld [vmem:[%s13 + $0x20] sm:$0xf]
        %v1189 = vld [vmem:[%s13 + $0x24] sm:$0xf]
        %v1190 = vld [vmem:[%s13 + $0x28] sm:$0xf]
        %v1191 = vld [vmem:[%s13 + $0x2c] sm:$0xf]
        %v1192 = vpack.c.bf16 %v1067, %v1067
        %v1197 = vunpack.c.l.b16 %v1188
        %v1198 = vunpack.c.l.b16 %v1189
        %v1199 = vunpack.c.l.b16 %v1190
        %v1200 = vunpack.c.l.b16 %v1191
        %v1201 = vpack.c.b16 %v1198, %v1197
        %v1202 = vpack.c.b16 %v1200, %v1199
        %v1206 = vsel %vm722, %v1192, 0
        %1208 = vmatprep.subr.bf16.mxu0 0
        %1209 = vmatpush1.bf16.msra.mxu0 0
        %1210 = vmatprep.subr.bf16.mxu0 0
        %1211 = vmatpush1.bf16.msra.mxu0 0
        %1212 = vmatprep.subr.bf16.mxu0 0
        %1213 = vmatpush1.bf16.msra.mxu0 0
        %1214 = vmatprep.subr.bf16.mxu0 0
        %1215 = vmatpush1.bf16.msra.mxu0 0
        %1216 = vmatprep.subr.bf16.mxu0 0
        %1217 = vmatpush1.bf16.msra.mxu0 0
        %1218 = vmatprep.subr.bf16.mxu0 0
        %1219 = vmatpush1.bf16.msra.mxu0 0
        %1220 = vmatprep.subr.bf16.mxu0 0
        %1221 = vmatpush1.bf16.msra.mxu0 %v1202
        %1222 = vmatprep.subr.bf16.mxu0 0
        %1223 = vmatpush1.bf16.msra.mxu0 %v1201
        %1224 = vmatprep.subr.bf16.mxu0 0
        %1225 = vmatpush2.bf16.msra.mxu0 0
        %1226 = vmatprep.subr.bf16.mxu0 0
        %1227 = vmatpush2.bf16.msra.mxu0 0
        %1228 = vmatprep.subr.bf16.mxu0 0
        %1229 = vmatpush2.bf16.msra.mxu0 0
        %1230 = vmatprep.subr.bf16.mxu0 0
        %1231 = vmatpush2.bf16.msra.mxu0 0
        %1232 = vmatprep.subr.bf16.mxu0 0
        %1233 = vmatpush2.bf16.msra.mxu0 0
        %1234 = vmatprep.subr.bf16.mxu0 0
        %1235 = vmatpush2.bf16.msra.mxu0 0
        %1236 = vmatprep.subr.bf16.mxu0 0
        %1237 = vmatpush2.bf16.msra.mxu0 0
        %1238 = vmatprep.subr.bf16.mxu0 0
        %1239 = vmatpush2.bf16.msra.mxu0 0
        %1240 = vmatprep.mubr.bf16.mxu0 0
        %1241 = vmatmul.mubr.bf16.gmra.mxu0 %v1206
        %v1242 = vpop.f32.mrf.mxu0
        %v1243 = vadd.f32 0.0, %v1242
        %v1244 = vpop.f32.mrf.mxu0
        %v1245 = vpop.f32.mrf.mxu0
        %v1246 = vpop.f32.mrf.mxu0
        %1247 = vdwg.mxu0
        %v1248 = vadd.f32 %v1183, %v1243
        %v1249 = vld [vmem:[%s14] sm:$0x1]
        %v1251 = vlaneseq
        %v1252 = vshrl.u32 %v1251, 7
        %v1253 = vsub.s32 0, %v1252
        %v1254 = vrot.slane %v1249, %v1253
        %v1256 = vadd.f32 %v1248, %v1254
        %v1257 = vmax.f32 %v1256, 0.0
        %v1258 = vld [vmem:[%s692] sm:$0x1]
        %v1259 = vpack.c.bf16 %v1257, %v1257
        %v1261 = vsel %vm895, %v1258, 0
        %v1264 = vsel %vm899, %v1259, 0
        %1266 = vmatprep.subr.bf16.mxu0 0
        %1267 = vmatpush1.bf16.msra.mxu0 0
        %1268 = vmatprep.subr.bf16.mxu0 0
        %1269 = vmatpush1.bf16.msra.mxu0 0
        %1270 = vmatprep.subr.bf16.mxu0 0
        %1271 = vmatpush1.bf16.msra.mxu0 0
        %1272 = vmatprep.subr.bf16.mxu0 0
        %1273 = vmatpush1.bf16.msra.mxu0 0
        %1274 = vmatprep.subr.bf16.mxu0 0
        %1275 = vmatpush1.bf16.msra.mxu0 0
        %1276 = vmatprep.subr.bf16.mxu0 0
        %1277 = vmatpush1.bf16.msra.mxu0 0
        %1278 = vmatprep.subr.bf16.mxu0 0
        %1279 = vmatpush1.bf16.msra.mxu0 0
        %1280 = vmatprep.subr.bf16.mxu0 0
        %1281 = vmatpush1.bf16.msra.mxu0 %v1264
        %1282 = vmatprep.subr.bf16.mxu0 0
        %1283 = vmatpush2.bf16.msra.mxu0 0
        %1284 = vmatprep.subr.bf16.mxu0 0
        %1285 = vmatpush2.bf16.msra.mxu0 0
        %1286 = vmatprep.subr.bf16.mxu0 0
        %1287 = vmatpush2.bf16.msra.mxu0 0
        %1288 = vmatprep.subr.bf16.mxu0 0
        %1289 = vmatpush2.bf16.msra.mxu0 0
        %1290 = vmatprep.subr.bf16.mxu0 0
        %1291 = vmatpush2.bf16.msra.mxu0 0
        %1292 = vmatprep.subr.bf16.mxu0 0
        %1293 = vmatpush2.bf16.msra.mxu0 0
        %1294 = vmatprep.subr.bf16.mxu0 0
        %1295 = vmatpush2.bf16.msra.mxu0 0
        %1296 = vmatprep.subr.bf16.mxu0 0
        %1297 = vmatpush2.bf16.msra.mxu0 0
        %1298 = vmatprep.mubr.bf16.mxu0 0
        %1299 = vmatmul.mubr.bf16.gmra.mxu0 %v1261
        %v1300 = vpop.f32.mrf.mxu0
        %v1301 = vadd.f32 0.0, %v1300
        %v1302 = vpop.f32.mrf.mxu0
        %v1303 = vpop.f32.mrf.mxu0
        %v1304 = vpop.f32.mrf.mxu0
        %1305 = vdwg.mxu0
        %v1306 = vld [vmem:[%s15] sm:$0xf]
        %v1307 = vld [vmem:[%s15 + $0x4] sm:$0xf]
        %v1308 = vld [vmem:[%s15 + $0x8] sm:$0xf]
        %v1309 = vld [vmem:[%s15 + $0xc] sm:$0xf]
        %v1310 = vpack.c.bf16 %v1301, %v1301
        %v1311 = vld [vmem:[%s16] sm:$0x1]
        %v1316 = vunpack.c.l.b16 %v1306
        %v1317 = vunpack.c.l.b16 %v1307
        %v1318 = vunpack.c.l.b16 %v1308
        %v1319 = vunpack.c.l.b16 %v1309
        %v1320 = vpack.c.b16 %v1317, %v1316
        %v1321 = vpack.c.b16 %v1319, %v1318
        %v1325 = vsel %vm722, %v1310, 0
        %1327 = vmatprep.subr.bf16.mxu0 0
        %1328 = vmatpush1.bf16.msra.mxu0 0
        %1329 = vmatprep.subr.bf16.mxu0 0
        %1330 = vmatpush1.bf16.msra.mxu0 0
        %1331 = vmatprep.subr.bf16.mxu0 0
        %1332 = vmatpush1.bf16.msra.mxu0 0
        %1333 = vmatprep.subr.bf16.mxu0 0
        %1334 = vmatpush1.bf16.msra.mxu0 0
        %1335 = vmatprep.subr.bf16.mxu0 0
        %1336 = vmatpush1.bf16.msra.mxu0 0
        %1337 = vmatprep.subr.bf16.mxu0 0
        %1338 = vmatpush1.bf16.msra.mxu0 0
        %1339 = vmatprep.subr.bf16.mxu0 0
        %1340 = vmatpush1.bf16.msra.mxu0 %v1321
        %1341 = vmatprep.subr.bf16.mxu0 0
        %1342 = vmatpush1.bf16.msra.mxu0 %v1320
        %1343 = vmatprep.subr.bf16.mxu0 0
        %1344 = vmatpush2.bf16.msra.mxu0 0
        %1345 = vmatprep.subr.bf16.mxu0 0
        %1346 = vmatpush2.bf16.msra.mxu0 0
        %1347 = vmatprep.subr.bf16.mxu0 0
        %1348 = vmatpush2.bf16.msra.mxu0 0
        %1349 = vmatprep.subr.bf16.mxu0 0
        %1350 = vmatpush2.bf16.msra.mxu0 0
        %1351 = vmatprep.subr.bf16.mxu0 0
        %1352 = vmatpush2.bf16.msra.mxu0 0
        %1353 = vmatprep.subr.bf16.mxu0 0
        %1354 = vmatpush2.bf16.msra.mxu0 0
        %1355 = vmatprep.subr.bf16.mxu0 0
        %1356 = vmatpush2.bf16.msra.mxu0 0
        %1357 = vmatprep.subr.bf16.mxu0 0
        %1358 = vmatpush2.bf16.msra.mxu0 0
        %1359 = vmatprep.mubr.bf16.mxu0 0
        %1360 = vmatmul.mubr.bf16.gmra.mxu0 %v1325
        %v1361 = vpop.f32.mrf.mxu0
        %v1362 = vadd.f32 %v1311, %v1361
        %v1363 = vpop.f32.mrf.mxu0
        %v1364 = vpop.f32.mrf.mxu0
        %v1365 = vpop.f32.mrf.mxu0
        %1366 = vdwg.mxu0
        %v1367 = vmax.f32 %v1362, 0.0
        %v1368 = vld [vmem:[%s17] sm:$0xf]
        %v1369 = vld [vmem:[%s17 + $0x4] sm:$0xf]
        %v1370 = vld [vmem:[%s17 + $0x8] sm:$0xf]
        %v1371 = vld [vmem:[%s17 + $0xc] sm:$0xf]
        %v1372 = vld [vmem:[%s17 + $0x10] sm:$0xf]
        %v1373 = vld [vmem:[%s17 + $0x14] sm:$0xf]
        %v1374 = vld [vmem:[%s17 + $0x18] sm:$0xf]
        %v1375 = vld [vmem:[%s17 + $0x1c] sm:$0xf]
        %v1376 = vpack.c.bf16 %v695, %v695
        %v1381 = vunpack.c.l.b16 %v1372
        %v1382 = vunpack.c.l.b16 %v1373
        %v1383 = vunpack.c.l.b16 %v1374
        %v1384 = vunpack.c.l.b16 %v1375
        %v1385 = vpack.c.b16 %v1382, %v1381
        %v1386 = vpack.c.b16 %v1384, %v1383
        %v1390 = vsel %vm722, %v1376, 0
        %1392 = vmatprep.subr.bf16.mxu0 0
        %1393 = vmatpush1.bf16.msra.mxu0 0
        %1394 = vmatprep.subr.bf16.mxu0 0
        %1395 = vmatpush1.bf16.msra.mxu0 0
        %1396 = vmatprep.subr.bf16.mxu0 0
        %1397 = vmatpush1.bf16.msra.mxu0 0
        %1398 = vmatprep.subr.bf16.mxu0 0
        %1399 = vmatpush1.bf16.msra.mxu0 0
        %1400 = vmatprep.subr.bf16.mxu0 0
        %1401 = vmatpush1.bf16.msra.mxu0 0
        %1402 = vmatprep.subr.bf16.mxu0 0
        %1403 = vmatpush1.bf16.msra.mxu0 0
        %1404 = vmatprep.subr.bf16.mxu0 0
        %1405 = vmatpush1.bf16.msra.mxu0 %v1386
        %1406 = vmatprep.subr.bf16.mxu0 0
        %1407 = vmatpush1.bf16.msra.mxu0 %v1385
        %1408 = vmatprep.subr.bf16.mxu0 0
        %1409 = vmatpush2.bf16.msra.mxu0 0
        %1410 = vmatprep.subr.bf16.mxu0 0
        %1411 = vmatpush2.bf16.msra.mxu0 0
        %1412 = vmatprep.subr.bf16.mxu0 0
        %1413 = vmatpush2.bf16.msra.mxu0 0
        %1414 = vmatprep.subr.bf16.mxu0 0
        %1415 = vmatpush2.bf16.msra.mxu0 0
        %1416 = vmatprep.subr.bf16.mxu0 0
        %1417 = vmatpush2.bf16.msra.mxu0 0
        %1418 = vmatprep.subr.bf16.mxu0 0
        %1419 = vmatpush2.bf16.msra.mxu0 0
        %1420 = vmatprep.subr.bf16.mxu0 0
        %1421 = vmatpush2.bf16.msra.mxu0 0
        %1422 = vmatprep.subr.bf16.mxu0 0
        %1423 = vmatpush2.bf16.msra.mxu0 0
        %1424 = vmatprep.mubr.bf16.mxu0 0
        %1425 = vmatmul.mubr.bf16.gmra.mxu0 %v1390
        %v1426 = vpop.f32.mrf.mxu0
        %v1427 = vadd.f32 0.0, %v1426
        %v1428 = vpop.f32.mrf.mxu0
        %v1429 = vpop.f32.mrf.mxu0
        %v1430 = vpop.f32.mrf.mxu0
        %1431 = vdwg.mxu0
        %v1436 = vunpack.c.l.b16 %v1368
        %v1437 = vunpack.c.l.b16 %v1369
        %v1438 = vunpack.c.l.b16 %v1370
        %v1439 = vunpack.c.l.b16 %v1371
        %v1440 = vpack.c.b16 %v1437, %v1436
        %v1441 = vpack.c.b16 %v1439, %v1438
        %1444 = vmatprep.subr.bf16.mxu0 0
        %1445 = vmatpush1.bf16.msra.mxu0 0
        %1446 = vmatprep.subr.bf16.mxu0 0
        %1447 = vmatpush1.bf16.msra.mxu0 0
        %1448 = vmatprep.subr.bf16.mxu0 0
        %1449 = vmatpush1.bf16.msra.mxu0 0
        %1450 = vmatprep.subr.bf16.mxu0 0
        %1451 = vmatpush1.bf16.msra.mxu0 0
        %1452 = vmatprep.subr.bf16.mxu0 0
        %1453 = vmatpush1.bf16.msra.mxu0 0
        %1454 = vmatprep.subr.bf16.mxu0 0
        %1455 = vmatpush1.bf16.msra.mxu0 0
        %1456 = vmatprep.subr.bf16.mxu0 0
        %1457 = vmatpush1.bf16.msra.mxu0 %v1441
        %1458 = vmatprep.subr.bf16.mxu0 0
        %1459 = vmatpush1.bf16.msra.mxu0 %v1440
        %1460 = vmatprep.subr.bf16.mxu0 0
        %1461 = vmatpush2.bf16.msra.mxu0 0
        %1462 = vmatprep.subr.bf16.mxu0 0
        %1463 = vmatpush2.bf16.msra.mxu0 0
        %1464 = vmatprep.subr.bf16.mxu0 0
        %1465 = vmatpush2.bf16.msra.mxu0 0
        %1466 = vmatprep.subr.bf16.mxu0 0
        %1467 = vmatpush2.bf16.msra.mxu0 0
        %1468 = vmatprep.subr.bf16.mxu0 0
        %1469 = vmatpush2.bf16.msra.mxu0 0
        %1470 = vmatprep.subr.bf16.mxu0 0
        %1471 = vmatpush2.bf16.msra.mxu0 0
        %1472 = vmatprep.subr.bf16.mxu0 0
        %1473 = vmatpush2.bf16.msra.mxu0 0
        %1474 = vmatprep.subr.bf16.mxu0 0
        %1475 = vmatpush2.bf16.msra.mxu0 0
        %1476 = vmatprep.mubr.bf16.mxu0 0
        %1477 = vmatmul.mubr.bf16.gmra.mxu0 %v1325
        %v1478 = vpop.f32.mrf.mxu0
        %v1479 = vadd.f32 %v1427, %v1478
        %v1480 = vpop.f32.mrf.mxu0
        %v1481 = vpop.f32.mrf.mxu0
        %v1482 = vpop.f32.mrf.mxu0
        %1483 = vdwg.mxu0
        %v1484 = vld [vmem:[%s18] sm:$0x1]
        %v1485 = vadd.f32 %v1479, %v1484
        %v1486 = vxor.u32 %v1485, 2147483648
        %v1487 = vmul.f32 %v1486, 1.442695
        %v1488 = vpow.pop %v1487
        %v1489 = vadd.f32 %v1488, 1.0
        %v1490 = vrcp.pop %v1489
        %v1491 = vmul.f32 1.0, %v1490
        %v1492 = vmax.f32 %v1491, 0.1
        %v1493 = vmul.f32 %v1492, %v695
        %v1494 = vsub.f32 1.0, %v1491
        %v1495 = vmul.f32 %v1494, %v1367
        %v1496 = vadd.f32 %v1493, %v1495
        %vm1497 = vcmask 253952
        %1498 = vst.msk [vmem:[%s666] sm:$0x1] %vm1497, %v1496
        %s1499 = sand.u32 %s475, 1
        %s1500 = scalar_lea.sflag [#allocation3], %s1499
        %s1501 = sand.u32 %s475, 1
        %s1502 = scalar_lea.vmem [#allocation2], %s1501
        // Predicated region
        $region97: #{predict_model_forward.14} parent=95 // pred_check
          %p1503 = pneg %p485
        $region98: #{predict_model_forward.14} parent=95 // pred_check_branch
          %1505 = sbr.rel (%p1503) target = $region100
        $region99: #{predict_model_forward.14} parent=95 // pred_region
          %s1507 = ssub.s32 16, 16
          %1508 = vsyncadd %s1500, %s1507
          %s1509 = smul.addr %s33, 16
          %s1510 = scalar_lea.hbm %s19, %s1509
          %s1512 = sshll.u32 %s1502, 4
          %s1513 = int_to_ptr.vmem [resolvable:$true] %s1512
          %1515 = dma.vmem_to_hbm [thread:$0]  %s1513, 16, %s1510, %s1500
        $region100: #{predict_model_forward.14} parent=95 // pred_fallthru
          _
      $region96: #{predict_model_forward.14} parent=5 // pred_fallthru
        _
      %p1516 = scmp.le.s32.totalorder 2, %s28
      // Predicated region
      $region101: #{predict_model_forward.14} parent=5 // pred_check
        %p1517 = pneg %p1516
      $region102: #{predict_model_forward.14} parent=5 // pred_check_branch
        %1519 = sbr.rel (%p1517) target = $region104
      $region103: #{predict_model_forward.14} parent=5 // pred_region
        %s1520 = ssub.s32 %s28, 2
        // Predicated region
        $region105: #{predict_model_forward.14} parent=103 // pred_check
          %p1521 = pneg %p491
        $region106: #{predict_model_forward.14} parent=103 // pred_check_branch
          %1523 = sbr.rel (%p1521) target = $region108
        $region107: #{predict_model_forward.14} parent=103 // pred_region
          %s1524 = sand.u32 %s476, 1
          %s1525 = scalar_lea.sflag [#allocation3], %s1524
          %s1526 = sand.u32 %s476, 1
          %s1527 = scalar_lea.vmem [#allocation2], %s1526
          %1528 = dma.done %s1525, 16
        $region108: #{predict_model_forward.14} parent=103 // pred_fallthru
          _
      $region104: #{predict_model_forward.14} parent=5 // pred_fallthru
        _
    $region6: #{predict_model_forward.14} parent=1 // loop_footer
      %s32 = sadd.s32 1, %s28
    $region7: #{predict_model_forward.14} parent=1 // loop_footer_branch
      %27 = sbr.rel target = $region3
    $region8: #{predict_model_forward.14} parent=1 // loop_exit
      _
    %1529 = vsyncpa [#allocation3], 1
    %s1530 = scalar_lea.sflag [#allocation3], 1
    %1531 = vsyncpa %s1530, 1

// kernel: predict_model_forward.17
$region0: #{predict_model_forward.17}
  #allocation0 [shape = 'u32[]', space=smem, size = 0x4, offset = 0x4, fixed_abs, tag = 'smem constant byte address 0x4 - core index']
  #allocation1 [shape = 'u32[144,128]{1,0:T(1,128)}', space=vmem, size = 0x12000, scoped, tag = 'internal scratch']
  #allocation2 [shape = 'f32[1,1]{1,0:T(1,128)S(1)}', space=vmem, size = 0x200, scoped, tag = 'scoped memory for predict_model_forward.17']
  %s0 = inlined_call_operand.vmem [shape: f32[2,32], index: 0, kind: input, shape index: {}]
  %s1 = inlined_call_operand.vmem [shape: f32[2,32], index: 1, kind: input, shape index: {}]
  %s2 = inlined_call_operand.vmem [shape: f32[1,32], index: 2, kind: input, shape index: {}]
  %s3 = inlined_call_operand.vmem [shape: f32[1,32], index: 3, kind: input, shape index: {}]
  %s4 = inlined_call_operand.<no memory space> [shape: f32[1,1], index: 4, kind: input, shape index: {}]
  %s5 = inlined_call_operand.vmem [shape: f32[2,1], index: 5, kind: output, shape index: {}]
  %s6 = sld [smem:[#allocation0]]
  $region30: #{predict_model_forward.17} parent=0
    _
  %s8 = ssub.s32 1, %s6
  %s9 = scalar_select 0, %s8, %s6
  %v10 = vstv %s4
  %11 = vst [vmem:[#allocation2] sm:$0x1] %v10
  // Predicated region
  $region2: #{predict_model_forward.17} parent=0 // pred_check
    _
  $region3: #{predict_model_forward.17} parent=0 // pred_check_branch
    %13 = sbr.rel (0) target = $region5
  $region4: #{predict_model_forward.17} parent=0 // pred_region
    _
  $region5: #{predict_model_forward.17} parent=0 // pred_fallthru
    _
  // Predicated region
  $region6: #{predict_model_forward.17} parent=0 // pred_check
    _
  $region7: #{predict_model_forward.17} parent=0 // pred_check_branch
    %15 = sbr.rel (0) target = $region9
  $region8: #{predict_model_forward.17} parent=0 // pred_region
    _
  $region9: #{predict_model_forward.17} parent=0 // pred_fallthru
    _
  // Predicated region
  $region10: #{predict_model_forward.17} parent=0 // pred_check
    _
  $region11: #{predict_model_forward.17} parent=0 // pred_check_branch
    %17 = sbr.rel (0) target = $region13
  $region12: #{predict_model_forward.17} parent=0 // pred_region
    _
  $region13: #{predict_model_forward.17} parent=0 // pred_fallthru
    _
  // Predicated region
  $region14: #{predict_model_forward.17} parent=0 // pred_check
    _
  $region15: #{predict_model_forward.17} parent=0 // pred_check_branch
    %19 = sbr.rel (0) target = $region17
  $region16: #{predict_model_forward.17} parent=0 // pred_region
    _
  $region17: #{predict_model_forward.17} parent=0 // pred_fallthru
    _
  // Predicated region
  $region18: #{predict_model_forward.17} parent=0 // pred_check
    _
  $region19: #{predict_model_forward.17} parent=0 // pred_check_branch
    %21 = sbr.rel (0) target = $region21
  $region20: #{predict_model_forward.17} parent=0 // pred_region
    _
  $region21: #{predict_model_forward.17} parent=0 // pred_fallthru
    _
  %v22 = vld [vmem:[%s0] sm:$0x3]
  %v23 = vld [vmem:[%s2] sm:$0x1]
  %v25 = vlaneseq
  %v26 = vshrl.u32 %v25, 7
  %v27 = vsub.s32 0, %v26
  %v28 = vrot.slane %v23, %v27
  %v30 = vmul.f32 %v22, %v28
  %vm31 = vcmask 254976
  %v32 = vsel %vm31, %v30, 0.0
  %33 = vadd.xlane.f32.xlu0 %v32
  %v34 = vpop.xlane.xlu0 %33
  %v35 = vld [vmem:[%s1] sm:$0x3]
  %v36 = vld [vmem:[%s3] sm:$0x1]
  %v38 = vlaneseq
  %v39 = vshrl.u32 %v38, 7
  %v40 = vsub.s32 0, %v39
  %v41 = vrot.slane %v36, %v40
  %v43 = vmul.f32 %v35, %v41
  %v44 = vsel %vm31, %v43, 0.0
  %45 = vadd.xlane.f32.xlu0 %v44
  %v46 = vpop.xlane.xlu0 %45
  %v47 = vadd.f32 %v34, %v46
  %v48 = vld [vmem:[#allocation2] sm:$0x1]
  %v50 = vlaneseq
  %v51 = vshrl.u32 %v50, 7
  %v52 = vsub.s32 0, %v51
  %v53 = vrot.slane %v48, %v52
  %v55 = vadd.f32 %v47, %v53
  %v56 = vxor.u32 %v55, 2147483648
  %v57 = vmul.f32 %v56, 1.442695
  %v58 = vpow.pop %v57
  %v59 = vadd.f32 %v58, 1.0
  %v60 = vrcp.pop %v59
  %v61 = vmul.f32 1.0, %v60
  %vm62 = vcmask 1024
  %63 = vst.msk [vmem:[%s5] sm:$0x3] %vm62, %v61
  // Predicated region
  $region22: #{predict_model_forward.17} parent=0 // pred_check
    _
  $region23: #{predict_model_forward.17} parent=0 // pred_check_branch
    %65 = sbr.rel (0) target = $region25
  $region24: #{predict_model_forward.17} parent=0 // pred_region
    _
  $region25: #{predict_model_forward.17} parent=0 // pred_fallthru
    _
  // Predicated region
  $region26: #{predict_model_forward.17} parent=0 // pred_check
    _
  $region27: #{predict_model_forward.17} parent=0 // pred_check_branch
    %67 = sbr.rel (0) target = $region29
  $region28: #{predict_model_forward.17} parent=0 // pred_region
    _
  $region29: #{predict_model_forward.17} parent=0 // pred_fallthru
    _

// kernel: predict_model_forward.16
$region0: #{predict_model_forward.16}
  #allocation0 [shape = 'u32[]', space=smem, size = 0x4, offset = 0x4, fixed_abs, tag = 'smem constant byte address 0x4 - core index']
  #allocation1 [shape = 'u32[144,128]{1,0:T(1,128)}', space=vmem, size = 0x12000, scoped, tag = 'internal scratch']
  #allocation2 [shape = 'f32[1,1]{1,0:T(1,128)S(1)}', space=vmem, size = 0x200, scoped, tag = 'scoped memory for predict_model_forward.16']
  %s0 = inlined_call_operand.vmem [shape: f32[2,1,32], index: 0, kind: input, shape index: {}]
  %s1 = inlined_call_operand.vmem [shape: f32[2,1,32], index: 1, kind: input, shape index: {}]
  %s2 = inlined_call_operand.vmem [shape: f32[2,5,32], index: 2, kind: input, shape index: {}]
  %s3 = inlined_call_operand.vmem [shape: bf16[32,32], index: 3, kind: input, shape index: {}]
  %s4 = inlined_call_operand.vmem [shape: bf16[32,32], index: 4, kind: input, shape index: {}]
  %s5 = inlined_call_operand.vmem [shape: bf16[32,32], index: 5, kind: input, shape index: {}]
  %s6 = inlined_call_operand.vmem [shape: f32[1,32], index: 6, kind: input, shape index: {}]
  %s7 = inlined_call_operand.vmem [shape: f32[1,32], index: 7, kind: input, shape index: {}]
  %s8 = inlined_call_operand.<no memory space> [shape: f32[1,1], index: 8, kind: input, shape index: {}]
  %s9 = inlined_call_operand.vmem [shape: f32[2,5,1], index: 9, kind: output, shape index: {}]
  %s10 = sld [smem:[#allocation0]]
  $region69: #{predict_model_forward.16} parent=0
    _
  %s12 = ssub.s32 1, %s10
  %s13 = scalar_select 0, %s12, %s10
  %v14 = vstv %s8
  %15 = vst [vmem:[#allocation2] sm:$0x1] %v14
  loop: start=0, step=1, limit=4
  $region2: #{predict_model_forward.16} parent=0 // loop_pre_header
    _
  $region3: #{predict_model_forward.16} parent=0 // loop_header
    %s17 = sphi 0, %s21
    %p18 = scmp.ge.s32.totalorder %s17, 4
    %s27 = sphi 0, %s29
    %s30 = sphi 0, %s27
    %s31 = sphi 0, %s30
    %s47 = sphi 0, %s31
    %s53 = sphi 0, %s55
    %s56 = sphi 0, %s53
    %s57 = sphi 0, %s56
    %s73 = sphi 0, %s57
    %s79 = sphi 0, %s81
    %s82 = sphi 0, %s79
    %s83 = sphi 0, %s82
    %s99 = sphi 0, %s83
    %s103 = sphi 0, %s103
    %s105 = sphi 0, %s103
    %s106 = sphi 0, %s105
    %s120 = sphi 0, %s106
    %s124 = sphi 0, %s124
    %s126 = sphi 0, %s124
    %s127 = sphi 0, %s126
    %s141 = sphi 0, %s127
    %s145 = sphi 0, %s145
    %s147 = sphi 0, %s145
    %s148 = sphi 0, %s147
    %s162 = sphi 0, %s148
    %s166 = sphi 0, %s166
    %s168 = sphi 0, %s166
    %s169 = sphi 0, %s168
    %s183 = sphi 0, %s169
    %s187 = sphi 0, %s187
    %s189 = sphi 0, %s187
    %s190 = sphi 0, %s189
    %s204 = sphi 0, %s190
    %s208 = sphi 0, %s208
    %s210 = sphi 0, %s208
    %s211 = sphi 0, %s210
    %s225 = sphi 0, %s211
    %s231 = sphi 0, %s233
    %s234 = sphi 0, %s231
    %s235 = sphi 0, %s234
    %s251 = sphi 0, %s235
  $region4: #{predict_model_forward.16} parent=0 // loop_header_branch
    %20 = sbr.rel (%p18) target = $region8
  $region5: #{predict_model_forward.16} parent=0 // loop_body
    %s22 = ssub.s32 %s17, 1
    %s23 = ssub.s32 %s17, 2
    %s24 = sadd.s32 %s17, 1
    %s25 = ssub.s32 %s17, %s24
    %p26 = scmp.eq.s32.totalorder %s25, 0
    %s28 = sadd.s32 %s27, 1
    %s29 = scalar_select %p26, %s27, %s28
    %p32 = pneg %p26
    %p33 = scmp.eq.s32.totalorder %s17, 1
    %p34 = por %p32, %p33
    %p35 = scmp.ne.s32.totalorder %s27, %s30
    %p36 = scmp.eq.s32.totalorder %s17, 0
    %p37 = por %p35, %p36
    %p38 = scmp.ne.s32.totalorder %s27, %s30
    %p39 = scmp.eq.s32.totalorder %s22, 1
    %p40 = por %p38, %p39
    %p41 = scmp.ne.s32.totalorder %s30, %s31
    %p42 = scmp.eq.s32.totalorder %s22, 0
    %p43 = por %p41, %p42
    %p44 = scmp.ne.s32.totalorder %s30, %s31
    %p45 = scmp.eq.s32.totalorder %s23, 1
    %p46 = por %p44, %p45
    %p48 = scmp.ne.s32.totalorder %s31, %s47
    %p49 = scmp.eq.s32.totalorder %s23, 0
    %p50 = por %p48, %p49
    %s51 = ssub.s32 %s17, %s24
    %p52 = scmp.eq.s32.totalorder %s51, 0
    %s54 = sadd.s32 %s53, 1
    %s55 = scalar_select %p52, %s53, %s54
    %p58 = pneg %p52
    %p59 = scmp.eq.s32.totalorder %s17, 1
    %p60 = por %p58, %p59
    %p61 = scmp.ne.s32.totalorder %s53, %s56
    %p62 = scmp.eq.s32.totalorder %s17, 0
    %p63 = por %p61, %p62
    %p64 = scmp.ne.s32.totalorder %s53, %s56
    %p65 = scmp.eq.s32.totalorder %s22, 1
    %p66 = por %p64, %p65
    %p67 = scmp.ne.s32.totalorder %s56, %s57
    %p68 = scmp.eq.s32.totalorder %s22, 0
    %p69 = por %p67, %p68
    %p70 = scmp.ne.s32.totalorder %s56, %s57
    %p71 = scmp.eq.s32.totalorder %s23, 1
    %p72 = por %p70, %p71
    %p74 = scmp.ne.s32.totalorder %s57, %s73
    %p75 = scmp.eq.s32.totalorder %s23, 0
    %p76 = por %p74, %p75
    %s77 = ssub.s32 %s17, %s24
    %p78 = scmp.eq.s32.totalorder %s77, 0
    %s80 = sadd.s32 %s79, 1
    %s81 = scalar_select %p78, %s79, %s80
    %p84 = pneg %p78
    %p85 = scmp.eq.s32.totalorder %s17, 1
    %p86 = por %p84, %p85
    %p87 = scmp.ne.s32.totalorder %s79, %s82
    %p88 = scmp.eq.s32.totalorder %s17, 0
    %p89 = por %p87, %p88
    %p90 = scmp.ne.s32.totalorder %s79, %s82
    %p91 = scmp.eq.s32.totalorder %s22, 1
    %p92 = por %p90, %p91
    %p93 = scmp.ne.s32.totalorder %s82, %s83
    %p94 = scmp.eq.s32.totalorder %s22, 0
    %p95 = por %p93, %p94
    %p96 = scmp.ne.s32.totalorder %s82, %s83
    %p97 = scmp.eq.s32.totalorder %s23, 1
    %p98 = por %p96, %p97
    %p100 = scmp.ne.s32.totalorder %s83, %s99
    %p101 = scmp.eq.s32.totalorder %s23, 0
    %p102 = por %p100, %p101
    %s104 = sadd.s32 %s103, 1
    %p107 = scmp.eq.s32.totalorder %s17, 1
    %p108 = scmp.ne.s32.totalorder %s103, %s105
    %p109 = scmp.eq.s32.totalorder %s17, 0
    %p110 = por %p108, %p109
    %p111 = scmp.ne.s32.totalorder %s103, %s105
    %p112 = scmp.eq.s32.totalorder %s22, 1
    %p113 = por %p111, %p112
    %p114 = scmp.ne.s32.totalorder %s105, %s106
    %p115 = scmp.eq.s32.totalorder %s22, 0
    %p116 = por %p114, %p115
    %p117 = scmp.ne.s32.totalorder %s105, %s106
    %p118 = scmp.eq.s32.totalorder %s23, 1
    %p119 = por %p117, %p118
    %p121 = scmp.ne.s32.totalorder %s106, %s120
    %p122 = scmp.eq.s32.totalorder %s23, 0
    %p123 = por %p121, %p122
    %s125 = sadd.s32 %s124, 1
    %p128 = scmp.eq.s32.totalorder %s17, 1
    %p129 = scmp.ne.s32.totalorder %s124, %s126
    %p130 = scmp.eq.s32.totalorder %s17, 0
    %p131 = por %p129, %p130
    %p132 = scmp.ne.s32.totalorder %s124, %s126
    %p133 = scmp.eq.s32.totalorder %s22, 1
    %p134 = por %p132, %p133
    %p135 = scmp.ne.s32.totalorder %s126, %s127
    %p136 = scmp.eq.s32.totalorder %s22, 0
    %p137 = por %p135, %p136
    %p138 = scmp.ne.s32.totalorder %s126, %s127
    %p139 = scmp.eq.s32.totalorder %s23, 1
    %p140 = por %p138, %p139
    %p142 = scmp.ne.s32.totalorder %s127, %s141
    %p143 = scmp.eq.s32.totalorder %s23, 0
    %p144 = por %p142, %p143
    %s146 = sadd.s32 %s145, 1
    %p149 = scmp.eq.s32.totalorder %s17, 1
    %p150 = scmp.ne.s32.totalorder %s145, %s147
    %p151 = scmp.eq.s32.totalorder %s17, 0
    %p152 = por %p150, %p151
    %p153 = scmp.ne.s32.totalorder %s145, %s147
    %p154 = scmp.eq.s32.totalorder %s22, 1
    %p155 = por %p153, %p154
    %p156 = scmp.ne.s32.totalorder %s147, %s148
    %p157 = scmp.eq.s32.totalorder %s22, 0
    %p158 = por %p156, %p157
    %p159 = scmp.ne.s32.totalorder %s147, %s148
    %p160 = scmp.eq.s32.totalorder %s23, 1
    %p161 = por %p159, %p160
    %p163 = scmp.ne.s32.totalorder %s148, %s162
    %p164 = scmp.eq.s32.totalorder %s23, 0
    %p165 = por %p163, %p164
    %s167 = sadd.s32 %s166, 1
    %p170 = scmp.eq.s32.totalorder %s17, 1
    %p171 = scmp.ne.s32.totalorder %s166, %s168
    %p172 = scmp.eq.s32.totalorder %s17, 0
    %p173 = por %p171, %p172
    %p174 = scmp.ne.s32.totalorder %s166, %s168
    %p175 = scmp.eq.s32.totalorder %s22, 1
    %p176 = por %p174, %p175
    %p177 = scmp.ne.s32.totalorder %s168, %s169
    %p178 = scmp.eq.s32.totalorder %s22, 0
    %p179 = por %p177, %p178
    %p180 = scmp.ne.s32.totalorder %s168, %s169
    %p181 = scmp.eq.s32.totalorder %s23, 1
    %p182 = por %p180, %p181
    %p184 = scmp.ne.s32.totalorder %s169, %s183
    %p185 = scmp.eq.s32.totalorder %s23, 0
    %p186 = por %p184, %p185
    %s188 = sadd.s32 %s187, 1
    %p191 = scmp.eq.s32.totalorder %s17, 1
    %p192 = scmp.ne.s32.totalorder %s187, %s189
    %p193 = scmp.eq.s32.totalorder %s17, 0
    %p194 = por %p192, %p193
    %p195 = scmp.ne.s32.totalorder %s187, %s189
    %p196 = scmp.eq.s32.totalorder %s22, 1
    %p197 = por %p195, %p196
    %p198 = scmp.ne.s32.totalorder %s189, %s190
    %p199 = scmp.eq.s32.totalorder %s22, 0
    %p200 = por %p198, %p199
    %p201 = scmp.ne.s32.totalorder %s189, %s190
    %p202 = scmp.eq.s32.totalorder %s23, 1
    %p203 = por %p201, %p202
    %p205 = scmp.ne.s32.totalorder %s190, %s204
    %p206 = scmp.eq.s32.totalorder %s23, 0
    %p207 = por %p205, %p206
    %s209 = sadd.s32 %s208, 1
    %p212 = scmp.eq.s32.totalorder %s17, 1
    %p213 = scmp.ne.s32.totalorder %s208, %s210
    %p214 = scmp.eq.s32.totalorder %s17, 0
    %p215 = por %p213, %p214
    %p216 = scmp.ne.s32.totalorder %s208, %s210
    %p217 = scmp.eq.s32.totalorder %s22, 1
    %p218 = por %p216, %p217
    %p219 = scmp.ne.s32.totalorder %s210, %s211
    %p220 = scmp.eq.s32.totalorder %s22, 0
    %p221 = por %p219, %p220
    %p222 = scmp.ne.s32.totalorder %s210, %s211
    %p223 = scmp.eq.s32.totalorder %s23, 1
    %p224 = por %p222, %p223
    %p226 = scmp.ne.s32.totalorder %s211, %s225
    %p227 = scmp.eq.s32.totalorder %s23, 0
    %p228 = por %p226, %p227
    %s229 = ssub.s32 %s17, %s24
    %p230 = scmp.eq.s32.totalorder %s229, 0
    %s232 = sadd.s32 %s231, 1
    %s233 = scalar_select %p230, %s231, %s232
    %p236 = pneg %p230
    %p237 = scmp.eq.s32.totalorder %s17, 1
    %p238 = por %p236, %p237
    %p239 = scmp.ne.s32.totalorder %s231, %s234
    %p240 = scmp.eq.s32.totalorder %s17, 0
    %p241 = por %p239, %p240
    %p242 = scmp.ne.s32.totalorder %s231, %s234
    %p243 = scmp.eq.s32.totalorder %s22, 1
    %p244 = por %p242, %p243
    %p245 = scmp.ne.s32.totalorder %s234, %s235
    %p246 = scmp.eq.s32.totalorder %s22, 0
    %p247 = por %p245, %p246
    %p248 = scmp.ne.s32.totalorder %s234, %s235
    %p249 = scmp.eq.s32.totalorder %s23, 1
    %p250 = por %p248, %p249
    %p252 = scmp.ne.s32.totalorder %s235, %s251
    %p253 = scmp.eq.s32.totalorder %s23, 0
    %p254 = por %p252, %p253
    %p255 = scmp.le.s32.totalorder 1, %s17
    %p256 = scmp.lt.s32.totalorder %s17, 3
    %p257 = pnand %p255, %p256
    %p258 = pneg %p257
    // Predicated region
    $region9: #{predict_model_forward.16} parent=5 // pred_check
      _
    $region10: #{predict_model_forward.16} parent=5 // pred_check_branch
      %260 = sbr.rel (%p257) target = $region12
    $region11: #{predict_model_forward.16} parent=5 // pred_region
      %s261 = ssub.s32 %s17, 1
      // Predicated region
      $region13: #{predict_model_forward.16} parent=11 // pred_check
        %p262 = pneg %p116
      $region14: #{predict_model_forward.16} parent=11 // pred_check_branch
        %264 = sbr.rel (%p262) target = $region16
      $region15: #{predict_model_forward.16} parent=11 // pred_region
        _
      $region16: #{predict_model_forward.16} parent=11 // pred_fallthru
        _
      // Predicated region
      $region17: #{predict_model_forward.16} parent=11 // pred_check
        %p265 = pneg %p137
      $region18: #{predict_model_forward.16} parent=11 // pred_check_branch
        %267 = sbr.rel (%p265) target = $region20
      $region19: #{predict_model_forward.16} parent=11 // pred_region
        _
      $region20: #{predict_model_forward.16} parent=11 // pred_fallthru
        _
      // Predicated region
      $region21: #{predict_model_forward.16} parent=11 // pred_check
        %p268 = pneg %p158
      $region22: #{predict_model_forward.16} parent=11 // pred_check_branch
        %270 = sbr.rel (%p268) target = $region24
      $region23: #{predict_model_forward.16} parent=11 // pred_region
        _
      $region24: #{predict_model_forward.16} parent=11 // pred_fallthru
        _
      // Predicated region
      $region25: #{predict_model_forward.16} parent=11 // pred_check
        %p271 = pneg %p179
      $region26: #{predict_model_forward.16} parent=11 // pred_check_branch
        %273 = sbr.rel (%p271) target = $region28
      $region27: #{predict_model_forward.16} parent=11 // pred_region
        _
      $region28: #{predict_model_forward.16} parent=11 // pred_fallthru
        _
      // Predicated region
      $region29: #{predict_model_forward.16} parent=11 // pred_check
        %p274 = pneg %p200
      $region30: #{predict_model_forward.16} parent=11 // pred_check_branch
        %276 = sbr.rel (%p274) target = $region32
      $region31: #{predict_model_forward.16} parent=11 // pred_region
        _
      $region32: #{predict_model_forward.16} parent=11 // pred_fallthru
        _
      // Predicated region
      $region33: #{predict_model_forward.16} parent=11 // pred_check
        %p277 = pneg %p221
      $region34: #{predict_model_forward.16} parent=11 // pred_check_branch
        %279 = sbr.rel (%p277) target = $region36
      $region35: #{predict_model_forward.16} parent=11 // pred_region
        _
      $region36: #{predict_model_forward.16} parent=11 // pred_fallthru
        _
    $region12: #{predict_model_forward.16} parent=5 // pred_fallthru
      _
    %p280 = scmp.lt.s32.totalorder %s17, 2
    // Predicated region
    $region37: #{predict_model_forward.16} parent=5 // pred_check
      %p281 = pneg %p280
    $region38: #{predict_model_forward.16} parent=5 // pred_check_branch
      %283 = sbr.rel (%p281) target = $region40
    $region39: #{predict_model_forward.16} parent=5 // pred_region
      // Predicated region
      $region41: #{predict_model_forward.16} parent=39 // pred_check
        %p284 = pneg %p37
      $region42: #{predict_model_forward.16} parent=39 // pred_check_branch
        %286 = sbr.rel (%p284) target = $region44
      $region43: #{predict_model_forward.16} parent=39 // pred_region
        %p287 = scmp.lt.s32.totalorder %s17, 1
        %s288 = scalar_select %p287, %s17, 1
        %s289 = scalar_lea.vmem %s0, %s288
      $region44: #{predict_model_forward.16} parent=39 // pred_fallthru
        _
      // Predicated region
      $region45: #{predict_model_forward.16} parent=39 // pred_check
        %p290 = pneg %p63
      $region46: #{predict_model_forward.16} parent=39 // pred_check_branch
        %292 = sbr.rel (%p290) target = $region48
      $region47: #{predict_model_forward.16} parent=39 // pred_region
        %p293 = scmp.lt.s32.totalorder %s17, 1
        %s294 = scalar_select %p293, %s17, 1
        %s295 = scalar_lea.vmem %s1, %s294
      $region48: #{predict_model_forward.16} parent=39 // pred_fallthru
        _
      // Predicated region
      $region49: #{predict_model_forward.16} parent=39 // pred_check
        %p296 = pneg %p89
      $region50: #{predict_model_forward.16} parent=39 // pred_check_branch
        %298 = sbr.rel (%p296) target = $region52
      $region51: #{predict_model_forward.16} parent=39 // pred_region
        %p299 = scmp.lt.s32.totalorder %s17, 1
        %s300 = scalar_select %p299, %s17, 1
        %s301 = smul.addr %s300, 8
        %s302 = scalar_lea.vmem %s2, %s301
      $region52: #{predict_model_forward.16} parent=39 // pred_fallthru
        _
    $region40: #{predict_model_forward.16} parent=5 // pred_fallthru
      _
    %p303 = scmp.le.s32.totalorder 1, %s17
    %p304 = scmp.lt.s32.totalorder %s17, 3
    %p305 = pnand %p303, %p304
    %p306 = pneg %p305
    // Predicated region
    $region53: #{predict_model_forward.16} parent=5 // pred_check
      _
    $region54: #{predict_model_forward.16} parent=5 // pred_check_branch
      %308 = sbr.rel (%p305) target = $region56
    $region55: #{predict_model_forward.16} parent=5 // pred_region
      %s309 = ssub.s32 %s17, 1
      %p310 = scmp.lt.s32.totalorder %s22, 1
      %s311 = scalar_select %p310, %s22, 1
      %s312 = scalar_lea.vmem %s0, %s311
      %p313 = pneg %p43
      %p314 = pneg %p40
      %p315 = scmp.lt.s32.totalorder %s22, 1
      %s316 = scalar_select %p315, %s22, 1
      %s317 = scalar_lea.vmem %s1, %s316
      %p318 = pneg %p69
      %p319 = pneg %p66
      %p320 = scmp.lt.s32.totalorder %s22, 1
      %s321 = scalar_select %p320, %s22, 1
      %s322 = smul.addr %s321, 8
      %s323 = scalar_lea.vmem %s2, %s322
      %p324 = pneg %p95
      %p325 = pneg %p92
      %p326 = pneg %p116
      %p327 = pneg %p113
      %p328 = pneg %p137
      %p329 = pneg %p134
      %p330 = pneg %p158
      %p331 = pneg %p155
      %p332 = pneg %p179
      %p333 = pneg %p176
      %p334 = pneg %p200
      %p335 = pneg %p197
      %p336 = pneg %p221
      %p337 = pneg %p218
      %p338 = pneg %p247
      %p339 = pneg %p244
      %p340 = scmp.lt.s32.totalorder %s22, 1
      %s341 = scalar_select %p340, %s22, 1
      %s342 = smul.addr %s341, 8
      %s343 = scalar_lea.vmem %s9, %s342
      %p344 = scmp.lt.s32.totalorder %s22, 1
      %s345 = scalar_select %p344, %s22, 1
      %s346 = scalar_lea.vmem %s0, %s345
      %p347 = scmp.lt.s32.totalorder %s22, 1
      %s348 = scalar_select %p347, %s22, 1
      %s349 = scalar_lea.vmem %s1, %s348
      %p350 = scmp.lt.s32.totalorder %s22, 1
      %s351 = scalar_select %p350, %s22, 1
      %s352 = smul.addr %s351, 8
      %s353 = scalar_lea.vmem %s2, %s352
      %p354 = scmp.lt.s32.totalorder %s22, 1
      %s355 = scalar_select %p354, %s22, 1
      %s356 = smul.addr %s355, 8
      %s357 = scalar_lea.vmem %s9, %s356
      %v359 = vld [vmem:[%s346] sm:$0x1]
      %v360 = vld [vmem:[%s3] sm:$0xf]
      %v361 = vld [vmem:[%s3 + $0x4] sm:$0xf]
      %v362 = vld [vmem:[%s3 + $0x8] sm:$0xf]
      %v363 = vld [vmem:[%s3 + $0xc] sm:$0xf]
      %v364 = vpack.c.bf16 %v359, %v359
      %v365 = vld [vmem:[%s349] sm:$0x1]
      %v366 = vld [vmem:[%s4] sm:$0xf]
      %v367 = vld [vmem:[%s4 + $0x4] sm:$0xf]
      %v368 = vld [vmem:[%s4 + $0x8] sm:$0xf]
      %v369 = vld [vmem:[%s4 + $0xc] sm:$0xf]
      %v370 = vpack.c.bf16 %v365, %v365
      %v375 = vunpack.c.l.b16 %v366
      %v376 = vunpack.c.l.b16 %v367
      %v377 = vunpack.c.l.b16 %v368
      %v378 = vunpack.c.l.b16 %v369
      %v379 = vpack.c.b16 %v376, %v375
      %v380 = vpack.c.b16 %v378, %v377
      %vm383 = vcmask 261120
      %v385 = vsel %vm383, %v370, 0
      %387 = vmatprep.subr.bf16.mxu0 0
      %388 = vmatpush1.bf16.msra.mxu0 0
      %389 = vmatprep.subr.bf16.mxu0 0
      %390 = vmatpush1.bf16.msra.mxu0 0
      %391 = vmatprep.subr.bf16.mxu0 0
      %392 = vmatpush1.bf16.msra.mxu0 0
      %393 = vmatprep.subr.bf16.mxu0 0
      %394 = vmatpush1.bf16.msra.mxu0 0
      %395 = vmatprep.subr.bf16.mxu0 0
      %396 = vmatpush1.bf16.msra.mxu0 0
      %397 = vmatprep.subr.bf16.mxu0 0
      %398 = vmatpush1.bf16.msra.mxu0 0
      %399 = vmatprep.subr.bf16.mxu0 0
      %400 = vmatpush1.bf16.msra.mxu0 %v380
      %401 = vmatprep.subr.bf16.mxu0 0
      %402 = vmatpush1.bf16.msra.mxu0 %v379
      %403 = vmatprep.subr.bf16.mxu0 0
      %404 = vmatpush2.bf16.msra.mxu0 0
      %405 = vmatprep.subr.bf16.mxu0 0
      %406 = vmatpush2.bf16.msra.mxu0 0
      %407 = vmatprep.subr.bf16.mxu0 0
      %408 = vmatpush2.bf16.msra.mxu0 0
      %409 = vmatprep.subr.bf16.mxu0 0
      %410 = vmatpush2.bf16.msra.mxu0 0
      %411 = vmatprep.subr.bf16.mxu0 0
      %412 = vmatpush2.bf16.msra.mxu0 0
      %413 = vmatprep.subr.bf16.mxu0 0
      %414 = vmatpush2.bf16.msra.mxu0 0
      %415 = vmatprep.subr.bf16.mxu0 0
      %416 = vmatpush2.bf16.msra.mxu0 0
      %417 = vmatprep.subr.bf16.mxu0 0
      %418 = vmatpush2.bf16.msra.mxu0 0
      %419 = vmatprep.mubr.bf16.mxu0 0
      %420 = vmatmul.mubr.bf16.gmra.mxu0 %v385
      %v421 = vpop.f32.mrf.mxu0
      %v422 = vadd.f32 0.0, %v421
      %v423 = vpop.f32.mrf.mxu0
      %v424 = vpop.f32.mrf.mxu0
      %v425 = vpop.f32.mrf.mxu0
      %426 = vdwg.mxu0
      %v431 = vunpack.c.l.b16 %v360
      %v432 = vunpack.c.l.b16 %v361
      %v433 = vunpack.c.l.b16 %v362
      %v434 = vunpack.c.l.b16 %v363
      %v435 = vpack.c.b16 %v432, %v431
      %v436 = vpack.c.b16 %v434, %v433
      %v440 = vsel %vm383, %v364, 0
      %442 = vmatprep.subr.bf16.mxu0 0
      %443 = vmatpush1.bf16.msra.mxu0 0
      %444 = vmatprep.subr.bf16.mxu0 0
      %445 = vmatpush1.bf16.msra.mxu0 0
      %446 = vmatprep.subr.bf16.mxu0 0
      %447 = vmatpush1.bf16.msra.mxu0 0
      %448 = vmatprep.subr.bf16.mxu0 0
      %449 = vmatpush1.bf16.msra.mxu0 0
      %450 = vmatprep.subr.bf16.mxu0 0
      %451 = vmatpush1.bf16.msra.mxu0 0
      %452 = vmatprep.subr.bf16.mxu0 0
      %453 = vmatpush1.bf16.msra.mxu0 0
      %454 = vmatprep.subr.bf16.mxu0 0
      %455 = vmatpush1.bf16.msra.mxu0 %v436
      %456 = vmatprep.subr.bf16.mxu0 0
      %457 = vmatpush1.bf16.msra.mxu0 %v435
      %458 = vmatprep.subr.bf16.mxu0 0
      %459 = vmatpush2.bf16.msra.mxu0 0
      %460 = vmatprep.subr.bf16.mxu0 0
      %461 = vmatpush2.bf16.msra.mxu0 0
      %462 = vmatprep.subr.bf16.mxu0 0
      %463 = vmatpush2.bf16.msra.mxu0 0
      %464 = vmatprep.subr.bf16.mxu0 0
      %465 = vmatpush2.bf16.msra.mxu0 0
      %466 = vmatprep.subr.bf16.mxu0 0
      %467 = vmatpush2.bf16.msra.mxu0 0
      %468 = vmatprep.subr.bf16.mxu0 0
      %469 = vmatpush2.bf16.msra.mxu0 0
      %470 = vmatprep.subr.bf16.mxu0 0
      %471 = vmatpush2.bf16.msra.mxu0 0
      %472 = vmatprep.subr.bf16.mxu0 0
      %473 = vmatpush2.bf16.msra.mxu0 0
      %474 = vmatprep.mubr.bf16.mxu0 0
      %475 = vmatmul.mubr.bf16.gmra.mxu0 %v440
      %v476 = vpop.f32.mrf.mxu0
      %v477 = vadd.f32 %v422, %v476
      %v478 = vpop.f32.mrf.mxu0
      %v479 = vpop.f32.mrf.mxu0
      %v480 = vpop.f32.mrf.mxu0
      %481 = vdwg.mxu0
      %v482 = vld [vmem:[%s6] sm:$0x1]
      %v483 = vadd.f32 %v477, %v482
      %v484 = vld [vmem:[%s353] sm:$0x1f]
      %v485 = vld [vmem:[%s5] sm:$0xf]
      %v486 = vld [vmem:[%s5 + $0x4] sm:$0xf]
      %v487 = vld [vmem:[%s5 + $0x8] sm:$0xf]
      %v488 = vld [vmem:[%s5 + $0xc] sm:$0xf]
      %v489 = vpack.c.bf16 %v484, %v484
      %v490 = vlaneseq
      %v491 = vshrl.u32 %v490, 7
      %v492 = vsub.s32 0, %v491
      %v493 = vrot.slane %v483, %v492
      %v498 = vunpack.c.l.b16 %v485
      %v499 = vunpack.c.l.b16 %v486
      %v500 = vunpack.c.l.b16 %v487
      %v501 = vunpack.c.l.b16 %v488
      %v502 = vpack.c.b16 %v499, %v498
      %v503 = vpack.c.b16 %v501, %v500
      %v507 = vsel %vm383, %v489, 0
      %509 = vmatprep.subr.bf16.mxu0 0
      %510 = vmatpush1.bf16.msra.mxu0 0
      %511 = vmatprep.subr.bf16.mxu0 0
      %512 = vmatpush1.bf16.msra.mxu0 0
      %513 = vmatprep.subr.bf16.mxu0 0
      %514 = vmatpush1.bf16.msra.mxu0 0
      %515 = vmatprep.subr.bf16.mxu0 0
      %516 = vmatpush1.bf16.msra.mxu0 0
      %517 = vmatprep.subr.bf16.mxu0 0
      %518 = vmatpush1.bf16.msra.mxu0 0
      %519 = vmatprep.subr.bf16.mxu0 0
      %520 = vmatpush1.bf16.msra.mxu0 0
      %521 = vmatprep.subr.bf16.mxu0 0
      %522 = vmatpush1.bf16.msra.mxu0 %v503
      %523 = vmatprep.subr.bf16.mxu0 0
      %524 = vmatpush1.bf16.msra.mxu0 %v502
      %525 = vmatprep.subr.bf16.mxu0 0
      %526 = vmatpush2.bf16.msra.mxu0 0
      %527 = vmatprep.subr.bf16.mxu0 0
      %528 = vmatpush2.bf16.msra.mxu0 0
      %529 = vmatprep.subr.bf16.mxu0 0
      %530 = vmatpush2.bf16.msra.mxu0 0
      %531 = vmatprep.subr.bf16.mxu0 0
      %532 = vmatpush2.bf16.msra.mxu0 0
      %533 = vmatprep.subr.bf16.mxu0 0
      %534 = vmatpush2.bf16.msra.mxu0 0
      %535 = vmatprep.subr.bf16.mxu0 0
      %536 = vmatpush2.bf16.msra.mxu0 0
      %537 = vmatprep.subr.bf16.mxu0 0
      %538 = vmatpush2.bf16.msra.mxu0 0
      %539 = vmatprep.subr.bf16.mxu0 0
      %540 = vmatpush2.bf16.msra.mxu0 0
      %541 = vmatprep.mubr.bf16.mxu0 0
      %542 = vmatmul.mubr.bf16.gmra.mxu0 %v507
      %v543 = vpop.f32.mrf.mxu0
      %v544 = vadd.f32 %v493, %v543
      %v545 = vpop.f32.mrf.mxu0
      %v546 = vpop.f32.mrf.mxu0
      %v547 = vpop.f32.mrf.mxu0
      %548 = vdwg.mxu0
      %vm549 = vcmp.ge.f32.partialorder %v544, 0.0
      %v550 = vmul.f32 %v544, 0.01
      %v551 = vsel %vm549, %v544, %v550
      %v552 = vld [vmem:[%s7] sm:$0x1]
      %v554 = vlaneseq
      %v555 = vshrl.u32 %v554, 7
      %v556 = vsub.s32 0, %v555
      %v557 = vrot.slane %v552, %v556
      %v559 = vmul.f32 %v551, %v557
      %vm560 = vcmask 258048
      %v561 = vsel %vm560, %v559, 0.0
      %562 = vadd.xlane.f32.xlu0 %v561
      %v563 = vpop.xlane.xlu0 %562
      %v564 = vld [vmem:[#allocation2] sm:$0x1]
      %v566 = vlaneseq
      %v567 = vshrl.u32 %v566, 7
      %v568 = vsub.s32 0, %v567
      %v569 = vrot.slane %v564, %v568
      %v571 = vadd.f32 %v563, %v569
      %vm572 = vcmask 4096
      %573 = vst.msk [vmem:[%s357] sm:$0x1f] %vm572, %v571
      %p574 = scmp.lt.s32.totalorder %s22, 1
      %s575 = scalar_select %p574, %s22, 1
      %s576 = smul.addr %s575, 8
      %s577 = scalar_lea.vmem %s9, %s576
      // Predicated region
      $region57: #{predict_model_forward.16} parent=55 // pred_check
        %p578 = pneg %p244
      $region58: #{predict_model_forward.16} parent=55 // pred_check_branch
        %580 = sbr.rel (%p578) target = $region60
      $region59: #{predict_model_forward.16} parent=55 // pred_region
        _
      $region60: #{predict_model_forward.16} parent=55 // pred_fallthru
        _
    $region56: #{predict_model_forward.16} parent=5 // pred_fallthru
      _
    %p581 = scmp.le.s32.totalorder 2, %s17
    // Predicated region
    $region61: #{predict_model_forward.16} parent=5 // pred_check
      %p582 = pneg %p581
    $region62: #{predict_model_forward.16} parent=5 // pred_check_branch
      %584 = sbr.rel (%p582) target = $region64
    $region63: #{predict_model_forward.16} parent=5 // pred_region
      %s585 = ssub.s32 %s17, 2
      // Predicated region
      $region65: #{predict_model_forward.16} parent=63 // pred_check
        %p586 = pneg %p250
      $region66: #{predict_model_forward.16} parent=63 // pred_check_branch
        %588 = sbr.rel (%p586) target = $region68
      $region67: #{predict_model_forward.16} parent=63 // pred_region
        %p589 = scmp.lt.s32.totalorder %s23, 1
        %s590 = scalar_select %p589, %s23, 1
        %s591 = smul.addr %s590, 8
        %s592 = scalar_lea.vmem %s9, %s591
      $region68: #{predict_model_forward.16} parent=63 // pred_fallthru
        _
    $region64: #{predict_model_forward.16} parent=5 // pred_fallthru
      _
  $region6: #{predict_model_forward.16} parent=0 // loop_footer
    %s21 = sadd.s32 1, %s17
  $region7: #{predict_model_forward.16} parent=0 // loop_footer_branch
    %16 = sbr.rel target = $region3
  $region8: #{predict_model_forward.16} parent=0 // loop_exit
    _

// kernel: predict_model_forward.15
$region0: #{predict_model_forward.15}
  #allocation0 [shape = 'u32[]', space=smem, size = 0x4, offset = 0x4, fixed_abs, tag = 'smem constant byte address 0x4 - core index']
  #allocation1 [shape = 'u32[144,128]{1,0:T(1,128)}', space=vmem, size = 0x12000, scoped, tag = 'internal scratch']
  #allocation2 [shape = 'f32[1,1]{1,0:T(1,128)S(1)}', space=vmem, size = 0x200, scoped, tag = 'scoped memory for predict_model_forward.15']
  %s0 = inlined_call_operand.vmem [shape: f32[2,1,32], index: 0, kind: input, shape index: {}]
  %s1 = inlined_call_operand.vmem [shape: f32[2,1,32], index: 1, kind: input, shape index: {}]
  %s2 = inlined_call_operand.vmem [shape: f32[2,4,32], index: 2, kind: input, shape index: {}]
  %s3 = inlined_call_operand.vmem [shape: bf16[32,32], index: 3, kind: input, shape index: {}]
  %s4 = inlined_call_operand.vmem [shape: bf16[32,32], index: 4, kind: input, shape index: {}]
  %s5 = inlined_call_operand.vmem [shape: bf16[32,32], index: 5, kind: input, shape index: {}]
  %s6 = inlined_call_operand.vmem [shape: f32[1,32], index: 6, kind: input, shape index: {}]
  %s7 = inlined_call_operand.vmem [shape: f32[1,32], index: 7, kind: input, shape index: {}]
  %s8 = inlined_call_operand.<no memory space> [shape: f32[1,1], index: 8, kind: input, shape index: {}]
  %s9 = inlined_call_operand.vmem [shape: f32[2,4,1], index: 9, kind: output, shape index: {}]
  %s10 = sld [smem:[#allocation0]]
  $region69: #{predict_model_forward.15} parent=0
    _
  %s12 = ssub.s32 1, %s10
  %s13 = scalar_select 0, %s12, %s10
  %v14 = vstv %s8
  %15 = vst [vmem:[#allocation2] sm:$0x1] %v14
  loop: start=0, step=1, limit=4
  $region2: #{predict_model_forward.15} parent=0 // loop_pre_header
    _
  $region3: #{predict_model_forward.15} parent=0 // loop_header
    %s17 = sphi 0, %s21
    %p18 = scmp.ge.s32.totalorder %s17, 4
    %s27 = sphi 0, %s29
    %s30 = sphi 0, %s27
    %s31 = sphi 0, %s30
    %s47 = sphi 0, %s31
    %s53 = sphi 0, %s55
    %s56 = sphi 0, %s53
    %s57 = sphi 0, %s56
    %s73 = sphi 0, %s57
    %s79 = sphi 0, %s81
    %s82 = sphi 0, %s79
    %s83 = sphi 0, %s82
    %s99 = sphi 0, %s83
    %s103 = sphi 0, %s103
    %s105 = sphi 0, %s103
    %s106 = sphi 0, %s105
    %s120 = sphi 0, %s106
    %s124 = sphi 0, %s124
    %s126 = sphi 0, %s124
    %s127 = sphi 0, %s126
    %s141 = sphi 0, %s127
    %s145 = sphi 0, %s145
    %s147 = sphi 0, %s145
    %s148 = sphi 0, %s147
    %s162 = sphi 0, %s148
    %s166 = sphi 0, %s166
    %s168 = sphi 0, %s166
    %s169 = sphi 0, %s168
    %s183 = sphi 0, %s169
    %s187 = sphi 0, %s187
    %s189 = sphi 0, %s187
    %s190 = sphi 0, %s189
    %s204 = sphi 0, %s190
    %s208 = sphi 0, %s208
    %s210 = sphi 0, %s208
    %s211 = sphi 0, %s210
    %s225 = sphi 0, %s211
    %s231 = sphi 0, %s233
    %s234 = sphi 0, %s231
    %s235 = sphi 0, %s234
    %s251 = sphi 0, %s235
  $region4: #{predict_model_forward.15} parent=0 // loop_header_branch
    %20 = sbr.rel (%p18) target = $region8
  $region5: #{predict_model_forward.15} parent=0 // loop_body
    %s22 = ssub.s32 %s17, 1
    %s23 = ssub.s32 %s17, 2
    %s24 = sadd.s32 %s17, 1
    %s25 = ssub.s32 %s17, %s24
    %p26 = scmp.eq.s32.totalorder %s25, 0
    %s28 = sadd.s32 %s27, 1
    %s29 = scalar_select %p26, %s27, %s28
    %p32 = pneg %p26
    %p33 = scmp.eq.s32.totalorder %s17, 1
    %p34 = por %p32, %p33
    %p35 = scmp.ne.s32.totalorder %s27, %s30
    %p36 = scmp.eq.s32.totalorder %s17, 0
    %p37 = por %p35, %p36
    %p38 = scmp.ne.s32.totalorder %s27, %s30
    %p39 = scmp.eq.s32.totalorder %s22, 1
    %p40 = por %p38, %p39
    %p41 = scmp.ne.s32.totalorder %s30, %s31
    %p42 = scmp.eq.s32.totalorder %s22, 0
    %p43 = por %p41, %p42
    %p44 = scmp.ne.s32.totalorder %s30, %s31
    %p45 = scmp.eq.s32.totalorder %s23, 1
    %p46 = por %p44, %p45
    %p48 = scmp.ne.s32.totalorder %s31, %s47
    %p49 = scmp.eq.s32.totalorder %s23, 0
    %p50 = por %p48, %p49
    %s51 = ssub.s32 %s17, %s24
    %p52 = scmp.eq.s32.totalorder %s51, 0
    %s54 = sadd.s32 %s53, 1
    %s55 = scalar_select %p52, %s53, %s54
    %p58 = pneg %p52
    %p59 = scmp.eq.s32.totalorder %s17, 1
    %p60 = por %p58, %p59
    %p61 = scmp.ne.s32.totalorder %s53, %s56
    %p62 = scmp.eq.s32.totalorder %s17, 0
    %p63 = por %p61, %p62
    %p64 = scmp.ne.s32.totalorder %s53, %s56
    %p65 = scmp.eq.s32.totalorder %s22, 1
    %p66 = por %p64, %p65
    %p67 = scmp.ne.s32.totalorder %s56, %s57
    %p68 = scmp.eq.s32.totalorder %s22, 0
    %p69 = por %p67, %p68
    %p70 = scmp.ne.s32.totalorder %s56, %s57
    %p71 = scmp.eq.s32.totalorder %s23, 1
    %p72 = por %p70, %p71
    %p74 = scmp.ne.s32.totalorder %s57, %s73
    %p75 = scmp.eq.s32.totalorder %s23, 0
    %p76 = por %p74, %p75
    %s77 = ssub.s32 %s17, %s24
    %p78 = scmp.eq.s32.totalorder %s77, 0
    %s80 = sadd.s32 %s79, 1
    %s81 = scalar_select %p78, %s79, %s80
    %p84 = pneg %p78
    %p85 = scmp.eq.s32.totalorder %s17, 1
    %p86 = por %p84, %p85
    %p87 = scmp.ne.s32.totalorder %s79, %s82
    %p88 = scmp.eq.s32.totalorder %s17, 0
    %p89 = por %p87, %p88
    %p90 = scmp.ne.s32.totalorder %s79, %s82
    %p91 = scmp.eq.s32.totalorder %s22, 1
    %p92 = por %p90, %p91
    %p93 = scmp.ne.s32.totalorder %s82, %s83
    %p94 = scmp.eq.s32.totalorder %s22, 0
    %p95 = por %p93, %p94
    %p96 = scmp.ne.s32.totalorder %s82, %s83
    %p97 = scmp.eq.s32.totalorder %s23, 1
    %p98 = por %p96, %p97
    %p100 = scmp.ne.s32.totalorder %s83, %s99
    %p101 = scmp.eq.s32.totalorder %s23, 0
    %p102 = por %p100, %p101
    %s104 = sadd.s32 %s103, 1
    %p107 = scmp.eq.s32.totalorder %s17, 1
    %p108 = scmp.ne.s32.totalorder %s103, %s105
    %p109 = scmp.eq.s32.totalorder %s17, 0
    %p110 = por %p108, %p109
    %p111 = scmp.ne.s32.totalorder %s103, %s105
    %p112 = scmp.eq.s32.totalorder %s22, 1
    %p113 = por %p111, %p112
    %p114 = scmp.ne.s32.totalorder %s105, %s106
    %p115 = scmp.eq.s32.totalorder %s22, 0
    %p116 = por %p114, %p115
    %p117 = scmp.ne.s32.totalorder %s105, %s106
    %p118 = scmp.eq.s32.totalorder %s23, 1
    %p119 = por %p117, %p118
    %p121 = scmp.ne.s32.totalorder %s106, %s120
    %p122 = scmp.eq.s32.totalorder %s23, 0
    %p123 = por %p121, %p122
    %s125 = sadd.s32 %s124, 1
    %p128 = scmp.eq.s32.totalorder %s17, 1
    %p129 = scmp.ne.s32.totalorder %s124, %s126
    %p130 = scmp.eq.s32.totalorder %s17, 0
    %p131 = por %p129, %p130
    %p132 = scmp.ne.s32.totalorder %s124, %s126
    %p133 = scmp.eq.s32.totalorder %s22, 1
    %p134 = por %p132, %p133
    %p135 = scmp.ne.s32.totalorder %s126, %s127
    %p136 = scmp.eq.s32.totalorder %s22, 0
    %p137 = por %p135, %p136
    %p138 = scmp.ne.s32.totalorder %s126, %s127
    %p139 = scmp.eq.s32.totalorder %s23, 1
    %p140 = por %p138, %p139
    %p142 = scmp.ne.s32.totalorder %s127, %s141
    %p143 = scmp.eq.s32.totalorder %s23, 0
    %p144 = por %p142, %p143
    %s146 = sadd.s32 %s145, 1
    %p149 = scmp.eq.s32.totalorder %s17, 1
    %p150 = scmp.ne.s32.totalorder %s145, %s147
    %p151 = scmp.eq.s32.totalorder %s17, 0
    %p152 = por %p150, %p151
    %p153 = scmp.ne.s32.totalorder %s145, %s147
    %p154 = scmp.eq.s32.totalorder %s22, 1
    %p155 = por %p153, %p154
    %p156 = scmp.ne.s32.totalorder %s147, %s148
    %p157 = scmp.eq.s32.totalorder %s22, 0
    %p158 = por %p156, %p157
    %p159 = scmp.ne.s32.totalorder %s147, %s148
    %p160 = scmp.eq.s32.totalorder %s23, 1
    %p161 = por %p159, %p160
    %p163 = scmp.ne.s32.totalorder %s148, %s162
    %p164 = scmp.eq.s32.totalorder %s23, 0
    %p165 = por %p163, %p164
    %s167 = sadd.s32 %s166, 1
    %p170 = scmp.eq.s32.totalorder %s17, 1
    %p171 = scmp.ne.s32.totalorder %s166, %s168
    %p172 = scmp.eq.s32.totalorder %s17, 0
    %p173 = por %p171, %p172
    %p174 = scmp.ne.s32.totalorder %s166, %s168
    %p175 = scmp.eq.s32.totalorder %s22, 1
    %p176 = por %p174, %p175
    %p177 = scmp.ne.s32.totalorder %s168, %s169
    %p178 = scmp.eq.s32.totalorder %s22, 0
    %p179 = por %p177, %p178
    %p180 = scmp.ne.s32.totalorder %s168, %s169
    %p181 = scmp.eq.s32.totalorder %s23, 1
    %p182 = por %p180, %p181
    %p184 = scmp.ne.s32.totalorder %s169, %s183
    %p185 = scmp.eq.s32.totalorder %s23, 0
    %p186 = por %p184, %p185
    %s188 = sadd.s32 %s187, 1
    %p191 = scmp.eq.s32.totalorder %s17, 1
    %p192 = scmp.ne.s32.totalorder %s187, %s189
    %p193 = scmp.eq.s32.totalorder %s17, 0
    %p194 = por %p192, %p193
    %p195 = scmp.ne.s32.totalorder %s187, %s189
    %p196 = scmp.eq.s32.totalorder %s22, 1
    %p197 = por %p195, %p196
    %p198 = scmp.ne.s32.totalorder %s189, %s190
    %p199 = scmp.eq.s32.totalorder %s22, 0
    %p200 = por %p198, %p199
    %p201 = scmp.ne.s32.totalorder %s189, %s190
    %p202 = scmp.eq.s32.totalorder %s23, 1
    %p203 = por %p201, %p202
    %p205 = scmp.ne.s32.totalorder %s190, %s204
    %p206 = scmp.eq.s32.totalorder %s23, 0
    %p207 = por %p205, %p206
    %s209 = sadd.s32 %s208, 1
    %p212 = scmp.eq.s32.totalorder %s17, 1
    %p213 = scmp.ne.s32.totalorder %s208, %s210
    %p214 = scmp.eq.s32.totalorder %s17, 0
    %p215 = por %p213, %p214
    %p216 = scmp.ne.s32.totalorder %s208, %s210
    %p217 = scmp.eq.s32.totalorder %s22, 1
    %p218 = por %p216, %p217
    %p219 = scmp.ne.s32.totalorder %s210, %s211
    %p220 = scmp.eq.s32.totalorder %s22, 0
    %p221 = por %p219, %p220
    %p222 = scmp.ne.s32.totalorder %s210, %s211
    %p223 = scmp.eq.s32.totalorder %s23, 1
    %p224 = por %p222, %p223
    %p226 = scmp.ne.s32.totalorder %s211, %s225
    %p227 = scmp.eq.s32.totalorder %s23, 0
    %p228 = por %p226, %p227
    %s229 = ssub.s32 %s17, %s24
    %p230 = scmp.eq.s32.totalorder %s229, 0
    %s232 = sadd.s32 %s231, 1
    %s233 = scalar_select %p230, %s231, %s232
    %p236 = pneg %p230
    %p237 = scmp.eq.s32.totalorder %s17, 1
    %p238 = por %p236, %p237
    %p239 = scmp.ne.s32.totalorder %s231, %s234
    %p240 = scmp.eq.s32.totalorder %s17, 0
    %p241 = por %p239, %p240
    %p242 = scmp.ne.s32.totalorder %s231, %s234
    %p243 = scmp.eq.s32.totalorder %s22, 1
    %p244 = por %p242, %p243
    %p245 = scmp.ne.s32.totalorder %s234, %s235
    %p246 = scmp.eq.s32.totalorder %s22, 0
    %p247 = por %p245, %p246
    %p248 = scmp.ne.s32.totalorder %s234, %s235
    %p249 = scmp.eq.s32.totalorder %s23, 1
    %p250 = por %p248, %p249
    %p252 = scmp.ne.s32.totalorder %s235, %s251
    %p253 = scmp.eq.s32.totalorder %s23, 0
    %p254 = por %p252, %p253
    %p255 = scmp.le.s32.totalorder 1, %s17
    %p256 = scmp.lt.s32.totalorder %s17, 3
    %p257 = pnand %p255, %p256
    %p258 = pneg %p257
    // Predicated region
    $region9: #{predict_model_forward.15} parent=5 // pred_check
      _
    $region10: #{predict_model_forward.15} parent=5 // pred_check_branch
      %260 = sbr.rel (%p257) target = $region12
    $region11: #{predict_model_forward.15} parent=5 // pred_region
      %s261 = ssub.s32 %s17, 1
      // Predicated region
      $region13: #{predict_model_forward.15} parent=11 // pred_check
        %p262 = pneg %p116
      $region14: #{predict_model_forward.15} parent=11 // pred_check_branch
        %264 = sbr.rel (%p262) target = $region16
      $region15: #{predict_model_forward.15} parent=11 // pred_region
        _
      $region16: #{predict_model_forward.15} parent=11 // pred_fallthru
        _
      // Predicated region
      $region17: #{predict_model_forward.15} parent=11 // pred_check
        %p265 = pneg %p137
      $region18: #{predict_model_forward.15} parent=11 // pred_check_branch
        %267 = sbr.rel (%p265) target = $region20
      $region19: #{predict_model_forward.15} parent=11 // pred_region
        _
      $region20: #{predict_model_forward.15} parent=11 // pred_fallthru
        _
      // Predicated region
      $region21: #{predict_model_forward.15} parent=11 // pred_check
        %p268 = pneg %p158
      $region22: #{predict_model_forward.15} parent=11 // pred_check_branch
        %270 = sbr.rel (%p268) target = $region24
      $region23: #{predict_model_forward.15} parent=11 // pred_region
        _
      $region24: #{predict_model_forward.15} parent=11 // pred_fallthru
        _
      // Predicated region
      $region25: #{predict_model_forward.15} parent=11 // pred_check
        %p271 = pneg %p179
      $region26: #{predict_model_forward.15} parent=11 // pred_check_branch
        %273 = sbr.rel (%p271) target = $region28
      $region27: #{predict_model_forward.15} parent=11 // pred_region
        _
      $region28: #{predict_model_forward.15} parent=11 // pred_fallthru
        _
      // Predicated region
      $region29: #{predict_model_forward.15} parent=11 // pred_check
        %p274 = pneg %p200
      $region30: #{predict_model_forward.15} parent=11 // pred_check_branch
        %276 = sbr.rel (%p274) target = $region32
      $region31: #{predict_model_forward.15} parent=11 // pred_region
        _
      $region32: #{predict_model_forward.15} parent=11 // pred_fallthru
        _
      // Predicated region
      $region33: #{predict_model_forward.15} parent=11 // pred_check
        %p277 = pneg %p221
      $region34: #{predict_model_forward.15} parent=11 // pred_check_branch
        %279 = sbr.rel (%p277) target = $region36
      $region35: #{predict_model_forward.15} parent=11 // pred_region
        _
      $region36: #{predict_model_forward.15} parent=11 // pred_fallthru
        _
    $region12: #{predict_model_forward.15} parent=5 // pred_fallthru
      _
    %p280 = scmp.lt.s32.totalorder %s17, 2
    // Predicated region
    $region37: #{predict_model_forward.15} parent=5 // pred_check
      %p281 = pneg %p280
    $region38: #{predict_model_forward.15} parent=5 // pred_check_branch
      %283 = sbr.rel (%p281) target = $region40
    $region39: #{predict_model_forward.15} parent=5 // pred_region
      // Predicated region
      $region41: #{predict_model_forward.15} parent=39 // pred_check
        %p284 = pneg %p37
      $region42: #{predict_model_forward.15} parent=39 // pred_check_branch
        %286 = sbr.rel (%p284) target = $region44
      $region43: #{predict_model_forward.15} parent=39 // pred_region
        %p287 = scmp.lt.s32.totalorder %s17, 1
        %s288 = scalar_select %p287, %s17, 1
        %s289 = scalar_lea.vmem %s0, %s288
      $region44: #{predict_model_forward.15} parent=39 // pred_fallthru
        _
      // Predicated region
      $region45: #{predict_model_forward.15} parent=39 // pred_check
        %p290 = pneg %p63
      $region46: #{predict_model_forward.15} parent=39 // pred_check_branch
        %292 = sbr.rel (%p290) target = $region48
      $region47: #{predict_model_forward.15} parent=39 // pred_region
        %p293 = scmp.lt.s32.totalorder %s17, 1
        %s294 = scalar_select %p293, %s17, 1
        %s295 = scalar_lea.vmem %s1, %s294
      $region48: #{predict_model_forward.15} parent=39 // pred_fallthru
        _
      // Predicated region
      $region49: #{predict_model_forward.15} parent=39 // pred_check
        %p296 = pneg %p89
      $region50: #{predict_model_forward.15} parent=39 // pred_check_branch
        %298 = sbr.rel (%p296) target = $region52
      $region51: #{predict_model_forward.15} parent=39 // pred_region
        %p299 = scmp.lt.s32.totalorder %s17, 1
        %s300 = scalar_select %p299, %s17, 1
        %s301 = smul.addr %s300, 4
        %s302 = scalar_lea.vmem %s2, %s301
      $region52: #{predict_model_forward.15} parent=39 // pred_fallthru
        _
    $region40: #{predict_model_forward.15} parent=5 // pred_fallthru
      _
    %p303 = scmp.le.s32.totalorder 1, %s17
    %p304 = scmp.lt.s32.totalorder %s17, 3
    %p305 = pnand %p303, %p304
    %p306 = pneg %p305
    // Predicated region
    $region53: #{predict_model_forward.15} parent=5 // pred_check
      _
    $region54: #{predict_model_forward.15} parent=5 // pred_check_branch
      %308 = sbr.rel (%p305) target = $region56
    $region55: #{predict_model_forward.15} parent=5 // pred_region
      %s309 = ssub.s32 %s17, 1
      %p310 = scmp.lt.s32.totalorder %s22, 1
      %s311 = scalar_select %p310, %s22, 1
      %s312 = scalar_lea.vmem %s0, %s311
      %p313 = pneg %p43
      %p314 = pneg %p40
      %p315 = scmp.lt.s32.totalorder %s22, 1
      %s316 = scalar_select %p315, %s22, 1
      %s317 = scalar_lea.vmem %s1, %s316
      %p318 = pneg %p69
      %p319 = pneg %p66
      %p320 = scmp.lt.s32.totalorder %s22, 1
      %s321 = scalar_select %p320, %s22, 1
      %s322 = smul.addr %s321, 4
      %s323 = scalar_lea.vmem %s2, %s322
      %p324 = pneg %p95
      %p325 = pneg %p92
      %p326 = pneg %p116
      %p327 = pneg %p113
      %p328 = pneg %p137
      %p329 = pneg %p134
      %p330 = pneg %p158
      %p331 = pneg %p155
      %p332 = pneg %p179
      %p333 = pneg %p176
      %p334 = pneg %p200
      %p335 = pneg %p197
      %p336 = pneg %p221
      %p337 = pneg %p218
      %p338 = pneg %p247
      %p339 = pneg %p244
      %p340 = scmp.lt.s32.totalorder %s22, 1
      %s341 = scalar_select %p340, %s22, 1
      %s342 = smul.addr %s341, 4
      %s343 = scalar_lea.vmem %s9, %s342
      %p344 = scmp.lt.s32.totalorder %s22, 1
      %s345 = scalar_select %p344, %s22, 1
      %s346 = scalar_lea.vmem %s0, %s345
      %p347 = scmp.lt.s32.totalorder %s22, 1
      %s348 = scalar_select %p347, %s22, 1
      %s349 = scalar_lea.vmem %s1, %s348
      %p350 = scmp.lt.s32.totalorder %s22, 1
      %s351 = scalar_select %p350, %s22, 1
      %s352 = smul.addr %s351, 4
      %s353 = scalar_lea.vmem %s2, %s352
      %p354 = scmp.lt.s32.totalorder %s22, 1
      %s355 = scalar_select %p354, %s22, 1
      %s356 = smul.addr %s355, 4
      %s357 = scalar_lea.vmem %s9, %s356
      %v359 = vld [vmem:[%s346] sm:$0x1]
      %v360 = vld [vmem:[%s3] sm:$0xf]
      %v361 = vld [vmem:[%s3 + $0x4] sm:$0xf]
      %v362 = vld [vmem:[%s3 + $0x8] sm:$0xf]
      %v363 = vld [vmem:[%s3 + $0xc] sm:$0xf]
      %v364 = vpack.c.bf16 %v359, %v359
      %v365 = vld [vmem:[%s349] sm:$0x1]
      %v366 = vld [vmem:[%s4] sm:$0xf]
      %v367 = vld [vmem:[%s4 + $0x4] sm:$0xf]
      %v368 = vld [vmem:[%s4 + $0x8] sm:$0xf]
      %v369 = vld [vmem:[%s4 + $0xc] sm:$0xf]
      %v370 = vpack.c.bf16 %v365, %v365
      %v375 = vunpack.c.l.b16 %v366
      %v376 = vunpack.c.l.b16 %v367
      %v377 = vunpack.c.l.b16 %v368
      %v378 = vunpack.c.l.b16 %v369
      %v379 = vpack.c.b16 %v376, %v375
      %v380 = vpack.c.b16 %v378, %v377
      %vm383 = vcmask 261120
      %v385 = vsel %vm383, %v370, 0
      %387 = vmatprep.subr.bf16.mxu0 0
      %388 = vmatpush1.bf16.msra.mxu0 0
      %389 = vmatprep.subr.bf16.mxu0 0
      %390 = vmatpush1.bf16.msra.mxu0 0
      %391 = vmatprep.subr.bf16.mxu0 0
      %392 = vmatpush1.bf16.msra.mxu0 0
      %393 = vmatprep.subr.bf16.mxu0 0
      %394 = vmatpush1.bf16.msra.mxu0 0
      %395 = vmatprep.subr.bf16.mxu0 0
      %396 = vmatpush1.bf16.msra.mxu0 0
      %397 = vmatprep.subr.bf16.mxu0 0
      %398 = vmatpush1.bf16.msra.mxu0 0
      %399 = vmatprep.subr.bf16.mxu0 0
      %400 = vmatpush1.bf16.msra.mxu0 %v380
      %401 = vmatprep.subr.bf16.mxu0 0
      %402 = vmatpush1.bf16.msra.mxu0 %v379
      %403 = vmatprep.subr.bf16.mxu0 0
      %404 = vmatpush2.bf16.msra.mxu0 0
      %405 = vmatprep.subr.bf16.mxu0 0
      %406 = vmatpush2.bf16.msra.mxu0 0
      %407 = vmatprep.subr.bf16.mxu0 0
      %408 = vmatpush2.bf16.msra.mxu0 0
      %409 = vmatprep.subr.bf16.mxu0 0
      %410 = vmatpush2.bf16.msra.mxu0 0
      %411 = vmatprep.subr.bf16.mxu0 0
      %412 = vmatpush2.bf16.msra.mxu0 0
      %413 = vmatprep.subr.bf16.mxu0 0
      %414 = vmatpush2.bf16.msra.mxu0 0
      %415 = vmatprep.subr.bf16.mxu0 0
      %416 = vmatpush2.bf16.msra.mxu0 0
      %417 = vmatprep.subr.bf16.mxu0 0
      %418 = vmatpush2.bf16.msra.mxu0 0
      %419 = vmatprep.mubr.bf16.mxu0 0
      %420 = vmatmul.mubr.bf16.gmra.mxu0 %v385
      %v421 = vpop.f32.mrf.mxu0
      %v422 = vadd.f32 0.0, %v421
      %v423 = vpop.f32.mrf.mxu0
      %v424 = vpop.f32.mrf.mxu0
      %v425 = vpop.f32.mrf.mxu0
      %426 = vdwg.mxu0
      %v431 = vunpack.c.l.b16 %v360
      %v432 = vunpack.c.l.b16 %v361
      %v433 = vunpack.c.l.b16 %v362
      %v434 = vunpack.c.l.b16 %v363
      %v435 = vpack.c.b16 %v432, %v431
      %v436 = vpack.c.b16 %v434, %v433
      %v440 = vsel %vm383, %v364, 0
      %442 = vmatprep.subr.bf16.mxu0 0
      %443 = vmatpush1.bf16.msra.mxu0 0
      %444 = vmatprep.subr.bf16.mxu0 0
      %445 = vmatpush1.bf16.msra.mxu0 0
      %446 = vmatprep.subr.bf16.mxu0 0
      %447 = vmatpush1.bf16.msra.mxu0 0
      %448 = vmatprep.subr.bf16.mxu0 0
      %449 = vmatpush1.bf16.msra.mxu0 0
      %450 = vmatprep.subr.bf16.mxu0 0
      %451 = vmatpush1.bf16.msra.mxu0 0
      %452 = vmatprep.subr.bf16.mxu0 0
      %453 = vmatpush1.bf16.msra.mxu0 0
      %454 = vmatprep.subr.bf16.mxu0 0
      %455 = vmatpush1.bf16.msra.mxu0 %v436
      %456 = vmatprep.subr.bf16.mxu0 0
      %457 = vmatpush1.bf16.msra.mxu0 %v435
      %458 = vmatprep.subr.bf16.mxu0 0
      %459 = vmatpush2.bf16.msra.mxu0 0
      %460 = vmatprep.subr.bf16.mxu0 0
      %461 = vmatpush2.bf16.msra.mxu0 0
      %462 = vmatprep.subr.bf16.mxu0 0
      %463 = vmatpush2.bf16.msra.mxu0 0
      %464 = vmatprep.subr.bf16.mxu0 0
      %465 = vmatpush2.bf16.msra.mxu0 0
      %466 = vmatprep.subr.bf16.mxu0 0
      %467 = vmatpush2.bf16.msra.mxu0 0
      %468 = vmatprep.subr.bf16.mxu0 0
      %469 = vmatpush2.bf16.msra.mxu0 0
      %470 = vmatprep.subr.bf16.mxu0 0
      %471 = vmatpush2.bf16.msra.mxu0 0
      %472 = vmatprep.subr.bf16.mxu0 0
      %473 = vmatpush2.bf16.msra.mxu0 0
      %474 = vmatprep.mubr.bf16.mxu0 0
      %475 = vmatmul.mubr.bf16.gmra.mxu0 %v440
      %v476 = vpop.f32.mrf.mxu0
      %v477 = vadd.f32 %v422, %v476
      %v478 = vpop.f32.mrf.mxu0
      %v479 = vpop.f32.mrf.mxu0
      %v480 = vpop.f32.mrf.mxu0
      %481 = vdwg.mxu0
      %v482 = vld [vmem:[%s6] sm:$0x1]
      %v483 = vadd.f32 %v477, %v482
      %v484 = vld [vmem:[%s353] sm:$0xf]
      %v485 = vld [vmem:[%s5] sm:$0xf]
      %v486 = vld [vmem:[%s5 + $0x4] sm:$0xf]
      %v487 = vld [vmem:[%s5 + $0x8] sm:$0xf]
      %v488 = vld [vmem:[%s5 + $0xc] sm:$0xf]
      %v489 = vpack.c.bf16 %v484, %v484
      %v490 = vlaneseq
      %v491 = vshrl.u32 %v490, 7
      %v492 = vsub.s32 0, %v491
      %v493 = vrot.slane %v483, %v492
      %v498 = vunpack.c.l.b16 %v485
      %v499 = vunpack.c.l.b16 %v486
      %v500 = vunpack.c.l.b16 %v487
      %v501 = vunpack.c.l.b16 %v488
      %v502 = vpack.c.b16 %v499, %v498
      %v503 = vpack.c.b16 %v501, %v500
      %v507 = vsel %vm383, %v489, 0
      %509 = vmatprep.subr.bf16.mxu0 0
      %510 = vmatpush1.bf16.msra.mxu0 0
      %511 = vmatprep.subr.bf16.mxu0 0
      %512 = vmatpush1.bf16.msra.mxu0 0
      %513 = vmatprep.subr.bf16.mxu0 0
      %514 = vmatpush1.bf16.msra.mxu0 0
      %515 = vmatprep.subr.bf16.mxu0 0
      %516 = vmatpush1.bf16.msra.mxu0 0
      %517 = vmatprep.subr.bf16.mxu0 0
      %518 = vmatpush1.bf16.msra.mxu0 0
      %519 = vmatprep.subr.bf16.mxu0 0
      %520 = vmatpush1.bf16.msra.mxu0 0
      %521 = vmatprep.subr.bf16.mxu0 0
      %522 = vmatpush1.bf16.msra.mxu0 %v503
      %523 = vmatprep.subr.bf16.mxu0 0
      %524 = vmatpush1.bf16.msra.mxu0 %v502
      %525 = vmatprep.subr.bf16.mxu0 0
      %526 = vmatpush2.bf16.msra.mxu0 0
      %527 = vmatprep.subr.bf16.mxu0 0
      %528 = vmatpush2.bf16.msra.mxu0 0
      %529 = vmatprep.subr.bf16.mxu0 0
      %530 = vmatpush2.bf16.msra.mxu0 0
      %531 = vmatprep.subr.bf16.mxu0 0
      %532 = vmatpush2.bf16.msra.mxu0 0
      %533 = vmatprep.subr.bf16.mxu0 0
      %534 = vmatpush2.bf16.msra.mxu0 0
      %535 = vmatprep.subr.bf16.mxu0 0
      %536 = vmatpush2.bf16.msra.mxu0 0
      %537 = vmatprep.subr.bf16.mxu0 0
      %538 = vmatpush2.bf16.msra.mxu0 0
      %539 = vmatprep.subr.bf16.mxu0 0
      %540 = vmatpush2.bf16.msra.mxu0 0
      %541 = vmatprep.mubr.bf16.mxu0 0
      %542 = vmatmul.mubr.bf16.gmra.mxu0 %v507
      %v543 = vpop.f32.mrf.mxu0
      %v544 = vadd.f32 %v493, %v543
      %v545 = vpop.f32.mrf.mxu0
      %v546 = vpop.f32.mrf.mxu0
      %v547 = vpop.f32.mrf.mxu0
      %548 = vdwg.mxu0
      %vm549 = vcmp.ge.f32.partialorder %v544, 0.0
      %v550 = vmul.f32 %v544, 0.01
      %v551 = vsel %vm549, %v544, %v550
      %v552 = vld [vmem:[%s7] sm:$0x1]
      %v554 = vlaneseq
      %v555 = vshrl.u32 %v554, 7
      %v556 = vsub.s32 0, %v555
      %v557 = vrot.slane %v552, %v556
      %v559 = vmul.f32 %v551, %v557
      %vm560 = vcmask 257024
      %v561 = vsel %vm560, %v559, 0.0
      %562 = vadd.xlane.f32.xlu0 %v561
      %v563 = vpop.xlane.xlu0 %562
      %v564 = vld [vmem:[#allocation2] sm:$0x1]
      %v566 = vlaneseq
      %v567 = vshrl.u32 %v566, 7
      %v568 = vsub.s32 0, %v567
      %v569 = vrot.slane %v564, %v568
      %v571 = vadd.f32 %v563, %v569
      %vm572 = vcmask 3072
      %573 = vst.msk [vmem:[%s357] sm:$0xf] %vm572, %v571
      %p574 = scmp.lt.s32.totalorder %s22, 1
      %s575 = scalar_select %p574, %s22, 1
      %s576 = smul.addr %s575, 4
      %s577 = scalar_lea.vmem %s9, %s576
      // Predicated region
      $region57: #{predict_model_forward.15} parent=55 // pred_check
        %p578 = pneg %p244
      $region58: #{predict_model_forward.15} parent=55 // pred_check_branch
        %580 = sbr.rel (%p578) target = $region60
      $region59: #{predict_model_forward.15} parent=55 // pred_region
        _
      $region60: #{predict_model_forward.15} parent=55 // pred_fallthru
        _
    $region56: #{predict_model_forward.15} parent=5 // pred_fallthru
      _
    %p581 = scmp.le.s32.totalorder 2, %s17
    // Predicated region
    $region61: #{predict_model_forward.15} parent=5 // pred_check
      %p582 = pneg %p581
    $region62: #{predict_model_forward.15} parent=5 // pred_check_branch
      %584 = sbr.rel (%p582) target = $region64
    $region63: #{predict_model_forward.15} parent=5 // pred_region
      %s585 = ssub.s32 %s17, 2
      // Predicated region
      $region65: #{predict_model_forward.15} parent=63 // pred_check
        %p586 = pneg %p250
      $region66: #{predict_model_forward.15} parent=63 // pred_check_branch
        %588 = sbr.rel (%p586) target = $region68
      $region67: #{predict_model_forward.15} parent=63 // pred_region
        %p589 = scmp.lt.s32.totalorder %s23, 1
        %s590 = scalar_select %p589, %s23, 1
        %s591 = smul.addr %s590, 4
        %s592 = scalar_lea.vmem %s9, %s591
      $region68: #{predict_model_forward.15} parent=63 // pred_fallthru
        _
    $region64: #{predict_model_forward.15} parent=5 // pred_fallthru
      _
  $region6: #{predict_model_forward.15} parent=0 // loop_footer
    %s21 = sadd.s32 1, %s17
  $region7: #{predict_model_forward.15} parent=0 // loop_footer_branch
    %16 = sbr.rel target = $region3
  $region8: #{predict_model_forward.15} parent=0 // loop_exit
    _

</llo_original>
